<compile_context>
chip_gen: v5e
topology: v5e:2x2
jax: 0.10.0
libtpu: 0.0.40
codegen_flags: <defaults>
</compile_context>

<pallas_src>
import numpy as np
import jax
import jax.numpy as jnp
from jax import lax
from jax.experimental import pallas as pl
from jax.experimental.pallas import tpu as pltpu

BN_EPS = 1e-5
CPAD = 128            # lane-padded channel width for conv weights / activations


def _rup8(x):
    return ((x + 7) // 8) * 8


def rnet_forward(x, kp):
    """x: (N, 3, 24, 24) float32 NCHW; kp: packed params from pack_params()."""
    N, Cin, H, W = x.shape
    assert (Cin, H, W) == (3, 24, 24), "RNet expects 3x24x24 inputs"

    # dense raster geometry (row = n*P + h*W + w) per stage
    W0, P0 = 24, 24 * 24          # conv1 output raster
    W1, P1 = 11, 11 * 11          # pool1 / conv2 raster
    W2, P2 = 4, 4 * 4             # pool2 / conv3 raster
    R0, R1, R2 = N * P0, N * P1, N * P2
    R0P = _rup8(R0 + 2 * W0 + 2)  # headroom for pool1 taps
    R1P = _rup8(R1 + 2 * W1 + 2)  # headroom for conv2 / pool2 taps
    R2P = _rup8(R2 + 1 * W2 + 1)  # headroom for conv3 taps
    counts = (float(N * 24 * 24), float(N * 9 * 9), float(N * 3 * 3))

    # ---- host prep: conv1 im2col (pad=1), channels-last, 27 taps -> 32 lanes --
    xp = jnp.pad(x, ((0, 0), (0, 0), (1, 1), (1, 1)))          # (N,3,26,26)
    xp = xp.transpose(0, 2, 3, 1)                              # (N,26,26,3)
    patches = [xp[:, kh:kh + 24, kw:kw + 24, :]
               for kh in range(3) for kw in range(3)]
    xr = jnp.concatenate(patches, axis=-1)                     # (N,24,24,27)
    xr = jnp.pad(xr, ((0, 0), (0, 0), (0, 0), (0, 5)))         # 27 -> 32 lanes
    xr = xr.reshape(R0, 32).astype(jnp.bfloat16)               # cast once (host)

    # row-validity masks (only needed for BN stats of conv2 / conv3)
    q1 = np.arange(R1) % P1
    m2 = (((q1 // W1) <= 8) & ((q1 % W1) <= 8)).astype(np.float32).reshape(R1, 1)
    q2 = np.arange(R2) % P2
    m3 = (((q2 // W2) <= 2) & ((q2 % W2) <= 2)).astype(np.float32).reshape(R2, 1)
    m2, m3 = jnp.asarray(m2), jnp.asarray(m3)

    bf16, f32 = jnp.bfloat16, jnp.float32

    def kernel(x_ref, m2_ref, m3_ref, w1_ref, w2_ref, w3_ref, bn_ref,
               wfa_ref, bfa_ref, wfb1_ref, bfb1_ref, wfb2_ref, bfb2_ref,
               cls_ref, box_ref,
               a1_ref, pd1_ref, p1c_ref, a2_ref, pd2_ref, p2c_ref, a3_ref):

        def bn_relu(acc, layer, mask, count):
            # training-mode BatchNorm (single-pass biased stats on valid rows) + ReLU
            gamma = bn_ref[pl.ds(2 * layer, 1), :]
            beta = bn_ref[pl.ds(2 * layer + 1, 1), :]
            xm = acc if mask is None else acc * mask
            inv_n = 1.0 / count
            mean = jnp.sum(xm, axis=0, keepdims=True) * inv_n
            ex2 = jnp.sum(xm * xm, axis=0, keepdims=True) * inv_n
            var = jnp.maximum(ex2 - mean * mean, 0.0)
            out = (acc - mean) * lax.rsqrt(var + BN_EPS) * gamma + beta
            return jnp.maximum(out, 0.0)

        def conv_taps(src_ref, w_ref, ksize, width, rows):
            # out[r] = sum_t src[r + kh*width + kw] @ W_t   (dense raster, dil=1)
            acc = jnp.zeros((rows, CPAD), f32)
            for kh in range(ksize):
                for kw in range(ksize):
                    t = kh * ksize + kw
                    lhs = src_ref[pl.ds(kh * width + kw, rows), :].astype(bf16)
                    rhs = w_ref[pl.ds(t * CPAD, CPAD), :]
                    acc = acc + jnp.dot(lhs, rhs, preferred_element_type=f32)
            return acc

        def pool_dense(src_ref, width, rows):
            # 3x3 max over shifted views; the stride-2 selection happens in compaction
            out = src_ref[pl.ds(0, rows), :]
            for i in range(3):
                for j in range(3):
                    if i or j:
                        out = jnp.maximum(out, src_ref[pl.ds(i * width + j, rows), :])
            return out

        def store_zt(dst_ref, val, rows, rows_pad):
            # store + keep tail rows zero (tails are read by shifted taps and must
            # stay finite/zero so masked BN stats are not poisoned)
            dst_ref[pl.ds(0, rows), :] = val
            if rows_pad > rows:
                dst_ref[pl.ds(rows, rows_pad - rows), :] = jnp.zeros(
                    (rows_pad - rows, CPAD), f32)

        # ---- conv1 (im2col, single K=32 matmul) + BN + ReLU --------------------
        a1 = jnp.dot(x_ref[...], w1_ref[...], preferred_element_type=f32)
        store_zt(a1_ref, bn_relu(a1, 0, None, counts[0]), R0, R0P)

        # ---- pool1 (3x3 / stride 2): dense max, then compact to 11-wide raster --
        pd1_ref[pl.ds(0, R0), :] = pool_dense(a1_ref, W0, R0)
        for n_i in range(N):
            for h in range(W1):
                src = pd1_ref[pl.ds(n_i * P0 + 2 * h * W0, W1, stride=2), :]
                p1c_ref[pl.ds(n_i * P1 + h * W1, W1), :] = src
        p1c_ref[pl.ds(R1, R1P - R1), :] = jnp.zeros((R1P - R1, CPAD), f32)

        # ---- conv2 (28->48, k3, no pad) + BN + ReLU -----------------------------
        a2 = conv_taps(p1c_ref, w2_ref, 3, W1, R1)
        store_zt(a2_ref, bn_relu(a2, 1, m2_ref[...], counts[1]), R1, R1P)

        # ---- pool2 (3x3 / stride 2): dense max, then compact to 4-wide raster ---
        pd2_ref[pl.ds(0, R1), :] = pool_dense(a2_ref, W1, R1)
        for n_i in range(N):
            for h in range(W2):
                src = pd2_ref[pl.ds(n_i * P1 + 2 * h * W1, W2, stride=2), :]
                p2c_ref[pl.ds(n_i * P2 + h * W2, W2), :] = src
        p2c_ref[pl.ds(R2, R2P - R2), :] = jnp.zeros((R2P - R2, CPAD), f32)

        # ---- conv3 (48->64, k2) + BN + ReLU -------------------------------------
        a3 = conv_taps(p2c_ref, w3_ref, 2, W2, R2)
        a3_ref[pl.ds(0, R2), :] = bn_relu(a3, 2, m3_ref[...], counts[2])

        # ---- FC heads: merged 576 -> 128|128, batched over N via strided gather --
        hacc = jnp.zeros((N, 256), f32)
        for s in range(9):
            h4, w4 = s // 3, s % 3
            feat = a3_ref[pl.ds(h4 * W2 + w4, N, stride=P2), :].astype(bf16)
            hacc = hacc + jnp.dot(feat, wfa_ref[pl.ds(s * CPAD, CPAD), :],
                                  preferred_element_type=f32)
        h_all = jnp.maximum(hacc + bfa_ref[...], 0.0)
        h1 = h_all[:, 0:128].astype(bf16)
        h2 = h_all[:, 128:256].astype(bf16)
        logit = jnp.dot(h1, wfb1_ref[...], preferred_element_type=f32) + bfb1_ref[...]
        cls_ref[...] = 1.0 / (1.0 + jnp.exp(-logit))               # torch.sigmoid
        box_ref[...] = (jnp.dot(h2, wfb2_ref[...], preferred_element_type=f32)
                        + bfb2_ref[...])

    full = lambda shp: pl.BlockSpec(shp, lambda i: (0,) * len(shp))
    args = (xr, m2, m3, kp['w1'], kp['w2'], kp['w3'], kp['bn'], kp['wfa'],
            kp['bfa'], kp['wfb1'], kp['bfb1'], kp['wfb2'], kp['bfb2'])

    # NOTE: at N=2 with whole-batch BN statistics a single grid step is both
    # correct and fastest; for large batched v7x workloads add a "parallel"
    # batch grid axis (needs per-sub-batch or folded BN) and rotate scratch.
    return pl.pallas_call(
        kernel,
        out_shape=(jax.ShapeDtypeStruct((N, 1), jnp.float32),
                   jax.ShapeDtypeStruct((N, 4), jnp.float32)),
        grid=(1,),
        in_specs=[full(a.shape) for a in args],
        out_specs=(full((N, 1)), full((N, 4))),
        scratch_shapes=[
            pltpu.VMEM((R0P, CPAD), jnp.float32),   # a1 : conv1 out (BN+ReLU)
            pltpu.VMEM((R0, CPAD), jnp.float32),    # pd1: pool1 dense
            pltpu.VMEM((R1P, CPAD), jnp.float32),   # p1c: pool1 compacted (conv2 in)
            pltpu.VMEM((R1P, CPAD), jnp.float32),   # a2 : conv2 out (BN+ReLU)
            pltpu.VMEM((R1P, CPAD), jnp.float32),   # pd2: pool2 dense
            pltpu.VMEM((R2P, CPAD), jnp.float32),   # p2c: pool2 compacted (conv3 in)
            pltpu.VMEM((R2P, CPAD), jnp.float32),   # a3 : conv3 out (BN+ReLU)
        ],
        compiler_params=pltpu.CompilerParams(
            dimension_semantics=("arbitrary",),
            vmem_limit_bytes=32 * 1024 * 1024),
    )(*args)


def init_params(key):
    ks = jax.random.split(key, 17)
    n = lambda k, shape, s: jax.random.normal(k, shape, jnp.float32) * s
    p = {}
    p['w1'] = n(ks[0], (3, 3, 3, 28), 0.2)        # (kh, kw, cin, cout)
    p['w2'] = n(ks[1], (3, 3, 28, 48), 0.1)
    p['w3'] = n(ks[2], (2, 2, 48, 64), 0.1)
    p['g1'] = 1.0 + n(ks[3], (28,), 0.1); p['b1'] = n(ks[4], (28,), 0.1)
    p['g2'] = 1.0 + n(ks[5], (48,), 0.1); p['b2'] = n(ks[6], (48,), 0.1)
    p['g3'] = 1.0 + n(ks[7], (64,), 0.1); p['b3'] = n(ks[8], (64,), 0.1)
    # FC first-layer weights: row order (h3, w3, c) -- the kernel's flatten order.
    # (Torch's reshape(-1, 64*3*3) orders rows (c, h3, w3); to load torch weights
    #  permute rows: kernel_row[(h*3+w)*64+c] = torch_row[c*9+h*3+w].)
    p['w_fc1a'] = n(ks[9], (576, 128), 0.05); p['b_fc1a'] = n(ks[10], (128,), 0.05)
    p['w_fc1b'] = n(ks[11], (128, 1), 0.05);  p['b_fc1b'] = n(ks[12], (1,), 0.05)
    p['w_fc2a'] = n(ks[13], (576, 128), 0.05); p['b_fc2a'] = n(ks[14], (128,), 0.05)
    p['w_fc2b'] = n(ks[15], (128, 4), 0.05);  p['b_fc2b'] = n(ks[16], (4,), 0.05)
    return p


def pack_params(p):
    """Repack dense parameters into the kernel's lane-padded (x128) layouts."""
    f32, bf16 = jnp.float32, jnp.bfloat16

    # conv1 in im2col layout: row = (kh*3+kw)*3 + cin (27 -> 32), col = cout
    w1 = jnp.zeros((32, CPAD), f32)
    for kh in range(3):
        for kw in range(3):
            t = kh * 3 + kw
            w1 = w1.at[t * 3:t * 3 + 3, :28].set(p['w1'][kh, kw])
    # conv2 / conv3 as per-tap (128 x 128) blocks (cin lane-padded)
    w2 = jnp.zeros((9 * CPAD, CPAD), f32)
    for kh in range(3):
        for kw in range(3):
            t = kh * 3 + kw
            w2 = w2.at[t * CPAD:t * CPAD + 28, :48].set(p['w2'][kh, kw])
    w3 = jnp.zeros((4 * CPAD, CPAD), f32)
    for kh in range(2):
        for kw in range(2):
            t = kh * 2 + kw
            w3 = w3.at[t * CPAD:t * CPAD + 48, :64].set(p['w3'][kh, kw])

    bn = jnp.zeros((6, CPAD), f32)                # rows: g1,b1,g2,b2,g3,b3
    for i, (g, b) in enumerate((('g1', 'b1'), ('g2', 'b2'), ('g3', 'b3'))):
        bn = bn.at[2 * i, :p[g].shape[0]].set(p[g])
        bn = bn.at[2 * i + 1, :p[b].shape[0]].set(p[b])

    # merged first FC layer: one (128 x 256) block per conv3 spatial position;
    # rows = conv3 channel (64 zero-padded to 128), cols = [fc1 hidden | fc2 hidden]
    wfa = jnp.zeros((9 * CPAD, 256), f32)
    for s in range(9):
        wfa = wfa.at[s * CPAD:s * CPAD + 64, 0:128].set(p['w_fc1a'][s * 64:(s + 1) * 64])
        wfa = wfa.at[s * CPAD:s * CPAD + 64, 128:256].set(p['w_fc2a'][s * 64:(s + 1) * 64])
    bfa = jnp.concatenate([p['b_fc1a'], p['b_fc2a']]).reshape(1, 256)

    return {
        'w1': w1.astype(bf16), 'w2': w2.astype(bf16), 'w3': w3.astype(bf16),
        'bn': bn, 'wfa': wfa.astype(bf16), 'bfa': bfa,
        'wfb1': p['w_fc1b'].astype(bf16), 'bfb1': p['b_fc1b'].reshape(1, 1),
        'wfb2': p['w_fc2b'].astype(bf16), 'bfb2': p['b_fc2b'].reshape(1, 4),
    }


if __name__ == "__main__":
    key = jax.random.PRNGKey(0)
    k_x, k_p = jax.random.split(key)
    # RNet requires 24x24 inputs (the 64*3*3 flatten in the FC stage).
    x = jax.random.normal(k_x, (2, 3, 24, 24), jnp.float32)
    params = pack_params(init_params(k_p))
    cls, box = jax.jit(rnet_forward)(x, params)
    jax.block_until_ready((cls, box))
    assert cls.shape == (2, 1) and box.shape == (2, 4)
    assert bool(jnp.all(jnp.isfinite(cls))) and bool(jnp.all(jnp.isfinite(box)))
    assert bool(jnp.all((cls >= 0) & (cls <= 1)))
    print("KERNEL_OK")
</pallas_src>

<mosaic_0001>
module attributes {stable_mosaic.version = 11 : i64} {
  func.func @kernel(%arg0: i32, %arg1: memref<1152x32xbf16, #tpu.memory_space<vmem>>, %arg2: memref<242x1xf32, #tpu.memory_space<vmem>>, %arg3: memref<32x1xf32, #tpu.memory_space<vmem>>, %arg4: memref<32x128xbf16, #tpu.memory_space<vmem>>, %arg5: memref<1152x128xbf16, #tpu.memory_space<vmem>>, %arg6: memref<512x128xbf16, #tpu.memory_space<vmem>>, %arg7: memref<6x128xf32, #tpu.memory_space<vmem>>, %arg8: memref<1152x256xbf16, #tpu.memory_space<vmem>>, %arg9: memref<1x256xf32, #tpu.memory_space<vmem>>, %arg10: memref<128x1xbf16, #tpu.memory_space<vmem>>, %arg11: memref<1x1xf32, #tpu.memory_space<vmem>>, %arg12: memref<128x4xbf16, #tpu.memory_space<vmem>>, %arg13: memref<1x4xf32, #tpu.memory_space<vmem>>, %arg14: memref<2x1xf32, #tpu.memory_space<vmem>>, %arg15: memref<2x4xf32, #tpu.memory_space<vmem>>, %arg16: memref<1208x128xf32, #tpu.memory_space<vmem>>, %arg17: memref<1152x128xf32, #tpu.memory_space<vmem>>, %arg18: memref<272x128xf32, #tpu.memory_space<vmem>>, %arg19: memref<272x128xf32, #tpu.memory_space<vmem>>, %arg20: memref<272x128xf32, #tpu.memory_space<vmem>>, %arg21: memref<40x128xf32, #tpu.memory_space<vmem>>, %arg22: memref<40x128xf32, #tpu.memory_space<vmem>>) attributes {dimension_semantics = [#tpu.dimension_semantics<arbitrary>], iteration_bounds = array<i64: 1>, scalar_prefetch = 0 : i64, scratch_operands = 7 : i64, tpu.core_type = #tpu.core_type<tc>, window_params = [{pipeline_mode = #tpu.pipeline_mode<synchronous>, transform_indices = @transform_0, window_bounds = array<i64: 1152, 32>}, {pipeline_mode = #tpu.pipeline_mode<synchronous>, transform_indices = @transform_1, window_bounds = array<i64: 242, 1>}, {pipeline_mode = #tpu.pipeline_mode<synchronous>, transform_indices = @transform_2, window_bounds = array<i64: 32, 1>}, {pipeline_mode = #tpu.pipeline_mode<synchronous>, transform_indices = @transform_3, window_bounds = array<i64: 32, 128>}, {pipeline_mode = #tpu.pipeline_mode<synchronous>, transform_indices = @transform_4, window_bounds = array<i64: 1152, 128>}, {pipeline_mode = #tpu.pipeline_mode<synchronous>, transform_indices = @transform_5, window_bounds = array<i64: 512, 128>}, {pipeline_mode = #tpu.pipeline_mode<synchronous>, transform_indices = @transform_6, window_bounds = array<i64: 6, 128>}, {pipeline_mode = #tpu.pipeline_mode<synchronous>, transform_indices = @transform_7, window_bounds = array<i64: 1152, 256>}, {pipeline_mode = #tpu.pipeline_mode<synchronous>, transform_indices = @transform_8, window_bounds = array<i64: 1, 256>}, {pipeline_mode = #tpu.pipeline_mode<synchronous>, transform_indices = @transform_9, window_bounds = array<i64: 128, 1>}, {pipeline_mode = #tpu.pipeline_mode<synchronous>, transform_indices = @transform_10, window_bounds = array<i64: 1, 1>}, {pipeline_mode = #tpu.pipeline_mode<synchronous>, transform_indices = @transform_11, window_bounds = array<i64: 128, 4>}, {pipeline_mode = #tpu.pipeline_mode<synchronous>, transform_indices = @transform_12, window_bounds = array<i64: 1, 4>}, {pipeline_mode = #tpu.pipeline_mode<synchronous>, transform_indices = @transform_13, window_bounds = array<i64: 2, 1>}, {pipeline_mode = #tpu.pipeline_mode<synchronous>, transform_indices = @transform_14, window_bounds = array<i64: 2, 4>}]} {
    %c0 = arith.constant 0 : index
    %c0_0 = arith.constant 0 : index
    %0 = vector.load %arg1[%c0, %c0_0] : memref<1152x32xbf16, #tpu.memory_space<vmem>>, vector<1152x32xbf16>
    %c0_1 = arith.constant 0 : index
    %c0_2 = arith.constant 0 : index
    %1 = vector.load %arg4[%c0_1, %c0_2] : memref<32x128xbf16, #tpu.memory_space<vmem>>, vector<32x128xbf16>
    %cst = arith.constant dense<0.000000e+00> : vector<1152x128xf32>
    %2 = tpu.matmul %0, %1, %cst {dimension_numbers = #tpu.dot_dimension_numbers<[1], [0], [0], [1], [0, 0, 1, 1], [], []>} : vector<1152x32xbf16>, vector<32x128xbf16>, vector<1152x128xf32> -> vector<1152x128xf32>
    %c0_3 = arith.constant 0 : index
    %c0_4 = arith.constant 0 : index
    %3 = vector.load %arg7[%c0_3, %c0_4] : memref<6x128xf32, #tpu.memory_space<vmem>>, vector<1x128xf32>
    %c1 = arith.constant 1 : index
    %c0_5 = arith.constant 0 : index
    %4 = vector.load %arg7[%c1, %c0_5] : memref<6x128xf32, #tpu.memory_space<vmem>>, vector<1x128xf32>
    %cst_6 = arith.constant dense<0.000000e+00> : vector<128xf32>
    %5 = vector.multi_reduction <add>, %2, %cst_6 [0] : vector<1152x128xf32> to vector<128xf32>
    %6 = vector.shape_cast %5 : vector<128xf32> to vector<1x128xf32>
    %cst_7 = arith.constant 8.68055562E-4 : f32
    %7 = vector.broadcast %cst_7 : f32 to vector<1x128xf32>
    %8 = arith.mulf %6, %7 : vector<1x128xf32>
    %9 = arith.mulf %2, %2 : vector<1152x128xf32>
    %cst_8 = arith.constant dense<0.000000e+00> : vector<128xf32>
    %10 = vector.multi_reduction <add>, %9, %cst_8 [0] : vector<1152x128xf32> to vector<128xf32>
    %11 = vector.shape_cast %10 : vector<128xf32> to vector<1x128xf32>
    %cst_9 = arith.constant 8.68055562E-4 : f32
    %12 = vector.broadcast %cst_9 : f32 to vector<1x128xf32>
    %13 = arith.mulf %11, %12 : vector<1x128xf32>
    %14 = arith.mulf %8, %8 : vector<1x128xf32>
    %15 = arith.subf %13, %14 : vector<1x128xf32>
    %cst_10 = arith.constant 0.000000e+00 : f32
    %16 = vector.broadcast %cst_10 : f32 to vector<1x128xf32>
    %17 = arith.maximumf %15, %16 : vector<1x128xf32>
    %18 = vector.broadcast %8 : vector<1x128xf32> to vector<1152x128xf32>
    %19 = arith.subf %2, %18 : vector<1152x128xf32>
    %cst_11 = arith.constant 9.99999974E-6 : f32
    %20 = vector.broadcast %cst_11 : f32 to vector<1x128xf32>
    %21 = arith.addf %17, %20 : vector<1x128xf32>
    %22 = math.rsqrt %21 : vector<1x128xf32>
    %23 = vector.broadcast %22 : vector<1x128xf32> to vector<1152x128xf32>
    %24 = arith.mulf %19, %23 : vector<1152x128xf32>
    %25 = vector.broadcast %3 : vector<1x128xf32> to vector<1152x128xf32>
    %26 = arith.mulf %24, %25 : vector<1152x128xf32>
    %27 = vector.broadcast %4 : vector<1x128xf32> to vector<1152x128xf32>
    %28 = arith.addf %26, %27 : vector<1152x128xf32>
    %cst_12 = arith.constant 0.000000e+00 : f32
    %29 = vector.broadcast %cst_12 : f32 to vector<1152x128xf32>
    %30 = arith.maximumf %28, %29 : vector<1152x128xf32>
    %c0_13 = arith.constant 0 : index
    %c0_14 = arith.constant 0 : index
    %31 = vector.load %arg16[%c0_13, %c0_14] : memref<1208x128xf32, #tpu.memory_space<vmem>>, vector<1152x128xf32>
    tpu.vector_store %arg16[%c0_13, %c0_14], %30 {strides = array<i32>} : memref<1208x128xf32, #tpu.memory_space<vmem>>, vector<1152x128xf32>,
    %cst_15 = arith.constant 0.000000e+00 : f32
    %32 = vector.broadcast %cst_15 : f32 to vector<56x128xf32>
    %c1152 = arith.constant 1152 : index
    %c0_16 = arith.constant 0 : index
    %33 = vector.load %arg16[%c1152, %c0_16] : memref<1208x128xf32, #tpu.memory_space<vmem>>, vector<56x128xf32>
    tpu.vector_store %arg16[%c1152, %c0_16], %32 {strides = array<i32>} : memref<1208x128xf32, #tpu.memory_space<vmem>>, vector<56x128xf32>,
    %c0_17 = arith.constant 0 : index
    %c0_18 = arith.constant 0 : index
    %34 = vector.load %arg16[%c0_17, %c0_18] : memref<1208x128xf32, #tpu.memory_space<vmem>>, vector<1152x128xf32>
    %c1_19 = arith.constant 1 : index
    %c0_20 = arith.constant 0 : index
    %35 = vector.load %arg16[%c1_19, %c0_20] : memref<1208x128xf32, #tpu.memory_space<vmem>>, vector<1152x128xf32>
    %36 = arith.maximumf %34, %35 : vector<1152x128xf32>
    %c2 = arith.constant 2 : index
    %c0_21 = arith.constant 0 : index
    %37 = vector.load %arg16[%c2, %c0_21] : memref<1208x128xf32, #tpu.memory_space<vmem>>, vector<1152x128xf32>
    %38 = arith.maximumf %36, %37 : vector<1152x128xf32>
    %c24 = arith.constant 24 : index
    %c0_22 = arith.constant 0 : index
    %39 = vector.load %arg16[%c24, %c0_22] : memref<1208x128xf32, #tpu.memory_space<vmem>>, vector<1152x128xf32>
    %40 = arith.maximumf %38, %39 : vector<1152x128xf32>
    %c25 = arith.constant 25 : index
    %c0_23 = arith.constant 0 : index
    %41 = vector.load %arg16[%c25, %c0_23] : memref<1208x128xf32, #tpu.memory_space<vmem>>, vector<1152x128xf32>
    %42 = arith.maximumf %40, %41 : vector<1152x128xf32>
    %c26 = arith.constant 26 : index
    %c0_24 = arith.constant 0 : index
    %43 = vector.load %arg16[%c26, %c0_24] : memref<1208x128xf32, #tpu.memory_space<vmem>>, vector<1152x128xf32>
    %44 = arith.maximumf %42, %43 : vector<1152x128xf32>
    %c48 = arith.constant 48 : index
    %c0_25 = arith.constant 0 : index
    %45 = vector.load %arg16[%c48, %c0_25] : memref<1208x128xf32, #tpu.memory_space<vmem>>, vector<1152x128xf32>
    %46 = arith.maximumf %44, %45 : vector<1152x128xf32>
    %c49 = arith.constant 49 : index
    %c0_26 = arith.constant 0 : index
    %47 = vector.load %arg16[%c49, %c0_26] : memref<1208x128xf32, #tpu.memory_space<vmem>>, vector<1152x128xf32>
    %48 = arith.maximumf %46, %47 : vector<1152x128xf32>
    %c50 = arith.constant 50 : index
    %c0_27 = arith.constant 0 : index
    %49 = vector.load %arg16[%c50, %c0_27] : memref<1208x128xf32, #tpu.memory_space<vmem>>, vector<1152x128xf32>
    %50 = arith.maximumf %48, %49 : vector<1152x128xf32>
    %c0_28 = arith.constant 0 : index
    %c0_29 = arith.constant 0 : index
    %51 = vector.load %arg17[%c0_28, %c0_29] : memref<1152x128xf32, #tpu.memory_space<vmem>>, vector<1152x128xf32>
    tpu.vector_store %arg17[%c0_28, %c0_29], %50 {strides = array<i32>} : memref<1152x128xf32, #tpu.memory_space<vmem>>, vector<1152x128xf32>,
    %c0_30 = arith.constant 0 : index
    %c0_31 = arith.constant 0 : index
    %52 = tpu.strided_load %arg17[%c0_30, %c0_31] {strides = array<i32: 2, 1>} : memref<1152x128xf32, #tpu.memory_space<vmem>>, vector<11x128xf32>
    %c0_32 = arith.constant 0 : index
    %c0_33 = arith.constant 0 : index
    %53 = vector.load %arg18[%c0_32, %c0_33] : memref<272x128xf32, #tpu.memory_space<vmem>>, vector<11x128xf32>
    tpu.vector_store %arg18[%c0_32, %c0_33], %52 {strides = array<i32>} : memref<272x128xf32, #tpu.memory_space<vmem>>, vector<11x128xf32>,
    %c48_34 = arith.constant 48 : index
    %c0_35 = arith.constant 0 : index
    %54 = tpu.strided_load %arg17[%c48_34, %c0_35] {strides = array<i32: 2, 1>} : memref<1152x128xf32, #tpu.memory_space<vmem>>, vector<11x128xf32>
    %c11 = arith.constant 11 : index
    %c0_36 = arith.constant 0 : index
    %55 = vector.load %arg18[%c11, %c0_36] : memref<272x128xf32, #tpu.memory_space<vmem>>, vector<11x128xf32>
    tpu.vector_store %arg18[%c11, %c0_36], %54 {strides = array<i32>} : memref<272x128xf32, #tpu.memory_space<vmem>>, vector<11x128xf32>,
    %c96 = arith.constant 96 : index
    %c0_37 = arith.constant 0 : index
    %56 = tpu.strided_load %arg17[%c96, %c0_37] {strides = array<i32: 2, 1>} : memref<1152x128xf32, #tpu.memory_space<vmem>>, vector<11x128xf32>
    %c22 = arith.constant 22 : index
    %c0_38 = arith.constant 0 : index
    %57 = vector.load %arg18[%c22, %c0_38] : memref<272x128xf32, #tpu.memory_space<vmem>>, vector<11x128xf32>
    tpu.vector_store %arg18[%c22, %c0_38], %56 {strides = array<i32>} : memref<272x128xf32, #tpu.memory_space<vmem>>, vector<11x128xf32>,
    %c144 = arith.constant 144 : index
    %c0_39 = arith.constant 0 : index
    %58 = tpu.strided_load %arg17[%c144, %c0_39] {strides = array<i32: 2, 1>} : memref<1152x128xf32, #tpu.memory_space<vmem>>, vector<11x128xf32>
    %c33 = arith.constant 33 : index
    %c0_40 = arith.constant 0 : index
    %59 = vector.load %arg18[%c33, %c0_40] : memref<272x128xf32, #tpu.memory_space<vmem>>, vector<11x128xf32>
    tpu.vector_store %arg18[%c33, %c0_40], %58 {strides = array<i32>} : memref<272x128xf32, #tpu.memory_space<vmem>>, vector<11x128xf32>,
    %c192 = arith.constant 192 : index
    %c0_41 = arith.constant 0 : index
    %60 = tpu.strided_load %arg17[%c192, %c0_41] {strides = array<i32: 2, 1>} : memref<1152x128xf32, #tpu.memory_space<vmem>>, vector<11x128xf32>
    %c44 = arith.constant 44 : index
    %c0_42 = arith.constant 0 : index
    %61 = vector.load %arg18[%c44, %c0_42] : memref<272x128xf32, #tpu.memory_space<vmem>>, vector<11x128xf32>
    tpu.vector_store %arg18[%c44, %c0_42], %60 {strides = array<i32>} : memref<272x128xf32, #tpu.memory_space<vmem>>, vector<11x128xf32>,
    %c240 = arith.constant 240 : index
    %c0_43 = arith.constant 0 : index
    %62 = tpu.strided_load %arg17[%c240, %c0_43] {strides = array<i32: 2, 1>} : memref<1152x128xf32, #tpu.memory_space<vmem>>, vector<11x128xf32>
    %c55 = arith.constant 55 : index
    %c0_44 = arith.constant 0 : index
    %63 = vector.load %arg18[%c55, %c0_44] : memref<272x128xf32, #tpu.memory_space<vmem>>, vector<11x128xf32>
    tpu.vector_store %arg18[%c55, %c0_44], %62 {strides = array<i32>} : memref<272x128xf32, #tpu.memory_space<vmem>>, vector<11x128xf32>,
    %c288 = arith.constant 288 : index
    %c0_45 = arith.constant 0 : index
    %64 = tpu.strided_load %arg17[%c288, %c0_45] {strides = array<i32: 2, 1>} : memref<1152x128xf32, #tpu.memory_space<vmem>>, vector<11x128xf32>
    %c66 = arith.constant 66 : index
    %c0_46 = arith.constant 0 : index
    %65 = vector.load %arg18[%c66, %c0_46] : memref<272x128xf32, #tpu.memory_space<vmem>>, vector<11x128xf32>
    tpu.vector_store %arg18[%c66, %c0_46], %64 {strides = array<i32>} : memref<272x128xf32, #tpu.memory_space<vmem>>, vector<11x128xf32>,
    %c336 = arith.constant 336 : index
    %c0_47 = arith.constant 0 : index
    %66 = tpu.strided_load %arg17[%c336, %c0_47] {strides = array<i32: 2, 1>} : memref<1152x128xf32, #tpu.memory_space<vmem>>, vector<11x128xf32>
    %c77 = arith.constant 77 : index
    %c0_48 = arith.constant 0 : index
    %67 = vector.load %arg18[%c77, %c0_48] : memref<272x128xf32, #tpu.memory_space<vmem>>, vector<11x128xf32>
    tpu.vector_store %arg18[%c77, %c0_48], %66 {strides = array<i32>} : memref<272x128xf32, #tpu.memory_space<vmem>>, vector<11x128xf32>,
    %c384 = arith.constant 384 : index
    %c0_49 = arith.constant 0 : index
    %68 = tpu.strided_load %arg17[%c384, %c0_49] {strides = array<i32: 2, 1>} : memref<1152x128xf32, #tpu.memory_space<vmem>>, vector<11x128xf32>
    %c88 = arith.constant 88 : index
    %c0_50 = arith.constant 0 : index
    %69 = vector.load %arg18[%c88, %c0_50] : memref<272x128xf32, #tpu.memory_space<vmem>>, vector<11x128xf32>
    tpu.vector_store %arg18[%c88, %c0_50], %68 {strides = array<i32>} : memref<272x128xf32, #tpu.memory_space<vmem>>, vector<11x128xf32>,
    %c432 = arith.constant 432 : index
    %c0_51 = arith.constant 0 : index
    %70 = tpu.strided_load %arg17[%c432, %c0_51] {strides = array<i32: 2, 1>} : memref<1152x128xf32, #tpu.memory_space<vmem>>, vector<11x128xf32>
    %c99 = arith.constant 99 : index
    %c0_52 = arith.constant 0 : index
    %71 = vector.load %arg18[%c99, %c0_52] : memref<272x128xf32, #tpu.memory_space<vmem>>, vector<11x128xf32>
    tpu.vector_store %arg18[%c99, %c0_52], %70 {strides = array<i32>} : memref<272x128xf32, #tpu.memory_space<vmem>>, vector<11x128xf32>,
    %c480 = arith.constant 480 : index
    %c0_53 = arith.constant 0 : index
    %72 = tpu.strided_load %arg17[%c480, %c0_53] {strides = array<i32: 2, 1>} : memref<1152x128xf32, #tpu.memory_space<vmem>>, vector<11x128xf32>
    %c110 = arith.constant 110 : index
    %c0_54 = arith.constant 0 : index
    %73 = vector.load %arg18[%c110, %c0_54] : memref<272x128xf32, #tpu.memory_space<vmem>>, vector<11x128xf32>
    tpu.vector_store %arg18[%c110, %c0_54], %72 {strides = array<i32>} : memref<272x128xf32, #tpu.memory_space<vmem>>, vector<11x128xf32>,
    %c576 = arith.constant 576 : index
    %c0_55 = arith.constant 0 : index
    %74 = tpu.strided_load %arg17[%c576, %c0_55] {strides = array<i32: 2, 1>} : memref<1152x128xf32, #tpu.memory_space<vmem>>, vector<11x128xf32>
    %c121 = arith.constant 121 : index
    %c0_56 = arith.constant 0 : index
    %75 = vector.load %arg18[%c121, %c0_56] : memref<272x128xf32, #tpu.memory_space<vmem>>, vector<11x128xf32>
    tpu.vector_store %arg18[%c121, %c0_56], %74 {strides = array<i32>} : memref<272x128xf32, #tpu.memory_space<vmem>>, vector<11x128xf32>,
    %c624 = arith.constant 624 : index
    %c0_57 = arith.constant 0 : index
    %76 = tpu.strided_load %arg17[%c624, %c0_57] {strides = array<i32: 2, 1>} : memref<1152x128xf32, #tpu.memory_space<vmem>>, vector<11x128xf32>
    %c132 = arith.constant 132 : index
    %c0_58 = arith.constant 0 : index
    %77 = vector.load %arg18[%c132, %c0_58] : memref<272x128xf32, #tpu.memory_space<vmem>>, vector<11x128xf32>
    tpu.vector_store %arg18[%c132, %c0_58], %76 {strides = array<i32>} : memref<272x128xf32, #tpu.memory_space<vmem>>, vector<11x128xf32>,
    %c672 = arith.constant 672 : index
    %c0_59 = arith.constant 0 : index
    %78 = tpu.strided_load %arg17[%c672, %c0_59] {strides = array<i32: 2, 1>} : memref<1152x128xf32, #tpu.memory_space<vmem>>, vector<11x128xf32>
    %c143 = arith.constant 143 : index
    %c0_60 = arith.constant 0 : index
    %79 = vector.load %arg18[%c143, %c0_60] : memref<272x128xf32, #tpu.memory_space<vmem>>, vector<11x128xf32>
    tpu.vector_store %arg18[%c143, %c0_60], %78 {strides = array<i32>} : memref<272x128xf32, #tpu.memory_space<vmem>>, vector<11x128xf32>,
    %c720 = arith.constant 720 : index
    %c0_61 = arith.constant 0 : index
    %80 = tpu.strided_load %arg17[%c720, %c0_61] {strides = array<i32: 2, 1>} : memref<1152x128xf32, #tpu.memory_space<vmem>>, vector<11x128xf32>
    %c154 = arith.constant 154 : index
    %c0_62 = arith.constant 0 : index
    %81 = vector.load %arg18[%c154, %c0_62] : memref<272x128xf32, #tpu.memory_space<vmem>>, vector<11x128xf32>
    tpu.vector_store %arg18[%c154, %c0_62], %80 {strides = array<i32>} : memref<272x128xf32, #tpu.memory_space<vmem>>, vector<11x128xf32>,
    %c768 = arith.constant 768 : index
    %c0_63 = arith.constant 0 : index
    %82 = tpu.strided_load %arg17[%c768, %c0_63] {strides = array<i32: 2, 1>} : memref<1152x128xf32, #tpu.memory_space<vmem>>, vector<11x128xf32>
    %c165 = arith.constant 165 : index
    %c0_64 = arith.constant 0 : index
    %83 = vector.load %arg18[%c165, %c0_64] : memref<272x128xf32, #tpu.memory_space<vmem>>, vector<11x128xf32>
    tpu.vector_store %arg18[%c165, %c0_64], %82 {strides = array<i32>} : memref<272x128xf32, #tpu.memory_space<vmem>>, vector<11x128xf32>,
    %c816 = arith.constant 816 : index
    %c0_65 = arith.constant 0 : index
    %84 = tpu.strided_load %arg17[%c816, %c0_65] {strides = array<i32: 2, 1>} : memref<1152x128xf32, #tpu.memory_space<vmem>>, vector<11x128xf32>
    %c176 = arith.constant 176 : index
    %c0_66 = arith.constant 0 : index
    %85 = vector.load %arg18[%c176, %c0_66] : memref<272x128xf32, #tpu.memory_space<vmem>>, vector<11x128xf32>
    tpu.vector_store %arg18[%c176, %c0_66], %84 {strides = array<i32>} : memref<272x128xf32, #tpu.memory_space<vmem>>, vector<11x128xf32>,
    %c864 = arith.constant 864 : index
    %c0_67 = arith.constant 0 : index
    %86 = tpu.strided_load %arg17[%c864, %c0_67] {strides = array<i32: 2, 1>} : memref<1152x128xf32, #tpu.memory_space<vmem>>, vector<11x128xf32>
    %c187 = arith.constant 187 : index
    %c0_68 = arith.constant 0 : index
    %87 = vector.load %arg18[%c187, %c0_68] : memref<272x128xf32, #tpu.memory_space<vmem>>, vector<11x128xf32>
    tpu.vector_store %arg18[%c187, %c0_68], %86 {strides = array<i32>} : memref<272x128xf32, #tpu.memory_space<vmem>>, vector<11x128xf32>,
    %c912 = arith.constant 912 : index
    %c0_69 = arith.constant 0 : index
    %88 = tpu.strided_load %arg17[%c912, %c0_69] {strides = array<i32: 2, 1>} : memref<1152x128xf32, #tpu.memory_space<vmem>>, vector<11x128xf32>
    %c198 = arith.constant 198 : index
    %c0_70 = arith.constant 0 : index
    %89 = vector.load %arg18[%c198, %c0_70] : memref<272x128xf32, #tpu.memory_space<vmem>>, vector<11x128xf32>
    tpu.vector_store %arg18[%c198, %c0_70], %88 {strides = array<i32>} : memref<272x128xf32, #tpu.memory_space<vmem>>, vector<11x128xf32>,
    %c960 = arith.constant 960 : index
    %c0_71 = arith.constant 0 : index
    %90 = tpu.strided_load %arg17[%c960, %c0_71] {strides = array<i32: 2, 1>} : memref<1152x128xf32, #tpu.memory_space<vmem>>, vector<11x128xf32>
    %c209 = arith.constant 209 : index
    %c0_72 = arith.constant 0 : index
    %91 = vector.load %arg18[%c209, %c0_72] : memref<272x128xf32, #tpu.memory_space<vmem>>, vector<11x128xf32>
    tpu.vector_store %arg18[%c209, %c0_72], %90 {strides = array<i32>} : memref<272x128xf32, #tpu.memory_space<vmem>>, vector<11x128xf32>,
    %c1008 = arith.constant 1008 : index
    %c0_73 = arith.constant 0 : index
    %92 = tpu.strided_load %arg17[%c1008, %c0_73] {strides = array<i32: 2, 1>} : memref<1152x128xf32, #tpu.memory_space<vmem>>, vector<11x128xf32>
    %c220 = arith.constant 220 : index
    %c0_74 = arith.constant 0 : index
    %93 = vector.load %arg18[%c220, %c0_74] : memref<272x128xf32, #tpu.memory_space<vmem>>, vector<11x128xf32>
    tpu.vector_store %arg18[%c220, %c0_74], %92 {strides = array<i32>} : memref<272x128xf32, #tpu.memory_space<vmem>>, vector<11x128xf32>,
    %c1056 = arith.constant 1056 : index
    %c0_75 = arith.constant 0 : index
    %94 = tpu.strided_load %arg17[%c1056, %c0_75] {strides = array<i32: 2, 1>} : memref<1152x128xf32, #tpu.memory_space<vmem>>, vector<11x128xf32>
    %c231 = arith.constant 231 : index
    %c0_76 = arith.constant 0 : index
    %95 = vector.load %arg18[%c231, %c0_76] : memref<272x128xf32, #tpu.memory_space<vmem>>, vector<11x128xf32>
    tpu.vector_store %arg18[%c231, %c0_76], %94 {strides = array<i32>} : memref<272x128xf32, #tpu.memory_space<vmem>>, vector<11x128xf32>,
    %cst_77 = arith.constant 0.000000e+00 : f32
    %96 = vector.broadcast %cst_77 : f32 to vector<30x128xf32>
    %c242 = arith.constant 242 : index
    %c0_78 = arith.constant 0 : index
    %97 = vector.load %arg18[%c242, %c0_78] : memref<272x128xf32, #tpu.memory_space<vmem>>, vector<30x128xf32>
    tpu.vector_store %arg18[%c242, %c0_78], %96 {strides = array<i32>} : memref<272x128xf32, #tpu.memory_space<vmem>>, vector<30x128xf32>,
    %cst_79 = arith.constant 0.000000e+00 : f32
    %98 = vector.broadcast %cst_79 : f32 to vector<242x128xf32>
    %c0_80 = arith.constant 0 : index
    %c0_81 = arith.constant 0 : index
    %99 = vector.load %arg18[%c0_80, %c0_81] : memref<272x128xf32, #tpu.memory_space<vmem>>, vector<242x128xf32>
    %100 = arith.truncf %99 : vector<242x128xf32> to vector<242x128xbf16>
    %c0_82 = arith.constant 0 : index
    %c0_83 = arith.constant 0 : index
    %101 = vector.load %arg5[%c0_82, %c0_83] : memref<1152x128xbf16, #tpu.memory_space<vmem>>, vector<128x128xbf16>
    %cst_84 = arith.constant dense<0.000000e+00> : vector<242x128xf32>
    %102 = tpu.matmul %100, %101, %cst_84 {dimension_numbers = #tpu.dot_dimension_numbers<[1], [0], [0], [1], [0, 0, 1, 1], [], []>} : vector<242x128xbf16>, vector<128x128xbf16>, vector<242x128xf32> -> vector<242x128xf32>
    %103 = arith.addf %98, %102 : vector<242x128xf32>
    %c1_85 = arith.constant 1 : index
    %c0_86 = arith.constant 0 : index
    %104 = vector.load %arg18[%c1_85, %c0_86] : memref<272x128xf32, #tpu.memory_space<vmem>>, vector<242x128xf32>
    %105 = arith.truncf %104 : vector<242x128xf32> to vector<242x128xbf16>
    %c128 = arith.constant 128 : index
    %c0_87 = arith.constant 0 : index
    %106 = vector.load %arg5[%c128, %c0_87] : memref<1152x128xbf16, #tpu.memory_space<vmem>>, vector<128x128xbf16>
    %cst_88 = arith.constant dense<0.000000e+00> : vector<242x128xf32>
    %107 = tpu.matmul %105, %106, %cst_88 {dimension_numbers = #tpu.dot_dimension_numbers<[1], [0], [0], [1], [0, 0, 1, 1], [], []>} : vector<242x128xbf16>, vector<128x128xbf16>, vector<242x128xf32> -> vector<242x128xf32>
    %108 = arith.addf %103, %107 : vector<242x128xf32>
    %c2_89 = arith.constant 2 : index
    %c0_90 = arith.constant 0 : index
    %109 = vector.load %arg18[%c2_89, %c0_90] : memref<272x128xf32, #tpu.memory_space<vmem>>, vector<242x128xf32>
    %110 = arith.truncf %109 : vector<242x128xf32> to vector<242x128xbf16>
    %c256 = arith.constant 256 : index
    %c0_91 = arith.constant 0 : index
    %111 = vector.load %arg5[%c256, %c0_91] : memref<1152x128xbf16, #tpu.memory_space<vmem>>, vector<128x128xbf16>
    %cst_92 = arith.constant dense<0.000000e+00> : vector<242x128xf32>
    %112 = tpu.matmul %110, %111, %cst_92 {dimension_numbers = #tpu.dot_dimension_numbers<[1], [0], [0], [1], [0, 0, 1, 1], [], []>} : vector<242x128xbf16>, vector<128x128xbf16>, vector<242x128xf32> -> vector<242x128xf32>
    %113 = arith.addf %108, %112 : vector<242x128xf32>
    %c11_93 = arith.constant 11 : index
    %c0_94 = arith.constant 0 : index
    %114 = vector.load %arg18[%c11_93, %c0_94] : memref<272x128xf32, #tpu.memory_space<vmem>>, vector<242x128xf32>
    %115 = arith.truncf %114 : vector<242x128xf32> to vector<242x128xbf16>
    %c384_95 = arith.constant 384 : index
    %c0_96 = arith.constant 0 : index
    %116 = vector.load %arg5[%c384_95, %c0_96] : memref<1152x128xbf16, #tpu.memory_space<vmem>>, vector<128x128xbf16>
    %cst_97 = arith.constant dense<0.000000e+00> : vector<242x128xf32>
    %117 = tpu.matmul %115, %116, %cst_97 {dimension_numbers = #tpu.dot_dimension_numbers<[1], [0], [0], [1], [0, 0, 1, 1], [], []>} : vector<242x128xbf16>, vector<128x128xbf16>, vector<242x128xf32> -> vector<242x128xf32>
    %118 = arith.addf %113, %117 : vector<242x128xf32>
    %c12 = arith.constant 12 : index
    %c0_98 = arith.constant 0 : index
    %119 = vector.load %arg18[%c12, %c0_98] : memref<272x128xf32, #tpu.memory_space<vmem>>, vector<242x128xf32>
    %120 = arith.truncf %119 : vector<242x128xf32> to vector<242x128xbf16>
    %c512 = arith.constant 512 : index
    %c0_99 = arith.constant 0 : index
    %121 = vector.load %arg5[%c512, %c0_99] : memref<1152x128xbf16, #tpu.memory_space<vmem>>, vector<128x128xbf16>
    %cst_100 = arith.constant dense<0.000000e+00> : vector<242x128xf32>
    %122 = tpu.matmul %120, %121, %cst_100 {dimension_numbers = #tpu.dot_dimension_numbers<[1], [0], [0], [1], [0, 0, 1, 1], [], []>} : vector<242x128xbf16>, vector<128x128xbf16>, vector<242x128xf32> -> vector<242x128xf32>
    %123 = arith.addf %118, %122 : vector<242x128xf32>
    %c13 = arith.constant 13 : index
    %c0_101 = arith.constant 0 : index
    %124 = vector.load %arg18[%c13, %c0_101] : memref<272x128xf32, #tpu.memory_space<vmem>>, vector<242x128xf32>
    %125 = arith.truncf %124 : vector<242x128xf32> to vector<242x128xbf16>
    %c640 = arith.constant 640 : index
    %c0_102 = arith.constant 0 : index
    %126 = vector.load %arg5[%c640, %c0_102] : memref<1152x128xbf16, #tpu.memory_space<vmem>>, vector<128x128xbf16>
    %cst_103 = arith.constant dense<0.000000e+00> : vector<242x128xf32>
    %127 = tpu.matmul %125, %126, %cst_103 {dimension_numbers = #tpu.dot_dimension_numbers<[1], [0], [0], [1], [0, 0, 1, 1], [], []>} : vector<242x128xbf16>, vector<128x128xbf16>, vector<242x128xf32> -> vector<242x128xf32>
    %128 = arith.addf %123, %127 : vector<242x128xf32>
    %c22_104 = arith.constant 22 : index
    %c0_105 = arith.constant 0 : index
    %129 = vector.load %arg18[%c22_104, %c0_105] : memref<272x128xf32, #tpu.memory_space<vmem>>, vector<242x128xf32>
    %130 = arith.truncf %129 : vector<242x128xf32> to vector<242x128xbf16>
    %c768_106 = arith.constant 768 : index
    %c0_107 = arith.constant 0 : index
    %131 = vector.load %arg5[%c768_106, %c0_107] : memref<1152x128xbf16, #tpu.memory_space<vmem>>, vector<128x128xbf16>
    %cst_108 = arith.constant dense<0.000000e+00> : vector<242x128xf32>
    %132 = tpu.matmul %130, %131, %cst_108 {dimension_numbers = #tpu.dot_dimension_numbers<[1], [0], [0], [1], [0, 0, 1, 1], [], []>} : vector<242x128xbf16>, vector<128x128xbf16>, vector<242x128xf32> -> vector<242x128xf32>
    %133 = arith.addf %128, %132 : vector<242x128xf32>
    %c23 = arith.constant 23 : index
    %c0_109 = arith.constant 0 : index
    %134 = vector.load %arg18[%c23, %c0_109] : memref<272x128xf32, #tpu.memory_space<vmem>>, vector<242x128xf32>
    %135 = arith.truncf %134 : vector<242x128xf32> to vector<242x128xbf16>
    %c896 = arith.constant 896 : index
    %c0_110 = arith.constant 0 : index
    %136 = vector.load %arg5[%c896, %c0_110] : memref<1152x128xbf16, #tpu.memory_space<vmem>>, vector<128x128xbf16>
    %cst_111 = arith.constant dense<0.000000e+00> : vector<242x128xf32>
    %137 = tpu.matmul %135, %136, %cst_111 {dimension_numbers = #tpu.dot_dimension_numbers<[1], [0], [0], [1], [0, 0, 1, 1], [], []>} : vector<242x128xbf16>, vector<128x128xbf16>, vector<242x128xf32> -> vector<242x128xf32>
    %138 = arith.addf %133, %137 : vector<242x128xf32>
    %c24_112 = arith.constant 24 : index
    %c0_113 = arith.constant 0 : index
    %139 = vector.load %arg18[%c24_112, %c0_113] : memref<272x128xf32, #tpu.memory_space<vmem>>, vector<242x128xf32>
    %140 = arith.truncf %139 : vector<242x128xf32> to vector<242x128xbf16>
    %c1024 = arith.constant 1024 : index
    %c0_114 = arith.constant 0 : index
    %141 = vector.load %arg5[%c1024, %c0_114] : memref<1152x128xbf16, #tpu.memory_space<vmem>>, vector<128x128xbf16>
    %cst_115 = arith.constant dense<0.000000e+00> : vector<242x128xf32>
    %142 = tpu.matmul %140, %141, %cst_115 {dimension_numbers = #tpu.dot_dimension_numbers<[1], [0], [0], [1], [0, 0, 1, 1], [], []>} : vector<242x128xbf16>, vector<128x128xbf16>, vector<242x128xf32> -> vector<242x128xf32>
    %143 = arith.addf %138, %142 : vector<242x128xf32>
    %c0_116 = arith.constant 0 : index
    %c0_117 = arith.constant 0 : index
    %144 = vector.load %arg2[%c0_116, %c0_117] : memref<242x1xf32, #tpu.memory_space<vmem>>, vector<242x1xf32>
    %c2_118 = arith.constant 2 : index
    %c0_119 = arith.constant 0 : index
    %145 = vector.load %arg7[%c2_118, %c0_119] : memref<6x128xf32, #tpu.memory_space<vmem>>, vector<1x128xf32>
    %c3 = arith.constant 3 : index
    %c0_120 = arith.constant 0 : index
    %146 = vector.load %arg7[%c3, %c0_120] : memref<6x128xf32, #tpu.memory_space<vmem>>, vector<1x128xf32>
    %147 = vector.broadcast %144 : vector<242x1xf32> to vector<242x128xf32>
    %148 = arith.mulf %143, %147 : vector<242x128xf32>
    %cst_121 = arith.constant dense<0.000000e+00> : vector<128xf32>
    %149 = vector.multi_reduction <add>, %148, %cst_121 [0] : vector<242x128xf32> to vector<128xf32>
    %150 = vector.shape_cast %149 : vector<128xf32> to vector<1x128xf32>
    %cst_122 = arith.constant 0.00617283955 : f32
    %151 = vector.broadcast %cst_122 : f32 to vector<1x128xf32>
    %152 = arith.mulf %150, %151 : vector<1x128xf32>
    %153 = arith.mulf %148, %148 : vector<242x128xf32>
    %cst_123 = arith.constant dense<0.000000e+00> : vector<128xf32>
    %154 = vector.multi_reduction <add>, %153, %cst_123 [0] : vector<242x128xf32> to vector<128xf32>
    %155 = vector.shape_cast %154 : vector<128xf32> to vector<1x128xf32>
    %cst_124 = arith.constant 0.00617283955 : f32
    %156 = vector.broadcast %cst_124 : f32 to vector<1x128xf32>
    %157 = arith.mulf %155, %156 : vector<1x128xf32>
    %158 = arith.mulf %152, %152 : vector<1x128xf32>
    %159 = arith.subf %157, %158 : vector<1x128xf32>
    %cst_125 = arith.constant 0.000000e+00 : f32
    %160 = vector.broadcast %cst_125 : f32 to vector<1x128xf32>
    %161 = arith.maximumf %159, %160 : vector<1x128xf32>
    %162 = vector.broadcast %152 : vector<1x128xf32> to vector<242x128xf32>
    %163 = arith.subf %143, %162 : vector<242x128xf32>
    %cst_126 = arith.constant 9.99999974E-6 : f32
    %164 = vector.broadcast %cst_126 : f32 to vector<1x128xf32>
    %165 = arith.addf %161, %164 : vector<1x128xf32>
    %166 = math.rsqrt %165 : vector<1x128xf32>
    %167 = vector.broadcast %166 : vector<1x128xf32> to vector<242x128xf32>
    %168 = arith.mulf %163, %167 : vector<242x128xf32>
    %169 = vector.broadcast %145 : vector<1x128xf32> to vector<242x128xf32>
    %170 = arith.mulf %168, %169 : vector<242x128xf32>
    %171 = vector.broadcast %146 : vector<1x128xf32> to vector<242x128xf32>
    %172 = arith.addf %170, %171 : vector<242x128xf32>
    %cst_127 = arith.constant 0.000000e+00 : f32
    %173 = vector.broadcast %cst_127 : f32 to vector<242x128xf32>
    %174 = arith.maximumf %172, %173 : vector<242x128xf32>
    %c0_128 = arith.constant 0 : index
    %c0_129 = arith.constant 0 : index
    %175 = vector.load %arg19[%c0_128, %c0_129] : memref<272x128xf32, #tpu.memory_space<vmem>>, vector<242x128xf32>
    tpu.vector_store %arg19[%c0_128, %c0_129], %174 {strides = array<i32>} : memref<272x128xf32, #tpu.memory_space<vmem>>, vector<242x128xf32>,
    %cst_130 = arith.constant 0.000000e+00 : f32
    %176 = vector.broadcast %cst_130 : f32 to vector<30x128xf32>
    %c242_131 = arith.constant 242 : index
    %c0_132 = arith.constant 0 : index
    %177 = vector.load %arg19[%c242_131, %c0_132] : memref<272x128xf32, #tpu.memory_space<vmem>>, vector<30x128xf32>
    tpu.vector_store %arg19[%c242_131, %c0_132], %176 {strides = array<i32>} : memref<272x128xf32, #tpu.memory_space<vmem>>, vector<30x128xf32>,
    %c0_133 = arith.constant 0 : index
    %c0_134 = arith.constant 0 : index
    %178 = vector.load %arg19[%c0_133, %c0_134] : memref<272x128xf32, #tpu.memory_space<vmem>>, vector<242x128xf32>
    %c1_135 = arith.constant 1 : index
    %c0_136 = arith.constant 0 : index
    %179 = vector.load %arg19[%c1_135, %c0_136] : memref<272x128xf32, #tpu.memory_space<vmem>>, vector<242x128xf32>
    %180 = arith.maximumf %178, %179 : vector<242x128xf32>
    %c2_137 = arith.constant 2 : index
    %c0_138 = arith.constant 0 : index
    %181 = vector.load %arg19[%c2_137, %c0_138] : memref<272x128xf32, #tpu.memory_space<vmem>>, vector<242x128xf32>
    %182 = arith.maximumf %180, %181 : vector<242x128xf32>
    %c11_139 = arith.constant 11 : index
    %c0_140 = arith.constant 0 : index
    %183 = vector.load %arg19[%c11_139, %c0_140] : memref<272x128xf32, #tpu.memory_space<vmem>>, vector<242x128xf32>
    %184 = arith.maximumf %182, %183 : vector<242x128xf32>
    %c12_141 = arith.constant 12 : index
    %c0_142 = arith.constant 0 : index
    %185 = vector.load %arg19[%c12_141, %c0_142] : memref<272x128xf32, #tpu.memory_space<vmem>>, vector<242x128xf32>
    %186 = arith.maximumf %184, %185 : vector<242x128xf32>
    %c13_143 = arith.constant 13 : index
    %c0_144 = arith.constant 0 : index
    %187 = vector.load %arg19[%c13_143, %c0_144] : memref<272x128xf32, #tpu.memory_space<vmem>>, vector<242x128xf32>
    %188 = arith.maximumf %186, %187 : vector<242x128xf32>
    %c22_145 = arith.constant 22 : index
    %c0_146 = arith.constant 0 : index
    %189 = vector.load %arg19[%c22_145, %c0_146] : memref<272x128xf32, #tpu.memory_space<vmem>>, vector<242x128xf32>
    %190 = arith.maximumf %188, %189 : vector<242x128xf32>
    %c23_147 = arith.constant 23 : index
    %c0_148 = arith.constant 0 : index
    %191 = vector.load %arg19[%c23_147, %c0_148] : memref<272x128xf32, #tpu.memory_space<vmem>>, vector<242x128xf32>
    %192 = arith.maximumf %190, %191 : vector<242x128xf32>
    %c24_149 = arith.constant 24 : index
    %c0_150 = arith.constant 0 : index
    %193 = vector.load %arg19[%c24_149, %c0_150] : memref<272x128xf32, #tpu.memory_space<vmem>>, vector<242x128xf32>
    %194 = arith.maximumf %192, %193 : vector<242x128xf32>
    %c0_151 = arith.constant 0 : index
    %c0_152 = arith.constant 0 : index
    %195 = vector.load %arg20[%c0_151, %c0_152] : memref<272x128xf32, #tpu.memory_space<vmem>>, vector<242x128xf32>
    tpu.vector_store %arg20[%c0_151, %c0_152], %194 {strides = array<i32>} : memref<272x128xf32, #tpu.memory_space<vmem>>, vector<242x128xf32>,
    %c0_153 = arith.constant 0 : index
    %c0_154 = arith.constant 0 : index
    %196 = tpu.strided_load %arg20[%c0_153, %c0_154] {strides = array<i32: 2, 1>} : memref<272x128xf32, #tpu.memory_space<vmem>>, vector<4x128xf32>
    %c0_155 = arith.constant 0 : index
    %c0_156 = arith.constant 0 : index
    %197 = vector.load %arg21[%c0_155, %c0_156] : memref<40x128xf32, #tpu.memory_space<vmem>>, vector<4x128xf32>
    tpu.vector_store %arg21[%c0_155, %c0_156], %196 {strides = array<i32>} : memref<40x128xf32, #tpu.memory_space<vmem>>, vector<4x128xf32>,
    %c22_157 = arith.constant 22 : index
    %c0_158 = arith.constant 0 : index
    %198 = tpu.strided_load %arg20[%c22_157, %c0_158] {strides = array<i32: 2, 1>} : memref<272x128xf32, #tpu.memory_space<vmem>>, vector<4x128xf32>
    %c4 = arith.constant 4 : index
    %c0_159 = arith.constant 0 : index
    %199 = vector.load %arg21[%c4, %c0_159] : memref<40x128xf32, #tpu.memory_space<vmem>>, vector<4x128xf32>
    tpu.vector_store %arg21[%c4, %c0_159], %198 {strides = array<i32>} : memref<40x128xf32, #tpu.memory_space<vmem>>, vector<4x128xf32>,
    %c44_160 = arith.constant 44 : index
    %c0_161 = arith.constant 0 : index
    %200 = tpu.strided_load %arg20[%c44_160, %c0_161] {strides = array<i32: 2, 1>} : memref<272x128xf32, #tpu.memory_space<vmem>>, vector<4x128xf32>
    %c8 = arith.constant 8 : index
    %c0_162 = arith.constant 0 : index
    %201 = vector.load %arg21[%c8, %c0_162] : memref<40x128xf32, #tpu.memory_space<vmem>>, vector<4x128xf32>
    tpu.vector_store %arg21[%c8, %c0_162], %200 {strides = array<i32>} : memref<40x128xf32, #tpu.memory_space<vmem>>, vector<4x128xf32>,
    %c66_163 = arith.constant 66 : index
    %c0_164 = arith.constant 0 : index
    %202 = tpu.strided_load %arg20[%c66_163, %c0_164] {strides = array<i32: 2, 1>} : memref<272x128xf32, #tpu.memory_space<vmem>>, vector<4x128xf32>
    %c12_165 = arith.constant 12 : index
    %c0_166 = arith.constant 0 : index
    %203 = vector.load %arg21[%c12_165, %c0_166] : memref<40x128xf32, #tpu.memory_space<vmem>>, vector<4x128xf32>
    tpu.vector_store %arg21[%c12_165, %c0_166], %202 {strides = array<i32>} : memref<40x128xf32, #tpu.memory_space<vmem>>, vector<4x128xf32>,
    %c121_167 = arith.constant 121 : index
    %c0_168 = arith.constant 0 : index
    %204 = tpu.strided_load %arg20[%c121_167, %c0_168] {strides = array<i32: 2, 1>} : memref<272x128xf32, #tpu.memory_space<vmem>>, vector<4x128xf32>
    %c16 = arith.constant 16 : index
    %c0_169 = arith.constant 0 : index
    %205 = vector.load %arg21[%c16, %c0_169] : memref<40x128xf32, #tpu.memory_space<vmem>>, vector<4x128xf32>
    tpu.vector_store %arg21[%c16, %c0_169], %204 {strides = array<i32>} : memref<40x128xf32, #tpu.memory_space<vmem>>, vector<4x128xf32>,
    %c143_170 = arith.constant 143 : index
    %c0_171 = arith.constant 0 : index
    %206 = tpu.strided_load %arg20[%c143_170, %c0_171] {strides = array<i32: 2, 1>} : memref<272x128xf32, #tpu.memory_space<vmem>>, vector<4x128xf32>
    %c20 = arith.constant 20 : index
    %c0_172 = arith.constant 0 : index
    %207 = vector.load %arg21[%c20, %c0_172] : memref<40x128xf32, #tpu.memory_space<vmem>>, vector<4x128xf32>
    tpu.vector_store %arg21[%c20, %c0_172], %206 {strides = array<i32>} : memref<40x128xf32, #tpu.memory_space<vmem>>, vector<4x128xf32>,
    %c165_173 = arith.constant 165 : index
    %c0_174 = arith.constant 0 : index
    %208 = tpu.strided_load %arg20[%c165_173, %c0_174] {strides = array<i32: 2, 1>} : memref<272x128xf32, #tpu.memory_space<vmem>>, vector<4x128xf32>
    %c24_175 = arith.constant 24 : index
    %c0_176 = arith.constant 0 : index
    %209 = vector.load %arg21[%c24_175, %c0_176] : memref<40x128xf32, #tpu.memory_space<vmem>>, vector<4x128xf32>
    tpu.vector_store %arg21[%c24_175, %c0_176], %208 {strides = array<i32>} : memref<40x128xf32, #tpu.memory_space<vmem>>, vector<4x128xf32>,
    %c187_177 = arith.constant 187 : index
    %c0_178 = arith.constant 0 : index
    %210 = tpu.strided_load %arg20[%c187_177, %c0_178] {strides = array<i32: 2, 1>} : memref<272x128xf32, #tpu.memory_space<vmem>>, vector<4x128xf32>
    %c28 = arith.constant 28 : index
    %c0_179 = arith.constant 0 : index
    %211 = vector.load %arg21[%c28, %c0_179] : memref<40x128xf32, #tpu.memory_space<vmem>>, vector<4x128xf32>
    tpu.vector_store %arg21[%c28, %c0_179], %210 {strides = array<i32>} : memref<40x128xf32, #tpu.memory_space<vmem>>, vector<4x128xf32>,
    %cst_180 = arith.constant 0.000000e+00 : f32
    %212 = vector.broadcast %cst_180 : f32 to vector<8x128xf32>
    %c32 = arith.constant 32 : index
    %c0_181 = arith.constant 0 : index
    %213 = vector.load %arg21[%c32, %c0_181] : memref<40x128xf32, #tpu.memory_space<vmem>>, vector<8x128xf32>
    tpu.vector_store %arg21[%c32, %c0_181], %212 {strides = array<i32>} : memref<40x128xf32, #tpu.memory_space<vmem>>, vector<8x128xf32>,
    %cst_182 = arith.constant 0.000000e+00 : f32
    %214 = vector.broadcast %cst_182 : f32 to vector<32x128xf32>
    %c0_183 = arith.constant 0 : index
    %c0_184 = arith.constant 0 : index
    %215 = vector.load %arg21[%c0_183, %c0_184] : memref<40x128xf32, #tpu.memory_space<vmem>>, vector<32x128xf32>
    %216 = arith.truncf %215 : vector<32x128xf32> to vector<32x128xbf16>
    %c0_185 = arith.constant 0 : index
    %c0_186 = arith.constant 0 : index
    %217 = vector.load %arg6[%c0_185, %c0_186] : memref<512x128xbf16, #tpu.memory_space<vmem>>, vector<128x128xbf16>
    %cst_187 = arith.constant dense<0.000000e+00> : vector<32x128xf32>
    %218 = tpu.matmul %216, %217, %cst_187 {dimension_numbers = #tpu.dot_dimension_numbers<[1], [0], [0], [1], [0, 0, 1, 1], [], []>} : vector<32x128xbf16>, vector<128x128xbf16>, vector<32x128xf32> -> vector<32x128xf32>
    %219 = arith.addf %214, %218 : vector<32x128xf32>
    %c1_188 = arith.constant 1 : index
    %c0_189 = arith.constant 0 : index
    %220 = vector.load %arg21[%c1_188, %c0_189] : memref<40x128xf32, #tpu.memory_space<vmem>>, vector<32x128xf32>
    %221 = arith.truncf %220 : vector<32x128xf32> to vector<32x128xbf16>
    %c128_190 = arith.constant 128 : index
    %c0_191 = arith.constant 0 : index
    %222 = vector.load %arg6[%c128_190, %c0_191] : memref<512x128xbf16, #tpu.memory_space<vmem>>, vector<128x128xbf16>
    %cst_192 = arith.constant dense<0.000000e+00> : vector<32x128xf32>
    %223 = tpu.matmul %221, %222, %cst_192 {dimension_numbers = #tpu.dot_dimension_numbers<[1], [0], [0], [1], [0, 0, 1, 1], [], []>} : vector<32x128xbf16>, vector<128x128xbf16>, vector<32x128xf32> -> vector<32x128xf32>
    %224 = arith.addf %219, %223 : vector<32x128xf32>
    %c4_193 = arith.constant 4 : index
    %c0_194 = arith.constant 0 : index
    %225 = vector.load %arg21[%c4_193, %c0_194] : memref<40x128xf32, #tpu.memory_space<vmem>>, vector<32x128xf32>
    %226 = arith.truncf %225 : vector<32x128xf32> to vector<32x128xbf16>
    %c256_195 = arith.constant 256 : index
    %c0_196 = arith.constant 0 : index
    %227 = vector.load %arg6[%c256_195, %c0_196] : memref<512x128xbf16, #tpu.memory_space<vmem>>, vector<128x128xbf16>
    %cst_197 = arith.constant dense<0.000000e+00> : vector<32x128xf32>
    %228 = tpu.matmul %226, %227, %cst_197 {dimension_numbers = #tpu.dot_dimension_numbers<[1], [0], [0], [1], [0, 0, 1, 1], [], []>} : vector<32x128xbf16>, vector<128x128xbf16>, vector<32x128xf32> -> vector<32x128xf32>
    %229 = arith.addf %224, %228 : vector<32x128xf32>
    %c5 = arith.constant 5 : index
    %c0_198 = arith.constant 0 : index
    %230 = vector.load %arg21[%c5, %c0_198] : memref<40x128xf32, #tpu.memory_space<vmem>>, vector<32x128xf32>
    %231 = arith.truncf %230 : vector<32x128xf32> to vector<32x128xbf16>
    %c384_199 = arith.constant 384 : index
    %c0_200 = arith.constant 0 : index
    %232 = vector.load %arg6[%c384_199, %c0_200] : memref<512x128xbf16, #tpu.memory_space<vmem>>, vector<128x128xbf16>
    %cst_201 = arith.constant dense<0.000000e+00> : vector<32x128xf32>
    %233 = tpu.matmul %231, %232, %cst_201 {dimension_numbers = #tpu.dot_dimension_numbers<[1], [0], [0], [1], [0, 0, 1, 1], [], []>} : vector<32x128xbf16>, vector<128x128xbf16>, vector<32x128xf32> -> vector<32x128xf32>
    %234 = arith.addf %229, %233 : vector<32x128xf32>
    %c0_202 = arith.constant 0 : index
    %c0_203 = arith.constant 0 : index
    %235 = vector.load %arg3[%c0_202, %c0_203] : memref<32x1xf32, #tpu.memory_space<vmem>>, vector<32x1xf32>
    %c4_204 = arith.constant 4 : index
    %c0_205 = arith.constant 0 : index
    %236 = vector.load %arg7[%c4_204, %c0_205] : memref<6x128xf32, #tpu.memory_space<vmem>>, vector<1x128xf32>
    %c5_206 = arith.constant 5 : index
    %c0_207 = arith.constant 0 : index
    %237 = vector.load %arg7[%c5_206, %c0_207] : memref<6x128xf32, #tpu.memory_space<vmem>>, vector<1x128xf32>
    %238 = vector.broadcast %235 : vector<32x1xf32> to vector<32x128xf32>
    %239 = arith.mulf %234, %238 : vector<32x128xf32>
    %cst_208 = arith.constant dense<0.000000e+00> : vector<128xf32>
    %240 = vector.multi_reduction <add>, %239, %cst_208 [0] : vector<32x128xf32> to vector<128xf32>
    %241 = vector.shape_cast %240 : vector<128xf32> to vector<1x128xf32>
    %cst_209 = arith.constant 0.055555556 : f32
    %242 = vector.broadcast %cst_209 : f32 to vector<1x128xf32>
    %243 = arith.mulf %241, %242 : vector<1x128xf32>
    %244 = arith.mulf %239, %239 : vector<32x128xf32>
    %cst_210 = arith.constant dense<0.000000e+00> : vector<128xf32>
    %245 = vector.multi_reduction <add>, %244, %cst_210 [0] : vector<32x128xf32> to vector<128xf32>
    %246 = vector.shape_cast %245 : vector<128xf32> to vector<1x128xf32>
    %cst_211 = arith.constant 0.055555556 : f32
    %247 = vector.broadcast %cst_211 : f32 to vector<1x128xf32>
    %248 = arith.mulf %246, %247 : vector<1x128xf32>
    %249 = arith.mulf %243, %243 : vector<1x128xf32>
    %250 = arith.subf %248, %249 : vector<1x128xf32>
    %cst_212 = arith.constant 0.000000e+00 : f32
    %251 = vector.broadcast %cst_212 : f32 to vector<1x128xf32>
    %252 = arith.maximumf %250, %251 : vector<1x128xf32>
    %253 = vector.broadcast %243 : vector<1x128xf32> to vector<32x128xf32>
    %254 = arith.subf %234, %253 : vector<32x128xf32>
    %cst_213 = arith.constant 9.99999974E-6 : f32
    %255 = vector.broadcast %cst_213 : f32 to vector<1x128xf32>
    %256 = arith.addf %252, %255 : vector<1x128xf32>
    %257 = math.rsqrt %256 : vector<1x128xf32>
    %258 = vector.broadcast %257 : vector<1x128xf32> to vector<32x128xf32>
    %259 = arith.mulf %254, %258 : vector<32x128xf32>
    %260 = vector.broadcast %236 : vector<1x128xf32> to vector<32x128xf32>
    %261 = arith.mulf %259, %260 : vector<32x128xf32>
    %262 = vector.broadcast %237 : vector<1x128xf32> to vector<32x128xf32>
    %263 = arith.addf %261, %262 : vector<32x128xf32>
    %cst_214 = arith.constant 0.000000e+00 : f32
    %264 = vector.broadcast %cst_214 : f32 to vector<32x128xf32>
    %265 = arith.maximumf %263, %264 : vector<32x128xf32>
    %c0_215 = arith.constant 0 : index
    %c0_216 = arith.constant 0 : index
    %266 = vector.load %arg22[%c0_215, %c0_216] : memref<40x128xf32, #tpu.memory_space<vmem>>, vector<32x128xf32>
    tpu.vector_store %arg22[%c0_215, %c0_216], %265 {strides = array<i32>} : memref<40x128xf32, #tpu.memory_space<vmem>>, vector<32x128xf32>,
    %cst_217 = arith.constant 0.000000e+00 : f32
    %267 = vector.broadcast %cst_217 : f32 to vector<2x256xf32>
    %c0_218 = arith.constant 0 : index
    %c0_219 = arith.constant 0 : index
    %268 = tpu.strided_load %arg22[%c0_218, %c0_219] {strides = array<i32: 16, 1>} : memref<40x128xf32, #tpu.memory_space<vmem>>, vector<2x128xf32>
    %269 = arith.truncf %268 : vector<2x128xf32> to vector<2x128xbf16>
    %c0_220 = arith.constant 0 : index
    %c0_221 = arith.constant 0 : index
    %270 = vector.load %arg8[%c0_220, %c0_221] : memref<1152x256xbf16, #tpu.memory_space<vmem>>, vector<128x256xbf16>
    %cst_222 = arith.constant dense<0.000000e+00> : vector<2x256xf32>
    %271 = tpu.matmul %269, %270, %cst_222 {dimension_numbers = #tpu.dot_dimension_numbers<[1], [0], [0], [1], [0, 0, 1, 1], [], []>} : vector<2x128xbf16>, vector<128x256xbf16>, vector<2x256xf32> -> vector<2x256xf32>
    %272 = arith.addf %267, %271 : vector<2x256xf32>
    %c1_223 = arith.constant 1 : index
    %c0_224 = arith.constant 0 : index
    %273 = tpu.strided_load %arg22[%c1_223, %c0_224] {strides = array<i32: 16, 1>} : memref<40x128xf32, #tpu.memory_space<vmem>>, vector<2x128xf32>
    %274 = arith.truncf %273 : vector<2x128xf32> to vector<2x128xbf16>
    %c128_225 = arith.constant 128 : index
    %c0_226 = arith.constant 0 : index
    %275 = vector.load %arg8[%c128_225, %c0_226] : memref<1152x256xbf16, #tpu.memory_space<vmem>>, vector<128x256xbf16>
    %cst_227 = arith.constant dense<0.000000e+00> : vector<2x256xf32>
    %276 = tpu.matmul %274, %275, %cst_227 {dimension_numbers = #tpu.dot_dimension_numbers<[1], [0], [0], [1], [0, 0, 1, 1], [], []>} : vector<2x128xbf16>, vector<128x256xbf16>, vector<2x256xf32> -> vector<2x256xf32>
    %277 = arith.addf %272, %276 : vector<2x256xf32>
    %c2_228 = arith.constant 2 : index
    %c0_229 = arith.constant 0 : index
    %278 = tpu.strided_load %arg22[%c2_228, %c0_229] {strides = array<i32: 16, 1>} : memref<40x128xf32, #tpu.memory_space<vmem>>, vector<2x128xf32>
    %279 = arith.truncf %278 : vector<2x128xf32> to vector<2x128xbf16>
    %c256_230 = arith.constant 256 : index
    %c0_231 = arith.constant 0 : index
    %280 = vector.load %arg8[%c256_230, %c0_231] : memref<1152x256xbf16, #tpu.memory_space<vmem>>, vector<128x256xbf16>
    %cst_232 = arith.constant dense<0.000000e+00> : vector<2x256xf32>
    %281 = tpu.matmul %279, %280, %cst_232 {dimension_numbers = #tpu.dot_dimension_numbers<[1], [0], [0], [1], [0, 0, 1, 1], [], []>} : vector<2x128xbf16>, vector<128x256xbf16>, vector<2x256xf32> -> vector<2x256xf32>
    %282 = arith.addf %277, %281 : vector<2x256xf32>
    %c4_233 = arith.constant 4 : index
    %c0_234 = arith.constant 0 : index
    %283 = tpu.strided_load %arg22[%c4_233, %c0_234] {strides = array<i32: 16, 1>} : memref<40x128xf32, #tpu.memory_space<vmem>>, vector<2x128xf32>
    %284 = arith.truncf %283 : vector<2x128xf32> to vector<2x128xbf16>
    %c384_235 = arith.constant 384 : index
    %c0_236 = arith.constant 0 : index
    %285 = vector.load %arg8[%c384_235, %c0_236] : memref<1152x256xbf16, #tpu.memory_space<vmem>>, vector<128x256xbf16>
    %cst_237 = arith.constant dense<0.000000e+00> : vector<2x256xf32>
    %286 = tpu.matmul %284, %285, %cst_237 {dimension_numbers = #tpu.dot_dimension_numbers<[1], [0], [0], [1], [0, 0, 1, 1], [], []>} : vector<2x128xbf16>, vector<128x256xbf16>, vector<2x256xf32> -> vector<2x256xf32>
    %287 = arith.addf %282, %286 : vector<2x256xf32>
    %c5_238 = arith.constant 5 : index
    %c0_239 = arith.constant 0 : index
    %288 = tpu.strided_load %arg22[%c5_238, %c0_239] {strides = array<i32: 16, 1>} : memref<40x128xf32, #tpu.memory_space<vmem>>, vector<2x128xf32>
    %289 = arith.truncf %288 : vector<2x128xf32> to vector<2x128xbf16>
    %c512_240 = arith.constant 512 : index
    %c0_241 = arith.constant 0 : index
    %290 = vector.load %arg8[%c512_240, %c0_241] : memref<1152x256xbf16, #tpu.memory_space<vmem>>, vector<128x256xbf16>
    %cst_242 = arith.constant dense<0.000000e+00> : vector<2x256xf32>
    %291 = tpu.matmul %289, %290, %cst_242 {dimension_numbers = #tpu.dot_dimension_numbers<[1], [0], [0], [1], [0, 0, 1, 1], [], []>} : vector<2x128xbf16>, vector<128x256xbf16>, vector<2x256xf32> -> vector<2x256xf32>
    %292 = arith.addf %287, %291 : vector<2x256xf32>
    %c6 = arith.constant 6 : index
    %c0_243 = arith.constant 0 : index
    %293 = tpu.strided_load %arg22[%c6, %c0_243] {strides = array<i32: 16, 1>} : memref<40x128xf32, #tpu.memory_space<vmem>>, vector<2x128xf32>
    %294 = arith.truncf %293 : vector<2x128xf32> to vector<2x128xbf16>
    %c640_244 = arith.constant 640 : index
    %c0_245 = arith.constant 0 : index
    %295 = vector.load %arg8[%c640_244, %c0_245] : memref<1152x256xbf16, #tpu.memory_space<vmem>>, vector<128x256xbf16>
    %cst_246 = arith.constant dense<0.000000e+00> : vector<2x256xf32>
    %296 = tpu.matmul %294, %295, %cst_246 {dimension_numbers = #tpu.dot_dimension_numbers<[1], [0], [0], [1], [0, 0, 1, 1], [], []>} : vector<2x128xbf16>, vector<128x256xbf16>, vector<2x256xf32> -> vector<2x256xf32>
    %297 = arith.addf %292, %296 : vector<2x256xf32>
    %c8_247 = arith.constant 8 : index
    %c0_248 = arith.constant 0 : index
    %298 = tpu.strided_load %arg22[%c8_247, %c0_248] {strides = array<i32: 16, 1>} : memref<40x128xf32, #tpu.memory_space<vmem>>, vector<2x128xf32>
    %299 = arith.truncf %298 : vector<2x128xf32> to vector<2x128xbf16>
    %c768_249 = arith.constant 768 : index
    %c0_250 = arith.constant 0 : index
    %300 = vector.load %arg8[%c768_249, %c0_250] : memref<1152x256xbf16, #tpu.memory_space<vmem>>, vector<128x256xbf16>
    %cst_251 = arith.constant dense<0.000000e+00> : vector<2x256xf32>
    %301 = tpu.matmul %299, %300, %cst_251 {dimension_numbers = #tpu.dot_dimension_numbers<[1], [0], [0], [1], [0, 0, 1, 1], [], []>} : vector<2x128xbf16>, vector<128x256xbf16>, vector<2x256xf32> -> vector<2x256xf32>
    %302 = arith.addf %297, %301 : vector<2x256xf32>
    %c9 = arith.constant 9 : index
    %c0_252 = arith.constant 0 : index
    %303 = tpu.strided_load %arg22[%c9, %c0_252] {strides = array<i32: 16, 1>} : memref<40x128xf32, #tpu.memory_space<vmem>>, vector<2x128xf32>
    %304 = arith.truncf %303 : vector<2x128xf32> to vector<2x128xbf16>
    %c896_253 = arith.constant 896 : index
    %c0_254 = arith.constant 0 : index
    %305 = vector.load %arg8[%c896_253, %c0_254] : memref<1152x256xbf16, #tpu.memory_space<vmem>>, vector<128x256xbf16>
    %cst_255 = arith.constant dense<0.000000e+00> : vector<2x256xf32>
    %306 = tpu.matmul %304, %305, %cst_255 {dimension_numbers = #tpu.dot_dimension_numbers<[1], [0], [0], [1], [0, 0, 1, 1], [], []>} : vector<2x128xbf16>, vector<128x256xbf16>, vector<2x256xf32> -> vector<2x256xf32>
    %307 = arith.addf %302, %306 : vector<2x256xf32>
    %c10 = arith.constant 10 : index
    %c0_256 = arith.constant 0 : index
    %308 = tpu.strided_load %arg22[%c10, %c0_256] {strides = array<i32: 16, 1>} : memref<40x128xf32, #tpu.memory_space<vmem>>, vector<2x128xf32>
    %309 = arith.truncf %308 : vector<2x128xf32> to vector<2x128xbf16>
    %c1024_257 = arith.constant 1024 : index
    %c0_258 = arith.constant 0 : index
    %310 = vector.load %arg8[%c1024_257, %c0_258] : memref<1152x256xbf16, #tpu.memory_space<vmem>>, vector<128x256xbf16>
    %cst_259 = arith.constant dense<0.000000e+00> : vector<2x256xf32>
    %311 = tpu.matmul %309, %310, %cst_259 {dimension_numbers = #tpu.dot_dimension_numbers<[1], [0], [0], [1], [0, 0, 1, 1], [], []>} : vector<2x128xbf16>, vector<128x256xbf16>, vector<2x256xf32> -> vector<2x256xf32>
    %312 = arith.addf %307, %311 : vector<2x256xf32>
    %c0_260 = arith.constant 0 : index
    %c0_261 = arith.constant 0 : index
    %313 = vector.load %arg9[%c0_260, %c0_261] : memref<1x256xf32, #tpu.memory_space<vmem>>, vector<1x256xf32>
    %314 = vector.broadcast %313 : vector<1x256xf32> to vector<2x256xf32>
    %315 = arith.addf %312, %314 : vector<2x256xf32>
    %cst_262 = arith.constant 0.000000e+00 : f32
    %316 = vector.broadcast %cst_262 : f32 to vector<2x256xf32>
    %317 = arith.maximumf %315, %316 : vector<2x256xf32>
    %318 = vector.extract_strided_slice %317 {offsets = [0, 0], sizes = [2, 128], strides = [1, 1]} : vector<2x256xf32> to vector<2x128xf32>
    %319 = arith.truncf %318 : vector<2x128xf32> to vector<2x128xbf16>
    %320 = vector.extract_strided_slice %317 {offsets = [0, 128], sizes = [2, 128], strides = [1, 1]} : vector<2x256xf32> to vector<2x128xf32>
    %321 = arith.truncf %320 : vector<2x128xf32> to vector<2x128xbf16>
    %c0_263 = arith.constant 0 : index
    %c0_264 = arith.constant 0 : index
    %322 = vector.load %arg10[%c0_263, %c0_264] : memref<128x1xbf16, #tpu.memory_space<vmem>>, vector<128x1xbf16>
    %cst_265 = arith.constant dense<0.000000e+00> : vector<2x1xf32>
    %323 = tpu.matmul %319, %322, %cst_265 {dimension_numbers = #tpu.dot_dimension_numbers<[1], [0], [0], [1], [0, 0, 1, 1], [], []>} : vector<2x128xbf16>, vector<128x1xbf16>, vector<2x1xf32> -> vector<2x1xf32>
    %c0_266 = arith.constant 0 : index
    %c0_267 = arith.constant 0 : index
    %324 = vector.load %arg11[%c0_266, %c0_267] : memref<1x1xf32, #tpu.memory_space<vmem>>, vector<1x1xf32>
    %325 = vector.broadcast %324 : vector<1x1xf32> to vector<2x1xf32>
    %326 = arith.addf %323, %325 : vector<2x1xf32>
    %cst_268 = arith.constant 0.000000e+00 : f32
    %327 = vector.broadcast %cst_268 : f32 to vector<2x1xf32>
    %328 = arith.subf %327, %326 : vector<2x1xf32>
    %329 = math.exp %328 : vector<2x1xf32>
    %cst_269 = arith.constant 1.000000e+00 : f32
    %330 = vector.broadcast %cst_269 : f32 to vector<2x1xf32>
    %331 = arith.addf %330, %329 : vector<2x1xf32>
    %cst_270 = arith.constant 1.000000e+00 : f32
    %332 = vector.broadcast %cst_270 : f32 to vector<2x1xf32>
    %333 = arith.divf %332, %331 : vector<2x1xf32>
    %c0_271 = arith.constant 0 : index
    %c0_272 = arith.constant 0 : index
    %334 = vector.load %arg14[%c0_271, %c0_272] : memref<2x1xf32, #tpu.memory_space<vmem>>, vector<2x1xf32>
    tpu.vector_store %arg14[%c0_271, %c0_272], %333 {strides = array<i32>} : memref<2x1xf32, #tpu.memory_space<vmem>>, vector<2x1xf32>,
    %c0_273 = arith.constant 0 : index
    %c0_274 = arith.constant 0 : index
    %335 = vector.load %arg12[%c0_273, %c0_274] : memref<128x4xbf16, #tpu.memory_space<vmem>>, vector<128x4xbf16>
    %cst_275 = arith.constant dense<0.000000e+00> : vector<2x4xf32>
    %336 = tpu.matmul %321, %335, %cst_275 {dimension_numbers = #tpu.dot_dimension_numbers<[1], [0], [0], [1], [0, 0, 1, 1], [], []>} : vector<2x128xbf16>, vector<128x4xbf16>, vector<2x4xf32> -> vector<2x4xf32>
    %c0_276 = arith.constant 0 : index
    %c0_277 = arith.constant 0 : index
    %337 = vector.load %arg13[%c0_276, %c0_277] : memref<1x4xf32, #tpu.memory_space<vmem>>, vector<1x4xf32>
    %338 = vector.broadcast %337 : vector<1x4xf32> to vector<2x4xf32>
    %339 = arith.addf %336, %338 : vector<2x4xf32>
    %c0_278 = arith.constant 0 : index
    %c0_279 = arith.constant 0 : index
    %340 = vector.load %arg15[%c0_278, %c0_279] : memref<2x4xf32, #tpu.memory_space<vmem>>, vector<2x4xf32>
    tpu.vector_store %arg15[%c0_278, %c0_279], %339 {strides = array<i32>} : memref<2x4xf32, #tpu.memory_space<vmem>>, vector<2x4xf32>,
    return
  }
  func.func @transform_0(%arg0: i32) -> (i32, i32) {
    %c0_i32 = arith.constant 0 : i32
    %c0_i32_0 = arith.constant 0 : i32
    %c0_i32_1 = arith.constant 0 : i32
    return %c0_i32, %c0_i32_0 : i32, i32
  }
  func.func @transform_1(%arg0: i32) -> (i32, i32) {
    %c0_i32 = arith.constant 0 : i32
    %c0_i32_0 = arith.constant 0 : i32
    %c0_i32_1 = arith.constant 0 : i32
    return %c0_i32, %c0_i32_0 : i32, i32
  }
  func.func @transform_2(%arg0: i32) -> (i32, i32) {
    %c0_i32 = arith.constant 0 : i32
    %c0_i32_0 = arith.constant 0 : i32
    %c0_i32_1 = arith.constant 0 : i32
    return %c0_i32, %c0_i32_0 : i32, i32
  }
  func.func @transform_3(%arg0: i32) -> (i32, i32) {
    %c0_i32 = arith.constant 0 : i32
    %c0_i32_0 = arith.constant 0 : i32
    %c0_i32_1 = arith.constant 0 : i32
    return %c0_i32, %c0_i32_0 : i32, i32
  }
  func.func @transform_4(%arg0: i32) -> (i32, i32) {
    %c0_i32 = arith.constant 0 : i32
    %c0_i32_0 = arith.constant 0 : i32
    %c0_i32_1 = arith.constant 0 : i32
    return %c0_i32, %c0_i32_0 : i32, i32
  }
  func.func @transform_5(%arg0: i32) -> (i32, i32) {
    %c0_i32 = arith.constant 0 : i32
    %c0_i32_0 = arith.constant 0 : i32
    %c0_i32_1 = arith.constant 0 : i32
    return %c0_i32, %c0_i32_0 : i32, i32
  }
  func.func @transform_6(%arg0: i32) -> (i32, i32) {
    %c0_i32 = arith.constant 0 : i32
    %c0_i32_0 = arith.constant 0 : i32
    %c0_i32_1 = arith.constant 0 : i32
    return %c0_i32, %c0_i32_0 : i32, i32
  }
  func.func @transform_7(%arg0: i32) -> (i32, i32) {
    %c0_i32 = arith.constant 0 : i32
    %c0_i32_0 = arith.constant 0 : i32
    %c0_i32_1 = arith.constant 0 : i32
    return %c0_i32, %c0_i32_0 : i32, i32
  }
  func.func @transform_8(%arg0: i32) -> (i32, i32) {
    %c0_i32 = arith.constant 0 : i32
    %c0_i32_0 = arith.constant 0 : i32
    %c0_i32_1 = arith.constant 0 : i32
    return %c0_i32, %c0_i32_0 : i32, i32
  }
  func.func @transform_9(%arg0: i32) -> (i32, i32) {
    %c0_i32 = arith.constant 0 : i32
    %c0_i32_0 = arith.constant 0 : i32
    %c0_i32_1 = arith.constant 0 : i32
    return %c0_i32, %c0_i32_0 : i32, i32
  }
  func.func @transform_10(%arg0: i32) -> (i32, i32) {
    %c0_i32 = arith.constant 0 : i32
    %c0_i32_0 = arith.constant 0 : i32
    %c0_i32_1 = arith.constant 0 : i32
    return %c0_i32, %c0_i32_0 : i32, i32
  }
  func.func @transform_11(%arg0: i32) -> (i32, i32) {
    %c0_i32 = arith.constant 0 : i32
    %c0_i32_0 = arith.constant 0 : i32
    %c0_i32_1 = arith.constant 0 : i32
    return %c0_i32, %c0_i32_0 : i32, i32
  }
  func.func @transform_12(%arg0: i32) -> (i32, i32) {
    %c0_i32 = arith.constant 0 : i32
    %c0_i32_0 = arith.constant 0 : i32
    %c0_i32_1 = arith.constant 0 : i32
    return %c0_i32, %c0_i32_0 : i32, i32
  }
  func.func @transform_13(%arg0: i32) -> (i32, i32) {
    %c0_i32 = arith.constant 0 : i32
    %c0_i32_0 = arith.constant 0 : i32
    %c0_i32_1 = arith.constant 0 : i32
    return %c0_i32, %c0_i32_0 : i32, i32
  }
  func.func @transform_14(%arg0: i32) -> (i32, i32) {
    %c0_i32 = arith.constant 0 : i32
    %c0_i32_0 = arith.constant 0 : i32
    %c0_i32_1 = arith.constant 0 : i32
    return %c0_i32, %c0_i32_0 : i32, i32
  }
}

</mosaic_0001>

<llo_original>
// kernel: rnet_forward.1
$region0: #{rnet_forward.1}
  #allocation0 [shape = 'u32[]', space=smem, size = 0x4, offset = 0x4, fixed_abs, tag = 'smem constant byte address 0x4 - core index']
  #allocation1 [shape = 'u32[72,128]{1,0:T(1,128)}', space=vmem, size = 0x9000, scoped, tag = 'internal scratch']
  #allocation2 [shape = 'f32[1208,128]{1,0:T(8,128)}', space=vmem, size = 0x97000, scoped, tag = 'scratch operand']
  #allocation3 [shape = 'f32[1152,128]{1,0:T(8,128)}', space=vmem, size = 0x90000, scoped, tag = 'scratch operand']
  #allocation4 [shape = 'f32[272,128]{1,0:T(8,128)}', space=vmem, size = 0x22000, scoped, tag = 'scratch operand']
  #allocation5 [shape = 'f32[272,128]{1,0:T(8,128)}', space=vmem, size = 0x22000, scoped, tag = 'scratch operand']
  #allocation6 [shape = 'f32[272,128]{1,0:T(8,128)}', space=vmem, size = 0x22000, scoped, tag = 'scratch operand']
  #allocation7 [shape = 'f32[40,128]{1,0:T(8,128)}', space=vmem, size = 0x5000, scoped, tag = 'scratch operand']
  #allocation8 [shape = 'f32[40,128]{1,0:T(8,128)}', space=vmem, size = 0x5000, scoped, tag = 'scratch operand']
  #allocation9 [shape = 'f32[1,1]{1,0:T(1,128)S(1)}', space=vmem, size = 0x200, scoped, tag = 'scoped memory for rnet_forward.1']
  %s0 = inlined_call_operand.vmem [shape: bf16[1152,32], index: 0, kind: input, shape index: {}]
  %s1 = inlined_call_operand.vmem [shape: f32[242,1], index: 1, kind: input, shape index: {}]
  %s2 = inlined_call_operand.vmem [shape: f32[32,1], index: 2, kind: input, shape index: {}]
  %s3 = inlined_call_operand.vmem [shape: bf16[32,128], index: 3, kind: input, shape index: {}]
  %s4 = inlined_call_operand.vmem [shape: bf16[1152,128], index: 4, kind: input, shape index: {}]
  %s5 = inlined_call_operand.vmem [shape: bf16[512,128], index: 5, kind: input, shape index: {}]
  %s6 = inlined_call_operand.vmem [shape: f32[6,128], index: 6, kind: input, shape index: {}]
  %s7 = inlined_call_operand.vmem [shape: bf16[1152,256], index: 7, kind: input, shape index: {}]
  %s8 = inlined_call_operand.vmem [shape: f32[1,256], index: 8, kind: input, shape index: {}]
  %s9 = inlined_call_operand.vmem [shape: bf16[128,1], index: 9, kind: input, shape index: {}]
  %s10 = inlined_call_operand.<no memory space> [shape: f32[1,1], index: 10, kind: input, shape index: {}]
  %s11 = inlined_call_operand.vmem [shape: bf16[128,4], index: 11, kind: input, shape index: {}]
  %s12 = inlined_call_operand.vmem [shape: f32[1,4], index: 12, kind: input, shape index: {}]
  %s13 = inlined_call_operand.vmem [shape: f32[2,1], index: 13, kind: output, shape index: {0}]
  %s14 = inlined_call_operand.hbm [shape: f32[2,4], index: 14, kind: output, shape index: {1}]
  %15 = xla_tuple %s13, %s14
  %s16 = sld [smem:[#allocation0]]
  $region70: #{rnet_forward.1} parent=0
    _
  %s18 = ssub.s32 1, %s16
  %s19 = scalar_select 0, %s18, %s16
  %v20 = vstv %s10
  %21 = vst [vmem:[#allocation9] sm:$0x1] %v20
  $region1: #{rnet_forward.1} parent=0
    #allocation10 [shape = 'u8[1024]{0}', space=vmem, size = 0x400, scoped, tag = 'output window, operand 1, single buffered']
    #allocation11 [shape = 's32[1]{0}', space=sflag, size = 0x4, scoped, tag = 'scoped memory for rnet_forward.1']
    %22 = vsyncpa [#allocation11], 0
    // Predicated region
    $region2: #{rnet_forward.1} parent=1 // pred_check
      _
    $region3: #{rnet_forward.1} parent=1 // pred_check_branch
      %24 = sbr.rel (0) target = $region5
    $region4: #{rnet_forward.1} parent=1 // pred_region
      _
    $region5: #{rnet_forward.1} parent=1 // pred_fallthru
      _
    // Predicated region
    $region6: #{rnet_forward.1} parent=1 // pred_check
      _
    $region7: #{rnet_forward.1} parent=1 // pred_check_branch
      %26 = sbr.rel (0) target = $region9
    $region8: #{rnet_forward.1} parent=1 // pred_region
      _
    $region9: #{rnet_forward.1} parent=1 // pred_fallthru
      _
    // Predicated region
    $region10: #{rnet_forward.1} parent=1 // pred_check
      _
    $region11: #{rnet_forward.1} parent=1 // pred_check_branch
      %28 = sbr.rel (0) target = $region13
    $region12: #{rnet_forward.1} parent=1 // pred_region
      _
    $region13: #{rnet_forward.1} parent=1 // pred_fallthru
      _
    // Predicated region
    $region14: #{rnet_forward.1} parent=1 // pred_check
      _
    $region15: #{rnet_forward.1} parent=1 // pred_check_branch
      %30 = sbr.rel (0) target = $region17
    $region16: #{rnet_forward.1} parent=1 // pred_region
      _
    $region17: #{rnet_forward.1} parent=1 // pred_fallthru
      _
    // Predicated region
    $region18: #{rnet_forward.1} parent=1 // pred_check
      _
    $region19: #{rnet_forward.1} parent=1 // pred_check_branch
      %32 = sbr.rel (0) target = $region21
    $region20: #{rnet_forward.1} parent=1 // pred_region
      _
    $region21: #{rnet_forward.1} parent=1 // pred_fallthru
      _
    // Predicated region
    $region22: #{rnet_forward.1} parent=1 // pred_check
      _
    $region23: #{rnet_forward.1} parent=1 // pred_check_branch
      %34 = sbr.rel (0) target = $region25
    $region24: #{rnet_forward.1} parent=1 // pred_region
      _
    $region25: #{rnet_forward.1} parent=1 // pred_fallthru
      _
    // Predicated region
    $region26: #{rnet_forward.1} parent=1 // pred_check
      _
    $region27: #{rnet_forward.1} parent=1 // pred_check_branch
      %36 = sbr.rel (0) target = $region29
    $region28: #{rnet_forward.1} parent=1 // pred_region
      _
    $region29: #{rnet_forward.1} parent=1 // pred_fallthru
      _
    // Predicated region
    $region30: #{rnet_forward.1} parent=1 // pred_check
      _
    $region31: #{rnet_forward.1} parent=1 // pred_check_branch
      %38 = sbr.rel (0) target = $region33
    $region32: #{rnet_forward.1} parent=1 // pred_region
      _
    $region33: #{rnet_forward.1} parent=1 // pred_fallthru
      _
    // Predicated region
    $region34: #{rnet_forward.1} parent=1 // pred_check
      _
    $region35: #{rnet_forward.1} parent=1 // pred_check_branch
      %40 = sbr.rel (0) target = $region37
    $region36: #{rnet_forward.1} parent=1 // pred_region
      _
    $region37: #{rnet_forward.1} parent=1 // pred_fallthru
      _
    // Predicated region
    $region38: #{rnet_forward.1} parent=1 // pred_check
      _
    $region39: #{rnet_forward.1} parent=1 // pred_check_branch
      %42 = sbr.rel (0) target = $region41
    $region40: #{rnet_forward.1} parent=1 // pred_region
      _
    $region41: #{rnet_forward.1} parent=1 // pred_fallthru
      _
    // Predicated region
    $region42: #{rnet_forward.1} parent=1 // pred_check
      _
    $region43: #{rnet_forward.1} parent=1 // pred_check_branch
      %44 = sbr.rel (0) target = $region45
    $region44: #{rnet_forward.1} parent=1 // pred_region
      _
    $region45: #{rnet_forward.1} parent=1 // pred_fallthru
      _
    // Predicated region
    $region46: #{rnet_forward.1} parent=1 // pred_check
      _
    $region47: #{rnet_forward.1} parent=1 // pred_check_branch
      %46 = sbr.rel (0) target = $region49
    $region48: #{rnet_forward.1} parent=1 // pred_region
      _
    $region49: #{rnet_forward.1} parent=1 // pred_fallthru
      _
    // Predicated region
    $region50: #{rnet_forward.1} parent=1 // pred_check
      _
    $region51: #{rnet_forward.1} parent=1 // pred_check_branch
      %48 = sbr.rel (0) target = $region53
    $region52: #{rnet_forward.1} parent=1 // pred_region
      _
    $region53: #{rnet_forward.1} parent=1 // pred_fallthru
      _
    %v50 = vld [vmem:[%s0] sm:$0xf]
    %v51 = vld [vmem:[%s0 + $0x4] sm:$0xf]
    %v52 = vld [vmem:[%s0 + $0x8] sm:$0xf]
    %v53 = vld [vmem:[%s0 + $0xc] sm:$0xf]
    %v54 = vld [vmem:[%s0 + $0x10] sm:$0xf]
    %v55 = vld [vmem:[%s0 + $0x14] sm:$0xf]
    %v56 = vld [vmem:[%s0 + $0x18] sm:$0xf]
    %v57 = vld [vmem:[%s0 + $0x1c] sm:$0xf]
    %v58 = vld [vmem:[%s0 + $0x20] sm:$0xf]
    %v59 = vld [vmem:[%s0 + $0x24] sm:$0xf]
    %v60 = vld [vmem:[%s0 + $0x28] sm:$0xf]
    %v61 = vld [vmem:[%s0 + $0x2c] sm:$0xf]
    %v62 = vld [vmem:[%s0 + $0x30] sm:$0xf]
    %v63 = vld [vmem:[%s0 + $0x34] sm:$0xf]
    %v64 = vld [vmem:[%s0 + $0x38] sm:$0xf]
    %v65 = vld [vmem:[%s0 + $0x3c] sm:$0xf]
    %v66 = vld [vmem:[%s0 + $0x40] sm:$0xf]
    %v67 = vld [vmem:[%s0 + $0x44] sm:$0xf]
    %v68 = vld [vmem:[%s0 + $0x48] sm:$0xf]
    %v69 = vld [vmem:[%s0 + $0x4c] sm:$0xf]
    %v70 = vld [vmem:[%s0 + $0x50] sm:$0xf]
    %v71 = vld [vmem:[%s0 + $0x54] sm:$0xf]
    %v72 = vld [vmem:[%s0 + $0x58] sm:$0xf]
    %v73 = vld [vmem:[%s0 + $0x5c] sm:$0xf]
    %v74 = vld [vmem:[%s0 + $0x60] sm:$0xf]
    %v75 = vld [vmem:[%s0 + $0x64] sm:$0xf]
    %v76 = vld [vmem:[%s0 + $0x68] sm:$0xf]
    %v77 = vld [vmem:[%s0 + $0x6c] sm:$0xf]
    %v78 = vld [vmem:[%s0 + $0x70] sm:$0xf]
    %v79 = vld [vmem:[%s0 + $0x74] sm:$0xf]
    %v80 = vld [vmem:[%s0 + $0x78] sm:$0xf]
    %v81 = vld [vmem:[%s0 + $0x7c] sm:$0xf]
    %v82 = vld [vmem:[%s0 + $0x80] sm:$0xf]
    %v83 = vld [vmem:[%s0 + $0x84] sm:$0xf]
    %v84 = vld [vmem:[%s0 + $0x88] sm:$0xf]
    %v85 = vld [vmem:[%s0 + $0x8c] sm:$0xf]
    %v86 = vld [vmem:[%s0 + $0x90] sm:$0xf]
    %v87 = vld [vmem:[%s0 + $0x94] sm:$0xf]
    %v88 = vld [vmem:[%s0 + $0x98] sm:$0xf]
    %v89 = vld [vmem:[%s0 + $0x9c] sm:$0xf]
    %v90 = vld [vmem:[%s0 + $0xa0] sm:$0xf]
    %v91 = vld [vmem:[%s0 + $0xa4] sm:$0xf]
    %v92 = vld [vmem:[%s0 + $0xa8] sm:$0xf]
    %v93 = vld [vmem:[%s0 + $0xac] sm:$0xf]
    %v94 = vld [vmem:[%s0 + $0xb0] sm:$0xf]
    %v95 = vld [vmem:[%s0 + $0xb4] sm:$0xf]
    %v96 = vld [vmem:[%s0 + $0xb8] sm:$0xf]
    %v97 = vld [vmem:[%s0 + $0xbc] sm:$0xf]
    %v98 = vld [vmem:[%s0 + $0xc0] sm:$0xf]
    %v99 = vld [vmem:[%s0 + $0xc4] sm:$0xf]
    %v100 = vld [vmem:[%s0 + $0xc8] sm:$0xf]
    %v101 = vld [vmem:[%s0 + $0xcc] sm:$0xf]
    %v102 = vld [vmem:[%s0 + $0xd0] sm:$0xf]
    %v103 = vld [vmem:[%s0 + $0xd4] sm:$0xf]
    %v104 = vld [vmem:[%s0 + $0xd8] sm:$0xf]
    %v105 = vld [vmem:[%s0 + $0xdc] sm:$0xf]
    %v106 = vld [vmem:[%s0 + $0xe0] sm:$0xf]
    %v107 = vld [vmem:[%s0 + $0xe4] sm:$0xf]
    %v108 = vld [vmem:[%s0 + $0xe8] sm:$0xf]
    %v109 = vld [vmem:[%s0 + $0xec] sm:$0xf]
    %v110 = vld [vmem:[%s0 + $0xf0] sm:$0xf]
    %v111 = vld [vmem:[%s0 + $0xf4] sm:$0xf]
    %v112 = vld [vmem:[%s0 + $0xf8] sm:$0xf]
    %v113 = vld [vmem:[%s0 + $0xfc] sm:$0xf]
    %v114 = vld [vmem:[%s0 + $0x100] sm:$0xf]
    %v115 = vld [vmem:[%s0 + $0x104] sm:$0xf]
    %v116 = vld [vmem:[%s0 + $0x108] sm:$0xf]
    %v117 = vld [vmem:[%s0 + $0x10c] sm:$0xf]
    %v118 = vld [vmem:[%s0 + $0x110] sm:$0xf]
    %v119 = vld [vmem:[%s0 + $0x114] sm:$0xf]
    %v120 = vld [vmem:[%s0 + $0x118] sm:$0xf]
    %v121 = vld [vmem:[%s0 + $0x11c] sm:$0xf]
    %v122 = vld [vmem:[%s0 + $0x120] sm:$0xf]
    %v123 = vld [vmem:[%s0 + $0x124] sm:$0xf]
    %v124 = vld [vmem:[%s0 + $0x128] sm:$0xf]
    %v125 = vld [vmem:[%s0 + $0x12c] sm:$0xf]
    %v126 = vld [vmem:[%s0 + $0x130] sm:$0xf]
    %v127 = vld [vmem:[%s0 + $0x134] sm:$0xf]
    %v128 = vld [vmem:[%s0 + $0x138] sm:$0xf]
    %v129 = vld [vmem:[%s0 + $0x13c] sm:$0xf]
    %v130 = vld [vmem:[%s0 + $0x140] sm:$0xf]
    %v131 = vld [vmem:[%s0 + $0x144] sm:$0xf]
    %v132 = vld [vmem:[%s0 + $0x148] sm:$0xf]
    %v133 = vld [vmem:[%s0 + $0x14c] sm:$0xf]
    %v134 = vld [vmem:[%s0 + $0x150] sm:$0xf]
    %v135 = vld [vmem:[%s0 + $0x154] sm:$0xf]
    %v136 = vld [vmem:[%s0 + $0x158] sm:$0xf]
    %v137 = vld [vmem:[%s0 + $0x15c] sm:$0xf]
    %v138 = vld [vmem:[%s0 + $0x160] sm:$0xf]
    %v139 = vld [vmem:[%s0 + $0x164] sm:$0xf]
    %v140 = vld [vmem:[%s0 + $0x168] sm:$0xf]
    %v141 = vld [vmem:[%s0 + $0x16c] sm:$0xf]
    %v142 = vld [vmem:[%s0 + $0x170] sm:$0xf]
    %v143 = vld [vmem:[%s0 + $0x174] sm:$0xf]
    %v144 = vld [vmem:[%s0 + $0x178] sm:$0xf]
    %v145 = vld [vmem:[%s0 + $0x17c] sm:$0xf]
    %v146 = vld [vmem:[%s0 + $0x180] sm:$0xf]
    %v147 = vld [vmem:[%s0 + $0x184] sm:$0xf]
    %v148 = vld [vmem:[%s0 + $0x188] sm:$0xf]
    %v149 = vld [vmem:[%s0 + $0x18c] sm:$0xf]
    %v150 = vld [vmem:[%s0 + $0x190] sm:$0xf]
    %v151 = vld [vmem:[%s0 + $0x194] sm:$0xf]
    %v152 = vld [vmem:[%s0 + $0x198] sm:$0xf]
    %v153 = vld [vmem:[%s0 + $0x19c] sm:$0xf]
    %v154 = vld [vmem:[%s0 + $0x1a0] sm:$0xf]
    %v155 = vld [vmem:[%s0 + $0x1a4] sm:$0xf]
    %v156 = vld [vmem:[%s0 + $0x1a8] sm:$0xf]
    %v157 = vld [vmem:[%s0 + $0x1ac] sm:$0xf]
    %v158 = vld [vmem:[%s0 + $0x1b0] sm:$0xf]
    %v159 = vld [vmem:[%s0 + $0x1b4] sm:$0xf]
    %v160 = vld [vmem:[%s0 + $0x1b8] sm:$0xf]
    %v161 = vld [vmem:[%s0 + $0x1bc] sm:$0xf]
    %v162 = vld [vmem:[%s0 + $0x1c0] sm:$0xf]
    %v163 = vld [vmem:[%s0 + $0x1c4] sm:$0xf]
    %v164 = vld [vmem:[%s0 + $0x1c8] sm:$0xf]
    %v165 = vld [vmem:[%s0 + $0x1cc] sm:$0xf]
    %v166 = vld [vmem:[%s0 + $0x1d0] sm:$0xf]
    %v167 = vld [vmem:[%s0 + $0x1d4] sm:$0xf]
    %v168 = vld [vmem:[%s0 + $0x1d8] sm:$0xf]
    %v169 = vld [vmem:[%s0 + $0x1dc] sm:$0xf]
    %v170 = vld [vmem:[%s0 + $0x1e0] sm:$0xf]
    %v171 = vld [vmem:[%s0 + $0x1e4] sm:$0xf]
    %v172 = vld [vmem:[%s0 + $0x1e8] sm:$0xf]
    %v173 = vld [vmem:[%s0 + $0x1ec] sm:$0xf]
    %v174 = vld [vmem:[%s0 + $0x1f0] sm:$0xf]
    %v175 = vld [vmem:[%s0 + $0x1f4] sm:$0xf]
    %v176 = vld [vmem:[%s0 + $0x1f8] sm:$0xf]
    %v177 = vld [vmem:[%s0 + $0x1fc] sm:$0xf]
    %v178 = vld [vmem:[%s0 + $0x200] sm:$0xf]
    %v179 = vld [vmem:[%s0 + $0x204] sm:$0xf]
    %v180 = vld [vmem:[%s0 + $0x208] sm:$0xf]
    %v181 = vld [vmem:[%s0 + $0x20c] sm:$0xf]
    %v182 = vld [vmem:[%s0 + $0x210] sm:$0xf]
    %v183 = vld [vmem:[%s0 + $0x214] sm:$0xf]
    %v184 = vld [vmem:[%s0 + $0x218] sm:$0xf]
    %v185 = vld [vmem:[%s0 + $0x21c] sm:$0xf]
    %v186 = vld [vmem:[%s0 + $0x220] sm:$0xf]
    %v187 = vld [vmem:[%s0 + $0x224] sm:$0xf]
    %v188 = vld [vmem:[%s0 + $0x228] sm:$0xf]
    %v189 = vld [vmem:[%s0 + $0x22c] sm:$0xf]
    %v190 = vld [vmem:[%s0 + $0x230] sm:$0xf]
    %v191 = vld [vmem:[%s0 + $0x234] sm:$0xf]
    %v192 = vld [vmem:[%s0 + $0x238] sm:$0xf]
    %v193 = vld [vmem:[%s0 + $0x23c] sm:$0xf]
    %v194 = vld [vmem:[%s3] sm:$0xf]
    %v195 = vld [vmem:[%s3 + $0x4] sm:$0xf]
    %v196 = vld [vmem:[%s3 + $0x8] sm:$0xf]
    %v197 = vld [vmem:[%s3 + $0xc] sm:$0xf]
    %v342 = vunpack.c.l.b16 %v50
    %v343 = vunpack.c.l.b16 %v51
    %v344 = vunpack.c.l.b16 %v52
    %v345 = vunpack.c.l.b16 %v53
    %v346 = vunpack.c.l.b16 %v54
    %v347 = vunpack.c.l.b16 %v55
    %v348 = vunpack.c.l.b16 %v56
    %v349 = vunpack.c.l.b16 %v57
    %v350 = vunpack.c.l.b16 %v58
    %v351 = vunpack.c.l.b16 %v59
    %v352 = vunpack.c.l.b16 %v60
    %v353 = vunpack.c.l.b16 %v61
    %v354 = vunpack.c.l.b16 %v62
    %v355 = vunpack.c.l.b16 %v63
    %v356 = vunpack.c.l.b16 %v64
    %v357 = vunpack.c.l.b16 %v65
    %v358 = vunpack.c.l.b16 %v66
    %v359 = vunpack.c.l.b16 %v67
    %v360 = vunpack.c.l.b16 %v68
    %v361 = vunpack.c.l.b16 %v69
    %v362 = vunpack.c.l.b16 %v70
    %v363 = vunpack.c.l.b16 %v71
    %v364 = vunpack.c.l.b16 %v72
    %v365 = vunpack.c.l.b16 %v73
    %v366 = vunpack.c.l.b16 %v74
    %v367 = vunpack.c.l.b16 %v75
    %v368 = vunpack.c.l.b16 %v76
    %v369 = vunpack.c.l.b16 %v77
    %v370 = vunpack.c.l.b16 %v78
    %v371 = vunpack.c.l.b16 %v79
    %v372 = vunpack.c.l.b16 %v80
    %v373 = vunpack.c.l.b16 %v81
    %v374 = vunpack.c.l.b16 %v82
    %v375 = vunpack.c.l.b16 %v83
    %v376 = vunpack.c.l.b16 %v84
    %v377 = vunpack.c.l.b16 %v85
    %v378 = vunpack.c.l.b16 %v86
    %v379 = vunpack.c.l.b16 %v87
    %v380 = vunpack.c.l.b16 %v88
    %v381 = vunpack.c.l.b16 %v89
    %v382 = vunpack.c.l.b16 %v90
    %v383 = vunpack.c.l.b16 %v91
    %v384 = vunpack.c.l.b16 %v92
    %v385 = vunpack.c.l.b16 %v93
    %v386 = vunpack.c.l.b16 %v94
    %v387 = vunpack.c.l.b16 %v95
    %v388 = vunpack.c.l.b16 %v96
    %v389 = vunpack.c.l.b16 %v97
    %v390 = vunpack.c.l.b16 %v98
    %v391 = vunpack.c.l.b16 %v99
    %v392 = vunpack.c.l.b16 %v100
    %v393 = vunpack.c.l.b16 %v101
    %v394 = vunpack.c.l.b16 %v102
    %v395 = vunpack.c.l.b16 %v103
    %v396 = vunpack.c.l.b16 %v104
    %v397 = vunpack.c.l.b16 %v105
    %v398 = vunpack.c.l.b16 %v106
    %v399 = vunpack.c.l.b16 %v107
    %v400 = vunpack.c.l.b16 %v108
    %v401 = vunpack.c.l.b16 %v109
    %v402 = vunpack.c.l.b16 %v110
    %v403 = vunpack.c.l.b16 %v111
    %v404 = vunpack.c.l.b16 %v112
    %v405 = vunpack.c.l.b16 %v113
    %v406 = vunpack.c.l.b16 %v114
    %v407 = vunpack.c.l.b16 %v115
    %v408 = vunpack.c.l.b16 %v116
    %v409 = vunpack.c.l.b16 %v117
    %v410 = vunpack.c.l.b16 %v118
    %v411 = vunpack.c.l.b16 %v119
    %v412 = vunpack.c.l.b16 %v120
    %v413 = vunpack.c.l.b16 %v121
    %v414 = vunpack.c.l.b16 %v122
    %v415 = vunpack.c.l.b16 %v123
    %v416 = vunpack.c.l.b16 %v124
    %v417 = vunpack.c.l.b16 %v125
    %v418 = vunpack.c.l.b16 %v126
    %v419 = vunpack.c.l.b16 %v127
    %v420 = vunpack.c.l.b16 %v128
    %v421 = vunpack.c.l.b16 %v129
    %v422 = vunpack.c.l.b16 %v130
    %v423 = vunpack.c.l.b16 %v131
    %v424 = vunpack.c.l.b16 %v132
    %v425 = vunpack.c.l.b16 %v133
    %v426 = vunpack.c.l.b16 %v134
    %v427 = vunpack.c.l.b16 %v135
    %v428 = vunpack.c.l.b16 %v136
    %v429 = vunpack.c.l.b16 %v137
    %v430 = vunpack.c.l.b16 %v138
    %v431 = vunpack.c.l.b16 %v139
    %v432 = vunpack.c.l.b16 %v140
    %v433 = vunpack.c.l.b16 %v141
    %v434 = vunpack.c.l.b16 %v142
    %v435 = vunpack.c.l.b16 %v143
    %v436 = vunpack.c.l.b16 %v144
    %v437 = vunpack.c.l.b16 %v145
    %v438 = vunpack.c.l.b16 %v146
    %v439 = vunpack.c.l.b16 %v147
    %v440 = vunpack.c.l.b16 %v148
    %v441 = vunpack.c.l.b16 %v149
    %v442 = vunpack.c.l.b16 %v150
    %v443 = vunpack.c.l.b16 %v151
    %v444 = vunpack.c.l.b16 %v152
    %v445 = vunpack.c.l.b16 %v153
    %v446 = vunpack.c.l.b16 %v154
    %v447 = vunpack.c.l.b16 %v155
    %v448 = vunpack.c.l.b16 %v156
    %v449 = vunpack.c.l.b16 %v157
    %v450 = vunpack.c.l.b16 %v158
    %v451 = vunpack.c.l.b16 %v159
    %v452 = vunpack.c.l.b16 %v160
    %v453 = vunpack.c.l.b16 %v161
    %v454 = vunpack.c.l.b16 %v162
    %v455 = vunpack.c.l.b16 %v163
    %v456 = vunpack.c.l.b16 %v164
    %v457 = vunpack.c.l.b16 %v165
    %v458 = vunpack.c.l.b16 %v166
    %v459 = vunpack.c.l.b16 %v167
    %v460 = vunpack.c.l.b16 %v168
    %v461 = vunpack.c.l.b16 %v169
    %v462 = vunpack.c.l.b16 %v170
    %v463 = vunpack.c.l.b16 %v171
    %v464 = vunpack.c.l.b16 %v172
    %v465 = vunpack.c.l.b16 %v173
    %v466 = vunpack.c.l.b16 %v174
    %v467 = vunpack.c.l.b16 %v175
    %v468 = vunpack.c.l.b16 %v176
    %v469 = vunpack.c.l.b16 %v177
    %v470 = vunpack.c.l.b16 %v178
    %v471 = vunpack.c.l.b16 %v179
    %v472 = vunpack.c.l.b16 %v180
    %v473 = vunpack.c.l.b16 %v181
    %v474 = vunpack.c.l.b16 %v182
    %v475 = vunpack.c.l.b16 %v183
    %v476 = vunpack.c.l.b16 %v184
    %v477 = vunpack.c.l.b16 %v185
    %v478 = vunpack.c.l.b16 %v186
    %v479 = vunpack.c.l.b16 %v187
    %v480 = vunpack.c.l.b16 %v188
    %v481 = vunpack.c.l.b16 %v189
    %v482 = vunpack.c.l.b16 %v190
    %v483 = vunpack.c.l.b16 %v191
    %v484 = vunpack.c.l.b16 %v192
    %v485 = vunpack.c.l.b16 %v193
    %v486 = vpack.c.b16 %v343, %v342
    %v487 = vpack.c.b16 %v345, %v344
    %v488 = vpack.c.b16 %v347, %v346
    %v489 = vpack.c.b16 %v349, %v348
    %v490 = vpack.c.b16 %v351, %v350
    %v491 = vpack.c.b16 %v353, %v352
    %v492 = vpack.c.b16 %v355, %v354
    %v493 = vpack.c.b16 %v357, %v356
    %v494 = vpack.c.b16 %v359, %v358
    %v495 = vpack.c.b16 %v361, %v360
    %v496 = vpack.c.b16 %v363, %v362
    %v497 = vpack.c.b16 %v365, %v364
    %v498 = vpack.c.b16 %v367, %v366
    %v499 = vpack.c.b16 %v369, %v368
    %v500 = vpack.c.b16 %v371, %v370
    %v501 = vpack.c.b16 %v373, %v372
    %v502 = vpack.c.b16 %v375, %v374
    %v503 = vpack.c.b16 %v377, %v376
    %v504 = vpack.c.b16 %v379, %v378
    %v505 = vpack.c.b16 %v381, %v380
    %v506 = vpack.c.b16 %v383, %v382
    %v507 = vpack.c.b16 %v385, %v384
    %v508 = vpack.c.b16 %v387, %v386
    %v509 = vpack.c.b16 %v389, %v388
    %v510 = vpack.c.b16 %v391, %v390
    %v511 = vpack.c.b16 %v393, %v392
    %v512 = vpack.c.b16 %v395, %v394
    %v513 = vpack.c.b16 %v397, %v396
    %v514 = vpack.c.b16 %v399, %v398
    %v515 = vpack.c.b16 %v401, %v400
    %v516 = vpack.c.b16 %v403, %v402
    %v517 = vpack.c.b16 %v405, %v404
    %v518 = vpack.c.b16 %v407, %v406
    %v519 = vpack.c.b16 %v409, %v408
    %v520 = vpack.c.b16 %v411, %v410
    %v521 = vpack.c.b16 %v413, %v412
    %v522 = vpack.c.b16 %v415, %v414
    %v523 = vpack.c.b16 %v417, %v416
    %v524 = vpack.c.b16 %v419, %v418
    %v525 = vpack.c.b16 %v421, %v420
    %v526 = vpack.c.b16 %v423, %v422
    %v527 = vpack.c.b16 %v425, %v424
    %v528 = vpack.c.b16 %v427, %v426
    %v529 = vpack.c.b16 %v429, %v428
    %v530 = vpack.c.b16 %v431, %v430
    %v531 = vpack.c.b16 %v433, %v432
    %v532 = vpack.c.b16 %v435, %v434
    %v533 = vpack.c.b16 %v437, %v436
    %v534 = vpack.c.b16 %v439, %v438
    %v535 = vpack.c.b16 %v441, %v440
    %v536 = vpack.c.b16 %v443, %v442
    %v537 = vpack.c.b16 %v445, %v444
    %v538 = vpack.c.b16 %v447, %v446
    %v539 = vpack.c.b16 %v449, %v448
    %v540 = vpack.c.b16 %v451, %v450
    %v541 = vpack.c.b16 %v453, %v452
    %v542 = vpack.c.b16 %v455, %v454
    %v543 = vpack.c.b16 %v457, %v456
    %v544 = vpack.c.b16 %v459, %v458
    %v545 = vpack.c.b16 %v461, %v460
    %v546 = vpack.c.b16 %v463, %v462
    %v547 = vpack.c.b16 %v465, %v464
    %v548 = vpack.c.b16 %v467, %v466
    %v549 = vpack.c.b16 %v469, %v468
    %v550 = vpack.c.b16 %v471, %v470
    %v551 = vpack.c.b16 %v473, %v472
    %v552 = vpack.c.b16 %v475, %v474
    %v553 = vpack.c.b16 %v477, %v476
    %v554 = vpack.c.b16 %v479, %v478
    %v555 = vpack.c.b16 %v481, %v480
    %v556 = vpack.c.b16 %v483, %v482
    %v557 = vpack.c.b16 %v485, %v484
    %v562 = vunpack.c.l.b16 %v194
    %v563 = vunpack.c.l.b16 %v195
    %v564 = vunpack.c.l.b16 %v196
    %v565 = vunpack.c.l.b16 %v197
    %v566 = vpack.c.b16 %v563, %v562
    %v567 = vpack.c.b16 %v565, %v564
    %vm570 = vcmask 261120
    %v572 = vsel %vm570, %v486, 0
    %v575 = vsel %vm570, %v487, 0
    %v578 = vsel %vm570, %v488, 0
    %v581 = vsel %vm570, %v489, 0
    %v584 = vsel %vm570, %v490, 0
    %v587 = vsel %vm570, %v491, 0
    %v590 = vsel %vm570, %v492, 0
    %v593 = vsel %vm570, %v493, 0
    %v596 = vsel %vm570, %v494, 0
    %v599 = vsel %vm570, %v495, 0
    %v602 = vsel %vm570, %v496, 0
    %v605 = vsel %vm570, %v497, 0
    %v608 = vsel %vm570, %v498, 0
    %v611 = vsel %vm570, %v499, 0
    %v614 = vsel %vm570, %v500, 0
    %v617 = vsel %vm570, %v501, 0
    %v620 = vsel %vm570, %v502, 0
    %v623 = vsel %vm570, %v503, 0
    %v626 = vsel %vm570, %v504, 0
    %v629 = vsel %vm570, %v505, 0
    %v632 = vsel %vm570, %v506, 0
    %v635 = vsel %vm570, %v507, 0
    %v638 = vsel %vm570, %v508, 0
    %v641 = vsel %vm570, %v509, 0
    %v644 = vsel %vm570, %v510, 0
    %v647 = vsel %vm570, %v511, 0
    %v650 = vsel %vm570, %v512, 0
    %v653 = vsel %vm570, %v513, 0
    %v656 = vsel %vm570, %v514, 0
    %v659 = vsel %vm570, %v515, 0
    %v662 = vsel %vm570, %v516, 0
    %v665 = vsel %vm570, %v517, 0
    %v668 = vsel %vm570, %v518, 0
    %v671 = vsel %vm570, %v519, 0
    %v674 = vsel %vm570, %v520, 0
    %v677 = vsel %vm570, %v521, 0
    %v680 = vsel %vm570, %v522, 0
    %v683 = vsel %vm570, %v523, 0
    %v686 = vsel %vm570, %v524, 0
    %v689 = vsel %vm570, %v525, 0
    %v692 = vsel %vm570, %v526, 0
    %v695 = vsel %vm570, %v527, 0
    %v698 = vsel %vm570, %v528, 0
    %v701 = vsel %vm570, %v529, 0
    %v704 = vsel %vm570, %v530, 0
    %v707 = vsel %vm570, %v531, 0
    %v710 = vsel %vm570, %v532, 0
    %v713 = vsel %vm570, %v533, 0
    %v716 = vsel %vm570, %v534, 0
    %v719 = vsel %vm570, %v535, 0
    %v722 = vsel %vm570, %v536, 0
    %v725 = vsel %vm570, %v537, 0
    %v728 = vsel %vm570, %v538, 0
    %v731 = vsel %vm570, %v539, 0
    %v734 = vsel %vm570, %v540, 0
    %v737 = vsel %vm570, %v541, 0
    %v740 = vsel %vm570, %v542, 0
    %v743 = vsel %vm570, %v543, 0
    %v746 = vsel %vm570, %v544, 0
    %v749 = vsel %vm570, %v545, 0
    %v752 = vsel %vm570, %v546, 0
    %v755 = vsel %vm570, %v547, 0
    %v758 = vsel %vm570, %v548, 0
    %v761 = vsel %vm570, %v549, 0
    %v764 = vsel %vm570, %v550, 0
    %v767 = vsel %vm570, %v551, 0
    %v770 = vsel %vm570, %v552, 0
    %v773 = vsel %vm570, %v553, 0
    %v776 = vsel %vm570, %v554, 0
    %v779 = vsel %vm570, %v555, 0
    %v782 = vsel %vm570, %v556, 0
    %v785 = vsel %vm570, %v557, 0
    %787 = vmatpush.bf16.msra.mxu0 0
    %788 = vmatpush.bf16.msra.mxu0 0
    %789 = vmatpush.bf16.msra.mxu0 0
    %790 = vmatpush.bf16.msra.mxu0 0
    %791 = vmatpush.bf16.msra.mxu0 0
    %792 = vmatpush.bf16.msra.mxu0 0
    %793 = vmatpush.bf16.msra.mxu0 %v567
    %794 = vmatpush.bf16.msra.mxu0 %v566
    %795 = vmatmul.bf16.gmra.mxu0 %v572
    %v796 = vpop.f32.mrf.mxu0
    %v797 = vadd.f32 0.0, %v796
    %v798 = vpop.f32.mrf.mxu0
    %v799 = vadd.f32 0.0, %v798
    %800 = vmatmul.bf16.gmra.mxu0 %v575
    %v801 = vpop.f32.mrf.mxu0
    %v802 = vadd.f32 0.0, %v801
    %v803 = vpop.f32.mrf.mxu0
    %v804 = vadd.f32 0.0, %v803
    %805 = vmatmul.bf16.gmra.mxu0 %v578
    %v806 = vpop.f32.mrf.mxu0
    %v807 = vadd.f32 0.0, %v806
    %v808 = vpop.f32.mrf.mxu0
    %v809 = vadd.f32 0.0, %v808
    %810 = vmatmul.bf16.gmra.mxu0 %v581
    %v811 = vpop.f32.mrf.mxu0
    %v812 = vadd.f32 0.0, %v811
    %v813 = vpop.f32.mrf.mxu0
    %v814 = vadd.f32 0.0, %v813
    %815 = vmatmul.bf16.gmra.mxu0 %v584
    %v816 = vpop.f32.mrf.mxu0
    %v817 = vadd.f32 0.0, %v816
    %v818 = vpop.f32.mrf.mxu0
    %v819 = vadd.f32 0.0, %v818
    %820 = vmatmul.bf16.gmra.mxu0 %v587
    %v821 = vpop.f32.mrf.mxu0
    %v822 = vadd.f32 0.0, %v821
    %v823 = vpop.f32.mrf.mxu0
    %v824 = vadd.f32 0.0, %v823
    %825 = vmatmul.bf16.gmra.mxu0 %v590
    %v826 = vpop.f32.mrf.mxu0
    %v827 = vadd.f32 0.0, %v826
    %v828 = vpop.f32.mrf.mxu0
    %v829 = vadd.f32 0.0, %v828
    %830 = vmatmul.bf16.gmra.mxu0 %v593
    %v831 = vpop.f32.mrf.mxu0
    %v832 = vadd.f32 0.0, %v831
    %v833 = vpop.f32.mrf.mxu0
    %v834 = vadd.f32 0.0, %v833
    %835 = vmatmul.bf16.gmra.mxu0 %v596
    %v836 = vpop.f32.mrf.mxu0
    %v837 = vadd.f32 0.0, %v836
    %v838 = vpop.f32.mrf.mxu0
    %v839 = vadd.f32 0.0, %v838
    %840 = vmatmul.bf16.gmra.mxu0 %v599
    %v841 = vpop.f32.mrf.mxu0
    %v842 = vadd.f32 0.0, %v841
    %v843 = vpop.f32.mrf.mxu0
    %v844 = vadd.f32 0.0, %v843
    %845 = vmatmul.bf16.gmra.mxu0 %v602
    %v846 = vpop.f32.mrf.mxu0
    %v847 = vadd.f32 0.0, %v846
    %v848 = vpop.f32.mrf.mxu0
    %v849 = vadd.f32 0.0, %v848
    %850 = vmatmul.bf16.gmra.mxu0 %v605
    %v851 = vpop.f32.mrf.mxu0
    %v852 = vadd.f32 0.0, %v851
    %v853 = vpop.f32.mrf.mxu0
    %v854 = vadd.f32 0.0, %v853
    %855 = vmatmul.bf16.gmra.mxu0 %v608
    %v856 = vpop.f32.mrf.mxu0
    %v857 = vadd.f32 0.0, %v856
    %v858 = vpop.f32.mrf.mxu0
    %v859 = vadd.f32 0.0, %v858
    %860 = vmatmul.bf16.gmra.mxu0 %v611
    %v861 = vpop.f32.mrf.mxu0
    %v862 = vadd.f32 0.0, %v861
    %v863 = vpop.f32.mrf.mxu0
    %v864 = vadd.f32 0.0, %v863
    %865 = vmatmul.bf16.gmra.mxu0 %v614
    %v866 = vpop.f32.mrf.mxu0
    %v867 = vadd.f32 0.0, %v866
    %v868 = vpop.f32.mrf.mxu0
    %v869 = vadd.f32 0.0, %v868
    %870 = vmatmul.bf16.gmra.mxu0 %v617
    %v871 = vpop.f32.mrf.mxu0
    %v872 = vadd.f32 0.0, %v871
    %v873 = vpop.f32.mrf.mxu0
    %v874 = vadd.f32 0.0, %v873
    %875 = vmatmul.bf16.gmra.mxu0 %v620
    %v876 = vpop.f32.mrf.mxu0
    %v877 = vadd.f32 0.0, %v876
    %v878 = vpop.f32.mrf.mxu0
    %v879 = vadd.f32 0.0, %v878
    %880 = vmatmul.bf16.gmra.mxu0 %v623
    %v881 = vpop.f32.mrf.mxu0
    %v882 = vadd.f32 0.0, %v881
    %v883 = vpop.f32.mrf.mxu0
    %v884 = vadd.f32 0.0, %v883
    %885 = vmatmul.bf16.gmra.mxu0 %v626
    %v886 = vpop.f32.mrf.mxu0
    %v887 = vadd.f32 0.0, %v886
    %v888 = vpop.f32.mrf.mxu0
    %v889 = vadd.f32 0.0, %v888
    %890 = vmatmul.bf16.gmra.mxu0 %v629
    %v891 = vpop.f32.mrf.mxu0
    %v892 = vadd.f32 0.0, %v891
    %v893 = vpop.f32.mrf.mxu0
    %v894 = vadd.f32 0.0, %v893
    %895 = vmatmul.bf16.gmra.mxu0 %v632
    %v896 = vpop.f32.mrf.mxu0
    %v897 = vadd.f32 0.0, %v896
    %v898 = vpop.f32.mrf.mxu0
    %v899 = vadd.f32 0.0, %v898
    %900 = vmatmul.bf16.gmra.mxu0 %v635
    %v901 = vpop.f32.mrf.mxu0
    %v902 = vadd.f32 0.0, %v901
    %v903 = vpop.f32.mrf.mxu0
    %v904 = vadd.f32 0.0, %v903
    %905 = vmatmul.bf16.gmra.mxu0 %v638
    %v906 = vpop.f32.mrf.mxu0
    %v907 = vadd.f32 0.0, %v906
    %v908 = vpop.f32.mrf.mxu0
    %v909 = vadd.f32 0.0, %v908
    %910 = vmatmul.bf16.gmra.mxu0 %v641
    %v911 = vpop.f32.mrf.mxu0
    %v912 = vadd.f32 0.0, %v911
    %v913 = vpop.f32.mrf.mxu0
    %v914 = vadd.f32 0.0, %v913
    %915 = vmatmul.bf16.gmra.mxu0 %v644
    %v916 = vpop.f32.mrf.mxu0
    %v917 = vadd.f32 0.0, %v916
    %v918 = vpop.f32.mrf.mxu0
    %v919 = vadd.f32 0.0, %v918
    %920 = vmatmul.bf16.gmra.mxu0 %v647
    %v921 = vpop.f32.mrf.mxu0
    %v922 = vadd.f32 0.0, %v921
    %v923 = vpop.f32.mrf.mxu0
    %v924 = vadd.f32 0.0, %v923
    %925 = vmatmul.bf16.gmra.mxu0 %v650
    %v926 = vpop.f32.mrf.mxu0
    %v927 = vadd.f32 0.0, %v926
    %v928 = vpop.f32.mrf.mxu0
    %v929 = vadd.f32 0.0, %v928
    %930 = vmatmul.bf16.gmra.mxu0 %v653
    %v931 = vpop.f32.mrf.mxu0
    %v932 = vadd.f32 0.0, %v931
    %v933 = vpop.f32.mrf.mxu0
    %v934 = vadd.f32 0.0, %v933
    %935 = vmatmul.bf16.gmra.mxu0 %v656
    %v936 = vpop.f32.mrf.mxu0
    %v937 = vadd.f32 0.0, %v936
    %v938 = vpop.f32.mrf.mxu0
    %v939 = vadd.f32 0.0, %v938
    %940 = vmatmul.bf16.gmra.mxu0 %v659
    %v941 = vpop.f32.mrf.mxu0
    %v942 = vadd.f32 0.0, %v941
    %v943 = vpop.f32.mrf.mxu0
    %v944 = vadd.f32 0.0, %v943
    %945 = vmatmul.bf16.gmra.mxu0 %v662
    %v946 = vpop.f32.mrf.mxu0
    %v947 = vadd.f32 0.0, %v946
    %v948 = vpop.f32.mrf.mxu0
    %v949 = vadd.f32 0.0, %v948
    %950 = vmatmul.bf16.gmra.mxu0 %v665
    %v951 = vpop.f32.mrf.mxu0
    %v952 = vadd.f32 0.0, %v951
    %v953 = vpop.f32.mrf.mxu0
    %v954 = vadd.f32 0.0, %v953
    %955 = vmatmul.bf16.gmra.mxu0 %v668
    %v956 = vpop.f32.mrf.mxu0
    %v957 = vadd.f32 0.0, %v956
    %v958 = vpop.f32.mrf.mxu0
    %v959 = vadd.f32 0.0, %v958
    %960 = vmatmul.bf16.gmra.mxu0 %v671
    %v961 = vpop.f32.mrf.mxu0
    %v962 = vadd.f32 0.0, %v961
    %v963 = vpop.f32.mrf.mxu0
    %v964 = vadd.f32 0.0, %v963
    %965 = vmatmul.bf16.gmra.mxu0 %v674
    %v966 = vpop.f32.mrf.mxu0
    %v967 = vadd.f32 0.0, %v966
    %v968 = vpop.f32.mrf.mxu0
    %v969 = vadd.f32 0.0, %v968
    %970 = vmatmul.bf16.gmra.mxu0 %v677
    %v971 = vpop.f32.mrf.mxu0
    %v972 = vadd.f32 0.0, %v971
    %v973 = vpop.f32.mrf.mxu0
    %v974 = vadd.f32 0.0, %v973
    %975 = vmatmul.bf16.gmra.mxu0 %v680
    %v976 = vpop.f32.mrf.mxu0
    %v977 = vadd.f32 0.0, %v976
    %v978 = vpop.f32.mrf.mxu0
    %v979 = vadd.f32 0.0, %v978
    %980 = vmatmul.bf16.gmra.mxu0 %v683
    %v981 = vpop.f32.mrf.mxu0
    %v982 = vadd.f32 0.0, %v981
    %v983 = vpop.f32.mrf.mxu0
    %v984 = vadd.f32 0.0, %v983
    %985 = vmatmul.bf16.gmra.mxu0 %v686
    %v986 = vpop.f32.mrf.mxu0
    %v987 = vadd.f32 0.0, %v986
    %v988 = vpop.f32.mrf.mxu0
    %v989 = vadd.f32 0.0, %v988
    %990 = vmatmul.bf16.gmra.mxu0 %v689
    %v991 = vpop.f32.mrf.mxu0
    %v992 = vadd.f32 0.0, %v991
    %v993 = vpop.f32.mrf.mxu0
    %v994 = vadd.f32 0.0, %v993
    %995 = vmatmul.bf16.gmra.mxu0 %v692
    %v996 = vpop.f32.mrf.mxu0
    %v997 = vadd.f32 0.0, %v996
    %v998 = vpop.f32.mrf.mxu0
    %v999 = vadd.f32 0.0, %v998
    %1000 = vmatmul.bf16.gmra.mxu0 %v695
    %v1001 = vpop.f32.mrf.mxu0
    %v1002 = vadd.f32 0.0, %v1001
    %v1003 = vpop.f32.mrf.mxu0
    %v1004 = vadd.f32 0.0, %v1003
    %1005 = vmatmul.bf16.gmra.mxu0 %v698
    %v1006 = vpop.f32.mrf.mxu0
    %v1007 = vadd.f32 0.0, %v1006
    %v1008 = vpop.f32.mrf.mxu0
    %v1009 = vadd.f32 0.0, %v1008
    %1010 = vmatmul.bf16.gmra.mxu0 %v701
    %v1011 = vpop.f32.mrf.mxu0
    %v1012 = vadd.f32 0.0, %v1011
    %v1013 = vpop.f32.mrf.mxu0
    %v1014 = vadd.f32 0.0, %v1013
    %1015 = vmatmul.bf16.gmra.mxu0 %v704
    %v1016 = vpop.f32.mrf.mxu0
    %v1017 = vadd.f32 0.0, %v1016
    %v1018 = vpop.f32.mrf.mxu0
    %v1019 = vadd.f32 0.0, %v1018
    %1020 = vmatmul.bf16.gmra.mxu0 %v707
    %v1021 = vpop.f32.mrf.mxu0
    %v1022 = vadd.f32 0.0, %v1021
    %v1023 = vpop.f32.mrf.mxu0
    %v1024 = vadd.f32 0.0, %v1023
    %1025 = vmatmul.bf16.gmra.mxu0 %v710
    %v1026 = vpop.f32.mrf.mxu0
    %v1027 = vadd.f32 0.0, %v1026
    %v1028 = vpop.f32.mrf.mxu0
    %v1029 = vadd.f32 0.0, %v1028
    %1030 = vmatmul.bf16.gmra.mxu0 %v713
    %v1031 = vpop.f32.mrf.mxu0
    %v1032 = vadd.f32 0.0, %v1031
    %v1033 = vpop.f32.mrf.mxu0
    %v1034 = vadd.f32 0.0, %v1033
    %1035 = vmatmul.bf16.gmra.mxu0 %v716
    %v1036 = vpop.f32.mrf.mxu0
    %v1037 = vadd.f32 0.0, %v1036
    %v1038 = vpop.f32.mrf.mxu0
    %v1039 = vadd.f32 0.0, %v1038
    %1040 = vmatmul.bf16.gmra.mxu0 %v719
    %v1041 = vpop.f32.mrf.mxu0
    %v1042 = vadd.f32 0.0, %v1041
    %v1043 = vpop.f32.mrf.mxu0
    %v1044 = vadd.f32 0.0, %v1043
    %1045 = vmatmul.bf16.gmra.mxu0 %v722
    %v1046 = vpop.f32.mrf.mxu0
    %v1047 = vadd.f32 0.0, %v1046
    %v1048 = vpop.f32.mrf.mxu0
    %v1049 = vadd.f32 0.0, %v1048
    %1050 = vmatmul.bf16.gmra.mxu0 %v725
    %v1051 = vpop.f32.mrf.mxu0
    %v1052 = vadd.f32 0.0, %v1051
    %v1053 = vpop.f32.mrf.mxu0
    %v1054 = vadd.f32 0.0, %v1053
    %1055 = vmatmul.bf16.gmra.mxu0 %v728
    %v1056 = vpop.f32.mrf.mxu0
    %v1057 = vadd.f32 0.0, %v1056
    %v1058 = vpop.f32.mrf.mxu0
    %v1059 = vadd.f32 0.0, %v1058
    %1060 = vmatmul.bf16.gmra.mxu0 %v731
    %v1061 = vpop.f32.mrf.mxu0
    %v1062 = vadd.f32 0.0, %v1061
    %v1063 = vpop.f32.mrf.mxu0
    %v1064 = vadd.f32 0.0, %v1063
    %1065 = vmatmul.bf16.gmra.mxu0 %v734
    %v1066 = vpop.f32.mrf.mxu0
    %v1067 = vadd.f32 0.0, %v1066
    %v1068 = vpop.f32.mrf.mxu0
    %v1069 = vadd.f32 0.0, %v1068
    %1070 = vmatmul.bf16.gmra.mxu0 %v737
    %v1071 = vpop.f32.mrf.mxu0
    %v1072 = vadd.f32 0.0, %v1071
    %v1073 = vpop.f32.mrf.mxu0
    %v1074 = vadd.f32 0.0, %v1073
    %1075 = vmatmul.bf16.gmra.mxu0 %v740
    %v1076 = vpop.f32.mrf.mxu0
    %v1077 = vadd.f32 0.0, %v1076
    %v1078 = vpop.f32.mrf.mxu0
    %v1079 = vadd.f32 0.0, %v1078
    %1080 = vmatmul.bf16.gmra.mxu0 %v743
    %v1081 = vpop.f32.mrf.mxu0
    %v1082 = vadd.f32 0.0, %v1081
    %v1083 = vpop.f32.mrf.mxu0
    %v1084 = vadd.f32 0.0, %v1083
    %1085 = vmatmul.bf16.gmra.mxu0 %v746
    %v1086 = vpop.f32.mrf.mxu0
    %v1087 = vadd.f32 0.0, %v1086
    %v1088 = vpop.f32.mrf.mxu0
    %v1089 = vadd.f32 0.0, %v1088
    %1090 = vmatmul.bf16.gmra.mxu0 %v749
    %v1091 = vpop.f32.mrf.mxu0
    %v1092 = vadd.f32 0.0, %v1091
    %v1093 = vpop.f32.mrf.mxu0
    %v1094 = vadd.f32 0.0, %v1093
    %1095 = vmatmul.bf16.gmra.mxu0 %v752
    %v1096 = vpop.f32.mrf.mxu0
    %v1097 = vadd.f32 0.0, %v1096
    %v1098 = vpop.f32.mrf.mxu0
    %v1099 = vadd.f32 0.0, %v1098
    %1100 = vmatmul.bf16.gmra.mxu0 %v755
    %v1101 = vpop.f32.mrf.mxu0
    %v1102 = vadd.f32 0.0, %v1101
    %v1103 = vpop.f32.mrf.mxu0
    %v1104 = vadd.f32 0.0, %v1103
    %1105 = vmatmul.bf16.gmra.mxu0 %v758
    %v1106 = vpop.f32.mrf.mxu0
    %v1107 = vadd.f32 0.0, %v1106
    %v1108 = vpop.f32.mrf.mxu0
    %v1109 = vadd.f32 0.0, %v1108
    %1110 = vmatmul.bf16.gmra.mxu0 %v761
    %v1111 = vpop.f32.mrf.mxu0
    %v1112 = vadd.f32 0.0, %v1111
    %v1113 = vpop.f32.mrf.mxu0
    %v1114 = vadd.f32 0.0, %v1113
    %1115 = vmatmul.bf16.gmra.mxu0 %v764
    %v1116 = vpop.f32.mrf.mxu0
    %v1117 = vadd.f32 0.0, %v1116
    %v1118 = vpop.f32.mrf.mxu0
    %v1119 = vadd.f32 0.0, %v1118
    %1120 = vmatmul.bf16.gmra.mxu0 %v767
    %v1121 = vpop.f32.mrf.mxu0
    %v1122 = vadd.f32 0.0, %v1121
    %v1123 = vpop.f32.mrf.mxu0
    %v1124 = vadd.f32 0.0, %v1123
    %1125 = vmatmul.bf16.gmra.mxu0 %v770
    %v1126 = vpop.f32.mrf.mxu0
    %v1127 = vadd.f32 0.0, %v1126
    %v1128 = vpop.f32.mrf.mxu0
    %v1129 = vadd.f32 0.0, %v1128
    %1130 = vmatmul.bf16.gmra.mxu0 %v773
    %v1131 = vpop.f32.mrf.mxu0
    %v1132 = vadd.f32 0.0, %v1131
    %v1133 = vpop.f32.mrf.mxu0
    %v1134 = vadd.f32 0.0, %v1133
    %1135 = vmatmul.bf16.gmra.mxu0 %v776
    %v1136 = vpop.f32.mrf.mxu0
    %v1137 = vadd.f32 0.0, %v1136
    %v1138 = vpop.f32.mrf.mxu0
    %v1139 = vadd.f32 0.0, %v1138
    %1140 = vmatmul.bf16.gmra.mxu0 %v779
    %v1141 = vpop.f32.mrf.mxu0
    %v1142 = vadd.f32 0.0, %v1141
    %v1143 = vpop.f32.mrf.mxu0
    %v1144 = vadd.f32 0.0, %v1143
    %1145 = vmatmul.bf16.gmra.mxu0 %v782
    %v1146 = vpop.f32.mrf.mxu0
    %v1147 = vadd.f32 0.0, %v1146
    %v1148 = vpop.f32.mrf.mxu0
    %v1149 = vadd.f32 0.0, %v1148
    %1150 = vmatmul.bf16.gmra.mxu0 %v785
    %v1151 = vpop.f32.mrf.mxu0
    %v1152 = vadd.f32 0.0, %v1151
    %v1153 = vpop.f32.mrf.mxu0
    %v1154 = vadd.f32 0.0, %v1153
    %1155 = vdwg.mxu0
    %v1156 = vld [vmem:[%s6] sm:$0x1]
    %v1157 = vld [vmem:[%s6 + $0x1] sm:$0x1]
    %v1158 = vadd.f32 %v797, %v799
    %v1159 = vadd.f32 %v1158, %v802
    %v1160 = vadd.f32 %v1159, %v804
    %v1161 = vadd.f32 %v1160, %v807
    %v1162 = vadd.f32 %v1161, %v809
    %v1163 = vadd.f32 %v1162, %v812
    %v1164 = vadd.f32 %v1163, %v814
    %v1165 = vadd.f32 %v1164, %v817
    %v1166 = vadd.f32 %v1165, %v819
    %v1167 = vadd.f32 %v1166, %v822
    %v1168 = vadd.f32 %v1167, %v824
    %v1169 = vadd.f32 %v1168, %v827
    %v1170 = vadd.f32 %v1169, %v829
    %v1171 = vadd.f32 %v1170, %v832
    %v1172 = vadd.f32 %v1171, %v834
    %v1173 = vadd.f32 %v1172, %v837
    %v1174 = vadd.f32 %v1173, %v839
    %v1175 = vadd.f32 %v1174, %v842
    %v1176 = vadd.f32 %v1175, %v844
    %v1177 = vadd.f32 %v1176, %v847
    %v1178 = vadd.f32 %v1177, %v849
    %v1179 = vadd.f32 %v1178, %v852
    %v1180 = vadd.f32 %v1179, %v854
    %v1181 = vadd.f32 %v1180, %v857
    %v1182 = vadd.f32 %v1181, %v859
    %v1183 = vadd.f32 %v1182, %v862
    %v1184 = vadd.f32 %v1183, %v864
    %v1185 = vadd.f32 %v1184, %v867
    %v1186 = vadd.f32 %v1185, %v869
    %v1187 = vadd.f32 %v1186, %v872
    %v1188 = vadd.f32 %v1187, %v874
    %v1189 = vadd.f32 %v1188, %v877
    %v1190 = vadd.f32 %v1189, %v879
    %v1191 = vadd.f32 %v1190, %v882
    %v1192 = vadd.f32 %v1191, %v884
    %v1193 = vadd.f32 %v1192, %v887
    %v1194 = vadd.f32 %v1193, %v889
    %v1195 = vadd.f32 %v1194, %v892
    %v1196 = vadd.f32 %v1195, %v894
    %v1197 = vadd.f32 %v1196, %v897
    %v1198 = vadd.f32 %v1197, %v899
    %v1199 = vadd.f32 %v1198, %v902
    %v1200 = vadd.f32 %v1199, %v904
    %v1201 = vadd.f32 %v1200, %v907
    %v1202 = vadd.f32 %v1201, %v909
    %v1203 = vadd.f32 %v1202, %v912
    %v1204 = vadd.f32 %v1203, %v914
    %v1205 = vadd.f32 %v1204, %v917
    %v1206 = vadd.f32 %v1205, %v919
    %v1207 = vadd.f32 %v1206, %v922
    %v1208 = vadd.f32 %v1207, %v924
    %v1209 = vadd.f32 %v1208, %v927
    %v1210 = vadd.f32 %v1209, %v929
    %v1211 = vadd.f32 %v1210, %v932
    %v1212 = vadd.f32 %v1211, %v934
    %v1213 = vadd.f32 %v1212, %v937
    %v1214 = vadd.f32 %v1213, %v939
    %v1215 = vadd.f32 %v1214, %v942
    %v1216 = vadd.f32 %v1215, %v944
    %v1217 = vadd.f32 %v1216, %v947
    %v1218 = vadd.f32 %v1217, %v949
    %v1219 = vadd.f32 %v1218, %v952
    %v1220 = vadd.f32 %v1219, %v954
    %v1221 = vadd.f32 %v1220, %v957
    %v1222 = vadd.f32 %v1221, %v959
    %v1223 = vadd.f32 %v1222, %v962
    %v1224 = vadd.f32 %v1223, %v964
    %v1225 = vadd.f32 %v1224, %v967
    %v1226 = vadd.f32 %v1225, %v969
    %v1227 = vadd.f32 %v1226, %v972
    %v1228 = vadd.f32 %v1227, %v974
    %v1229 = vadd.f32 %v1228, %v977
    %v1230 = vadd.f32 %v1229, %v979
    %v1231 = vadd.f32 %v1230, %v982
    %v1232 = vadd.f32 %v1231, %v984
    %v1233 = vadd.f32 %v1232, %v987
    %v1234 = vadd.f32 %v1233, %v989
    %v1235 = vadd.f32 %v1234, %v992
    %v1236 = vadd.f32 %v1235, %v994
    %v1237 = vadd.f32 %v1236, %v997
    %v1238 = vadd.f32 %v1237, %v999
    %v1239 = vadd.f32 %v1238, %v1002
    %v1240 = vadd.f32 %v1239, %v1004
    %v1241 = vadd.f32 %v1240, %v1007
    %v1242 = vadd.f32 %v1241, %v1009
    %v1243 = vadd.f32 %v1242, %v1012
    %v1244 = vadd.f32 %v1243, %v1014
    %v1245 = vadd.f32 %v1244, %v1017
    %v1246 = vadd.f32 %v1245, %v1019
    %v1247 = vadd.f32 %v1246, %v1022
    %v1248 = vadd.f32 %v1247, %v1024
    %v1249 = vadd.f32 %v1248, %v1027
    %v1250 = vadd.f32 %v1249, %v1029
    %v1251 = vadd.f32 %v1250, %v1032
    %v1252 = vadd.f32 %v1251, %v1034
    %v1253 = vadd.f32 %v1252, %v1037
    %v1254 = vadd.f32 %v1253, %v1039
    %v1255 = vadd.f32 %v1254, %v1042
    %v1256 = vadd.f32 %v1255, %v1044
    %v1257 = vadd.f32 %v1256, %v1047
    %v1258 = vadd.f32 %v1257, %v1049
    %v1259 = vadd.f32 %v1258, %v1052
    %v1260 = vadd.f32 %v1259, %v1054
    %v1261 = vadd.f32 %v1260, %v1057
    %v1262 = vadd.f32 %v1261, %v1059
    %v1263 = vadd.f32 %v1262, %v1062
    %v1264 = vadd.f32 %v1263, %v1064
    %v1265 = vadd.f32 %v1264, %v1067
    %v1266 = vadd.f32 %v1265, %v1069
    %v1267 = vadd.f32 %v1266, %v1072
    %v1268 = vadd.f32 %v1267, %v1074
    %v1269 = vadd.f32 %v1268, %v1077
    %v1270 = vadd.f32 %v1269, %v1079
    %v1271 = vadd.f32 %v1270, %v1082
    %v1272 = vadd.f32 %v1271, %v1084
    %v1273 = vadd.f32 %v1272, %v1087
    %v1274 = vadd.f32 %v1273, %v1089
    %v1275 = vadd.f32 %v1274, %v1092
    %v1276 = vadd.f32 %v1275, %v1094
    %v1277 = vadd.f32 %v1276, %v1097
    %v1278 = vadd.f32 %v1277, %v1099
    %v1279 = vadd.f32 %v1278, %v1102
    %v1280 = vadd.f32 %v1279, %v1104
    %v1281 = vadd.f32 %v1280, %v1107
    %v1282 = vadd.f32 %v1281, %v1109
    %v1283 = vadd.f32 %v1282, %v1112
    %v1284 = vadd.f32 %v1283, %v1114
    %v1285 = vadd.f32 %v1284, %v1117
    %v1286 = vadd.f32 %v1285, %v1119
    %v1287 = vadd.f32 %v1286, %v1122
    %v1288 = vadd.f32 %v1287, %v1124
    %v1289 = vadd.f32 %v1288, %v1127
    %v1290 = vadd.f32 %v1289, %v1129
    %v1291 = vadd.f32 %v1290, %v1132
    %v1292 = vadd.f32 %v1291, %v1134
    %v1293 = vadd.f32 %v1292, %v1137
    %v1294 = vadd.f32 %v1293, %v1139
    %v1295 = vadd.f32 %v1294, %v1142
    %v1296 = vadd.f32 %v1295, %v1144
    %v1297 = vadd.f32 %v1296, %v1147
    %v1298 = vadd.f32 %v1297, %v1149
    %v1299 = vadd.f32 %v1298, %v1152
    %v1300 = vadd.f32 %v1299, %v1154
    %v1301 = vrot.slane %v1300, 4
    %v1302 = vadd.f32 %v1300, %v1301
    %v1303 = vrot.slane %v1302, 2
    %v1304 = vadd.f32 %v1302, %v1303
    %v1305 = vrot.slane %v1304, 1
    %v1306 = vadd.f32 %v1304, %v1305
    %v1307 = vmul.f32 %v1306, 0.00086805556
    %v1308 = vmul.f32 %v797, %v797
    %v1309 = vmul.f32 %v799, %v799
    %v1310 = vmul.f32 %v802, %v802
    %v1311 = vmul.f32 %v804, %v804
    %v1312 = vmul.f32 %v807, %v807
    %v1313 = vmul.f32 %v809, %v809
    %v1314 = vmul.f32 %v812, %v812
    %v1315 = vmul.f32 %v814, %v814
    %v1316 = vmul.f32 %v817, %v817
    %v1317 = vmul.f32 %v819, %v819
    %v1318 = vmul.f32 %v822, %v822
    %v1319 = vmul.f32 %v824, %v824
    %v1320 = vmul.f32 %v827, %v827
    %v1321 = vmul.f32 %v829, %v829
    %v1322 = vmul.f32 %v832, %v832
    %v1323 = vmul.f32 %v834, %v834
    %v1324 = vmul.f32 %v837, %v837
    %v1325 = vmul.f32 %v839, %v839
    %v1326 = vmul.f32 %v842, %v842
    %v1327 = vmul.f32 %v844, %v844
    %v1328 = vmul.f32 %v847, %v847
    %v1329 = vmul.f32 %v849, %v849
    %v1330 = vmul.f32 %v852, %v852
    %v1331 = vmul.f32 %v854, %v854
    %v1332 = vmul.f32 %v857, %v857
    %v1333 = vmul.f32 %v859, %v859
    %v1334 = vmul.f32 %v862, %v862
    %v1335 = vmul.f32 %v864, %v864
    %v1336 = vmul.f32 %v867, %v867
    %v1337 = vmul.f32 %v869, %v869
    %v1338 = vmul.f32 %v872, %v872
    %v1339 = vmul.f32 %v874, %v874
    %v1340 = vmul.f32 %v877, %v877
    %v1341 = vmul.f32 %v879, %v879
    %v1342 = vmul.f32 %v882, %v882
    %v1343 = vmul.f32 %v884, %v884
    %v1344 = vmul.f32 %v887, %v887
    %v1345 = vmul.f32 %v889, %v889
    %v1346 = vmul.f32 %v892, %v892
    %v1347 = vmul.f32 %v894, %v894
    %v1348 = vmul.f32 %v897, %v897
    %v1349 = vmul.f32 %v899, %v899
    %v1350 = vmul.f32 %v902, %v902
    %v1351 = vmul.f32 %v904, %v904
    %v1352 = vmul.f32 %v907, %v907
    %v1353 = vmul.f32 %v909, %v909
    %v1354 = vmul.f32 %v912, %v912
    %v1355 = vmul.f32 %v914, %v914
    %v1356 = vmul.f32 %v917, %v917
    %v1357 = vmul.f32 %v919, %v919
    %v1358 = vmul.f32 %v922, %v922
    %v1359 = vmul.f32 %v924, %v924
    %v1360 = vmul.f32 %v927, %v927
    %v1361 = vmul.f32 %v929, %v929
    %v1362 = vmul.f32 %v932, %v932
    %v1363 = vmul.f32 %v934, %v934
    %v1364 = vmul.f32 %v937, %v937
    %v1365 = vmul.f32 %v939, %v939
    %v1366 = vmul.f32 %v942, %v942
    %v1367 = vmul.f32 %v944, %v944
    %v1368 = vmul.f32 %v947, %v947
    %v1369 = vmul.f32 %v949, %v949
    %v1370 = vmul.f32 %v952, %v952
    %v1371 = vmul.f32 %v954, %v954
    %v1372 = vmul.f32 %v957, %v957
    %v1373 = vmul.f32 %v959, %v959
    %v1374 = vmul.f32 %v962, %v962
    %v1375 = vmul.f32 %v964, %v964
    %v1376 = vmul.f32 %v967, %v967
    %v1377 = vmul.f32 %v969, %v969
    %v1378 = vmul.f32 %v972, %v972
    %v1379 = vmul.f32 %v974, %v974
    %v1380 = vmul.f32 %v977, %v977
    %v1381 = vmul.f32 %v979, %v979
    %v1382 = vmul.f32 %v982, %v982
    %v1383 = vmul.f32 %v984, %v984
    %v1384 = vmul.f32 %v987, %v987
    %v1385 = vmul.f32 %v989, %v989
    %v1386 = vmul.f32 %v992, %v992
    %v1387 = vmul.f32 %v994, %v994
    %v1388 = vmul.f32 %v997, %v997
    %v1389 = vmul.f32 %v999, %v999
    %v1390 = vmul.f32 %v1002, %v1002
    %v1391 = vmul.f32 %v1004, %v1004
    %v1392 = vmul.f32 %v1007, %v1007
    %v1393 = vmul.f32 %v1009, %v1009
    %v1394 = vmul.f32 %v1012, %v1012
    %v1395 = vmul.f32 %v1014, %v1014
    %v1396 = vmul.f32 %v1017, %v1017
    %v1397 = vmul.f32 %v1019, %v1019
    %v1398 = vmul.f32 %v1022, %v1022
    %v1399 = vmul.f32 %v1024, %v1024
    %v1400 = vmul.f32 %v1027, %v1027
    %v1401 = vmul.f32 %v1029, %v1029
    %v1402 = vmul.f32 %v1032, %v1032
    %v1403 = vmul.f32 %v1034, %v1034
    %v1404 = vmul.f32 %v1037, %v1037
    %v1405 = vmul.f32 %v1039, %v1039
    %v1406 = vmul.f32 %v1042, %v1042
    %v1407 = vmul.f32 %v1044, %v1044
    %v1408 = vmul.f32 %v1047, %v1047
    %v1409 = vmul.f32 %v1049, %v1049
    %v1410 = vmul.f32 %v1052, %v1052
    %v1411 = vmul.f32 %v1054, %v1054
    %v1412 = vmul.f32 %v1057, %v1057
    %v1413 = vmul.f32 %v1059, %v1059
    %v1414 = vmul.f32 %v1062, %v1062
    %v1415 = vmul.f32 %v1064, %v1064
    %v1416 = vmul.f32 %v1067, %v1067
    %v1417 = vmul.f32 %v1069, %v1069
    %v1418 = vmul.f32 %v1072, %v1072
    %v1419 = vmul.f32 %v1074, %v1074
    %v1420 = vmul.f32 %v1077, %v1077
    %v1421 = vmul.f32 %v1079, %v1079
    %v1422 = vmul.f32 %v1082, %v1082
    %v1423 = vmul.f32 %v1084, %v1084
    %v1424 = vmul.f32 %v1087, %v1087
    %v1425 = vmul.f32 %v1089, %v1089
    %v1426 = vmul.f32 %v1092, %v1092
    %v1427 = vmul.f32 %v1094, %v1094
    %v1428 = vmul.f32 %v1097, %v1097
    %v1429 = vmul.f32 %v1099, %v1099
    %v1430 = vmul.f32 %v1102, %v1102
    %v1431 = vmul.f32 %v1104, %v1104
    %v1432 = vmul.f32 %v1107, %v1107
    %v1433 = vmul.f32 %v1109, %v1109
    %v1434 = vmul.f32 %v1112, %v1112
    %v1435 = vmul.f32 %v1114, %v1114
    %v1436 = vmul.f32 %v1117, %v1117
    %v1437 = vmul.f32 %v1119, %v1119
    %v1438 = vmul.f32 %v1122, %v1122
    %v1439 = vmul.f32 %v1124, %v1124
    %v1440 = vmul.f32 %v1127, %v1127
    %v1441 = vmul.f32 %v1129, %v1129
    %v1442 = vmul.f32 %v1132, %v1132
    %v1443 = vmul.f32 %v1134, %v1134
    %v1444 = vmul.f32 %v1137, %v1137
    %v1445 = vmul.f32 %v1139, %v1139
    %v1446 = vmul.f32 %v1142, %v1142
    %v1447 = vmul.f32 %v1144, %v1144
    %v1448 = vmul.f32 %v1147, %v1147
    %v1449 = vmul.f32 %v1149, %v1149
    %v1450 = vmul.f32 %v1152, %v1152
    %v1451 = vmul.f32 %v1154, %v1154
    %v1452 = vadd.f32 %v1308, %v1309
    %v1453 = vadd.f32 %v1452, %v1310
    %v1454 = vadd.f32 %v1453, %v1311
    %v1455 = vadd.f32 %v1454, %v1312
    %v1456 = vadd.f32 %v1455, %v1313
    %v1457 = vadd.f32 %v1456, %v1314
    %v1458 = vadd.f32 %v1457, %v1315
    %v1459 = vadd.f32 %v1458, %v1316
    %v1460 = vadd.f32 %v1459, %v1317
    %v1461 = vadd.f32 %v1460, %v1318
    %v1462 = vadd.f32 %v1461, %v1319
    %v1463 = vadd.f32 %v1462, %v1320
    %v1464 = vadd.f32 %v1463, %v1321
    %v1465 = vadd.f32 %v1464, %v1322
    %v1466 = vadd.f32 %v1465, %v1323
    %v1467 = vadd.f32 %v1466, %v1324
    %v1468 = vadd.f32 %v1467, %v1325
    %v1469 = vadd.f32 %v1468, %v1326
    %v1470 = vadd.f32 %v1469, %v1327
    %v1471 = vadd.f32 %v1470, %v1328
    %v1472 = vadd.f32 %v1471, %v1329
    %v1473 = vadd.f32 %v1472, %v1330
    %v1474 = vadd.f32 %v1473, %v1331
    %v1475 = vadd.f32 %v1474, %v1332
    %v1476 = vadd.f32 %v1475, %v1333
    %v1477 = vadd.f32 %v1476, %v1334
    %v1478 = vadd.f32 %v1477, %v1335
    %v1479 = vadd.f32 %v1478, %v1336
    %v1480 = vadd.f32 %v1479, %v1337
    %v1481 = vadd.f32 %v1480, %v1338
    %v1482 = vadd.f32 %v1481, %v1339
    %v1483 = vadd.f32 %v1482, %v1340
    %v1484 = vadd.f32 %v1483, %v1341
    %v1485 = vadd.f32 %v1484, %v1342
    %v1486 = vadd.f32 %v1485, %v1343
    %v1487 = vadd.f32 %v1486, %v1344
    %v1488 = vadd.f32 %v1487, %v1345
    %v1489 = vadd.f32 %v1488, %v1346
    %v1490 = vadd.f32 %v1489, %v1347
    %v1491 = vadd.f32 %v1490, %v1348
    %v1492 = vadd.f32 %v1491, %v1349
    %v1493 = vadd.f32 %v1492, %v1350
    %v1494 = vadd.f32 %v1493, %v1351
    %v1495 = vadd.f32 %v1494, %v1352
    %v1496 = vadd.f32 %v1495, %v1353
    %v1497 = vadd.f32 %v1496, %v1354
    %v1498 = vadd.f32 %v1497, %v1355
    %v1499 = vadd.f32 %v1498, %v1356
    %v1500 = vadd.f32 %v1499, %v1357
    %v1501 = vadd.f32 %v1500, %v1358
    %v1502 = vadd.f32 %v1501, %v1359
    %v1503 = vadd.f32 %v1502, %v1360
    %v1504 = vadd.f32 %v1503, %v1361
    %v1505 = vadd.f32 %v1504, %v1362
    %v1506 = vadd.f32 %v1505, %v1363
    %v1507 = vadd.f32 %v1506, %v1364
    %v1508 = vadd.f32 %v1507, %v1365
    %v1509 = vadd.f32 %v1508, %v1366
    %v1510 = vadd.f32 %v1509, %v1367
    %v1511 = vadd.f32 %v1510, %v1368
    %v1512 = vadd.f32 %v1511, %v1369
    %v1513 = vadd.f32 %v1512, %v1370
    %v1514 = vadd.f32 %v1513, %v1371
    %v1515 = vadd.f32 %v1514, %v1372
    %v1516 = vadd.f32 %v1515, %v1373
    %v1517 = vadd.f32 %v1516, %v1374
    %v1518 = vadd.f32 %v1517, %v1375
    %v1519 = vadd.f32 %v1518, %v1376
    %v1520 = vadd.f32 %v1519, %v1377
    %v1521 = vadd.f32 %v1520, %v1378
    %v1522 = vadd.f32 %v1521, %v1379
    %v1523 = vadd.f32 %v1522, %v1380
    %v1524 = vadd.f32 %v1523, %v1381
    %v1525 = vadd.f32 %v1524, %v1382
    %v1526 = vadd.f32 %v1525, %v1383
    %v1527 = vadd.f32 %v1526, %v1384
    %v1528 = vadd.f32 %v1527, %v1385
    %v1529 = vadd.f32 %v1528, %v1386
    %v1530 = vadd.f32 %v1529, %v1387
    %v1531 = vadd.f32 %v1530, %v1388
    %v1532 = vadd.f32 %v1531, %v1389
    %v1533 = vadd.f32 %v1532, %v1390
    %v1534 = vadd.f32 %v1533, %v1391
    %v1535 = vadd.f32 %v1534, %v1392
    %v1536 = vadd.f32 %v1535, %v1393
    %v1537 = vadd.f32 %v1536, %v1394
    %v1538 = vadd.f32 %v1537, %v1395
    %v1539 = vadd.f32 %v1538, %v1396
    %v1540 = vadd.f32 %v1539, %v1397
    %v1541 = vadd.f32 %v1540, %v1398
    %v1542 = vadd.f32 %v1541, %v1399
    %v1543 = vadd.f32 %v1542, %v1400
    %v1544 = vadd.f32 %v1543, %v1401
    %v1545 = vadd.f32 %v1544, %v1402
    %v1546 = vadd.f32 %v1545, %v1403
    %v1547 = vadd.f32 %v1546, %v1404
    %v1548 = vadd.f32 %v1547, %v1405
    %v1549 = vadd.f32 %v1548, %v1406
    %v1550 = vadd.f32 %v1549, %v1407
    %v1551 = vadd.f32 %v1550, %v1408
    %v1552 = vadd.f32 %v1551, %v1409
    %v1553 = vadd.f32 %v1552, %v1410
    %v1554 = vadd.f32 %v1553, %v1411
    %v1555 = vadd.f32 %v1554, %v1412
    %v1556 = vadd.f32 %v1555, %v1413
    %v1557 = vadd.f32 %v1556, %v1414
    %v1558 = vadd.f32 %v1557, %v1415
    %v1559 = vadd.f32 %v1558, %v1416
    %v1560 = vadd.f32 %v1559, %v1417
    %v1561 = vadd.f32 %v1560, %v1418
    %v1562 = vadd.f32 %v1561, %v1419
    %v1563 = vadd.f32 %v1562, %v1420
    %v1564 = vadd.f32 %v1563, %v1421
    %v1565 = vadd.f32 %v1564, %v1422
    %v1566 = vadd.f32 %v1565, %v1423
    %v1567 = vadd.f32 %v1566, %v1424
    %v1568 = vadd.f32 %v1567, %v1425
    %v1569 = vadd.f32 %v1568, %v1426
    %v1570 = vadd.f32 %v1569, %v1427
    %v1571 = vadd.f32 %v1570, %v1428
    %v1572 = vadd.f32 %v1571, %v1429
    %v1573 = vadd.f32 %v1572, %v1430
    %v1574 = vadd.f32 %v1573, %v1431
    %v1575 = vadd.f32 %v1574, %v1432
    %v1576 = vadd.f32 %v1575, %v1433
    %v1577 = vadd.f32 %v1576, %v1434
    %v1578 = vadd.f32 %v1577, %v1435
    %v1579 = vadd.f32 %v1578, %v1436
    %v1580 = vadd.f32 %v1579, %v1437
    %v1581 = vadd.f32 %v1580, %v1438
    %v1582 = vadd.f32 %v1581, %v1439
    %v1583 = vadd.f32 %v1582, %v1440
    %v1584 = vadd.f32 %v1583, %v1441
    %v1585 = vadd.f32 %v1584, %v1442
    %v1586 = vadd.f32 %v1585, %v1443
    %v1587 = vadd.f32 %v1586, %v1444
    %v1588 = vadd.f32 %v1587, %v1445
    %v1589 = vadd.f32 %v1588, %v1446
    %v1590 = vadd.f32 %v1589, %v1447
    %v1591 = vadd.f32 %v1590, %v1448
    %v1592 = vadd.f32 %v1591, %v1449
    %v1593 = vadd.f32 %v1592, %v1450
    %v1594 = vadd.f32 %v1593, %v1451
    %v1595 = vrot.slane %v1594, 4
    %v1596 = vadd.f32 %v1594, %v1595
    %v1597 = vrot.slane %v1596, 2
    %v1598 = vadd.f32 %v1596, %v1597
    %v1599 = vrot.slane %v1598, 1
    %v1600 = vadd.f32 %v1598, %v1599
    %v1601 = vmul.f32 %v1600, 0.00086805556
    %v1602 = vmul.f32 %v1307, %v1307
    %v1603 = vsub.f32 %v1601, %v1602
    %v1604 = vmax.f32 %v1603, 0.0
    %v1605 = vsub.f32 %v797, %v1307
    %v1606 = vsub.f32 %v799, %v1307
    %v1607 = vsub.f32 %v802, %v1307
    %v1608 = vsub.f32 %v804, %v1307
    %v1609 = vsub.f32 %v807, %v1307
    %v1610 = vsub.f32 %v809, %v1307
    %v1611 = vsub.f32 %v812, %v1307
    %v1612 = vsub.f32 %v814, %v1307
    %v1613 = vsub.f32 %v817, %v1307
    %v1614 = vsub.f32 %v819, %v1307
    %v1615 = vsub.f32 %v822, %v1307
    %v1616 = vsub.f32 %v824, %v1307
    %v1617 = vsub.f32 %v827, %v1307
    %v1618 = vsub.f32 %v829, %v1307
    %v1619 = vsub.f32 %v832, %v1307
    %v1620 = vsub.f32 %v834, %v1307
    %v1621 = vsub.f32 %v837, %v1307
    %v1622 = vsub.f32 %v839, %v1307
    %v1623 = vsub.f32 %v842, %v1307
    %v1624 = vsub.f32 %v844, %v1307
    %v1625 = vsub.f32 %v847, %v1307
    %v1626 = vsub.f32 %v849, %v1307
    %v1627 = vsub.f32 %v852, %v1307
    %v1628 = vsub.f32 %v854, %v1307
    %v1629 = vsub.f32 %v857, %v1307
    %v1630 = vsub.f32 %v859, %v1307
    %v1631 = vsub.f32 %v862, %v1307
    %v1632 = vsub.f32 %v864, %v1307
    %v1633 = vsub.f32 %v867, %v1307
    %v1634 = vsub.f32 %v869, %v1307
    %v1635 = vsub.f32 %v872, %v1307
    %v1636 = vsub.f32 %v874, %v1307
    %v1637 = vsub.f32 %v877, %v1307
    %v1638 = vsub.f32 %v879, %v1307
    %v1639 = vsub.f32 %v882, %v1307
    %v1640 = vsub.f32 %v884, %v1307
    %v1641 = vsub.f32 %v887, %v1307
    %v1642 = vsub.f32 %v889, %v1307
    %v1643 = vsub.f32 %v892, %v1307
    %v1644 = vsub.f32 %v894, %v1307
    %v1645 = vsub.f32 %v897, %v1307
    %v1646 = vsub.f32 %v899, %v1307
    %v1647 = vsub.f32 %v902, %v1307
    %v1648 = vsub.f32 %v904, %v1307
    %v1649 = vsub.f32 %v907, %v1307
    %v1650 = vsub.f32 %v909, %v1307
    %v1651 = vsub.f32 %v912, %v1307
    %v1652 = vsub.f32 %v914, %v1307
    %v1653 = vsub.f32 %v917, %v1307
    %v1654 = vsub.f32 %v919, %v1307
    %v1655 = vsub.f32 %v922, %v1307
    %v1656 = vsub.f32 %v924, %v1307
    %v1657 = vsub.f32 %v927, %v1307
    %v1658 = vsub.f32 %v929, %v1307
    %v1659 = vsub.f32 %v932, %v1307
    %v1660 = vsub.f32 %v934, %v1307
    %v1661 = vsub.f32 %v937, %v1307
    %v1662 = vsub.f32 %v939, %v1307
    %v1663 = vsub.f32 %v942, %v1307
    %v1664 = vsub.f32 %v944, %v1307
    %v1665 = vsub.f32 %v947, %v1307
    %v1666 = vsub.f32 %v949, %v1307
    %v1667 = vsub.f32 %v952, %v1307
    %v1668 = vsub.f32 %v954, %v1307
    %v1669 = vsub.f32 %v957, %v1307
    %v1670 = vsub.f32 %v959, %v1307
    %v1671 = vsub.f32 %v962, %v1307
    %v1672 = vsub.f32 %v964, %v1307
    %v1673 = vsub.f32 %v967, %v1307
    %v1674 = vsub.f32 %v969, %v1307
    %v1675 = vsub.f32 %v972, %v1307
    %v1676 = vsub.f32 %v974, %v1307
    %v1677 = vsub.f32 %v977, %v1307
    %v1678 = vsub.f32 %v979, %v1307
    %v1679 = vsub.f32 %v982, %v1307
    %v1680 = vsub.f32 %v984, %v1307
    %v1681 = vsub.f32 %v987, %v1307
    %v1682 = vsub.f32 %v989, %v1307
    %v1683 = vsub.f32 %v992, %v1307
    %v1684 = vsub.f32 %v994, %v1307
    %v1685 = vsub.f32 %v997, %v1307
    %v1686 = vsub.f32 %v999, %v1307
    %v1687 = vsub.f32 %v1002, %v1307
    %v1688 = vsub.f32 %v1004, %v1307
    %v1689 = vsub.f32 %v1007, %v1307
    %v1690 = vsub.f32 %v1009, %v1307
    %v1691 = vsub.f32 %v1012, %v1307
    %v1692 = vsub.f32 %v1014, %v1307
    %v1693 = vsub.f32 %v1017, %v1307
    %v1694 = vsub.f32 %v1019, %v1307
    %v1695 = vsub.f32 %v1022, %v1307
    %v1696 = vsub.f32 %v1024, %v1307
    %v1697 = vsub.f32 %v1027, %v1307
    %v1698 = vsub.f32 %v1029, %v1307
    %v1699 = vsub.f32 %v1032, %v1307
    %v1700 = vsub.f32 %v1034, %v1307
    %v1701 = vsub.f32 %v1037, %v1307
    %v1702 = vsub.f32 %v1039, %v1307
    %v1703 = vsub.f32 %v1042, %v1307
    %v1704 = vsub.f32 %v1044, %v1307
    %v1705 = vsub.f32 %v1047, %v1307
    %v1706 = vsub.f32 %v1049, %v1307
    %v1707 = vsub.f32 %v1052, %v1307
    %v1708 = vsub.f32 %v1054, %v1307
    %v1709 = vsub.f32 %v1057, %v1307
    %v1710 = vsub.f32 %v1059, %v1307
    %v1711 = vsub.f32 %v1062, %v1307
    %v1712 = vsub.f32 %v1064, %v1307
    %v1713 = vsub.f32 %v1067, %v1307
    %v1714 = vsub.f32 %v1069, %v1307
    %v1715 = vsub.f32 %v1072, %v1307
    %v1716 = vsub.f32 %v1074, %v1307
    %v1717 = vsub.f32 %v1077, %v1307
    %v1718 = vsub.f32 %v1079, %v1307
    %v1719 = vsub.f32 %v1082, %v1307
    %v1720 = vsub.f32 %v1084, %v1307
    %v1721 = vsub.f32 %v1087, %v1307
    %v1722 = vsub.f32 %v1089, %v1307
    %v1723 = vsub.f32 %v1092, %v1307
    %v1724 = vsub.f32 %v1094, %v1307
    %v1725 = vsub.f32 %v1097, %v1307
    %v1726 = vsub.f32 %v1099, %v1307
    %v1727 = vsub.f32 %v1102, %v1307
    %v1728 = vsub.f32 %v1104, %v1307
    %v1729 = vsub.f32 %v1107, %v1307
    %v1730 = vsub.f32 %v1109, %v1307
    %v1731 = vsub.f32 %v1112, %v1307
    %v1732 = vsub.f32 %v1114, %v1307
    %v1733 = vsub.f32 %v1117, %v1307
    %v1734 = vsub.f32 %v1119, %v1307
    %v1735 = vsub.f32 %v1122, %v1307
    %v1736 = vsub.f32 %v1124, %v1307
    %v1737 = vsub.f32 %v1127, %v1307
    %v1738 = vsub.f32 %v1129, %v1307
    %v1739 = vsub.f32 %v1132, %v1307
    %v1740 = vsub.f32 %v1134, %v1307
    %v1741 = vsub.f32 %v1137, %v1307
    %v1742 = vsub.f32 %v1139, %v1307
    %v1743 = vsub.f32 %v1142, %v1307
    %v1744 = vsub.f32 %v1144, %v1307
    %v1745 = vsub.f32 %v1147, %v1307
    %v1746 = vsub.f32 %v1149, %v1307
    %v1747 = vsub.f32 %v1152, %v1307
    %v1748 = vsub.f32 %v1154, %v1307
    %v1749 = vadd.f32 %v1604, 1e-05
    %v1750 = vrsqrt.pop %v1749
    %v1751 = vmul.f32 %v1750, %v1749
    %v1752 = vmul.f32 %v1751, %v1750
    %v1753 = vmul.f32 0.5, %v1752
    %v1754 = vsub.f32 1.5, %v1753
    %v1755 = vmul.f32 %v1750, %v1754
    %vm1756 = vweird.f32 %v1749
    %vm1757 = vweird.f32 %v1750
    %vm1758 = vmor %vm1756, %vm1757
    %v1759 = vsel %vm1758, %v1750, %v1755
    %v1760 = vmul.f32 %v1605, %v1759
    %v1761 = vmul.f32 %v1606, %v1759
    %v1762 = vmul.f32 %v1607, %v1759
    %v1763 = vmul.f32 %v1608, %v1759
    %v1764 = vmul.f32 %v1609, %v1759
    %v1765 = vmul.f32 %v1610, %v1759
    %v1766 = vmul.f32 %v1611, %v1759
    %v1767 = vmul.f32 %v1612, %v1759
    %v1768 = vmul.f32 %v1613, %v1759
    %v1769 = vmul.f32 %v1614, %v1759
    %v1770 = vmul.f32 %v1615, %v1759
    %v1771 = vmul.f32 %v1616, %v1759
    %v1772 = vmul.f32 %v1617, %v1759
    %v1773 = vmul.f32 %v1618, %v1759
    %v1774 = vmul.f32 %v1619, %v1759
    %v1775 = vmul.f32 %v1620, %v1759
    %v1776 = vmul.f32 %v1621, %v1759
    %v1777 = vmul.f32 %v1622, %v1759
    %v1778 = vmul.f32 %v1623, %v1759
    %v1779 = vmul.f32 %v1624, %v1759
    %v1780 = vmul.f32 %v1625, %v1759
    %v1781 = vmul.f32 %v1626, %v1759
    %v1782 = vmul.f32 %v1627, %v1759
    %v1783 = vmul.f32 %v1628, %v1759
    %v1784 = vmul.f32 %v1629, %v1759
    %v1785 = vmul.f32 %v1630, %v1759
    %v1786 = vmul.f32 %v1631, %v1759
    %v1787 = vmul.f32 %v1632, %v1759
    %v1788 = vmul.f32 %v1633, %v1759
    %v1789 = vmul.f32 %v1634, %v1759
    %v1790 = vmul.f32 %v1635, %v1759
    %v1791 = vmul.f32 %v1636, %v1759
    %v1792 = vmul.f32 %v1637, %v1759
    %v1793 = vmul.f32 %v1638, %v1759
    %v1794 = vmul.f32 %v1639, %v1759
    %v1795 = vmul.f32 %v1640, %v1759
    %v1796 = vmul.f32 %v1641, %v1759
    %v1797 = vmul.f32 %v1642, %v1759
    %v1798 = vmul.f32 %v1643, %v1759
    %v1799 = vmul.f32 %v1644, %v1759
    %v1800 = vmul.f32 %v1645, %v1759
    %v1801 = vmul.f32 %v1646, %v1759
    %v1802 = vmul.f32 %v1647, %v1759
    %v1803 = vmul.f32 %v1648, %v1759
    %v1804 = vmul.f32 %v1649, %v1759
    %v1805 = vmul.f32 %v1650, %v1759
    %v1806 = vmul.f32 %v1651, %v1759
    %v1807 = vmul.f32 %v1652, %v1759
    %v1808 = vmul.f32 %v1653, %v1759
    %v1809 = vmul.f32 %v1654, %v1759
    %v1810 = vmul.f32 %v1655, %v1759
    %v1811 = vmul.f32 %v1656, %v1759
    %v1812 = vmul.f32 %v1657, %v1759
    %v1813 = vmul.f32 %v1658, %v1759
    %v1814 = vmul.f32 %v1659, %v1759
    %v1815 = vmul.f32 %v1660, %v1759
    %v1816 = vmul.f32 %v1661, %v1759
    %v1817 = vmul.f32 %v1662, %v1759
    %v1818 = vmul.f32 %v1663, %v1759
    %v1819 = vmul.f32 %v1664, %v1759
    %v1820 = vmul.f32 %v1665, %v1759
    %v1821 = vmul.f32 %v1666, %v1759
    %v1822 = vmul.f32 %v1667, %v1759
    %v1823 = vmul.f32 %v1668, %v1759
    %v1824 = vmul.f32 %v1669, %v1759
    %v1825 = vmul.f32 %v1670, %v1759
    %v1826 = vmul.f32 %v1671, %v1759
    %v1827 = vmul.f32 %v1672, %v1759
    %v1828 = vmul.f32 %v1673, %v1759
    %v1829 = vmul.f32 %v1674, %v1759
    %v1830 = vmul.f32 %v1675, %v1759
    %v1831 = vmul.f32 %v1676, %v1759
    %v1832 = vmul.f32 %v1677, %v1759
    %v1833 = vmul.f32 %v1678, %v1759
    %v1834 = vmul.f32 %v1679, %v1759
    %v1835 = vmul.f32 %v1680, %v1759
    %v1836 = vmul.f32 %v1681, %v1759
    %v1837 = vmul.f32 %v1682, %v1759
    %v1838 = vmul.f32 %v1683, %v1759
    %v1839 = vmul.f32 %v1684, %v1759
    %v1840 = vmul.f32 %v1685, %v1759
    %v1841 = vmul.f32 %v1686, %v1759
    %v1842 = vmul.f32 %v1687, %v1759
    %v1843 = vmul.f32 %v1688, %v1759
    %v1844 = vmul.f32 %v1689, %v1759
    %v1845 = vmul.f32 %v1690, %v1759
    %v1846 = vmul.f32 %v1691, %v1759
    %v1847 = vmul.f32 %v1692, %v1759
    %v1848 = vmul.f32 %v1693, %v1759
    %v1849 = vmul.f32 %v1694, %v1759
    %v1850 = vmul.f32 %v1695, %v1759
    %v1851 = vmul.f32 %v1696, %v1759
    %v1852 = vmul.f32 %v1697, %v1759
    %v1853 = vmul.f32 %v1698, %v1759
    %v1854 = vmul.f32 %v1699, %v1759
    %v1855 = vmul.f32 %v1700, %v1759
    %v1856 = vmul.f32 %v1701, %v1759
    %v1857 = vmul.f32 %v1702, %v1759
    %v1858 = vmul.f32 %v1703, %v1759
    %v1859 = vmul.f32 %v1704, %v1759
    %v1860 = vmul.f32 %v1705, %v1759
    %v1861 = vmul.f32 %v1706, %v1759
    %v1862 = vmul.f32 %v1707, %v1759
    %v1863 = vmul.f32 %v1708, %v1759
    %v1864 = vmul.f32 %v1709, %v1759
    %v1865 = vmul.f32 %v1710, %v1759
    %v1866 = vmul.f32 %v1711, %v1759
    %v1867 = vmul.f32 %v1712, %v1759
    %v1868 = vmul.f32 %v1713, %v1759
    %v1869 = vmul.f32 %v1714, %v1759
    %v1870 = vmul.f32 %v1715, %v1759
    %v1871 = vmul.f32 %v1716, %v1759
    %v1872 = vmul.f32 %v1717, %v1759
    %v1873 = vmul.f32 %v1718, %v1759
    %v1874 = vmul.f32 %v1719, %v1759
    %v1875 = vmul.f32 %v1720, %v1759
    %v1876 = vmul.f32 %v1721, %v1759
    %v1877 = vmul.f32 %v1722, %v1759
    %v1878 = vmul.f32 %v1723, %v1759
    %v1879 = vmul.f32 %v1724, %v1759
    %v1880 = vmul.f32 %v1725, %v1759
    %v1881 = vmul.f32 %v1726, %v1759
    %v1882 = vmul.f32 %v1727, %v1759
    %v1883 = vmul.f32 %v1728, %v1759
    %v1884 = vmul.f32 %v1729, %v1759
    %v1885 = vmul.f32 %v1730, %v1759
    %v1886 = vmul.f32 %v1731, %v1759
    %v1887 = vmul.f32 %v1732, %v1759
    %v1888 = vmul.f32 %v1733, %v1759
    %v1889 = vmul.f32 %v1734, %v1759
    %v1890 = vmul.f32 %v1735, %v1759
    %v1891 = vmul.f32 %v1736, %v1759
    %v1892 = vmul.f32 %v1737, %v1759
    %v1893 = vmul.f32 %v1738, %v1759
    %v1894 = vmul.f32 %v1739, %v1759
    %v1895 = vmul.f32 %v1740, %v1759
    %v1896 = vmul.f32 %v1741, %v1759
    %v1897 = vmul.f32 %v1742, %v1759
    %v1898 = vmul.f32 %v1743, %v1759
    %v1899 = vmul.f32 %v1744, %v1759
    %v1900 = vmul.f32 %v1745, %v1759
    %v1901 = vmul.f32 %v1746, %v1759
    %v1902 = vmul.f32 %v1747, %v1759
    %v1903 = vmul.f32 %v1748, %v1759
    %v1904 = vperm.slane %v1156, 0
    %v1905 = vmul.f32 %v1760, %v1904
    %v1906 = vmul.f32 %v1761, %v1904
    %v1907 = vmul.f32 %v1762, %v1904
    %v1908 = vmul.f32 %v1763, %v1904
    %v1909 = vmul.f32 %v1764, %v1904
    %v1910 = vmul.f32 %v1765, %v1904
    %v1911 = vmul.f32 %v1766, %v1904
    %v1912 = vmul.f32 %v1767, %v1904
    %v1913 = vmul.f32 %v1768, %v1904
    %v1914 = vmul.f32 %v1769, %v1904
    %v1915 = vmul.f32 %v1770, %v1904
    %v1916 = vmul.f32 %v1771, %v1904
    %v1917 = vmul.f32 %v1772, %v1904
    %v1918 = vmul.f32 %v1773, %v1904
    %v1919 = vmul.f32 %v1774, %v1904
    %v1920 = vmul.f32 %v1775, %v1904
    %v1921 = vmul.f32 %v1776, %v1904
    %v1922 = vmul.f32 %v1777, %v1904
    %v1923 = vmul.f32 %v1778, %v1904
    %v1924 = vmul.f32 %v1779, %v1904
    %v1925 = vmul.f32 %v1780, %v1904
    %v1926 = vmul.f32 %v1781, %v1904
    %v1927 = vmul.f32 %v1782, %v1904
    %v1928 = vmul.f32 %v1783, %v1904
    %v1929 = vmul.f32 %v1784, %v1904
    %v1930 = vmul.f32 %v1785, %v1904
    %v1931 = vmul.f32 %v1786, %v1904
    %v1932 = vmul.f32 %v1787, %v1904
    %v1933 = vmul.f32 %v1788, %v1904
    %v1934 = vmul.f32 %v1789, %v1904
    %v1935 = vmul.f32 %v1790, %v1904
    %v1936 = vmul.f32 %v1791, %v1904
    %v1937 = vmul.f32 %v1792, %v1904
    %v1938 = vmul.f32 %v1793, %v1904
    %v1939 = vmul.f32 %v1794, %v1904
    %v1940 = vmul.f32 %v1795, %v1904
    %v1941 = vmul.f32 %v1796, %v1904
    %v1942 = vmul.f32 %v1797, %v1904
    %v1943 = vmul.f32 %v1798, %v1904
    %v1944 = vmul.f32 %v1799, %v1904
    %v1945 = vmul.f32 %v1800, %v1904
    %v1946 = vmul.f32 %v1801, %v1904
    %v1947 = vmul.f32 %v1802, %v1904
    %v1948 = vmul.f32 %v1803, %v1904
    %v1949 = vmul.f32 %v1804, %v1904
    %v1950 = vmul.f32 %v1805, %v1904
    %v1951 = vmul.f32 %v1806, %v1904
    %v1952 = vmul.f32 %v1807, %v1904
    %v1953 = vmul.f32 %v1808, %v1904
    %v1954 = vmul.f32 %v1809, %v1904
    %v1955 = vmul.f32 %v1810, %v1904
    %v1956 = vmul.f32 %v1811, %v1904
    %v1957 = vmul.f32 %v1812, %v1904
    %v1958 = vmul.f32 %v1813, %v1904
    %v1959 = vmul.f32 %v1814, %v1904
    %v1960 = vmul.f32 %v1815, %v1904
    %v1961 = vmul.f32 %v1816, %v1904
    %v1962 = vmul.f32 %v1817, %v1904
    %v1963 = vmul.f32 %v1818, %v1904
    %v1964 = vmul.f32 %v1819, %v1904
    %v1965 = vmul.f32 %v1820, %v1904
    %v1966 = vmul.f32 %v1821, %v1904
    %v1967 = vmul.f32 %v1822, %v1904
    %v1968 = vmul.f32 %v1823, %v1904
    %v1969 = vmul.f32 %v1824, %v1904
    %v1970 = vmul.f32 %v1825, %v1904
    %v1971 = vmul.f32 %v1826, %v1904
    %v1972 = vmul.f32 %v1827, %v1904
    %v1973 = vmul.f32 %v1828, %v1904
    %v1974 = vmul.f32 %v1829, %v1904
    %v1975 = vmul.f32 %v1830, %v1904
    %v1976 = vmul.f32 %v1831, %v1904
    %v1977 = vmul.f32 %v1832, %v1904
    %v1978 = vmul.f32 %v1833, %v1904
    %v1979 = vmul.f32 %v1834, %v1904
    %v1980 = vmul.f32 %v1835, %v1904
    %v1981 = vmul.f32 %v1836, %v1904
    %v1982 = vmul.f32 %v1837, %v1904
    %v1983 = vmul.f32 %v1838, %v1904
    %v1984 = vmul.f32 %v1839, %v1904
    %v1985 = vmul.f32 %v1840, %v1904
    %v1986 = vmul.f32 %v1841, %v1904
    %v1987 = vmul.f32 %v1842, %v1904
    %v1988 = vmul.f32 %v1843, %v1904
    %v1989 = vmul.f32 %v1844, %v1904
    %v1990 = vmul.f32 %v1845, %v1904
    %v1991 = vmul.f32 %v1846, %v1904
    %v1992 = vmul.f32 %v1847, %v1904
    %v1993 = vmul.f32 %v1848, %v1904
    %v1994 = vmul.f32 %v1849, %v1904
    %v1995 = vmul.f32 %v1850, %v1904
    %v1996 = vmul.f32 %v1851, %v1904
    %v1997 = vmul.f32 %v1852, %v1904
    %v1998 = vmul.f32 %v1853, %v1904
    %v1999 = vmul.f32 %v1854, %v1904
    %v2000 = vmul.f32 %v1855, %v1904
    %v2001 = vmul.f32 %v1856, %v1904
    %v2002 = vmul.f32 %v1857, %v1904
    %v2003 = vmul.f32 %v1858, %v1904
    %v2004 = vmul.f32 %v1859, %v1904
    %v2005 = vmul.f32 %v1860, %v1904
    %v2006 = vmul.f32 %v1861, %v1904
    %v2007 = vmul.f32 %v1862, %v1904
    %v2008 = vmul.f32 %v1863, %v1904
    %v2009 = vmul.f32 %v1864, %v1904
    %v2010 = vmul.f32 %v1865, %v1904
    %v2011 = vmul.f32 %v1866, %v1904
    %v2012 = vmul.f32 %v1867, %v1904
    %v2013 = vmul.f32 %v1868, %v1904
    %v2014 = vmul.f32 %v1869, %v1904
    %v2015 = vmul.f32 %v1870, %v1904
    %v2016 = vmul.f32 %v1871, %v1904
    %v2017 = vmul.f32 %v1872, %v1904
    %v2018 = vmul.f32 %v1873, %v1904
    %v2019 = vmul.f32 %v1874, %v1904
    %v2020 = vmul.f32 %v1875, %v1904
    %v2021 = vmul.f32 %v1876, %v1904
    %v2022 = vmul.f32 %v1877, %v1904
    %v2023 = vmul.f32 %v1878, %v1904
    %v2024 = vmul.f32 %v1879, %v1904
    %v2025 = vmul.f32 %v1880, %v1904
    %v2026 = vmul.f32 %v1881, %v1904
    %v2027 = vmul.f32 %v1882, %v1904
    %v2028 = vmul.f32 %v1883, %v1904
    %v2029 = vmul.f32 %v1884, %v1904
    %v2030 = vmul.f32 %v1885, %v1904
    %v2031 = vmul.f32 %v1886, %v1904
    %v2032 = vmul.f32 %v1887, %v1904
    %v2033 = vmul.f32 %v1888, %v1904
    %v2034 = vmul.f32 %v1889, %v1904
    %v2035 = vmul.f32 %v1890, %v1904
    %v2036 = vmul.f32 %v1891, %v1904
    %v2037 = vmul.f32 %v1892, %v1904
    %v2038 = vmul.f32 %v1893, %v1904
    %v2039 = vmul.f32 %v1894, %v1904
    %v2040 = vmul.f32 %v1895, %v1904
    %v2041 = vmul.f32 %v1896, %v1904
    %v2042 = vmul.f32 %v1897, %v1904
    %v2043 = vmul.f32 %v1898, %v1904
    %v2044 = vmul.f32 %v1899, %v1904
    %v2045 = vmul.f32 %v1900, %v1904
    %v2046 = vmul.f32 %v1901, %v1904
    %v2047 = vmul.f32 %v1902, %v1904
    %v2048 = vmul.f32 %v1903, %v1904
    %v2049 = vperm.slane %v1157, 0
    %v2050 = vadd.f32 %v1905, %v2049
    %v2051 = vadd.f32 %v1906, %v2049
    %v2052 = vadd.f32 %v1907, %v2049
    %v2053 = vadd.f32 %v1908, %v2049
    %v2054 = vadd.f32 %v1909, %v2049
    %v2055 = vadd.f32 %v1910, %v2049
    %v2056 = vadd.f32 %v1911, %v2049
    %v2057 = vadd.f32 %v1912, %v2049
    %v2058 = vadd.f32 %v1913, %v2049
    %v2059 = vadd.f32 %v1914, %v2049
    %v2060 = vadd.f32 %v1915, %v2049
    %v2061 = vadd.f32 %v1916, %v2049
    %v2062 = vadd.f32 %v1917, %v2049
    %v2063 = vadd.f32 %v1918, %v2049
    %v2064 = vadd.f32 %v1919, %v2049
    %v2065 = vadd.f32 %v1920, %v2049
    %v2066 = vadd.f32 %v1921, %v2049
    %v2067 = vadd.f32 %v1922, %v2049
    %v2068 = vadd.f32 %v1923, %v2049
    %v2069 = vadd.f32 %v1924, %v2049
    %v2070 = vadd.f32 %v1925, %v2049
    %v2071 = vadd.f32 %v1926, %v2049
    %v2072 = vadd.f32 %v1927, %v2049
    %v2073 = vadd.f32 %v1928, %v2049
    %v2074 = vadd.f32 %v1929, %v2049
    %v2075 = vadd.f32 %v1930, %v2049
    %v2076 = vadd.f32 %v1931, %v2049
    %v2077 = vadd.f32 %v1932, %v2049
    %v2078 = vadd.f32 %v1933, %v2049
    %v2079 = vadd.f32 %v1934, %v2049
    %v2080 = vadd.f32 %v1935, %v2049
    %v2081 = vadd.f32 %v1936, %v2049
    %v2082 = vadd.f32 %v1937, %v2049
    %v2083 = vadd.f32 %v1938, %v2049
    %v2084 = vadd.f32 %v1939, %v2049
    %v2085 = vadd.f32 %v1940, %v2049
    %v2086 = vadd.f32 %v1941, %v2049
    %v2087 = vadd.f32 %v1942, %v2049
    %v2088 = vadd.f32 %v1943, %v2049
    %v2089 = vadd.f32 %v1944, %v2049
    %v2090 = vadd.f32 %v1945, %v2049
    %v2091 = vadd.f32 %v1946, %v2049
    %v2092 = vadd.f32 %v1947, %v2049
    %v2093 = vadd.f32 %v1948, %v2049
    %v2094 = vadd.f32 %v1949, %v2049
    %v2095 = vadd.f32 %v1950, %v2049
    %v2096 = vadd.f32 %v1951, %v2049
    %v2097 = vadd.f32 %v1952, %v2049
    %v2098 = vadd.f32 %v1953, %v2049
    %v2099 = vadd.f32 %v1954, %v2049
    %v2100 = vadd.f32 %v1955, %v2049
    %v2101 = vadd.f32 %v1956, %v2049
    %v2102 = vadd.f32 %v1957, %v2049
    %v2103 = vadd.f32 %v1958, %v2049
    %v2104 = vadd.f32 %v1959, %v2049
    %v2105 = vadd.f32 %v1960, %v2049
    %v2106 = vadd.f32 %v1961, %v2049
    %v2107 = vadd.f32 %v1962, %v2049
    %v2108 = vadd.f32 %v1963, %v2049
    %v2109 = vadd.f32 %v1964, %v2049
    %v2110 = vadd.f32 %v1965, %v2049
    %v2111 = vadd.f32 %v1966, %v2049
    %v2112 = vadd.f32 %v1967, %v2049
    %v2113 = vadd.f32 %v1968, %v2049
    %v2114 = vadd.f32 %v1969, %v2049
    %v2115 = vadd.f32 %v1970, %v2049
    %v2116 = vadd.f32 %v1971, %v2049
    %v2117 = vadd.f32 %v1972, %v2049
    %v2118 = vadd.f32 %v1973, %v2049
    %v2119 = vadd.f32 %v1974, %v2049
    %v2120 = vadd.f32 %v1975, %v2049
    %v2121 = vadd.f32 %v1976, %v2049
    %v2122 = vadd.f32 %v1977, %v2049
    %v2123 = vadd.f32 %v1978, %v2049
    %v2124 = vadd.f32 %v1979, %v2049
    %v2125 = vadd.f32 %v1980, %v2049
    %v2126 = vadd.f32 %v1981, %v2049
    %v2127 = vadd.f32 %v1982, %v2049
    %v2128 = vadd.f32 %v1983, %v2049
    %v2129 = vadd.f32 %v1984, %v2049
    %v2130 = vadd.f32 %v1985, %v2049
    %v2131 = vadd.f32 %v1986, %v2049
    %v2132 = vadd.f32 %v1987, %v2049
    %v2133 = vadd.f32 %v1988, %v2049
    %v2134 = vadd.f32 %v1989, %v2049
    %v2135 = vadd.f32 %v1990, %v2049
    %v2136 = vadd.f32 %v1991, %v2049
    %v2137 = vadd.f32 %v1992, %v2049
    %v2138 = vadd.f32 %v1993, %v2049
    %v2139 = vadd.f32 %v1994, %v2049
    %v2140 = vadd.f32 %v1995, %v2049
    %v2141 = vadd.f32 %v1996, %v2049
    %v2142 = vadd.f32 %v1997, %v2049
    %v2143 = vadd.f32 %v1998, %v2049
    %v2144 = vadd.f32 %v1999, %v2049
    %v2145 = vadd.f32 %v2000, %v2049
    %v2146 = vadd.f32 %v2001, %v2049
    %v2147 = vadd.f32 %v2002, %v2049
    %v2148 = vadd.f32 %v2003, %v2049
    %v2149 = vadd.f32 %v2004, %v2049
    %v2150 = vadd.f32 %v2005, %v2049
    %v2151 = vadd.f32 %v2006, %v2049
    %v2152 = vadd.f32 %v2007, %v2049
    %v2153 = vadd.f32 %v2008, %v2049
    %v2154 = vadd.f32 %v2009, %v2049
    %v2155 = vadd.f32 %v2010, %v2049
    %v2156 = vadd.f32 %v2011, %v2049
    %v2157 = vadd.f32 %v2012, %v2049
    %v2158 = vadd.f32 %v2013, %v2049
    %v2159 = vadd.f32 %v2014, %v2049
    %v2160 = vadd.f32 %v2015, %v2049
    %v2161 = vadd.f32 %v2016, %v2049
    %v2162 = vadd.f32 %v2017, %v2049
    %v2163 = vadd.f32 %v2018, %v2049
    %v2164 = vadd.f32 %v2019, %v2049
    %v2165 = vadd.f32 %v2020, %v2049
    %v2166 = vadd.f32 %v2021, %v2049
    %v2167 = vadd.f32 %v2022, %v2049
    %v2168 = vadd.f32 %v2023, %v2049
    %v2169 = vadd.f32 %v2024, %v2049
    %v2170 = vadd.f32 %v2025, %v2049
    %v2171 = vadd.f32 %v2026, %v2049
    %v2172 = vadd.f32 %v2027, %v2049
    %v2173 = vadd.f32 %v2028, %v2049
    %v2174 = vadd.f32 %v2029, %v2049
    %v2175 = vadd.f32 %v2030, %v2049
    %v2176 = vadd.f32 %v2031, %v2049
    %v2177 = vadd.f32 %v2032, %v2049
    %v2178 = vadd.f32 %v2033, %v2049
    %v2179 = vadd.f32 %v2034, %v2049
    %v2180 = vadd.f32 %v2035, %v2049
    %v2181 = vadd.f32 %v2036, %v2049
    %v2182 = vadd.f32 %v2037, %v2049
    %v2183 = vadd.f32 %v2038, %v2049
    %v2184 = vadd.f32 %v2039, %v2049
    %v2185 = vadd.f32 %v2040, %v2049
    %v2186 = vadd.f32 %v2041, %v2049
    %v2187 = vadd.f32 %v2042, %v2049
    %v2188 = vadd.f32 %v2043, %v2049
    %v2189 = vadd.f32 %v2044, %v2049
    %v2190 = vadd.f32 %v2045, %v2049
    %v2191 = vadd.f32 %v2046, %v2049
    %v2192 = vadd.f32 %v2047, %v2049
    %v2193 = vadd.f32 %v2048, %v2049
    %v2194 = vmax.f32 %v2050, 0.0
    %v2195 = vmax.f32 %v2051, 0.0
    %v2196 = vmax.f32 %v2052, 0.0
    %v2197 = vmax.f32 %v2053, 0.0
    %v2198 = vmax.f32 %v2054, 0.0
    %v2199 = vmax.f32 %v2055, 0.0
    %v2200 = vmax.f32 %v2056, 0.0
    %v2201 = vmax.f32 %v2057, 0.0
    %v2202 = vmax.f32 %v2058, 0.0
    %v2203 = vmax.f32 %v2059, 0.0
    %v2204 = vmax.f32 %v2060, 0.0
    %v2205 = vmax.f32 %v2061, 0.0
    %v2206 = vmax.f32 %v2062, 0.0
    %v2207 = vmax.f32 %v2063, 0.0
    %v2208 = vmax.f32 %v2064, 0.0
    %v2209 = vmax.f32 %v2065, 0.0
    %v2210 = vmax.f32 %v2066, 0.0
    %v2211 = vmax.f32 %v2067, 0.0
    %v2212 = vmax.f32 %v2068, 0.0
    %v2213 = vmax.f32 %v2069, 0.0
    %v2214 = vmax.f32 %v2070, 0.0
    %v2215 = vmax.f32 %v2071, 0.0
    %v2216 = vmax.f32 %v2072, 0.0
    %v2217 = vmax.f32 %v2073, 0.0
    %v2218 = vmax.f32 %v2074, 0.0
    %v2219 = vmax.f32 %v2075, 0.0
    %v2220 = vmax.f32 %v2076, 0.0
    %v2221 = vmax.f32 %v2077, 0.0
    %v2222 = vmax.f32 %v2078, 0.0
    %v2223 = vmax.f32 %v2079, 0.0
    %v2224 = vmax.f32 %v2080, 0.0
    %v2225 = vmax.f32 %v2081, 0.0
    %v2226 = vmax.f32 %v2082, 0.0
    %v2227 = vmax.f32 %v2083, 0.0
    %v2228 = vmax.f32 %v2084, 0.0
    %v2229 = vmax.f32 %v2085, 0.0
    %v2230 = vmax.f32 %v2086, 0.0
    %v2231 = vmax.f32 %v2087, 0.0
    %v2232 = vmax.f32 %v2088, 0.0
    %v2233 = vmax.f32 %v2089, 0.0
    %v2234 = vmax.f32 %v2090, 0.0
    %v2235 = vmax.f32 %v2091, 0.0
    %v2236 = vmax.f32 %v2092, 0.0
    %v2237 = vmax.f32 %v2093, 0.0
    %v2238 = vmax.f32 %v2094, 0.0
    %v2239 = vmax.f32 %v2095, 0.0
    %v2240 = vmax.f32 %v2096, 0.0
    %v2241 = vmax.f32 %v2097, 0.0
    %v2242 = vmax.f32 %v2098, 0.0
    %v2243 = vmax.f32 %v2099, 0.0
    %v2244 = vmax.f32 %v2100, 0.0
    %v2245 = vmax.f32 %v2101, 0.0
    %v2246 = vmax.f32 %v2102, 0.0
    %v2247 = vmax.f32 %v2103, 0.0
    %v2248 = vmax.f32 %v2104, 0.0
    %v2249 = vmax.f32 %v2105, 0.0
    %v2250 = vmax.f32 %v2106, 0.0
    %v2251 = vmax.f32 %v2107, 0.0
    %v2252 = vmax.f32 %v2108, 0.0
    %v2253 = vmax.f32 %v2109, 0.0
    %v2254 = vmax.f32 %v2110, 0.0
    %v2255 = vmax.f32 %v2111, 0.0
    %v2256 = vmax.f32 %v2112, 0.0
    %v2257 = vmax.f32 %v2113, 0.0
    %v2258 = vmax.f32 %v2114, 0.0
    %v2259 = vmax.f32 %v2115, 0.0
    %v2260 = vmax.f32 %v2116, 0.0
    %v2261 = vmax.f32 %v2117, 0.0
    %v2262 = vmax.f32 %v2118, 0.0
    %v2263 = vmax.f32 %v2119, 0.0
    %v2264 = vmax.f32 %v2120, 0.0
    %v2265 = vmax.f32 %v2121, 0.0
    %v2266 = vmax.f32 %v2122, 0.0
    %v2267 = vmax.f32 %v2123, 0.0
    %v2268 = vmax.f32 %v2124, 0.0
    %v2269 = vmax.f32 %v2125, 0.0
    %v2270 = vmax.f32 %v2126, 0.0
    %v2271 = vmax.f32 %v2127, 0.0
    %v2272 = vmax.f32 %v2128, 0.0
    %v2273 = vmax.f32 %v2129, 0.0
    %v2274 = vmax.f32 %v2130, 0.0
    %v2275 = vmax.f32 %v2131, 0.0
    %v2276 = vmax.f32 %v2132, 0.0
    %v2277 = vmax.f32 %v2133, 0.0
    %v2278 = vmax.f32 %v2134, 0.0
    %v2279 = vmax.f32 %v2135, 0.0
    %v2280 = vmax.f32 %v2136, 0.0
    %v2281 = vmax.f32 %v2137, 0.0
    %v2282 = vmax.f32 %v2138, 0.0
    %v2283 = vmax.f32 %v2139, 0.0
    %v2284 = vmax.f32 %v2140, 0.0
    %v2285 = vmax.f32 %v2141, 0.0
    %v2286 = vmax.f32 %v2142, 0.0
    %v2287 = vmax.f32 %v2143, 0.0
    %v2288 = vmax.f32 %v2144, 0.0
    %v2289 = vmax.f32 %v2145, 0.0
    %v2290 = vmax.f32 %v2146, 0.0
    %v2291 = vmax.f32 %v2147, 0.0
    %v2292 = vmax.f32 %v2148, 0.0
    %v2293 = vmax.f32 %v2149, 0.0
    %v2294 = vmax.f32 %v2150, 0.0
    %v2295 = vmax.f32 %v2151, 0.0
    %v2296 = vmax.f32 %v2152, 0.0
    %v2297 = vmax.f32 %v2153, 0.0
    %v2298 = vmax.f32 %v2154, 0.0
    %v2299 = vmax.f32 %v2155, 0.0
    %v2300 = vmax.f32 %v2156, 0.0
    %v2301 = vmax.f32 %v2157, 0.0
    %v2302 = vmax.f32 %v2158, 0.0
    %v2303 = vmax.f32 %v2159, 0.0
    %v2304 = vmax.f32 %v2160, 0.0
    %v2305 = vmax.f32 %v2161, 0.0
    %v2306 = vmax.f32 %v2162, 0.0
    %v2307 = vmax.f32 %v2163, 0.0
    %v2308 = vmax.f32 %v2164, 0.0
    %v2309 = vmax.f32 %v2165, 0.0
    %v2310 = vmax.f32 %v2166, 0.0
    %v2311 = vmax.f32 %v2167, 0.0
    %v2312 = vmax.f32 %v2168, 0.0
    %v2313 = vmax.f32 %v2169, 0.0
    %v2314 = vmax.f32 %v2170, 0.0
    %v2315 = vmax.f32 %v2171, 0.0
    %v2316 = vmax.f32 %v2172, 0.0
    %v2317 = vmax.f32 %v2173, 0.0
    %v2318 = vmax.f32 %v2174, 0.0
    %v2319 = vmax.f32 %v2175, 0.0
    %v2320 = vmax.f32 %v2176, 0.0
    %v2321 = vmax.f32 %v2177, 0.0
    %v2322 = vmax.f32 %v2178, 0.0
    %v2323 = vmax.f32 %v2179, 0.0
    %v2324 = vmax.f32 %v2180, 0.0
    %v2325 = vmax.f32 %v2181, 0.0
    %v2326 = vmax.f32 %v2182, 0.0
    %v2327 = vmax.f32 %v2183, 0.0
    %v2328 = vmax.f32 %v2184, 0.0
    %v2329 = vmax.f32 %v2185, 0.0
    %v2330 = vmax.f32 %v2186, 0.0
    %v2331 = vmax.f32 %v2187, 0.0
    %v2332 = vmax.f32 %v2188, 0.0
    %v2333 = vmax.f32 %v2189, 0.0
    %v2334 = vmax.f32 %v2190, 0.0
    %v2335 = vmax.f32 %v2191, 0.0
    %v2336 = vmax.f32 %v2192, 0.0
    %v2337 = vmax.f32 %v2193, 0.0
    %2338 = vst [vmem:[#allocation2] sm:$0xff] %v2194
    %2339 = vst [vmem:[#allocation2 + $0x8] sm:$0xff] %v2195
    %2340 = vst [vmem:[#allocation2 + $0x10] sm:$0xff] %v2196
    %2341 = vst [vmem:[#allocation2 + $0x18] sm:$0xff] %v2197
    %2342 = vst [vmem:[#allocation2 + $0x20] sm:$0xff] %v2198
    %2343 = vst [vmem:[#allocation2 + $0x28] sm:$0xff] %v2199
    %2344 = vst [vmem:[#allocation2 + $0x30] sm:$0xff] %v2200
    %2345 = vst [vmem:[#allocation2 + $0x38] sm:$0xff] %v2201
    %2346 = vst [vmem:[#allocation2 + $0x40] sm:$0xff] %v2202
    %2347 = vst [vmem:[#allocation2 + $0x48] sm:$0xff] %v2203
    %2348 = vst [vmem:[#allocation2 + $0x50] sm:$0xff] %v2204
    %2349 = vst [vmem:[#allocation2 + $0x58] sm:$0xff] %v2205
    %2350 = vst [vmem:[#allocation2 + $0x60] sm:$0xff] %v2206
    %2351 = vst [vmem:[#allocation2 + $0x68] sm:$0xff] %v2207
    %2352 = vst [vmem:[#allocation2 + $0x70] sm:$0xff] %v2208
    %2353 = vst [vmem:[#allocation2 + $0x78] sm:$0xff] %v2209
    %2354 = vst [vmem:[#allocation2 + $0x80] sm:$0xff] %v2210
    %2355 = vst [vmem:[#allocation2 + $0x88] sm:$0xff] %v2211
    %2356 = vst [vmem:[#allocation2 + $0x90] sm:$0xff] %v2212
    %2357 = vst [vmem:[#allocation2 + $0x98] sm:$0xff] %v2213
    %2358 = vst [vmem:[#allocation2 + $0xa0] sm:$0xff] %v2214
    %2359 = vst [vmem:[#allocation2 + $0xa8] sm:$0xff] %v2215
    %2360 = vst [vmem:[#allocation2 + $0xb0] sm:$0xff] %v2216
    %2361 = vst [vmem:[#allocation2 + $0xb8] sm:$0xff] %v2217
    %2362 = vst [vmem:[#allocation2 + $0xc0] sm:$0xff] %v2218
    %2363 = vst [vmem:[#allocation2 + $0xc8] sm:$0xff] %v2219
    %2364 = vst [vmem:[#allocation2 + $0xd0] sm:$0xff] %v2220
    %2365 = vst [vmem:[#allocation2 + $0xd8] sm:$0xff] %v2221
    %2366 = vst [vmem:[#allocation2 + $0xe0] sm:$0xff] %v2222
    %2367 = vst [vmem:[#allocation2 + $0xe8] sm:$0xff] %v2223
    %2368 = vst [vmem:[#allocation2 + $0xf0] sm:$0xff] %v2224
    %2369 = vst [vmem:[#allocation2 + $0xf8] sm:$0xff] %v2225
    %2370 = vst [vmem:[#allocation2 + $0x100] sm:$0xff] %v2226
    %2371 = vst [vmem:[#allocation2 + $0x108] sm:$0xff] %v2227
    %2372 = vst [vmem:[#allocation2 + $0x110] sm:$0xff] %v2228
    %2373 = vst [vmem:[#allocation2 + $0x118] sm:$0xff] %v2229
    %2374 = vst [vmem:[#allocation2 + $0x120] sm:$0xff] %v2230
    %2375 = vst [vmem:[#allocation2 + $0x128] sm:$0xff] %v2231
    %2376 = vst [vmem:[#allocation2 + $0x130] sm:$0xff] %v2232
    %2377 = vst [vmem:[#allocation2 + $0x138] sm:$0xff] %v2233
    %2378 = vst [vmem:[#allocation2 + $0x140] sm:$0xff] %v2234
    %2379 = vst [vmem:[#allocation2 + $0x148] sm:$0xff] %v2235
    %2380 = vst [vmem:[#allocation2 + $0x150] sm:$0xff] %v2236
    %2381 = vst [vmem:[#allocation2 + $0x158] sm:$0xff] %v2237
    %2382 = vst [vmem:[#allocation2 + $0x160] sm:$0xff] %v2238
    %2383 = vst [vmem:[#allocation2 + $0x168] sm:$0xff] %v2239
    %2384 = vst [vmem:[#allocation2 + $0x170] sm:$0xff] %v2240
    %2385 = vst [vmem:[#allocation2 + $0x178] sm:$0xff] %v2241
    %2386 = vst [vmem:[#allocation2 + $0x180] sm:$0xff] %v2242
    %2387 = vst [vmem:[#allocation2 + $0x188] sm:$0xff] %v2243
    %2388 = vst [vmem:[#allocation2 + $0x190] sm:$0xff] %v2244
    %2389 = vst [vmem:[#allocation2 + $0x198] sm:$0xff] %v2245
    %2390 = vst [vmem:[#allocation2 + $0x1a0] sm:$0xff] %v2246
    %2391 = vst [vmem:[#allocation2 + $0x1a8] sm:$0xff] %v2247
    %2392 = vst [vmem:[#allocation2 + $0x1b0] sm:$0xff] %v2248
    %2393 = vst [vmem:[#allocation2 + $0x1b8] sm:$0xff] %v2249
    %2394 = vst [vmem:[#allocation2 + $0x1c0] sm:$0xff] %v2250
    %2395 = vst [vmem:[#allocation2 + $0x1c8] sm:$0xff] %v2251
    %2396 = vst [vmem:[#allocation2 + $0x1d0] sm:$0xff] %v2252
    %2397 = vst [vmem:[#allocation2 + $0x1d8] sm:$0xff] %v2253
    %2398 = vst [vmem:[#allocation2 + $0x1e0] sm:$0xff] %v2254
    %2399 = vst [vmem:[#allocation2 + $0x1e8] sm:$0xff] %v2255
    %2400 = vst [vmem:[#allocation2 + $0x1f0] sm:$0xff] %v2256
    %2401 = vst [vmem:[#allocation2 + $0x1f8] sm:$0xff] %v2257
    %2402 = vst [vmem:[#allocation2 + $0x200] sm:$0xff] %v2258
    %2403 = vst [vmem:[#allocation2 + $0x208] sm:$0xff] %v2259
    %2404 = vst [vmem:[#allocation2 + $0x210] sm:$0xff] %v2260
    %2405 = vst [vmem:[#allocation2 + $0x218] sm:$0xff] %v2261
    %2406 = vst [vmem:[#allocation2 + $0x220] sm:$0xff] %v2262
    %2407 = vst [vmem:[#allocation2 + $0x228] sm:$0xff] %v2263
    %2408 = vst [vmem:[#allocation2 + $0x230] sm:$0xff] %v2264
    %2409 = vst [vmem:[#allocation2 + $0x238] sm:$0xff] %v2265
    %2410 = vst [vmem:[#allocation2 + $0x240] sm:$0xff] %v2266
    %2411 = vst [vmem:[#allocation2 + $0x248] sm:$0xff] %v2267
    %2412 = vst [vmem:[#allocation2 + $0x250] sm:$0xff] %v2268
    %2413 = vst [vmem:[#allocation2 + $0x258] sm:$0xff] %v2269
    %2414 = vst [vmem:[#allocation2 + $0x260] sm:$0xff] %v2270
    %2415 = vst [vmem:[#allocation2 + $0x268] sm:$0xff] %v2271
    %2416 = vst [vmem:[#allocation2 + $0x270] sm:$0xff] %v2272
    %2417 = vst [vmem:[#allocation2 + $0x278] sm:$0xff] %v2273
    %2418 = vst [vmem:[#allocation2 + $0x280] sm:$0xff] %v2274
    %2419 = vst [vmem:[#allocation2 + $0x288] sm:$0xff] %v2275
    %2420 = vst [vmem:[#allocation2 + $0x290] sm:$0xff] %v2276
    %2421 = vst [vmem:[#allocation2 + $0x298] sm:$0xff] %v2277
    %2422 = vst [vmem:[#allocation2 + $0x2a0] sm:$0xff] %v2278
    %2423 = vst [vmem:[#allocation2 + $0x2a8] sm:$0xff] %v2279
    %2424 = vst [vmem:[#allocation2 + $0x2b0] sm:$0xff] %v2280
    %2425 = vst [vmem:[#allocation2 + $0x2b8] sm:$0xff] %v2281
    %2426 = vst [vmem:[#allocation2 + $0x2c0] sm:$0xff] %v2282
    %2427 = vst [vmem:[#allocation2 + $0x2c8] sm:$0xff] %v2283
    %2428 = vst [vmem:[#allocation2 + $0x2d0] sm:$0xff] %v2284
    %2429 = vst [vmem:[#allocation2 + $0x2d8] sm:$0xff] %v2285
    %2430 = vst [vmem:[#allocation2 + $0x2e0] sm:$0xff] %v2286
    %2431 = vst [vmem:[#allocation2 + $0x2e8] sm:$0xff] %v2287
    %2432 = vst [vmem:[#allocation2 + $0x2f0] sm:$0xff] %v2288
    %2433 = vst [vmem:[#allocation2 + $0x2f8] sm:$0xff] %v2289
    %2434 = vst [vmem:[#allocation2 + $0x300] sm:$0xff] %v2290
    %2435 = vst [vmem:[#allocation2 + $0x308] sm:$0xff] %v2291
    %2436 = vst [vmem:[#allocation2 + $0x310] sm:$0xff] %v2292
    %2437 = vst [vmem:[#allocation2 + $0x318] sm:$0xff] %v2293
    %2438 = vst [vmem:[#allocation2 + $0x320] sm:$0xff] %v2294
    %2439 = vst [vmem:[#allocation2 + $0x328] sm:$0xff] %v2295
    %2440 = vst [vmem:[#allocation2 + $0x330] sm:$0xff] %v2296
    %2441 = vst [vmem:[#allocation2 + $0x338] sm:$0xff] %v2297
    %2442 = vst [vmem:[#allocation2 + $0x340] sm:$0xff] %v2298
    %2443 = vst [vmem:[#allocation2 + $0x348] sm:$0xff] %v2299
    %2444 = vst [vmem:[#allocation2 + $0x350] sm:$0xff] %v2300
    %2445 = vst [vmem:[#allocation2 + $0x358] sm:$0xff] %v2301
    %2446 = vst [vmem:[#allocation2 + $0x360] sm:$0xff] %v2302
    %2447 = vst [vmem:[#allocation2 + $0x368] sm:$0xff] %v2303
    %2448 = vst [vmem:[#allocation2 + $0x370] sm:$0xff] %v2304
    %2449 = vst [vmem:[#allocation2 + $0x378] sm:$0xff] %v2305
    %2450 = vst [vmem:[#allocation2 + $0x380] sm:$0xff] %v2306
    %2451 = vst [vmem:[#allocation2 + $0x388] sm:$0xff] %v2307
    %2452 = vst [vmem:[#allocation2 + $0x390] sm:$0xff] %v2308
    %2453 = vst [vmem:[#allocation2 + $0x398] sm:$0xff] %v2309
    %2454 = vst [vmem:[#allocation2 + $0x3a0] sm:$0xff] %v2310
    %2455 = vst [vmem:[#allocation2 + $0x3a8] sm:$0xff] %v2311
    %2456 = vst [vmem:[#allocation2 + $0x3b0] sm:$0xff] %v2312
    %2457 = vst [vmem:[#allocation2 + $0x3b8] sm:$0xff] %v2313
    %2458 = vst [vmem:[#allocation2 + $0x3c0] sm:$0xff] %v2314
    %2459 = vst [vmem:[#allocation2 + $0x3c8] sm:$0xff] %v2315
    %2460 = vst [vmem:[#allocation2 + $0x3d0] sm:$0xff] %v2316
    %2461 = vst [vmem:[#allocation2 + $0x3d8] sm:$0xff] %v2317
    %2462 = vst [vmem:[#allocation2 + $0x3e0] sm:$0xff] %v2318
    %2463 = vst [vmem:[#allocation2 + $0x3e8] sm:$0xff] %v2319
    %2464 = vst [vmem:[#allocation2 + $0x3f0] sm:$0xff] %v2320
    %2465 = vst [vmem:[#allocation2 + $0x3f8] sm:$0xff] %v2321
    %2466 = vst [vmem:[#allocation2 + $0x400] sm:$0xff] %v2322
    %2467 = vst [vmem:[#allocation2 + $0x408] sm:$0xff] %v2323
    %2468 = vst [vmem:[#allocation2 + $0x410] sm:$0xff] %v2324
    %2469 = vst [vmem:[#allocation2 + $0x418] sm:$0xff] %v2325
    %2470 = vst [vmem:[#allocation2 + $0x420] sm:$0xff] %v2326
    %2471 = vst [vmem:[#allocation2 + $0x428] sm:$0xff] %v2327
    %2472 = vst [vmem:[#allocation2 + $0x430] sm:$0xff] %v2328
    %2473 = vst [vmem:[#allocation2 + $0x438] sm:$0xff] %v2329
    %2474 = vst [vmem:[#allocation2 + $0x440] sm:$0xff] %v2330
    %2475 = vst [vmem:[#allocation2 + $0x448] sm:$0xff] %v2331
    %2476 = vst [vmem:[#allocation2 + $0x450] sm:$0xff] %v2332
    %2477 = vst [vmem:[#allocation2 + $0x458] sm:$0xff] %v2333
    %2478 = vst [vmem:[#allocation2 + $0x460] sm:$0xff] %v2334
    %2479 = vst [vmem:[#allocation2 + $0x468] sm:$0xff] %v2335
    %2480 = vst [vmem:[#allocation2 + $0x470] sm:$0xff] %v2336
    %2481 = vst [vmem:[#allocation2 + $0x478] sm:$0xff] %v2337
    %2482 = vst [vmem:[#allocation2 + $0x480] sm:$0xff] 0.0
    %2483 = vst [vmem:[#allocation2 + $0x488] sm:$0xff] 0.0
    %2484 = vst [vmem:[#allocation2 + $0x490] sm:$0xff] 0.0
    %2485 = vst [vmem:[#allocation2 + $0x498] sm:$0xff] 0.0
    %2486 = vst [vmem:[#allocation2 + $0x4a0] sm:$0xff] 0.0
    %2487 = vst [vmem:[#allocation2 + $0x4a8] sm:$0xff] 0.0
    %2488 = vst [vmem:[#allocation2 + $0x4b0] sm:$0xff] 0.0
    %v2489 = vld [vmem:[#allocation2] sm:$0xff]
    %v2490 = vld [vmem:[#allocation2 + $0x8] sm:$0xff]
    %v2491 = vld [vmem:[#allocation2 + $0x10] sm:$0xff]
    %v2492 = vld [vmem:[#allocation2 + $0x18] sm:$0xff]
    %v2493 = vld [vmem:[#allocation2 + $0x20] sm:$0xff]
    %v2494 = vld [vmem:[#allocation2 + $0x28] sm:$0xff]
    %v2495 = vld [vmem:[#allocation2 + $0x30] sm:$0xff]
    %v2496 = vld [vmem:[#allocation2 + $0x38] sm:$0xff]
    %v2497 = vld [vmem:[#allocation2 + $0x40] sm:$0xff]
    %v2498 = vld [vmem:[#allocation2 + $0x48] sm:$0xff]
    %v2499 = vld [vmem:[#allocation2 + $0x50] sm:$0xff]
    %v2500 = vld [vmem:[#allocation2 + $0x58] sm:$0xff]
    %v2501 = vld [vmem:[#allocation2 + $0x60] sm:$0xff]
    %v2502 = vld [vmem:[#allocation2 + $0x68] sm:$0xff]
    %v2503 = vld [vmem:[#allocation2 + $0x70] sm:$0xff]
    %v2504 = vld [vmem:[#allocation2 + $0x78] sm:$0xff]
    %v2505 = vld [vmem:[#allocation2 + $0x80] sm:$0xff]
    %v2506 = vld [vmem:[#allocation2 + $0x88] sm:$0xff]
    %v2507 = vld [vmem:[#allocation2 + $0x90] sm:$0xff]
    %v2508 = vld [vmem:[#allocation2 + $0x98] sm:$0xff]
    %v2509 = vld [vmem:[#allocation2 + $0xa0] sm:$0xff]
    %v2510 = vld [vmem:[#allocation2 + $0xa8] sm:$0xff]
    %v2511 = vld [vmem:[#allocation2 + $0xb0] sm:$0xff]
    %v2512 = vld [vmem:[#allocation2 + $0xb8] sm:$0xff]
    %v2513 = vld [vmem:[#allocation2 + $0xc0] sm:$0xff]
    %v2514 = vld [vmem:[#allocation2 + $0xc8] sm:$0xff]
    %v2515 = vld [vmem:[#allocation2 + $0xd0] sm:$0xff]
    %v2516 = vld [vmem:[#allocation2 + $0xd8] sm:$0xff]
    %v2517 = vld [vmem:[#allocation2 + $0xe0] sm:$0xff]
    %v2518 = vld [vmem:[#allocation2 + $0xe8] sm:$0xff]
    %v2519 = vld [vmem:[#allocation2 + $0xf0] sm:$0xff]
    %v2520 = vld [vmem:[#allocation2 + $0xf8] sm:$0xff]
    %v2521 = vld [vmem:[#allocation2 + $0x100] sm:$0xff]
    %v2522 = vld [vmem:[#allocation2 + $0x108] sm:$0xff]
    %v2523 = vld [vmem:[#allocation2 + $0x110] sm:$0xff]
    %v2524 = vld [vmem:[#allocation2 + $0x118] sm:$0xff]
    %v2525 = vld [vmem:[#allocation2 + $0x120] sm:$0xff]
    %v2526 = vld [vmem:[#allocation2 + $0x128] sm:$0xff]
    %v2527 = vld [vmem:[#allocation2 + $0x130] sm:$0xff]
    %v2528 = vld [vmem:[#allocation2 + $0x138] sm:$0xff]
    %v2529 = vld [vmem:[#allocation2 + $0x140] sm:$0xff]
    %v2530 = vld [vmem:[#allocation2 + $0x148] sm:$0xff]
    %v2531 = vld [vmem:[#allocation2 + $0x150] sm:$0xff]
    %v2532 = vld [vmem:[#allocation2 + $0x158] sm:$0xff]
    %v2533 = vld [vmem:[#allocation2 + $0x160] sm:$0xff]
    %v2534 = vld [vmem:[#allocation2 + $0x168] sm:$0xff]
    %v2535 = vld [vmem:[#allocation2 + $0x170] sm:$0xff]
    %v2536 = vld [vmem:[#allocation2 + $0x178] sm:$0xff]
    %v2537 = vld [vmem:[#allocation2 + $0x180] sm:$0xff]
    %v2538 = vld [vmem:[#allocation2 + $0x188] sm:$0xff]
    %v2539 = vld [vmem:[#allocation2 + $0x190] sm:$0xff]
    %v2540 = vld [vmem:[#allocation2 + $0x198] sm:$0xff]
    %v2541 = vld [vmem:[#allocation2 + $0x1a0] sm:$0xff]
    %v2542 = vld [vmem:[#allocation2 + $0x1a8] sm:$0xff]
    %v2543 = vld [vmem:[#allocation2 + $0x1b0] sm:$0xff]
    %v2544 = vld [vmem:[#allocation2 + $0x1b8] sm:$0xff]
    %v2545 = vld [vmem:[#allocation2 + $0x1c0] sm:$0xff]
    %v2546 = vld [vmem:[#allocation2 + $0x1c8] sm:$0xff]
    %v2547 = vld [vmem:[#allocation2 + $0x1d0] sm:$0xff]
    %v2548 = vld [vmem:[#allocation2 + $0x1d8] sm:$0xff]
    %v2549 = vld [vmem:[#allocation2 + $0x1e0] sm:$0xff]
    %v2550 = vld [vmem:[#allocation2 + $0x1e8] sm:$0xff]
    %v2551 = vld [vmem:[#allocation2 + $0x1f0] sm:$0xff]
    %v2552 = vld [vmem:[#allocation2 + $0x1f8] sm:$0xff]
    %v2553 = vld [vmem:[#allocation2 + $0x200] sm:$0xff]
    %v2554 = vld [vmem:[#allocation2 + $0x208] sm:$0xff]
    %v2555 = vld [vmem:[#allocation2 + $0x210] sm:$0xff]
    %v2556 = vld [vmem:[#allocation2 + $0x218] sm:$0xff]
    %v2557 = vld [vmem:[#allocation2 + $0x220] sm:$0xff]
    %v2558 = vld [vmem:[#allocation2 + $0x228] sm:$0xff]
    %v2559 = vld [vmem:[#allocation2 + $0x230] sm:$0xff]
    %v2560 = vld [vmem:[#allocation2 + $0x238] sm:$0xff]
    %v2561 = vld [vmem:[#allocation2 + $0x240] sm:$0xff]
    %v2562 = vld [vmem:[#allocation2 + $0x248] sm:$0xff]
    %v2563 = vld [vmem:[#allocation2 + $0x250] sm:$0xff]
    %v2564 = vld [vmem:[#allocation2 + $0x258] sm:$0xff]
    %v2565 = vld [vmem:[#allocation2 + $0x260] sm:$0xff]
    %v2566 = vld [vmem:[#allocation2 + $0x268] sm:$0xff]
    %v2567 = vld [vmem:[#allocation2 + $0x270] sm:$0xff]
    %v2568 = vld [vmem:[#allocation2 + $0x278] sm:$0xff]
    %v2569 = vld [vmem:[#allocation2 + $0x280] sm:$0xff]
    %v2570 = vld [vmem:[#allocation2 + $0x288] sm:$0xff]
    %v2571 = vld [vmem:[#allocation2 + $0x290] sm:$0xff]
    %v2572 = vld [vmem:[#allocation2 + $0x298] sm:$0xff]
    %v2573 = vld [vmem:[#allocation2 + $0x2a0] sm:$0xff]
    %v2574 = vld [vmem:[#allocation2 + $0x2a8] sm:$0xff]
    %v2575 = vld [vmem:[#allocation2 + $0x2b0] sm:$0xff]
    %v2576 = vld [vmem:[#allocation2 + $0x2b8] sm:$0xff]
    %v2577 = vld [vmem:[#allocation2 + $0x2c0] sm:$0xff]
    %v2578 = vld [vmem:[#allocation2 + $0x2c8] sm:$0xff]
    %v2579 = vld [vmem:[#allocation2 + $0x2d0] sm:$0xff]
    %v2580 = vld [vmem:[#allocation2 + $0x2d8] sm:$0xff]
    %v2581 = vld [vmem:[#allocation2 + $0x2e0] sm:$0xff]
    %v2582 = vld [vmem:[#allocation2 + $0x2e8] sm:$0xff]
    %v2583 = vld [vmem:[#allocation2 + $0x2f0] sm:$0xff]
    %v2584 = vld [vmem:[#allocation2 + $0x2f8] sm:$0xff]
    %v2585 = vld [vmem:[#allocation2 + $0x300] sm:$0xff]
    %v2586 = vld [vmem:[#allocation2 + $0x308] sm:$0xff]
    %v2587 = vld [vmem:[#allocation2 + $0x310] sm:$0xff]
    %v2588 = vld [vmem:[#allocation2 + $0x318] sm:$0xff]
    %v2589 = vld [vmem:[#allocation2 + $0x320] sm:$0xff]
    %v2590 = vld [vmem:[#allocation2 + $0x328] sm:$0xff]
    %v2591 = vld [vmem:[#allocation2 + $0x330] sm:$0xff]
    %v2592 = vld [vmem:[#allocation2 + $0x338] sm:$0xff]
    %v2593 = vld [vmem:[#allocation2 + $0x340] sm:$0xff]
    %v2594 = vld [vmem:[#allocation2 + $0x348] sm:$0xff]
    %v2595 = vld [vmem:[#allocation2 + $0x350] sm:$0xff]
    %v2596 = vld [vmem:[#allocation2 + $0x358] sm:$0xff]
    %v2597 = vld [vmem:[#allocation2 + $0x360] sm:$0xff]
    %v2598 = vld [vmem:[#allocation2 + $0x368] sm:$0xff]
    %v2599 = vld [vmem:[#allocation2 + $0x370] sm:$0xff]
    %v2600 = vld [vmem:[#allocation2 + $0x378] sm:$0xff]
    %v2601 = vld [vmem:[#allocation2 + $0x380] sm:$0xff]
    %v2602 = vld [vmem:[#allocation2 + $0x388] sm:$0xff]
    %v2603 = vld [vmem:[#allocation2 + $0x390] sm:$0xff]
    %v2604 = vld [vmem:[#allocation2 + $0x398] sm:$0xff]
    %v2605 = vld [vmem:[#allocation2 + $0x3a0] sm:$0xff]
    %v2606 = vld [vmem:[#allocation2 + $0x3a8] sm:$0xff]
    %v2607 = vld [vmem:[#allocation2 + $0x3b0] sm:$0xff]
    %v2608 = vld [vmem:[#allocation2 + $0x3b8] sm:$0xff]
    %v2609 = vld [vmem:[#allocation2 + $0x3c0] sm:$0xff]
    %v2610 = vld [vmem:[#allocation2 + $0x3c8] sm:$0xff]
    %v2611 = vld [vmem:[#allocation2 + $0x3d0] sm:$0xff]
    %v2612 = vld [vmem:[#allocation2 + $0x3d8] sm:$0xff]
    %v2613 = vld [vmem:[#allocation2 + $0x3e0] sm:$0xff]
    %v2614 = vld [vmem:[#allocation2 + $0x3e8] sm:$0xff]
    %v2615 = vld [vmem:[#allocation2 + $0x3f0] sm:$0xff]
    %v2616 = vld [vmem:[#allocation2 + $0x3f8] sm:$0xff]
    %v2617 = vld [vmem:[#allocation2 + $0x400] sm:$0xff]
    %v2618 = vld [vmem:[#allocation2 + $0x408] sm:$0xff]
    %v2619 = vld [vmem:[#allocation2 + $0x410] sm:$0xff]
    %v2620 = vld [vmem:[#allocation2 + $0x418] sm:$0xff]
    %v2621 = vld [vmem:[#allocation2 + $0x420] sm:$0xff]
    %v2622 = vld [vmem:[#allocation2 + $0x428] sm:$0xff]
    %v2623 = vld [vmem:[#allocation2 + $0x430] sm:$0xff]
    %v2624 = vld [vmem:[#allocation2 + $0x438] sm:$0xff]
    %v2625 = vld [vmem:[#allocation2 + $0x440] sm:$0xff]
    %v2626 = vld [vmem:[#allocation2 + $0x448] sm:$0xff]
    %v2627 = vld [vmem:[#allocation2 + $0x450] sm:$0xff]
    %v2628 = vld [vmem:[#allocation2 + $0x458] sm:$0xff]
    %v2629 = vld [vmem:[#allocation2 + $0x460] sm:$0xff]
    %v2630 = vld [vmem:[#allocation2 + $0x468] sm:$0xff]
    %v2631 = vld [vmem:[#allocation2 + $0x470] sm:$0xff]
    %v2632 = vld [vmem:[#allocation2 + $0x478] sm:$0xff]
    %v2633 = vld [vmem:[#allocation2 + $0x1] sm:$0xff]
    %v2634 = vld [vmem:[#allocation2 + $0x9] sm:$0xff]
    %v2635 = vld [vmem:[#allocation2 + $0x11] sm:$0xff]
    %v2636 = vld [vmem:[#allocation2 + $0x19] sm:$0xff]
    %v2637 = vld [vmem:[#allocation2 + $0x21] sm:$0xff]
    %v2638 = vld [vmem:[#allocation2 + $0x29] sm:$0xff]
    %v2639 = vld [vmem:[#allocation2 + $0x31] sm:$0xff]
    %v2640 = vld [vmem:[#allocation2 + $0x39] sm:$0xff]
    %v2641 = vld [vmem:[#allocation2 + $0x41] sm:$0xff]
    %v2642 = vld [vmem:[#allocation2 + $0x49] sm:$0xff]
    %v2643 = vld [vmem:[#allocation2 + $0x51] sm:$0xff]
    %v2644 = vld [vmem:[#allocation2 + $0x59] sm:$0xff]
    %v2645 = vld [vmem:[#allocation2 + $0x61] sm:$0xff]
    %v2646 = vld [vmem:[#allocation2 + $0x69] sm:$0xff]
    %v2647 = vld [vmem:[#allocation2 + $0x71] sm:$0xff]
    %v2648 = vld [vmem:[#allocation2 + $0x79] sm:$0xff]
    %v2649 = vld [vmem:[#allocation2 + $0x81] sm:$0xff]
    %v2650 = vld [vmem:[#allocation2 + $0x89] sm:$0xff]
    %v2651 = vld [vmem:[#allocation2 + $0x91] sm:$0xff]
    %v2652 = vld [vmem:[#allocation2 + $0x99] sm:$0xff]
    %v2653 = vld [vmem:[#allocation2 + $0xa1] sm:$0xff]
    %v2654 = vld [vmem:[#allocation2 + $0xa9] sm:$0xff]
    %v2655 = vld [vmem:[#allocation2 + $0xb1] sm:$0xff]
    %v2656 = vld [vmem:[#allocation2 + $0xb9] sm:$0xff]
    %v2657 = vld [vmem:[#allocation2 + $0xc1] sm:$0xff]
    %v2658 = vld [vmem:[#allocation2 + $0xc9] sm:$0xff]
    %v2659 = vld [vmem:[#allocation2 + $0xd1] sm:$0xff]
    %v2660 = vld [vmem:[#allocation2 + $0xd9] sm:$0xff]
    %v2661 = vld [vmem:[#allocation2 + $0xe1] sm:$0xff]
    %v2662 = vld [vmem:[#allocation2 + $0xe9] sm:$0xff]
    %v2663 = vld [vmem:[#allocation2 + $0xf1] sm:$0xff]
    %v2664 = vld [vmem:[#allocation2 + $0xf9] sm:$0xff]
    %v2665 = vld [vmem:[#allocation2 + $0x101] sm:$0xff]
    %v2666 = vld [vmem:[#allocation2 + $0x109] sm:$0xff]
    %v2667 = vld [vmem:[#allocation2 + $0x111] sm:$0xff]
    %v2668 = vld [vmem:[#allocation2 + $0x119] sm:$0xff]
    %v2669 = vld [vmem:[#allocation2 + $0x121] sm:$0xff]
    %v2670 = vld [vmem:[#allocation2 + $0x129] sm:$0xff]
    %v2671 = vld [vmem:[#allocation2 + $0x131] sm:$0xff]
    %v2672 = vld [vmem:[#allocation2 + $0x139] sm:$0xff]
    %v2673 = vld [vmem:[#allocation2 + $0x141] sm:$0xff]
    %v2674 = vld [vmem:[#allocation2 + $0x149] sm:$0xff]
    %v2675 = vld [vmem:[#allocation2 + $0x151] sm:$0xff]
    %v2676 = vld [vmem:[#allocation2 + $0x159] sm:$0xff]
    %v2677 = vld [vmem:[#allocation2 + $0x161] sm:$0xff]
    %v2678 = vld [vmem:[#allocation2 + $0x169] sm:$0xff]
    %v2679 = vld [vmem:[#allocation2 + $0x171] sm:$0xff]
    %v2680 = vld [vmem:[#allocation2 + $0x179] sm:$0xff]
    %v2681 = vld [vmem:[#allocation2 + $0x181] sm:$0xff]
    %v2682 = vld [vmem:[#allocation2 + $0x189] sm:$0xff]
    %v2683 = vld [vmem:[#allocation2 + $0x191] sm:$0xff]
    %v2684 = vld [vmem:[#allocation2 + $0x199] sm:$0xff]
    %v2685 = vld [vmem:[#allocation2 + $0x1a1] sm:$0xff]
    %v2686 = vld [vmem:[#allocation2 + $0x1a9] sm:$0xff]
    %v2687 = vld [vmem:[#allocation2 + $0x1b1] sm:$0xff]
    %v2688 = vld [vmem:[#allocation2 + $0x1b9] sm:$0xff]
    %v2689 = vld [vmem:[#allocation2 + $0x1c1] sm:$0xff]
    %v2690 = vld [vmem:[#allocation2 + $0x1c9] sm:$0xff]
    %v2691 = vld [vmem:[#allocation2 + $0x1d1] sm:$0xff]
    %v2692 = vld [vmem:[#allocation2 + $0x1d9] sm:$0xff]
    %v2693 = vld [vmem:[#allocation2 + $0x1e1] sm:$0xff]
    %v2694 = vld [vmem:[#allocation2 + $0x1e9] sm:$0xff]
    %v2695 = vld [vmem:[#allocation2 + $0x1f1] sm:$0xff]
    %v2696 = vld [vmem:[#allocation2 + $0x1f9] sm:$0xff]
    %v2697 = vld [vmem:[#allocation2 + $0x201] sm:$0xff]
    %v2698 = vld [vmem:[#allocation2 + $0x209] sm:$0xff]
    %v2699 = vld [vmem:[#allocation2 + $0x211] sm:$0xff]
    %v2700 = vld [vmem:[#allocation2 + $0x219] sm:$0xff]
    %v2701 = vld [vmem:[#allocation2 + $0x221] sm:$0xff]
    %v2702 = vld [vmem:[#allocation2 + $0x229] sm:$0xff]
    %v2703 = vld [vmem:[#allocation2 + $0x231] sm:$0xff]
    %v2704 = vld [vmem:[#allocation2 + $0x239] sm:$0xff]
    %v2705 = vld [vmem:[#allocation2 + $0x241] sm:$0xff]
    %v2706 = vld [vmem:[#allocation2 + $0x249] sm:$0xff]
    %v2707 = vld [vmem:[#allocation2 + $0x251] sm:$0xff]
    %v2708 = vld [vmem:[#allocation2 + $0x259] sm:$0xff]
    %v2709 = vld [vmem:[#allocation2 + $0x261] sm:$0xff]
    %v2710 = vld [vmem:[#allocation2 + $0x269] sm:$0xff]
    %v2711 = vld [vmem:[#allocation2 + $0x271] sm:$0xff]
    %v2712 = vld [vmem:[#allocation2 + $0x279] sm:$0xff]
    %v2713 = vld [vmem:[#allocation2 + $0x281] sm:$0xff]
    %v2714 = vld [vmem:[#allocation2 + $0x289] sm:$0xff]
    %v2715 = vld [vmem:[#allocation2 + $0x291] sm:$0xff]
    %v2716 = vld [vmem:[#allocation2 + $0x299] sm:$0xff]
    %v2717 = vld [vmem:[#allocation2 + $0x2a1] sm:$0xff]
    %v2718 = vld [vmem:[#allocation2 + $0x2a9] sm:$0xff]
    %v2719 = vld [vmem:[#allocation2 + $0x2b1] sm:$0xff]
    %v2720 = vld [vmem:[#allocation2 + $0x2b9] sm:$0xff]
    %v2721 = vld [vmem:[#allocation2 + $0x2c1] sm:$0xff]
    %v2722 = vld [vmem:[#allocation2 + $0x2c9] sm:$0xff]
    %v2723 = vld [vmem:[#allocation2 + $0x2d1] sm:$0xff]
    %v2724 = vld [vmem:[#allocation2 + $0x2d9] sm:$0xff]
    %v2725 = vld [vmem:[#allocation2 + $0x2e1] sm:$0xff]
    %v2726 = vld [vmem:[#allocation2 + $0x2e9] sm:$0xff]
    %v2727 = vld [vmem:[#allocation2 + $0x2f1] sm:$0xff]
    %v2728 = vld [vmem:[#allocation2 + $0x2f9] sm:$0xff]
    %v2729 = vld [vmem:[#allocation2 + $0x301] sm:$0xff]
    %v2730 = vld [vmem:[#allocation2 + $0x309] sm:$0xff]
    %v2731 = vld [vmem:[#allocation2 + $0x311] sm:$0xff]
    %v2732 = vld [vmem:[#allocation2 + $0x319] sm:$0xff]
    %v2733 = vld [vmem:[#allocation2 + $0x321] sm:$0xff]
    %v2734 = vld [vmem:[#allocation2 + $0x329] sm:$0xff]
    %v2735 = vld [vmem:[#allocation2 + $0x331] sm:$0xff]
    %v2736 = vld [vmem:[#allocation2 + $0x339] sm:$0xff]
    %v2737 = vld [vmem:[#allocation2 + $0x341] sm:$0xff]
    %v2738 = vld [vmem:[#allocation2 + $0x349] sm:$0xff]
    %v2739 = vld [vmem:[#allocation2 + $0x351] sm:$0xff]
    %v2740 = vld [vmem:[#allocation2 + $0x359] sm:$0xff]
    %v2741 = vld [vmem:[#allocation2 + $0x361] sm:$0xff]
    %v2742 = vld [vmem:[#allocation2 + $0x369] sm:$0xff]
    %v2743 = vld [vmem:[#allocation2 + $0x371] sm:$0xff]
    %v2744 = vld [vmem:[#allocation2 + $0x379] sm:$0xff]
    %v2745 = vld [vmem:[#allocation2 + $0x381] sm:$0xff]
    %v2746 = vld [vmem:[#allocation2 + $0x389] sm:$0xff]
    %v2747 = vld [vmem:[#allocation2 + $0x391] sm:$0xff]
    %v2748 = vld [vmem:[#allocation2 + $0x399] sm:$0xff]
    %v2749 = vld [vmem:[#allocation2 + $0x3a1] sm:$0xff]
    %v2750 = vld [vmem:[#allocation2 + $0x3a9] sm:$0xff]
    %v2751 = vld [vmem:[#allocation2 + $0x3b1] sm:$0xff]
    %v2752 = vld [vmem:[#allocation2 + $0x3b9] sm:$0xff]
    %v2753 = vld [vmem:[#allocation2 + $0x3c1] sm:$0xff]
    %v2754 = vld [vmem:[#allocation2 + $0x3c9] sm:$0xff]
    %v2755 = vld [vmem:[#allocation2 + $0x3d1] sm:$0xff]
    %v2756 = vld [vmem:[#allocation2 + $0x3d9] sm:$0xff]
    %v2757 = vld [vmem:[#allocation2 + $0x3e1] sm:$0xff]
    %v2758 = vld [vmem:[#allocation2 + $0x3e9] sm:$0xff]
    %v2759 = vld [vmem:[#allocation2 + $0x3f1] sm:$0xff]
    %v2760 = vld [vmem:[#allocation2 + $0x3f9] sm:$0xff]
    %v2761 = vld [vmem:[#allocation2 + $0x401] sm:$0xff]
    %v2762 = vld [vmem:[#allocation2 + $0x409] sm:$0xff]
    %v2763 = vld [vmem:[#allocation2 + $0x411] sm:$0xff]
    %v2764 = vld [vmem:[#allocation2 + $0x419] sm:$0xff]
    %v2765 = vld [vmem:[#allocation2 + $0x421] sm:$0xff]
    %v2766 = vld [vmem:[#allocation2 + $0x429] sm:$0xff]
    %v2767 = vld [vmem:[#allocation2 + $0x431] sm:$0xff]
    %v2768 = vld [vmem:[#allocation2 + $0x439] sm:$0xff]
    %v2769 = vld [vmem:[#allocation2 + $0x441] sm:$0xff]
    %v2770 = vld [vmem:[#allocation2 + $0x449] sm:$0xff]
    %v2771 = vld [vmem:[#allocation2 + $0x451] sm:$0xff]
    %v2772 = vld [vmem:[#allocation2 + $0x459] sm:$0xff]
    %v2773 = vld [vmem:[#allocation2 + $0x461] sm:$0xff]
    %v2774 = vld [vmem:[#allocation2 + $0x469] sm:$0xff]
    %v2775 = vld [vmem:[#allocation2 + $0x471] sm:$0xff]
    %v2776 = vld [vmem:[#allocation2 + $0x479] sm:$0xff]
    %v2777 = vmax.f32 %v2489, %v2633
    %v2778 = vmax.f32 %v2490, %v2634
    %v2779 = vmax.f32 %v2491, %v2635
    %v2780 = vmax.f32 %v2492, %v2636
    %v2781 = vmax.f32 %v2493, %v2637
    %v2782 = vmax.f32 %v2494, %v2638
    %v2783 = vmax.f32 %v2495, %v2639
    %v2784 = vmax.f32 %v2496, %v2640
    %v2785 = vmax.f32 %v2497, %v2641
    %v2786 = vmax.f32 %v2498, %v2642
    %v2787 = vmax.f32 %v2499, %v2643
    %v2788 = vmax.f32 %v2500, %v2644
    %v2789 = vmax.f32 %v2501, %v2645
    %v2790 = vmax.f32 %v2502, %v2646
    %v2791 = vmax.f32 %v2503, %v2647
    %v2792 = vmax.f32 %v2504, %v2648
    %v2793 = vmax.f32 %v2505, %v2649
    %v2794 = vmax.f32 %v2506, %v2650
    %v2795 = vmax.f32 %v2507, %v2651
    %v2796 = vmax.f32 %v2508, %v2652
    %v2797 = vmax.f32 %v2509, %v2653
    %v2798 = vmax.f32 %v2510, %v2654
    %v2799 = vmax.f32 %v2511, %v2655
    %v2800 = vmax.f32 %v2512, %v2656
    %v2801 = vmax.f32 %v2513, %v2657
    %v2802 = vmax.f32 %v2514, %v2658
    %v2803 = vmax.f32 %v2515, %v2659
    %v2804 = vmax.f32 %v2516, %v2660
    %v2805 = vmax.f32 %v2517, %v2661
    %v2806 = vmax.f32 %v2518, %v2662
    %v2807 = vmax.f32 %v2519, %v2663
    %v2808 = vmax.f32 %v2520, %v2664
    %v2809 = vmax.f32 %v2521, %v2665
    %v2810 = vmax.f32 %v2522, %v2666
    %v2811 = vmax.f32 %v2523, %v2667
    %v2812 = vmax.f32 %v2524, %v2668
    %v2813 = vmax.f32 %v2525, %v2669
    %v2814 = vmax.f32 %v2526, %v2670
    %v2815 = vmax.f32 %v2527, %v2671
    %v2816 = vmax.f32 %v2528, %v2672
    %v2817 = vmax.f32 %v2529, %v2673
    %v2818 = vmax.f32 %v2530, %v2674
    %v2819 = vmax.f32 %v2531, %v2675
    %v2820 = vmax.f32 %v2532, %v2676
    %v2821 = vmax.f32 %v2533, %v2677
    %v2822 = vmax.f32 %v2534, %v2678
    %v2823 = vmax.f32 %v2535, %v2679
    %v2824 = vmax.f32 %v2536, %v2680
    %v2825 = vmax.f32 %v2537, %v2681
    %v2826 = vmax.f32 %v2538, %v2682
    %v2827 = vmax.f32 %v2539, %v2683
    %v2828 = vmax.f32 %v2540, %v2684
    %v2829 = vmax.f32 %v2541, %v2685
    %v2830 = vmax.f32 %v2542, %v2686
    %v2831 = vmax.f32 %v2543, %v2687
    %v2832 = vmax.f32 %v2544, %v2688
    %v2833 = vmax.f32 %v2545, %v2689
    %v2834 = vmax.f32 %v2546, %v2690
    %v2835 = vmax.f32 %v2547, %v2691
    %v2836 = vmax.f32 %v2548, %v2692
    %v2837 = vmax.f32 %v2549, %v2693
    %v2838 = vmax.f32 %v2550, %v2694
    %v2839 = vmax.f32 %v2551, %v2695
    %v2840 = vmax.f32 %v2552, %v2696
    %v2841 = vmax.f32 %v2553, %v2697
    %v2842 = vmax.f32 %v2554, %v2698
    %v2843 = vmax.f32 %v2555, %v2699
    %v2844 = vmax.f32 %v2556, %v2700
    %v2845 = vmax.f32 %v2557, %v2701
    %v2846 = vmax.f32 %v2558, %v2702
    %v2847 = vmax.f32 %v2559, %v2703
    %v2848 = vmax.f32 %v2560, %v2704
    %v2849 = vmax.f32 %v2561, %v2705
    %v2850 = vmax.f32 %v2562, %v2706
    %v2851 = vmax.f32 %v2563, %v2707
    %v2852 = vmax.f32 %v2564, %v2708
    %v2853 = vmax.f32 %v2565, %v2709
    %v2854 = vmax.f32 %v2566, %v2710
    %v2855 = vmax.f32 %v2567, %v2711
    %v2856 = vmax.f32 %v2568, %v2712
    %v2857 = vmax.f32 %v2569, %v2713
    %v2858 = vmax.f32 %v2570, %v2714
    %v2859 = vmax.f32 %v2571, %v2715
    %v2860 = vmax.f32 %v2572, %v2716
    %v2861 = vmax.f32 %v2573, %v2717
    %v2862 = vmax.f32 %v2574, %v2718
    %v2863 = vmax.f32 %v2575, %v2719
    %v2864 = vmax.f32 %v2576, %v2720
    %v2865 = vmax.f32 %v2577, %v2721
    %v2866 = vmax.f32 %v2578, %v2722
    %v2867 = vmax.f32 %v2579, %v2723
    %v2868 = vmax.f32 %v2580, %v2724
    %v2869 = vmax.f32 %v2581, %v2725
    %v2870 = vmax.f32 %v2582, %v2726
    %v2871 = vmax.f32 %v2583, %v2727
    %v2872 = vmax.f32 %v2584, %v2728
    %v2873 = vmax.f32 %v2585, %v2729
    %v2874 = vmax.f32 %v2586, %v2730
    %v2875 = vmax.f32 %v2587, %v2731
    %v2876 = vmax.f32 %v2588, %v2732
    %v2877 = vmax.f32 %v2589, %v2733
    %v2878 = vmax.f32 %v2590, %v2734
    %v2879 = vmax.f32 %v2591, %v2735
    %v2880 = vmax.f32 %v2592, %v2736
    %v2881 = vmax.f32 %v2593, %v2737
    %v2882 = vmax.f32 %v2594, %v2738
    %v2883 = vmax.f32 %v2595, %v2739
    %v2884 = vmax.f32 %v2596, %v2740
    %v2885 = vmax.f32 %v2597, %v2741
    %v2886 = vmax.f32 %v2598, %v2742
    %v2887 = vmax.f32 %v2599, %v2743
    %v2888 = vmax.f32 %v2600, %v2744
    %v2889 = vmax.f32 %v2601, %v2745
    %v2890 = vmax.f32 %v2602, %v2746
    %v2891 = vmax.f32 %v2603, %v2747
    %v2892 = vmax.f32 %v2604, %v2748
    %v2893 = vmax.f32 %v2605, %v2749
    %v2894 = vmax.f32 %v2606, %v2750
    %v2895 = vmax.f32 %v2607, %v2751
    %v2896 = vmax.f32 %v2608, %v2752
    %v2897 = vmax.f32 %v2609, %v2753
    %v2898 = vmax.f32 %v2610, %v2754
    %v2899 = vmax.f32 %v2611, %v2755
    %v2900 = vmax.f32 %v2612, %v2756
    %v2901 = vmax.f32 %v2613, %v2757
    %v2902 = vmax.f32 %v2614, %v2758
    %v2903 = vmax.f32 %v2615, %v2759
    %v2904 = vmax.f32 %v2616, %v2760
    %v2905 = vmax.f32 %v2617, %v2761
    %v2906 = vmax.f32 %v2618, %v2762
    %v2907 = vmax.f32 %v2619, %v2763
    %v2908 = vmax.f32 %v2620, %v2764
    %v2909 = vmax.f32 %v2621, %v2765
    %v2910 = vmax.f32 %v2622, %v2766
    %v2911 = vmax.f32 %v2623, %v2767
    %v2912 = vmax.f32 %v2624, %v2768
    %v2913 = vmax.f32 %v2625, %v2769
    %v2914 = vmax.f32 %v2626, %v2770
    %v2915 = vmax.f32 %v2627, %v2771
    %v2916 = vmax.f32 %v2628, %v2772
    %v2917 = vmax.f32 %v2629, %v2773
    %v2918 = vmax.f32 %v2630, %v2774
    %v2919 = vmax.f32 %v2631, %v2775
    %v2920 = vmax.f32 %v2632, %v2776
    %v2921 = vld [vmem:[#allocation2 + $0x2] sm:$0xff]
    %v2922 = vld [vmem:[#allocation2 + $0xa] sm:$0xff]
    %v2923 = vld [vmem:[#allocation2 + $0x12] sm:$0xff]
    %v2924 = vld [vmem:[#allocation2 + $0x1a] sm:$0xff]
    %v2925 = vld [vmem:[#allocation2 + $0x22] sm:$0xff]
    %v2926 = vld [vmem:[#allocation2 + $0x2a] sm:$0xff]
    %v2927 = vld [vmem:[#allocation2 + $0x32] sm:$0xff]
    %v2928 = vld [vmem:[#allocation2 + $0x3a] sm:$0xff]
    %v2929 = vld [vmem:[#allocation2 + $0x42] sm:$0xff]
    %v2930 = vld [vmem:[#allocation2 + $0x4a] sm:$0xff]
    %v2931 = vld [vmem:[#allocation2 + $0x52] sm:$0xff]
    %v2932 = vld [vmem:[#allocation2 + $0x5a] sm:$0xff]
    %v2933 = vld [vmem:[#allocation2 + $0x62] sm:$0xff]
    %v2934 = vld [vmem:[#allocation2 + $0x6a] sm:$0xff]
    %v2935 = vld [vmem:[#allocation2 + $0x72] sm:$0xff]
    %v2936 = vld [vmem:[#allocation2 + $0x7a] sm:$0xff]
    %v2937 = vld [vmem:[#allocation2 + $0x82] sm:$0xff]
    %v2938 = vld [vmem:[#allocation2 + $0x8a] sm:$0xff]
    %v2939 = vld [vmem:[#allocation2 + $0x92] sm:$0xff]
    %v2940 = vld [vmem:[#allocation2 + $0x9a] sm:$0xff]
    %v2941 = vld [vmem:[#allocation2 + $0xa2] sm:$0xff]
    %v2942 = vld [vmem:[#allocation2 + $0xaa] sm:$0xff]
    %v2943 = vld [vmem:[#allocation2 + $0xb2] sm:$0xff]
    %v2944 = vld [vmem:[#allocation2 + $0xba] sm:$0xff]
    %v2945 = vld [vmem:[#allocation2 + $0xc2] sm:$0xff]
    %v2946 = vld [vmem:[#allocation2 + $0xca] sm:$0xff]
    %v2947 = vld [vmem:[#allocation2 + $0xd2] sm:$0xff]
    %v2948 = vld [vmem:[#allocation2 + $0xda] sm:$0xff]
    %v2949 = vld [vmem:[#allocation2 + $0xe2] sm:$0xff]
    %v2950 = vld [vmem:[#allocation2 + $0xea] sm:$0xff]
    %v2951 = vld [vmem:[#allocation2 + $0xf2] sm:$0xff]
    %v2952 = vld [vmem:[#allocation2 + $0xfa] sm:$0xff]
    %v2953 = vld [vmem:[#allocation2 + $0x102] sm:$0xff]
    %v2954 = vld [vmem:[#allocation2 + $0x10a] sm:$0xff]
    %v2955 = vld [vmem:[#allocation2 + $0x112] sm:$0xff]
    %v2956 = vld [vmem:[#allocation2 + $0x11a] sm:$0xff]
    %v2957 = vld [vmem:[#allocation2 + $0x122] sm:$0xff]
    %v2958 = vld [vmem:[#allocation2 + $0x12a] sm:$0xff]
    %v2959 = vld [vmem:[#allocation2 + $0x132] sm:$0xff]
    %v2960 = vld [vmem:[#allocation2 + $0x13a] sm:$0xff]
    %v2961 = vld [vmem:[#allocation2 + $0x142] sm:$0xff]
    %v2962 = vld [vmem:[#allocation2 + $0x14a] sm:$0xff]
    %v2963 = vld [vmem:[#allocation2 + $0x152] sm:$0xff]
    %v2964 = vld [vmem:[#allocation2 + $0x15a] sm:$0xff]
    %v2965 = vld [vmem:[#allocation2 + $0x162] sm:$0xff]
    %v2966 = vld [vmem:[#allocation2 + $0x16a] sm:$0xff]
    %v2967 = vld [vmem:[#allocation2 + $0x172] sm:$0xff]
    %v2968 = vld [vmem:[#allocation2 + $0x17a] sm:$0xff]
    %v2969 = vld [vmem:[#allocation2 + $0x182] sm:$0xff]
    %v2970 = vld [vmem:[#allocation2 + $0x18a] sm:$0xff]
    %v2971 = vld [vmem:[#allocation2 + $0x192] sm:$0xff]
    %v2972 = vld [vmem:[#allocation2 + $0x19a] sm:$0xff]
    %v2973 = vld [vmem:[#allocation2 + $0x1a2] sm:$0xff]
    %v2974 = vld [vmem:[#allocation2 + $0x1aa] sm:$0xff]
    %v2975 = vld [vmem:[#allocation2 + $0x1b2] sm:$0xff]
    %v2976 = vld [vmem:[#allocation2 + $0x1ba] sm:$0xff]
    %v2977 = vld [vmem:[#allocation2 + $0x1c2] sm:$0xff]
    %v2978 = vld [vmem:[#allocation2 + $0x1ca] sm:$0xff]
    %v2979 = vld [vmem:[#allocation2 + $0x1d2] sm:$0xff]
    %v2980 = vld [vmem:[#allocation2 + $0x1da] sm:$0xff]
    %v2981 = vld [vmem:[#allocation2 + $0x1e2] sm:$0xff]
    %v2982 = vld [vmem:[#allocation2 + $0x1ea] sm:$0xff]
    %v2983 = vld [vmem:[#allocation2 + $0x1f2] sm:$0xff]
    %v2984 = vld [vmem:[#allocation2 + $0x1fa] sm:$0xff]
    %v2985 = vld [vmem:[#allocation2 + $0x202] sm:$0xff]
    %v2986 = vld [vmem:[#allocation2 + $0x20a] sm:$0xff]
    %v2987 = vld [vmem:[#allocation2 + $0x212] sm:$0xff]
    %v2988 = vld [vmem:[#allocation2 + $0x21a] sm:$0xff]
    %v2989 = vld [vmem:[#allocation2 + $0x222] sm:$0xff]
    %v2990 = vld [vmem:[#allocation2 + $0x22a] sm:$0xff]
    %v2991 = vld [vmem:[#allocation2 + $0x232] sm:$0xff]
    %v2992 = vld [vmem:[#allocation2 + $0x23a] sm:$0xff]
    %v2993 = vld [vmem:[#allocation2 + $0x242] sm:$0xff]
    %v2994 = vld [vmem:[#allocation2 + $0x24a] sm:$0xff]
    %v2995 = vld [vmem:[#allocation2 + $0x252] sm:$0xff]
    %v2996 = vld [vmem:[#allocation2 + $0x25a] sm:$0xff]
    %v2997 = vld [vmem:[#allocation2 + $0x262] sm:$0xff]
    %v2998 = vld [vmem:[#allocation2 + $0x26a] sm:$0xff]
    %v2999 = vld [vmem:[#allocation2 + $0x272] sm:$0xff]
    %v3000 = vld [vmem:[#allocation2 + $0x27a] sm:$0xff]
    %v3001 = vld [vmem:[#allocation2 + $0x282] sm:$0xff]
    %v3002 = vld [vmem:[#allocation2 + $0x28a] sm:$0xff]
    %v3003 = vld [vmem:[#allocation2 + $0x292] sm:$0xff]
    %v3004 = vld [vmem:[#allocation2 + $0x29a] sm:$0xff]
    %v3005 = vld [vmem:[#allocation2 + $0x2a2] sm:$0xff]
    %v3006 = vld [vmem:[#allocation2 + $0x2aa] sm:$0xff]
    %v3007 = vld [vmem:[#allocation2 + $0x2b2] sm:$0xff]
    %v3008 = vld [vmem:[#allocation2 + $0x2ba] sm:$0xff]
    %v3009 = vld [vmem:[#allocation2 + $0x2c2] sm:$0xff]
    %v3010 = vld [vmem:[#allocation2 + $0x2ca] sm:$0xff]
    %v3011 = vld [vmem:[#allocation2 + $0x2d2] sm:$0xff]
    %v3012 = vld [vmem:[#allocation2 + $0x2da] sm:$0xff]
    %v3013 = vld [vmem:[#allocation2 + $0x2e2] sm:$0xff]
    %v3014 = vld [vmem:[#allocation2 + $0x2ea] sm:$0xff]
    %v3015 = vld [vmem:[#allocation2 + $0x2f2] sm:$0xff]
    %v3016 = vld [vmem:[#allocation2 + $0x2fa] sm:$0xff]
    %v3017 = vld [vmem:[#allocation2 + $0x302] sm:$0xff]
    %v3018 = vld [vmem:[#allocation2 + $0x30a] sm:$0xff]
    %v3019 = vld [vmem:[#allocation2 + $0x312] sm:$0xff]
    %v3020 = vld [vmem:[#allocation2 + $0x31a] sm:$0xff]
    %v3021 = vld [vmem:[#allocation2 + $0x322] sm:$0xff]
    %v3022 = vld [vmem:[#allocation2 + $0x32a] sm:$0xff]
    %v3023 = vld [vmem:[#allocation2 + $0x332] sm:$0xff]
    %v3024 = vld [vmem:[#allocation2 + $0x33a] sm:$0xff]
    %v3025 = vld [vmem:[#allocation2 + $0x342] sm:$0xff]
    %v3026 = vld [vmem:[#allocation2 + $0x34a] sm:$0xff]
    %v3027 = vld [vmem:[#allocation2 + $0x352] sm:$0xff]
    %v3028 = vld [vmem:[#allocation2 + $0x35a] sm:$0xff]
    %v3029 = vld [vmem:[#allocation2 + $0x362] sm:$0xff]
    %v3030 = vld [vmem:[#allocation2 + $0x36a] sm:$0xff]
    %v3031 = vld [vmem:[#allocation2 + $0x372] sm:$0xff]
    %v3032 = vld [vmem:[#allocation2 + $0x37a] sm:$0xff]
    %v3033 = vld [vmem:[#allocation2 + $0x382] sm:$0xff]
    %v3034 = vld [vmem:[#allocation2 + $0x38a] sm:$0xff]
    %v3035 = vld [vmem:[#allocation2 + $0x392] sm:$0xff]
    %v3036 = vld [vmem:[#allocation2 + $0x39a] sm:$0xff]
    %v3037 = vld [vmem:[#allocation2 + $0x3a2] sm:$0xff]
    %v3038 = vld [vmem:[#allocation2 + $0x3aa] sm:$0xff]
    %v3039 = vld [vmem:[#allocation2 + $0x3b2] sm:$0xff]
    %v3040 = vld [vmem:[#allocation2 + $0x3ba] sm:$0xff]
    %v3041 = vld [vmem:[#allocation2 + $0x3c2] sm:$0xff]
    %v3042 = vld [vmem:[#allocation2 + $0x3ca] sm:$0xff]
    %v3043 = vld [vmem:[#allocation2 + $0x3d2] sm:$0xff]
    %v3044 = vld [vmem:[#allocation2 + $0x3da] sm:$0xff]
    %v3045 = vld [vmem:[#allocation2 + $0x3e2] sm:$0xff]
    %v3046 = vld [vmem:[#allocation2 + $0x3ea] sm:$0xff]
    %v3047 = vld [vmem:[#allocation2 + $0x3f2] sm:$0xff]
    %v3048 = vld [vmem:[#allocation2 + $0x3fa] sm:$0xff]
    %v3049 = vld [vmem:[#allocation2 + $0x402] sm:$0xff]
    %v3050 = vld [vmem:[#allocation2 + $0x40a] sm:$0xff]
    %v3051 = vld [vmem:[#allocation2 + $0x412] sm:$0xff]
    %v3052 = vld [vmem:[#allocation2 + $0x41a] sm:$0xff]
    %v3053 = vld [vmem:[#allocation2 + $0x422] sm:$0xff]
    %v3054 = vld [vmem:[#allocation2 + $0x42a] sm:$0xff]
    %v3055 = vld [vmem:[#allocation2 + $0x432] sm:$0xff]
    %v3056 = vld [vmem:[#allocation2 + $0x43a] sm:$0xff]
    %v3057 = vld [vmem:[#allocation2 + $0x442] sm:$0xff]
    %v3058 = vld [vmem:[#allocation2 + $0x44a] sm:$0xff]
    %v3059 = vld [vmem:[#allocation2 + $0x452] sm:$0xff]
    %v3060 = vld [vmem:[#allocation2 + $0x45a] sm:$0xff]
    %v3061 = vld [vmem:[#allocation2 + $0x462] sm:$0xff]
    %v3062 = vld [vmem:[#allocation2 + $0x46a] sm:$0xff]
    %v3063 = vld [vmem:[#allocation2 + $0x472] sm:$0xff]
    %v3064 = vld [vmem:[#allocation2 + $0x47a] sm:$0xff]
    %v3065 = vmax.f32 %v2777, %v2921
    %v3066 = vmax.f32 %v2778, %v2922
    %v3067 = vmax.f32 %v2779, %v2923
    %v3068 = vmax.f32 %v2780, %v2924
    %v3069 = vmax.f32 %v2781, %v2925
    %v3070 = vmax.f32 %v2782, %v2926
    %v3071 = vmax.f32 %v2783, %v2927
    %v3072 = vmax.f32 %v2784, %v2928
    %v3073 = vmax.f32 %v2785, %v2929
    %v3074 = vmax.f32 %v2786, %v2930
    %v3075 = vmax.f32 %v2787, %v2931
    %v3076 = vmax.f32 %v2788, %v2932
    %v3077 = vmax.f32 %v2789, %v2933
    %v3078 = vmax.f32 %v2790, %v2934
    %v3079 = vmax.f32 %v2791, %v2935
    %v3080 = vmax.f32 %v2792, %v2936
    %v3081 = vmax.f32 %v2793, %v2937
    %v3082 = vmax.f32 %v2794, %v2938
    %v3083 = vmax.f32 %v2795, %v2939
    %v3084 = vmax.f32 %v2796, %v2940
    %v3085 = vmax.f32 %v2797, %v2941
    %v3086 = vmax.f32 %v2798, %v2942
    %v3087 = vmax.f32 %v2799, %v2943
    %v3088 = vmax.f32 %v2800, %v2944
    %v3089 = vmax.f32 %v2801, %v2945
    %v3090 = vmax.f32 %v2802, %v2946
    %v3091 = vmax.f32 %v2803, %v2947
    %v3092 = vmax.f32 %v2804, %v2948
    %v3093 = vmax.f32 %v2805, %v2949
    %v3094 = vmax.f32 %v2806, %v2950
    %v3095 = vmax.f32 %v2807, %v2951
    %v3096 = vmax.f32 %v2808, %v2952
    %v3097 = vmax.f32 %v2809, %v2953
    %v3098 = vmax.f32 %v2810, %v2954
    %v3099 = vmax.f32 %v2811, %v2955
    %v3100 = vmax.f32 %v2812, %v2956
    %v3101 = vmax.f32 %v2813, %v2957
    %v3102 = vmax.f32 %v2814, %v2958
    %v3103 = vmax.f32 %v2815, %v2959
    %v3104 = vmax.f32 %v2816, %v2960
    %v3105 = vmax.f32 %v2817, %v2961
    %v3106 = vmax.f32 %v2818, %v2962
    %v3107 = vmax.f32 %v2819, %v2963
    %v3108 = vmax.f32 %v2820, %v2964
    %v3109 = vmax.f32 %v2821, %v2965
    %v3110 = vmax.f32 %v2822, %v2966
    %v3111 = vmax.f32 %v2823, %v2967
    %v3112 = vmax.f32 %v2824, %v2968
    %v3113 = vmax.f32 %v2825, %v2969
    %v3114 = vmax.f32 %v2826, %v2970
    %v3115 = vmax.f32 %v2827, %v2971
    %v3116 = vmax.f32 %v2828, %v2972
    %v3117 = vmax.f32 %v2829, %v2973
    %v3118 = vmax.f32 %v2830, %v2974
    %v3119 = vmax.f32 %v2831, %v2975
    %v3120 = vmax.f32 %v2832, %v2976
    %v3121 = vmax.f32 %v2833, %v2977
    %v3122 = vmax.f32 %v2834, %v2978
    %v3123 = vmax.f32 %v2835, %v2979
    %v3124 = vmax.f32 %v2836, %v2980
    %v3125 = vmax.f32 %v2837, %v2981
    %v3126 = vmax.f32 %v2838, %v2982
    %v3127 = vmax.f32 %v2839, %v2983
    %v3128 = vmax.f32 %v2840, %v2984
    %v3129 = vmax.f32 %v2841, %v2985
    %v3130 = vmax.f32 %v2842, %v2986
    %v3131 = vmax.f32 %v2843, %v2987
    %v3132 = vmax.f32 %v2844, %v2988
    %v3133 = vmax.f32 %v2845, %v2989
    %v3134 = vmax.f32 %v2846, %v2990
    %v3135 = vmax.f32 %v2847, %v2991
    %v3136 = vmax.f32 %v2848, %v2992
    %v3137 = vmax.f32 %v2849, %v2993
    %v3138 = vmax.f32 %v2850, %v2994
    %v3139 = vmax.f32 %v2851, %v2995
    %v3140 = vmax.f32 %v2852, %v2996
    %v3141 = vmax.f32 %v2853, %v2997
    %v3142 = vmax.f32 %v2854, %v2998
    %v3143 = vmax.f32 %v2855, %v2999
    %v3144 = vmax.f32 %v2856, %v3000
    %v3145 = vmax.f32 %v2857, %v3001
    %v3146 = vmax.f32 %v2858, %v3002
    %v3147 = vmax.f32 %v2859, %v3003
    %v3148 = vmax.f32 %v2860, %v3004
    %v3149 = vmax.f32 %v2861, %v3005
    %v3150 = vmax.f32 %v2862, %v3006
    %v3151 = vmax.f32 %v2863, %v3007
    %v3152 = vmax.f32 %v2864, %v3008
    %v3153 = vmax.f32 %v2865, %v3009
    %v3154 = vmax.f32 %v2866, %v3010
    %v3155 = vmax.f32 %v2867, %v3011
    %v3156 = vmax.f32 %v2868, %v3012
    %v3157 = vmax.f32 %v2869, %v3013
    %v3158 = vmax.f32 %v2870, %v3014
    %v3159 = vmax.f32 %v2871, %v3015
    %v3160 = vmax.f32 %v2872, %v3016
    %v3161 = vmax.f32 %v2873, %v3017
    %v3162 = vmax.f32 %v2874, %v3018
    %v3163 = vmax.f32 %v2875, %v3019
    %v3164 = vmax.f32 %v2876, %v3020
    %v3165 = vmax.f32 %v2877, %v3021
    %v3166 = vmax.f32 %v2878, %v3022
    %v3167 = vmax.f32 %v2879, %v3023
    %v3168 = vmax.f32 %v2880, %v3024
    %v3169 = vmax.f32 %v2881, %v3025
    %v3170 = vmax.f32 %v2882, %v3026
    %v3171 = vmax.f32 %v2883, %v3027
    %v3172 = vmax.f32 %v2884, %v3028
    %v3173 = vmax.f32 %v2885, %v3029
    %v3174 = vmax.f32 %v2886, %v3030
    %v3175 = vmax.f32 %v2887, %v3031
    %v3176 = vmax.f32 %v2888, %v3032
    %v3177 = vmax.f32 %v2889, %v3033
    %v3178 = vmax.f32 %v2890, %v3034
    %v3179 = vmax.f32 %v2891, %v3035
    %v3180 = vmax.f32 %v2892, %v3036
    %v3181 = vmax.f32 %v2893, %v3037
    %v3182 = vmax.f32 %v2894, %v3038
    %v3183 = vmax.f32 %v2895, %v3039
    %v3184 = vmax.f32 %v2896, %v3040
    %v3185 = vmax.f32 %v2897, %v3041
    %v3186 = vmax.f32 %v2898, %v3042
    %v3187 = vmax.f32 %v2899, %v3043
    %v3188 = vmax.f32 %v2900, %v3044
    %v3189 = vmax.f32 %v2901, %v3045
    %v3190 = vmax.f32 %v2902, %v3046
    %v3191 = vmax.f32 %v2903, %v3047
    %v3192 = vmax.f32 %v2904, %v3048
    %v3193 = vmax.f32 %v2905, %v3049
    %v3194 = vmax.f32 %v2906, %v3050
    %v3195 = vmax.f32 %v2907, %v3051
    %v3196 = vmax.f32 %v2908, %v3052
    %v3197 = vmax.f32 %v2909, %v3053
    %v3198 = vmax.f32 %v2910, %v3054
    %v3199 = vmax.f32 %v2911, %v3055
    %v3200 = vmax.f32 %v2912, %v3056
    %v3201 = vmax.f32 %v2913, %v3057
    %v3202 = vmax.f32 %v2914, %v3058
    %v3203 = vmax.f32 %v2915, %v3059
    %v3204 = vmax.f32 %v2916, %v3060
    %v3205 = vmax.f32 %v2917, %v3061
    %v3206 = vmax.f32 %v2918, %v3062
    %v3207 = vmax.f32 %v2919, %v3063
    %v3208 = vmax.f32 %v2920, %v3064
    %v3209 = vld [vmem:[#allocation2 + $0x480] sm:$0xff]
    %v3210 = vld [vmem:[#allocation2 + $0x488] sm:$0xff]
    %v3211 = vld [vmem:[#allocation2 + $0x490] sm:$0xff]
    %v3212 = vmax.f32 %v3065, %v2492
    %v3213 = vmax.f32 %v3066, %v2493
    %v3214 = vmax.f32 %v3067, %v2494
    %v3215 = vmax.f32 %v3068, %v2495
    %v3216 = vmax.f32 %v3069, %v2496
    %v3217 = vmax.f32 %v3070, %v2497
    %v3218 = vmax.f32 %v3071, %v2498
    %v3219 = vmax.f32 %v3072, %v2499
    %v3220 = vmax.f32 %v3073, %v2500
    %v3221 = vmax.f32 %v3074, %v2501
    %v3222 = vmax.f32 %v3075, %v2502
    %v3223 = vmax.f32 %v3076, %v2503
    %v3224 = vmax.f32 %v3077, %v2504
    %v3225 = vmax.f32 %v3078, %v2505
    %v3226 = vmax.f32 %v3079, %v2506
    %v3227 = vmax.f32 %v3080, %v2507
    %v3228 = vmax.f32 %v3081, %v2508
    %v3229 = vmax.f32 %v3082, %v2509
    %v3230 = vmax.f32 %v3083, %v2510
    %v3231 = vmax.f32 %v3084, %v2511
    %v3232 = vmax.f32 %v3085, %v2512
    %v3233 = vmax.f32 %v3086, %v2513
    %v3234 = vmax.f32 %v3087, %v2514
    %v3235 = vmax.f32 %v3088, %v2515
    %v3236 = vmax.f32 %v3089, %v2516
    %v3237 = vmax.f32 %v3090, %v2517
    %v3238 = vmax.f32 %v3091, %v2518
    %v3239 = vmax.f32 %v3092, %v2519
    %v3240 = vmax.f32 %v3093, %v2520
    %v3241 = vmax.f32 %v3094, %v2521
    %v3242 = vmax.f32 %v3095, %v2522
    %v3243 = vmax.f32 %v3096, %v2523
    %v3244 = vmax.f32 %v3097, %v2524
    %v3245 = vmax.f32 %v3098, %v2525
    %v3246 = vmax.f32 %v3099, %v2526
    %v3247 = vmax.f32 %v3100, %v2527
    %v3248 = vmax.f32 %v3101, %v2528
    %v3249 = vmax.f32 %v3102, %v2529
    %v3250 = vmax.f32 %v3103, %v2530
    %v3251 = vmax.f32 %v3104, %v2531
    %v3252 = vmax.f32 %v3105, %v2532
    %v3253 = vmax.f32 %v3106, %v2533
    %v3254 = vmax.f32 %v3107, %v2534
    %v3255 = vmax.f32 %v3108, %v2535
    %v3256 = vmax.f32 %v3109, %v2536
    %v3257 = vmax.f32 %v3110, %v2537
    %v3258 = vmax.f32 %v3111, %v2538
    %v3259 = vmax.f32 %v3112, %v2539
    %v3260 = vmax.f32 %v3113, %v2540
    %v3261 = vmax.f32 %v3114, %v2541
    %v3262 = vmax.f32 %v3115, %v2542
    %v3263 = vmax.f32 %v3116, %v2543
    %v3264 = vmax.f32 %v3117, %v2544
    %v3265 = vmax.f32 %v3118, %v2545
    %v3266 = vmax.f32 %v3119, %v2546
    %v3267 = vmax.f32 %v3120, %v2547
    %v3268 = vmax.f32 %v3121, %v2548
    %v3269 = vmax.f32 %v3122, %v2549
    %v3270 = vmax.f32 %v3123, %v2550
    %v3271 = vmax.f32 %v3124, %v2551
    %v3272 = vmax.f32 %v3125, %v2552
    %v3273 = vmax.f32 %v3126, %v2553
    %v3274 = vmax.f32 %v3127, %v2554
    %v3275 = vmax.f32 %v3128, %v2555
    %v3276 = vmax.f32 %v3129, %v2556
    %v3277 = vmax.f32 %v3130, %v2557
    %v3278 = vmax.f32 %v3131, %v2558
    %v3279 = vmax.f32 %v3132, %v2559
    %v3280 = vmax.f32 %v3133, %v2560
    %v3281 = vmax.f32 %v3134, %v2561
    %v3282 = vmax.f32 %v3135, %v2562
    %v3283 = vmax.f32 %v3136, %v2563
    %v3284 = vmax.f32 %v3137, %v2564
    %v3285 = vmax.f32 %v3138, %v2565
    %v3286 = vmax.f32 %v3139, %v2566
    %v3287 = vmax.f32 %v3140, %v2567
    %v3288 = vmax.f32 %v3141, %v2568
    %v3289 = vmax.f32 %v3142, %v2569
    %v3290 = vmax.f32 %v3143, %v2570
    %v3291 = vmax.f32 %v3144, %v2571
    %v3292 = vmax.f32 %v3145, %v2572
    %v3293 = vmax.f32 %v3146, %v2573
    %v3294 = vmax.f32 %v3147, %v2574
    %v3295 = vmax.f32 %v3148, %v2575
    %v3296 = vmax.f32 %v3149, %v2576
    %v3297 = vmax.f32 %v3150, %v2577
    %v3298 = vmax.f32 %v3151, %v2578
    %v3299 = vmax.f32 %v3152, %v2579
    %v3300 = vmax.f32 %v3153, %v2580
    %v3301 = vmax.f32 %v3154, %v2581
    %v3302 = vmax.f32 %v3155, %v2582
    %v3303 = vmax.f32 %v3156, %v2583
    %v3304 = vmax.f32 %v3157, %v2584
    %v3305 = vmax.f32 %v3158, %v2585
    %v3306 = vmax.f32 %v3159, %v2586
    %v3307 = vmax.f32 %v3160, %v2587
    %v3308 = vmax.f32 %v3161, %v2588
    %v3309 = vmax.f32 %v3162, %v2589
    %v3310 = vmax.f32 %v3163, %v2590
    %v3311 = vmax.f32 %v3164, %v2591
    %v3312 = vmax.f32 %v3165, %v2592
    %v3313 = vmax.f32 %v3166, %v2593
    %v3314 = vmax.f32 %v3167, %v2594
    %v3315 = vmax.f32 %v3168, %v2595
    %v3316 = vmax.f32 %v3169, %v2596
    %v3317 = vmax.f32 %v3170, %v2597
    %v3318 = vmax.f32 %v3171, %v2598
    %v3319 = vmax.f32 %v3172, %v2599
    %v3320 = vmax.f32 %v3173, %v2600
    %v3321 = vmax.f32 %v3174, %v2601
    %v3322 = vmax.f32 %v3175, %v2602
    %v3323 = vmax.f32 %v3176, %v2603
    %v3324 = vmax.f32 %v3177, %v2604
    %v3325 = vmax.f32 %v3178, %v2605
    %v3326 = vmax.f32 %v3179, %v2606
    %v3327 = vmax.f32 %v3180, %v2607
    %v3328 = vmax.f32 %v3181, %v2608
    %v3329 = vmax.f32 %v3182, %v2609
    %v3330 = vmax.f32 %v3183, %v2610
    %v3331 = vmax.f32 %v3184, %v2611
    %v3332 = vmax.f32 %v3185, %v2612
    %v3333 = vmax.f32 %v3186, %v2613
    %v3334 = vmax.f32 %v3187, %v2614
    %v3335 = vmax.f32 %v3188, %v2615
    %v3336 = vmax.f32 %v3189, %v2616
    %v3337 = vmax.f32 %v3190, %v2617
    %v3338 = vmax.f32 %v3191, %v2618
    %v3339 = vmax.f32 %v3192, %v2619
    %v3340 = vmax.f32 %v3193, %v2620
    %v3341 = vmax.f32 %v3194, %v2621
    %v3342 = vmax.f32 %v3195, %v2622
    %v3343 = vmax.f32 %v3196, %v2623
    %v3344 = vmax.f32 %v3197, %v2624
    %v3345 = vmax.f32 %v3198, %v2625
    %v3346 = vmax.f32 %v3199, %v2626
    %v3347 = vmax.f32 %v3200, %v2627
    %v3348 = vmax.f32 %v3201, %v2628
    %v3349 = vmax.f32 %v3202, %v2629
    %v3350 = vmax.f32 %v3203, %v2630
    %v3351 = vmax.f32 %v3204, %v2631
    %v3352 = vmax.f32 %v3205, %v2632
    %v3353 = vmax.f32 %v3206, %v3209
    %v3354 = vmax.f32 %v3207, %v3210
    %v3355 = vmax.f32 %v3208, %v3211
    %v3356 = vld [vmem:[#allocation2 + $0x481] sm:$0xff]
    %v3357 = vld [vmem:[#allocation2 + $0x489] sm:$0xff]
    %v3358 = vld [vmem:[#allocation2 + $0x491] sm:$0xff]
    %v3359 = vmax.f32 %v3212, %v2636
    %v3360 = vmax.f32 %v3213, %v2637
    %v3361 = vmax.f32 %v3214, %v2638
    %v3362 = vmax.f32 %v3215, %v2639
    %v3363 = vmax.f32 %v3216, %v2640
    %v3364 = vmax.f32 %v3217, %v2641
    %v3365 = vmax.f32 %v3218, %v2642
    %v3366 = vmax.f32 %v3219, %v2643
    %v3367 = vmax.f32 %v3220, %v2644
    %v3368 = vmax.f32 %v3221, %v2645
    %v3369 = vmax.f32 %v3222, %v2646
    %v3370 = vmax.f32 %v3223, %v2647
    %v3371 = vmax.f32 %v3224, %v2648
    %v3372 = vmax.f32 %v3225, %v2649
    %v3373 = vmax.f32 %v3226, %v2650
    %v3374 = vmax.f32 %v3227, %v2651
    %v3375 = vmax.f32 %v3228, %v2652
    %v3376 = vmax.f32 %v3229, %v2653
    %v3377 = vmax.f32 %v3230, %v2654
    %v3378 = vmax.f32 %v3231, %v2655
    %v3379 = vmax.f32 %v3232, %v2656
    %v3380 = vmax.f32 %v3233, %v2657
    %v3381 = vmax.f32 %v3234, %v2658
    %v3382 = vmax.f32 %v3235, %v2659
    %v3383 = vmax.f32 %v3236, %v2660
    %v3384 = vmax.f32 %v3237, %v2661
    %v3385 = vmax.f32 %v3238, %v2662
    %v3386 = vmax.f32 %v3239, %v2663
    %v3387 = vmax.f32 %v3240, %v2664
    %v3388 = vmax.f32 %v3241, %v2665
    %v3389 = vmax.f32 %v3242, %v2666
    %v3390 = vmax.f32 %v3243, %v2667
    %v3391 = vmax.f32 %v3244, %v2668
    %v3392 = vmax.f32 %v3245, %v2669
    %v3393 = vmax.f32 %v3246, %v2670
    %v3394 = vmax.f32 %v3247, %v2671
    %v3395 = vmax.f32 %v3248, %v2672
    %v3396 = vmax.f32 %v3249, %v2673
    %v3397 = vmax.f32 %v3250, %v2674
    %v3398 = vmax.f32 %v3251, %v2675
    %v3399 = vmax.f32 %v3252, %v2676
    %v3400 = vmax.f32 %v3253, %v2677
    %v3401 = vmax.f32 %v3254, %v2678
    %v3402 = vmax.f32 %v3255, %v2679
    %v3403 = vmax.f32 %v3256, %v2680
    %v3404 = vmax.f32 %v3257, %v2681
    %v3405 = vmax.f32 %v3258, %v2682
    %v3406 = vmax.f32 %v3259, %v2683
    %v3407 = vmax.f32 %v3260, %v2684
    %v3408 = vmax.f32 %v3261, %v2685
    %v3409 = vmax.f32 %v3262, %v2686
    %v3410 = vmax.f32 %v3263, %v2687
    %v3411 = vmax.f32 %v3264, %v2688
    %v3412 = vmax.f32 %v3265, %v2689
    %v3413 = vmax.f32 %v3266, %v2690
    %v3414 = vmax.f32 %v3267, %v2691
    %v3415 = vmax.f32 %v3268, %v2692
    %v3416 = vmax.f32 %v3269, %v2693
    %v3417 = vmax.f32 %v3270, %v2694
    %v3418 = vmax.f32 %v3271, %v2695
    %v3419 = vmax.f32 %v3272, %v2696
    %v3420 = vmax.f32 %v3273, %v2697
    %v3421 = vmax.f32 %v3274, %v2698
    %v3422 = vmax.f32 %v3275, %v2699
    %v3423 = vmax.f32 %v3276, %v2700
    %v3424 = vmax.f32 %v3277, %v2701
    %v3425 = vmax.f32 %v3278, %v2702
    %v3426 = vmax.f32 %v3279, %v2703
    %v3427 = vmax.f32 %v3280, %v2704
    %v3428 = vmax.f32 %v3281, %v2705
    %v3429 = vmax.f32 %v3282, %v2706
    %v3430 = vmax.f32 %v3283, %v2707
    %v3431 = vmax.f32 %v3284, %v2708
    %v3432 = vmax.f32 %v3285, %v2709
    %v3433 = vmax.f32 %v3286, %v2710
    %v3434 = vmax.f32 %v3287, %v2711
    %v3435 = vmax.f32 %v3288, %v2712
    %v3436 = vmax.f32 %v3289, %v2713
    %v3437 = vmax.f32 %v3290, %v2714
    %v3438 = vmax.f32 %v3291, %v2715
    %v3439 = vmax.f32 %v3292, %v2716
    %v3440 = vmax.f32 %v3293, %v2717
    %v3441 = vmax.f32 %v3294, %v2718
    %v3442 = vmax.f32 %v3295, %v2719
    %v3443 = vmax.f32 %v3296, %v2720
    %v3444 = vmax.f32 %v3297, %v2721
    %v3445 = vmax.f32 %v3298, %v2722
    %v3446 = vmax.f32 %v3299, %v2723
    %v3447 = vmax.f32 %v3300, %v2724
    %v3448 = vmax.f32 %v3301, %v2725
    %v3449 = vmax.f32 %v3302, %v2726
    %v3450 = vmax.f32 %v3303, %v2727
    %v3451 = vmax.f32 %v3304, %v2728
    %v3452 = vmax.f32 %v3305, %v2729
    %v3453 = vmax.f32 %v3306, %v2730
    %v3454 = vmax.f32 %v3307, %v2731
    %v3455 = vmax.f32 %v3308, %v2732
    %v3456 = vmax.f32 %v3309, %v2733
    %v3457 = vmax.f32 %v3310, %v2734
    %v3458 = vmax.f32 %v3311, %v2735
    %v3459 = vmax.f32 %v3312, %v2736
    %v3460 = vmax.f32 %v3313, %v2737
    %v3461 = vmax.f32 %v3314, %v2738
    %v3462 = vmax.f32 %v3315, %v2739
    %v3463 = vmax.f32 %v3316, %v2740
    %v3464 = vmax.f32 %v3317, %v2741
    %v3465 = vmax.f32 %v3318, %v2742
    %v3466 = vmax.f32 %v3319, %v2743
    %v3467 = vmax.f32 %v3320, %v2744
    %v3468 = vmax.f32 %v3321, %v2745
    %v3469 = vmax.f32 %v3322, %v2746
    %v3470 = vmax.f32 %v3323, %v2747
    %v3471 = vmax.f32 %v3324, %v2748
    %v3472 = vmax.f32 %v3325, %v2749
    %v3473 = vmax.f32 %v3326, %v2750
    %v3474 = vmax.f32 %v3327, %v2751
    %v3475 = vmax.f32 %v3328, %v2752
    %v3476 = vmax.f32 %v3329, %v2753
    %v3477 = vmax.f32 %v3330, %v2754
    %v3478 = vmax.f32 %v3331, %v2755
    %v3479 = vmax.f32 %v3332, %v2756
    %v3480 = vmax.f32 %v3333, %v2757
    %v3481 = vmax.f32 %v3334, %v2758
    %v3482 = vmax.f32 %v3335, %v2759
    %v3483 = vmax.f32 %v3336, %v2760
    %v3484 = vmax.f32 %v3337, %v2761
    %v3485 = vmax.f32 %v3338, %v2762
    %v3486 = vmax.f32 %v3339, %v2763
    %v3487 = vmax.f32 %v3340, %v2764
    %v3488 = vmax.f32 %v3341, %v2765
    %v3489 = vmax.f32 %v3342, %v2766
    %v3490 = vmax.f32 %v3343, %v2767
    %v3491 = vmax.f32 %v3344, %v2768
    %v3492 = vmax.f32 %v3345, %v2769
    %v3493 = vmax.f32 %v3346, %v2770
    %v3494 = vmax.f32 %v3347, %v2771
    %v3495 = vmax.f32 %v3348, %v2772
    %v3496 = vmax.f32 %v3349, %v2773
    %v3497 = vmax.f32 %v3350, %v2774
    %v3498 = vmax.f32 %v3351, %v2775
    %v3499 = vmax.f32 %v3352, %v2776
    %v3500 = vmax.f32 %v3353, %v3356
    %v3501 = vmax.f32 %v3354, %v3357
    %v3502 = vmax.f32 %v3355, %v3358
    %v3503 = vld [vmem:[#allocation2 + $0x482] sm:$0xff]
    %v3504 = vld [vmem:[#allocation2 + $0x48a] sm:$0xff]
    %v3505 = vld [vmem:[#allocation2 + $0x492] sm:$0xff]
    %v3506 = vmax.f32 %v3359, %v2924
    %v3507 = vmax.f32 %v3360, %v2925
    %v3508 = vmax.f32 %v3361, %v2926
    %v3509 = vmax.f32 %v3362, %v2927
    %v3510 = vmax.f32 %v3363, %v2928
    %v3511 = vmax.f32 %v3364, %v2929
    %v3512 = vmax.f32 %v3365, %v2930
    %v3513 = vmax.f32 %v3366, %v2931
    %v3514 = vmax.f32 %v3367, %v2932
    %v3515 = vmax.f32 %v3368, %v2933
    %v3516 = vmax.f32 %v3369, %v2934
    %v3517 = vmax.f32 %v3370, %v2935
    %v3518 = vmax.f32 %v3371, %v2936
    %v3519 = vmax.f32 %v3372, %v2937
    %v3520 = vmax.f32 %v3373, %v2938
    %v3521 = vmax.f32 %v3374, %v2939
    %v3522 = vmax.f32 %v3375, %v2940
    %v3523 = vmax.f32 %v3376, %v2941
    %v3524 = vmax.f32 %v3377, %v2942
    %v3525 = vmax.f32 %v3378, %v2943
    %v3526 = vmax.f32 %v3379, %v2944
    %v3527 = vmax.f32 %v3380, %v2945
    %v3528 = vmax.f32 %v3381, %v2946
    %v3529 = vmax.f32 %v3382, %v2947
    %v3530 = vmax.f32 %v3383, %v2948
    %v3531 = vmax.f32 %v3384, %v2949
    %v3532 = vmax.f32 %v3385, %v2950
    %v3533 = vmax.f32 %v3386, %v2951
    %v3534 = vmax.f32 %v3387, %v2952
    %v3535 = vmax.f32 %v3388, %v2953
    %v3536 = vmax.f32 %v3389, %v2954
    %v3537 = vmax.f32 %v3390, %v2955
    %v3538 = vmax.f32 %v3391, %v2956
    %v3539 = vmax.f32 %v3392, %v2957
    %v3540 = vmax.f32 %v3393, %v2958
    %v3541 = vmax.f32 %v3394, %v2959
    %v3542 = vmax.f32 %v3395, %v2960
    %v3543 = vmax.f32 %v3396, %v2961
    %v3544 = vmax.f32 %v3397, %v2962
    %v3545 = vmax.f32 %v3398, %v2963
    %v3546 = vmax.f32 %v3399, %v2964
    %v3547 = vmax.f32 %v3400, %v2965
    %v3548 = vmax.f32 %v3401, %v2966
    %v3549 = vmax.f32 %v3402, %v2967
    %v3550 = vmax.f32 %v3403, %v2968
    %v3551 = vmax.f32 %v3404, %v2969
    %v3552 = vmax.f32 %v3405, %v2970
    %v3553 = vmax.f32 %v3406, %v2971
    %v3554 = vmax.f32 %v3407, %v2972
    %v3555 = vmax.f32 %v3408, %v2973
    %v3556 = vmax.f32 %v3409, %v2974
    %v3557 = vmax.f32 %v3410, %v2975
    %v3558 = vmax.f32 %v3411, %v2976
    %v3559 = vmax.f32 %v3412, %v2977
    %v3560 = vmax.f32 %v3413, %v2978
    %v3561 = vmax.f32 %v3414, %v2979
    %v3562 = vmax.f32 %v3415, %v2980
    %v3563 = vmax.f32 %v3416, %v2981
    %v3564 = vmax.f32 %v3417, %v2982
    %v3565 = vmax.f32 %v3418, %v2983
    %v3566 = vmax.f32 %v3419, %v2984
    %v3567 = vmax.f32 %v3420, %v2985
    %v3568 = vmax.f32 %v3421, %v2986
    %v3569 = vmax.f32 %v3422, %v2987
    %v3570 = vmax.f32 %v3423, %v2988
    %v3571 = vmax.f32 %v3424, %v2989
    %v3572 = vmax.f32 %v3425, %v2990
    %v3573 = vmax.f32 %v3426, %v2991
    %v3574 = vmax.f32 %v3427, %v2992
    %v3575 = vmax.f32 %v3428, %v2993
    %v3576 = vmax.f32 %v3429, %v2994
    %v3577 = vmax.f32 %v3430, %v2995
    %v3578 = vmax.f32 %v3431, %v2996
    %v3579 = vmax.f32 %v3432, %v2997
    %v3580 = vmax.f32 %v3433, %v2998
    %v3581 = vmax.f32 %v3434, %v2999
    %v3582 = vmax.f32 %v3435, %v3000
    %v3583 = vmax.f32 %v3436, %v3001
    %v3584 = vmax.f32 %v3437, %v3002
    %v3585 = vmax.f32 %v3438, %v3003
    %v3586 = vmax.f32 %v3439, %v3004
    %v3587 = vmax.f32 %v3440, %v3005
    %v3588 = vmax.f32 %v3441, %v3006
    %v3589 = vmax.f32 %v3442, %v3007
    %v3590 = vmax.f32 %v3443, %v3008
    %v3591 = vmax.f32 %v3444, %v3009
    %v3592 = vmax.f32 %v3445, %v3010
    %v3593 = vmax.f32 %v3446, %v3011
    %v3594 = vmax.f32 %v3447, %v3012
    %v3595 = vmax.f32 %v3448, %v3013
    %v3596 = vmax.f32 %v3449, %v3014
    %v3597 = vmax.f32 %v3450, %v3015
    %v3598 = vmax.f32 %v3451, %v3016
    %v3599 = vmax.f32 %v3452, %v3017
    %v3600 = vmax.f32 %v3453, %v3018
    %v3601 = vmax.f32 %v3454, %v3019
    %v3602 = vmax.f32 %v3455, %v3020
    %v3603 = vmax.f32 %v3456, %v3021
    %v3604 = vmax.f32 %v3457, %v3022
    %v3605 = vmax.f32 %v3458, %v3023
    %v3606 = vmax.f32 %v3459, %v3024
    %v3607 = vmax.f32 %v3460, %v3025
    %v3608 = vmax.f32 %v3461, %v3026
    %v3609 = vmax.f32 %v3462, %v3027
    %v3610 = vmax.f32 %v3463, %v3028
    %v3611 = vmax.f32 %v3464, %v3029
    %v3612 = vmax.f32 %v3465, %v3030
    %v3613 = vmax.f32 %v3466, %v3031
    %v3614 = vmax.f32 %v3467, %v3032
    %v3615 = vmax.f32 %v3468, %v3033
    %v3616 = vmax.f32 %v3469, %v3034
    %v3617 = vmax.f32 %v3470, %v3035
    %v3618 = vmax.f32 %v3471, %v3036
    %v3619 = vmax.f32 %v3472, %v3037
    %v3620 = vmax.f32 %v3473, %v3038
    %v3621 = vmax.f32 %v3474, %v3039
    %v3622 = vmax.f32 %v3475, %v3040
    %v3623 = vmax.f32 %v3476, %v3041
    %v3624 = vmax.f32 %v3477, %v3042
    %v3625 = vmax.f32 %v3478, %v3043
    %v3626 = vmax.f32 %v3479, %v3044
    %v3627 = vmax.f32 %v3480, %v3045
    %v3628 = vmax.f32 %v3481, %v3046
    %v3629 = vmax.f32 %v3482, %v3047
    %v3630 = vmax.f32 %v3483, %v3048
    %v3631 = vmax.f32 %v3484, %v3049
    %v3632 = vmax.f32 %v3485, %v3050
    %v3633 = vmax.f32 %v3486, %v3051
    %v3634 = vmax.f32 %v3487, %v3052
    %v3635 = vmax.f32 %v3488, %v3053
    %v3636 = vmax.f32 %v3489, %v3054
    %v3637 = vmax.f32 %v3490, %v3055
    %v3638 = vmax.f32 %v3491, %v3056
    %v3639 = vmax.f32 %v3492, %v3057
    %v3640 = vmax.f32 %v3493, %v3058
    %v3641 = vmax.f32 %v3494, %v3059
    %v3642 = vmax.f32 %v3495, %v3060
    %v3643 = vmax.f32 %v3496, %v3061
    %v3644 = vmax.f32 %v3497, %v3062
    %v3645 = vmax.f32 %v3498, %v3063
    %v3646 = vmax.f32 %v3499, %v3064
    %v3647 = vmax.f32 %v3500, %v3503
    %v3648 = vmax.f32 %v3501, %v3504
    %v3649 = vmax.f32 %v3502, %v3505
    %v3650 = vld [vmem:[#allocation2 + $0x498] sm:$0xff]
    %v3651 = vld [vmem:[#allocation2 + $0x4a0] sm:$0xff]
    %v3652 = vld [vmem:[#allocation2 + $0x4a8] sm:$0xff]
    %v3653 = vmax.f32 %v3506, %v2495
    %v3654 = vmax.f32 %v3507, %v2496
    %v3655 = vmax.f32 %v3508, %v2497
    %v3656 = vmax.f32 %v3509, %v2498
    %v3657 = vmax.f32 %v3510, %v2499
    %v3658 = vmax.f32 %v3511, %v2500
    %v3659 = vmax.f32 %v3512, %v2501
    %v3660 = vmax.f32 %v3513, %v2502
    %v3661 = vmax.f32 %v3514, %v2503
    %v3662 = vmax.f32 %v3515, %v2504
    %v3663 = vmax.f32 %v3516, %v2505
    %v3664 = vmax.f32 %v3517, %v2506
    %v3665 = vmax.f32 %v3518, %v2507
    %v3666 = vmax.f32 %v3519, %v2508
    %v3667 = vmax.f32 %v3520, %v2509
    %v3668 = vmax.f32 %v3521, %v2510
    %v3669 = vmax.f32 %v3522, %v2511
    %v3670 = vmax.f32 %v3523, %v2512
    %v3671 = vmax.f32 %v3524, %v2513
    %v3672 = vmax.f32 %v3525, %v2514
    %v3673 = vmax.f32 %v3526, %v2515
    %v3674 = vmax.f32 %v3527, %v2516
    %v3675 = vmax.f32 %v3528, %v2517
    %v3676 = vmax.f32 %v3529, %v2518
    %v3677 = vmax.f32 %v3530, %v2519
    %v3678 = vmax.f32 %v3531, %v2520
    %v3679 = vmax.f32 %v3532, %v2521
    %v3680 = vmax.f32 %v3533, %v2522
    %v3681 = vmax.f32 %v3534, %v2523
    %v3682 = vmax.f32 %v3535, %v2524
    %v3683 = vmax.f32 %v3536, %v2525
    %v3684 = vmax.f32 %v3537, %v2526
    %v3685 = vmax.f32 %v3538, %v2527
    %v3686 = vmax.f32 %v3539, %v2528
    %v3687 = vmax.f32 %v3540, %v2529
    %v3688 = vmax.f32 %v3541, %v2530
    %v3689 = vmax.f32 %v3542, %v2531
    %v3690 = vmax.f32 %v3543, %v2532
    %v3691 = vmax.f32 %v3544, %v2533
    %v3692 = vmax.f32 %v3545, %v2534
    %v3693 = vmax.f32 %v3546, %v2535
    %v3694 = vmax.f32 %v3547, %v2536
    %v3695 = vmax.f32 %v3548, %v2537
    %v3696 = vmax.f32 %v3549, %v2538
    %v3697 = vmax.f32 %v3550, %v2539
    %v3698 = vmax.f32 %v3551, %v2540
    %v3699 = vmax.f32 %v3552, %v2541
    %v3700 = vmax.f32 %v3553, %v2542
    %v3701 = vmax.f32 %v3554, %v2543
    %v3702 = vmax.f32 %v3555, %v2544
    %v3703 = vmax.f32 %v3556, %v2545
    %v3704 = vmax.f32 %v3557, %v2546
    %v3705 = vmax.f32 %v3558, %v2547
    %v3706 = vmax.f32 %v3559, %v2548
    %v3707 = vmax.f32 %v3560, %v2549
    %v3708 = vmax.f32 %v3561, %v2550
    %v3709 = vmax.f32 %v3562, %v2551
    %v3710 = vmax.f32 %v3563, %v2552
    %v3711 = vmax.f32 %v3564, %v2553
    %v3712 = vmax.f32 %v3565, %v2554
    %v3713 = vmax.f32 %v3566, %v2555
    %v3714 = vmax.f32 %v3567, %v2556
    %v3715 = vmax.f32 %v3568, %v2557
    %v3716 = vmax.f32 %v3569, %v2558
    %v3717 = vmax.f32 %v3570, %v2559
    %v3718 = vmax.f32 %v3571, %v2560
    %v3719 = vmax.f32 %v3572, %v2561
    %v3720 = vmax.f32 %v3573, %v2562
    %v3721 = vmax.f32 %v3574, %v2563
    %v3722 = vmax.f32 %v3575, %v2564
    %v3723 = vmax.f32 %v3576, %v2565
    %v3724 = vmax.f32 %v3577, %v2566
    %v3725 = vmax.f32 %v3578, %v2567
    %v3726 = vmax.f32 %v3579, %v2568
    %v3727 = vmax.f32 %v3580, %v2569
    %v3728 = vmax.f32 %v3581, %v2570
    %v3729 = vmax.f32 %v3582, %v2571
    %v3730 = vmax.f32 %v3583, %v2572
    %v3731 = vmax.f32 %v3584, %v2573
    %v3732 = vmax.f32 %v3585, %v2574
    %v3733 = vmax.f32 %v3586, %v2575
    %v3734 = vmax.f32 %v3587, %v2576
    %v3735 = vmax.f32 %v3588, %v2577
    %v3736 = vmax.f32 %v3589, %v2578
    %v3737 = vmax.f32 %v3590, %v2579
    %v3738 = vmax.f32 %v3591, %v2580
    %v3739 = vmax.f32 %v3592, %v2581
    %v3740 = vmax.f32 %v3593, %v2582
    %v3741 = vmax.f32 %v3594, %v2583
    %v3742 = vmax.f32 %v3595, %v2584
    %v3743 = vmax.f32 %v3596, %v2585
    %v3744 = vmax.f32 %v3597, %v2586
    %v3745 = vmax.f32 %v3598, %v2587
    %v3746 = vmax.f32 %v3599, %v2588
    %v3747 = vmax.f32 %v3600, %v2589
    %v3748 = vmax.f32 %v3601, %v2590
    %v3749 = vmax.f32 %v3602, %v2591
    %v3750 = vmax.f32 %v3603, %v2592
    %v3751 = vmax.f32 %v3604, %v2593
    %v3752 = vmax.f32 %v3605, %v2594
    %v3753 = vmax.f32 %v3606, %v2595
    %v3754 = vmax.f32 %v3607, %v2596
    %v3755 = vmax.f32 %v3608, %v2597
    %v3756 = vmax.f32 %v3609, %v2598
    %v3757 = vmax.f32 %v3610, %v2599
    %v3758 = vmax.f32 %v3611, %v2600
    %v3759 = vmax.f32 %v3612, %v2601
    %v3760 = vmax.f32 %v3613, %v2602
    %v3761 = vmax.f32 %v3614, %v2603
    %v3762 = vmax.f32 %v3615, %v2604
    %v3763 = vmax.f32 %v3616, %v2605
    %v3764 = vmax.f32 %v3617, %v2606
    %v3765 = vmax.f32 %v3618, %v2607
    %v3766 = vmax.f32 %v3619, %v2608
    %v3767 = vmax.f32 %v3620, %v2609
    %v3768 = vmax.f32 %v3621, %v2610
    %v3769 = vmax.f32 %v3622, %v2611
    %v3770 = vmax.f32 %v3623, %v2612
    %v3771 = vmax.f32 %v3624, %v2613
    %v3772 = vmax.f32 %v3625, %v2614
    %v3773 = vmax.f32 %v3626, %v2615
    %v3774 = vmax.f32 %v3627, %v2616
    %v3775 = vmax.f32 %v3628, %v2617
    %v3776 = vmax.f32 %v3629, %v2618
    %v3777 = vmax.f32 %v3630, %v2619
    %v3778 = vmax.f32 %v3631, %v2620
    %v3779 = vmax.f32 %v3632, %v2621
    %v3780 = vmax.f32 %v3633, %v2622
    %v3781 = vmax.f32 %v3634, %v2623
    %v3782 = vmax.f32 %v3635, %v2624
    %v3783 = vmax.f32 %v3636, %v2625
    %v3784 = vmax.f32 %v3637, %v2626
    %v3785 = vmax.f32 %v3638, %v2627
    %v3786 = vmax.f32 %v3639, %v2628
    %v3787 = vmax.f32 %v3640, %v2629
    %v3788 = vmax.f32 %v3641, %v2630
    %v3789 = vmax.f32 %v3642, %v2631
    %v3790 = vmax.f32 %v3643, %v2632
    %v3791 = vmax.f32 %v3644, %v3209
    %v3792 = vmax.f32 %v3645, %v3210
    %v3793 = vmax.f32 %v3646, %v3211
    %v3794 = vmax.f32 %v3647, %v3650
    %v3795 = vmax.f32 %v3648, %v3651
    %v3796 = vmax.f32 %v3649, %v3652
    %v3797 = vld [vmem:[#allocation2 + $0x499] sm:$0xff]
    %v3798 = vld [vmem:[#allocation2 + $0x4a1] sm:$0xff]
    %v3799 = vld [vmem:[#allocation2 + $0x4a9] sm:$0xff]
    %v3800 = vmax.f32 %v3653, %v2639
    %v3801 = vmax.f32 %v3654, %v2640
    %v3802 = vmax.f32 %v3655, %v2641
    %v3803 = vmax.f32 %v3656, %v2642
    %v3804 = vmax.f32 %v3657, %v2643
    %v3805 = vmax.f32 %v3658, %v2644
    %v3806 = vmax.f32 %v3659, %v2645
    %v3807 = vmax.f32 %v3660, %v2646
    %v3808 = vmax.f32 %v3661, %v2647
    %v3809 = vmax.f32 %v3662, %v2648
    %v3810 = vmax.f32 %v3663, %v2649
    %v3811 = vmax.f32 %v3664, %v2650
    %v3812 = vmax.f32 %v3665, %v2651
    %v3813 = vmax.f32 %v3666, %v2652
    %v3814 = vmax.f32 %v3667, %v2653
    %v3815 = vmax.f32 %v3668, %v2654
    %v3816 = vmax.f32 %v3669, %v2655
    %v3817 = vmax.f32 %v3670, %v2656
    %v3818 = vmax.f32 %v3671, %v2657
    %v3819 = vmax.f32 %v3672, %v2658
    %v3820 = vmax.f32 %v3673, %v2659
    %v3821 = vmax.f32 %v3674, %v2660
    %v3822 = vmax.f32 %v3675, %v2661
    %v3823 = vmax.f32 %v3676, %v2662
    %v3824 = vmax.f32 %v3677, %v2663
    %v3825 = vmax.f32 %v3678, %v2664
    %v3826 = vmax.f32 %v3679, %v2665
    %v3827 = vmax.f32 %v3680, %v2666
    %v3828 = vmax.f32 %v3681, %v2667
    %v3829 = vmax.f32 %v3682, %v2668
    %v3830 = vmax.f32 %v3683, %v2669
    %v3831 = vmax.f32 %v3684, %v2670
    %v3832 = vmax.f32 %v3685, %v2671
    %v3833 = vmax.f32 %v3686, %v2672
    %v3834 = vmax.f32 %v3687, %v2673
    %v3835 = vmax.f32 %v3688, %v2674
    %v3836 = vmax.f32 %v3689, %v2675
    %v3837 = vmax.f32 %v3690, %v2676
    %v3838 = vmax.f32 %v3691, %v2677
    %v3839 = vmax.f32 %v3692, %v2678
    %v3840 = vmax.f32 %v3693, %v2679
    %v3841 = vmax.f32 %v3694, %v2680
    %v3842 = vmax.f32 %v3695, %v2681
    %v3843 = vmax.f32 %v3696, %v2682
    %v3844 = vmax.f32 %v3697, %v2683
    %v3845 = vmax.f32 %v3698, %v2684
    %v3846 = vmax.f32 %v3699, %v2685
    %v3847 = vmax.f32 %v3700, %v2686
    %v3848 = vmax.f32 %v3701, %v2687
    %v3849 = vmax.f32 %v3702, %v2688
    %v3850 = vmax.f32 %v3703, %v2689
    %v3851 = vmax.f32 %v3704, %v2690
    %v3852 = vmax.f32 %v3705, %v2691
    %v3853 = vmax.f32 %v3706, %v2692
    %v3854 = vmax.f32 %v3707, %v2693
    %v3855 = vmax.f32 %v3708, %v2694
    %v3856 = vmax.f32 %v3709, %v2695
    %v3857 = vmax.f32 %v3710, %v2696
    %v3858 = vmax.f32 %v3711, %v2697
    %v3859 = vmax.f32 %v3712, %v2698
    %v3860 = vmax.f32 %v3713, %v2699
    %v3861 = vmax.f32 %v3714, %v2700
    %v3862 = vmax.f32 %v3715, %v2701
    %v3863 = vmax.f32 %v3716, %v2702
    %v3864 = vmax.f32 %v3717, %v2703
    %v3865 = vmax.f32 %v3718, %v2704
    %v3866 = vmax.f32 %v3719, %v2705
    %v3867 = vmax.f32 %v3720, %v2706
    %v3868 = vmax.f32 %v3721, %v2707
    %v3869 = vmax.f32 %v3722, %v2708
    %v3870 = vmax.f32 %v3723, %v2709
    %v3871 = vmax.f32 %v3724, %v2710
    %v3872 = vmax.f32 %v3725, %v2711
    %v3873 = vmax.f32 %v3726, %v2712
    %v3874 = vmax.f32 %v3727, %v2713
    %v3875 = vmax.f32 %v3728, %v2714
    %v3876 = vmax.f32 %v3729, %v2715
    %v3877 = vmax.f32 %v3730, %v2716
    %v3878 = vmax.f32 %v3731, %v2717
    %v3879 = vmax.f32 %v3732, %v2718
    %v3880 = vmax.f32 %v3733, %v2719
    %v3881 = vmax.f32 %v3734, %v2720
    %v3882 = vmax.f32 %v3735, %v2721
    %v3883 = vmax.f32 %v3736, %v2722
    %v3884 = vmax.f32 %v3737, %v2723
    %v3885 = vmax.f32 %v3738, %v2724
    %v3886 = vmax.f32 %v3739, %v2725
    %v3887 = vmax.f32 %v3740, %v2726
    %v3888 = vmax.f32 %v3741, %v2727
    %v3889 = vmax.f32 %v3742, %v2728
    %v3890 = vmax.f32 %v3743, %v2729
    %v3891 = vmax.f32 %v3744, %v2730
    %v3892 = vmax.f32 %v3745, %v2731
    %v3893 = vmax.f32 %v3746, %v2732
    %v3894 = vmax.f32 %v3747, %v2733
    %v3895 = vmax.f32 %v3748, %v2734
    %v3896 = vmax.f32 %v3749, %v2735
    %v3897 = vmax.f32 %v3750, %v2736
    %v3898 = vmax.f32 %v3751, %v2737
    %v3899 = vmax.f32 %v3752, %v2738
    %v3900 = vmax.f32 %v3753, %v2739
    %v3901 = vmax.f32 %v3754, %v2740
    %v3902 = vmax.f32 %v3755, %v2741
    %v3903 = vmax.f32 %v3756, %v2742
    %v3904 = vmax.f32 %v3757, %v2743
    %v3905 = vmax.f32 %v3758, %v2744
    %v3906 = vmax.f32 %v3759, %v2745
    %v3907 = vmax.f32 %v3760, %v2746
    %v3908 = vmax.f32 %v3761, %v2747
    %v3909 = vmax.f32 %v3762, %v2748
    %v3910 = vmax.f32 %v3763, %v2749
    %v3911 = vmax.f32 %v3764, %v2750
    %v3912 = vmax.f32 %v3765, %v2751
    %v3913 = vmax.f32 %v3766, %v2752
    %v3914 = vmax.f32 %v3767, %v2753
    %v3915 = vmax.f32 %v3768, %v2754
    %v3916 = vmax.f32 %v3769, %v2755
    %v3917 = vmax.f32 %v3770, %v2756
    %v3918 = vmax.f32 %v3771, %v2757
    %v3919 = vmax.f32 %v3772, %v2758
    %v3920 = vmax.f32 %v3773, %v2759
    %v3921 = vmax.f32 %v3774, %v2760
    %v3922 = vmax.f32 %v3775, %v2761
    %v3923 = vmax.f32 %v3776, %v2762
    %v3924 = vmax.f32 %v3777, %v2763
    %v3925 = vmax.f32 %v3778, %v2764
    %v3926 = vmax.f32 %v3779, %v2765
    %v3927 = vmax.f32 %v3780, %v2766
    %v3928 = vmax.f32 %v3781, %v2767
    %v3929 = vmax.f32 %v3782, %v2768
    %v3930 = vmax.f32 %v3783, %v2769
    %v3931 = vmax.f32 %v3784, %v2770
    %v3932 = vmax.f32 %v3785, %v2771
    %v3933 = vmax.f32 %v3786, %v2772
    %v3934 = vmax.f32 %v3787, %v2773
    %v3935 = vmax.f32 %v3788, %v2774
    %v3936 = vmax.f32 %v3789, %v2775
    %v3937 = vmax.f32 %v3790, %v2776
    %v3938 = vmax.f32 %v3791, %v3356
    %v3939 = vmax.f32 %v3792, %v3357
    %v3940 = vmax.f32 %v3793, %v3358
    %v3941 = vmax.f32 %v3794, %v3797
    %v3942 = vmax.f32 %v3795, %v3798
    %v3943 = vmax.f32 %v3796, %v3799
    %v3944 = vld [vmem:[#allocation2 + $0x49a] sm:$0xff]
    %v3945 = vld [vmem:[#allocation2 + $0x4a2] sm:$0xff]
    %v3946 = vld [vmem:[#allocation2 + $0x4aa] sm:$0xff]
    %v3947 = vmax.f32 %v3800, %v2927
    %v3948 = vmax.f32 %v3801, %v2928
    %v3949 = vmax.f32 %v3802, %v2929
    %v3950 = vmax.f32 %v3803, %v2930
    %v3951 = vmax.f32 %v3804, %v2931
    %v3952 = vmax.f32 %v3805, %v2932
    %v3953 = vmax.f32 %v3806, %v2933
    %v3954 = vmax.f32 %v3807, %v2934
    %v3955 = vmax.f32 %v3808, %v2935
    %v3956 = vmax.f32 %v3809, %v2936
    %v3957 = vmax.f32 %v3810, %v2937
    %v3958 = vmax.f32 %v3811, %v2938
    %v3959 = vmax.f32 %v3812, %v2939
    %v3960 = vmax.f32 %v3813, %v2940
    %v3961 = vmax.f32 %v3814, %v2941
    %v3962 = vmax.f32 %v3815, %v2942
    %v3963 = vmax.f32 %v3816, %v2943
    %v3964 = vmax.f32 %v3817, %v2944
    %v3965 = vmax.f32 %v3818, %v2945
    %v3966 = vmax.f32 %v3819, %v2946
    %v3967 = vmax.f32 %v3820, %v2947
    %v3968 = vmax.f32 %v3821, %v2948
    %v3969 = vmax.f32 %v3822, %v2949
    %v3970 = vmax.f32 %v3823, %v2950
    %v3971 = vmax.f32 %v3824, %v2951
    %v3972 = vmax.f32 %v3825, %v2952
    %v3973 = vmax.f32 %v3826, %v2953
    %v3974 = vmax.f32 %v3827, %v2954
    %v3975 = vmax.f32 %v3828, %v2955
    %v3976 = vmax.f32 %v3829, %v2956
    %v3977 = vmax.f32 %v3830, %v2957
    %v3978 = vmax.f32 %v3831, %v2958
    %v3979 = vmax.f32 %v3832, %v2959
    %v3980 = vmax.f32 %v3833, %v2960
    %v3981 = vmax.f32 %v3834, %v2961
    %v3982 = vmax.f32 %v3835, %v2962
    %v3983 = vmax.f32 %v3836, %v2963
    %v3984 = vmax.f32 %v3837, %v2964
    %v3985 = vmax.f32 %v3838, %v2965
    %v3986 = vmax.f32 %v3839, %v2966
    %v3987 = vmax.f32 %v3840, %v2967
    %v3988 = vmax.f32 %v3841, %v2968
    %v3989 = vmax.f32 %v3842, %v2969
    %v3990 = vmax.f32 %v3843, %v2970
    %v3991 = vmax.f32 %v3844, %v2971
    %v3992 = vmax.f32 %v3845, %v2972
    %v3993 = vmax.f32 %v3846, %v2973
    %v3994 = vmax.f32 %v3847, %v2974
    %v3995 = vmax.f32 %v3848, %v2975
    %v3996 = vmax.f32 %v3849, %v2976
    %v3997 = vmax.f32 %v3850, %v2977
    %v3998 = vmax.f32 %v3851, %v2978
    %v3999 = vmax.f32 %v3852, %v2979
    %v4000 = vmax.f32 %v3853, %v2980
    %v4001 = vmax.f32 %v3854, %v2981
    %v4002 = vmax.f32 %v3855, %v2982
    %v4003 = vmax.f32 %v3856, %v2983
    %v4004 = vmax.f32 %v3857, %v2984
    %v4005 = vmax.f32 %v3858, %v2985
    %v4006 = vmax.f32 %v3859, %v2986
    %v4007 = vmax.f32 %v3860, %v2987
    %v4008 = vmax.f32 %v3861, %v2988
    %v4009 = vmax.f32 %v3862, %v2989
    %v4010 = vmax.f32 %v3863, %v2990
    %v4011 = vmax.f32 %v3864, %v2991
    %v4012 = vmax.f32 %v3865, %v2992
    %v4013 = vmax.f32 %v3866, %v2993
    %v4014 = vmax.f32 %v3867, %v2994
    %v4015 = vmax.f32 %v3868, %v2995
    %v4016 = vmax.f32 %v3869, %v2996
    %v4017 = vmax.f32 %v3870, %v2997
    %v4018 = vmax.f32 %v3871, %v2998
    %v4019 = vmax.f32 %v3872, %v2999
    %v4020 = vmax.f32 %v3873, %v3000
    %v4021 = vmax.f32 %v3874, %v3001
    %v4022 = vmax.f32 %v3875, %v3002
    %v4023 = vmax.f32 %v3876, %v3003
    %v4024 = vmax.f32 %v3877, %v3004
    %v4025 = vmax.f32 %v3878, %v3005
    %v4026 = vmax.f32 %v3879, %v3006
    %v4027 = vmax.f32 %v3880, %v3007
    %v4028 = vmax.f32 %v3881, %v3008
    %v4029 = vmax.f32 %v3882, %v3009
    %v4030 = vmax.f32 %v3883, %v3010
    %v4031 = vmax.f32 %v3884, %v3011
    %v4032 = vmax.f32 %v3885, %v3012
    %v4033 = vmax.f32 %v3886, %v3013
    %v4034 = vmax.f32 %v3887, %v3014
    %v4035 = vmax.f32 %v3888, %v3015
    %v4036 = vmax.f32 %v3889, %v3016
    %v4037 = vmax.f32 %v3890, %v3017
    %v4038 = vmax.f32 %v3891, %v3018
    %v4039 = vmax.f32 %v3892, %v3019
    %v4040 = vmax.f32 %v3893, %v3020
    %v4041 = vmax.f32 %v3894, %v3021
    %v4042 = vmax.f32 %v3895, %v3022
    %v4043 = vmax.f32 %v3896, %v3023
    %v4044 = vmax.f32 %v3897, %v3024
    %v4045 = vmax.f32 %v3898, %v3025
    %v4046 = vmax.f32 %v3899, %v3026
    %v4047 = vmax.f32 %v3900, %v3027
    %v4048 = vmax.f32 %v3901, %v3028
    %v4049 = vmax.f32 %v3902, %v3029
    %v4050 = vmax.f32 %v3903, %v3030
    %v4051 = vmax.f32 %v3904, %v3031
    %v4052 = vmax.f32 %v3905, %v3032
    %v4053 = vmax.f32 %v3906, %v3033
    %v4054 = vmax.f32 %v3907, %v3034
    %v4055 = vmax.f32 %v3908, %v3035
    %v4056 = vmax.f32 %v3909, %v3036
    %v4057 = vmax.f32 %v3910, %v3037
    %v4058 = vmax.f32 %v3911, %v3038
    %v4059 = vmax.f32 %v3912, %v3039
    %v4060 = vmax.f32 %v3913, %v3040
    %v4061 = vmax.f32 %v3914, %v3041
    %v4062 = vmax.f32 %v3915, %v3042
    %v4063 = vmax.f32 %v3916, %v3043
    %v4064 = vmax.f32 %v3917, %v3044
    %v4065 = vmax.f32 %v3918, %v3045
    %v4066 = vmax.f32 %v3919, %v3046
    %v4067 = vmax.f32 %v3920, %v3047
    %v4068 = vmax.f32 %v3921, %v3048
    %v4069 = vmax.f32 %v3922, %v3049
    %v4070 = vmax.f32 %v3923, %v3050
    %v4071 = vmax.f32 %v3924, %v3051
    %v4072 = vmax.f32 %v3925, %v3052
    %v4073 = vmax.f32 %v3926, %v3053
    %v4074 = vmax.f32 %v3927, %v3054
    %v4075 = vmax.f32 %v3928, %v3055
    %v4076 = vmax.f32 %v3929, %v3056
    %v4077 = vmax.f32 %v3930, %v3057
    %v4078 = vmax.f32 %v3931, %v3058
    %v4079 = vmax.f32 %v3932, %v3059
    %v4080 = vmax.f32 %v3933, %v3060
    %v4081 = vmax.f32 %v3934, %v3061
    %v4082 = vmax.f32 %v3935, %v3062
    %v4083 = vmax.f32 %v3936, %v3063
    %v4084 = vmax.f32 %v3937, %v3064
    %v4085 = vmax.f32 %v3938, %v3503
    %v4086 = vmax.f32 %v3939, %v3504
    %v4087 = vmax.f32 %v3940, %v3505
    %v4088 = vmax.f32 %v3941, %v3944
    %v4089 = vmax.f32 %v3942, %v3945
    %v4090 = vmax.f32 %v3943, %v3946
    %4091 = vst [vmem:[#allocation3] sm:$0xff] %v3947
    %4092 = vst [vmem:[#allocation3 + $0x8] sm:$0xff] %v3948
    %4093 = vst [vmem:[#allocation3 + $0x10] sm:$0xff] %v3949
    %4094 = vst [vmem:[#allocation3 + $0x18] sm:$0xff] %v3950
    %4095 = vst [vmem:[#allocation3 + $0x20] sm:$0xff] %v3951
    %4096 = vst [vmem:[#allocation3 + $0x28] sm:$0xff] %v3952
    %4097 = vst [vmem:[#allocation3 + $0x30] sm:$0xff] %v3953
    %4098 = vst [vmem:[#allocation3 + $0x38] sm:$0xff] %v3954
    %4099 = vst [vmem:[#allocation3 + $0x40] sm:$0xff] %v3955
    %4100 = vst [vmem:[#allocation3 + $0x48] sm:$0xff] %v3956
    %4101 = vst [vmem:[#allocation3 + $0x50] sm:$0xff] %v3957
    %4102 = vst [vmem:[#allocation3 + $0x58] sm:$0xff] %v3958
    %4103 = vst [vmem:[#allocation3 + $0x60] sm:$0xff] %v3959
    %4104 = vst [vmem:[#allocation3 + $0x68] sm:$0xff] %v3960
    %4105 = vst [vmem:[#allocation3 + $0x70] sm:$0xff] %v3961
    %4106 = vst [vmem:[#allocation3 + $0x78] sm:$0xff] %v3962
    %4107 = vst [vmem:[#allocation3 + $0x80] sm:$0xff] %v3963
    %4108 = vst [vmem:[#allocation3 + $0x88] sm:$0xff] %v3964
    %4109 = vst [vmem:[#allocation3 + $0x90] sm:$0xff] %v3965
    %4110 = vst [vmem:[#allocation3 + $0x98] sm:$0xff] %v3966
    %4111 = vst [vmem:[#allocation3 + $0xa0] sm:$0xff] %v3967
    %4112 = vst [vmem:[#allocation3 + $0xa8] sm:$0xff] %v3968
    %4113 = vst [vmem:[#allocation3 + $0xb0] sm:$0xff] %v3969
    %4114 = vst [vmem:[#allocation3 + $0xb8] sm:$0xff] %v3970
    %4115 = vst [vmem:[#allocation3 + $0xc0] sm:$0xff] %v3971
    %4116 = vst [vmem:[#allocation3 + $0xc8] sm:$0xff] %v3972
    %4117 = vst [vmem:[#allocation3 + $0xd0] sm:$0xff] %v3973
    %4118 = vst [vmem:[#allocation3 + $0xd8] sm:$0xff] %v3974
    %4119 = vst [vmem:[#allocation3 + $0xe0] sm:$0xff] %v3975
    %4120 = vst [vmem:[#allocation3 + $0xe8] sm:$0xff] %v3976
    %4121 = vst [vmem:[#allocation3 + $0xf0] sm:$0xff] %v3977
    %4122 = vst [vmem:[#allocation3 + $0xf8] sm:$0xff] %v3978
    %4123 = vst [vmem:[#allocation3 + $0x100] sm:$0xff] %v3979
    %4124 = vst [vmem:[#allocation3 + $0x108] sm:$0xff] %v3980
    %4125 = vst [vmem:[#allocation3 + $0x110] sm:$0xff] %v3981
    %4126 = vst [vmem:[#allocation3 + $0x118] sm:$0xff] %v3982
    %4127 = vst [vmem:[#allocation3 + $0x120] sm:$0xff] %v3983
    %4128 = vst [vmem:[#allocation3 + $0x128] sm:$0xff] %v3984
    %4129 = vst [vmem:[#allocation3 + $0x130] sm:$0xff] %v3985
    %4130 = vst [vmem:[#allocation3 + $0x138] sm:$0xff] %v3986
    %4131 = vst [vmem:[#allocation3 + $0x140] sm:$0xff] %v3987
    %4132 = vst [vmem:[#allocation3 + $0x148] sm:$0xff] %v3988
    %4133 = vst [vmem:[#allocation3 + $0x150] sm:$0xff] %v3989
    %4134 = vst [vmem:[#allocation3 + $0x158] sm:$0xff] %v3990
    %4135 = vst [vmem:[#allocation3 + $0x160] sm:$0xff] %v3991
    %4136 = vst [vmem:[#allocation3 + $0x168] sm:$0xff] %v3992
    %4137 = vst [vmem:[#allocation3 + $0x170] sm:$0xff] %v3993
    %4138 = vst [vmem:[#allocation3 + $0x178] sm:$0xff] %v3994
    %4139 = vst [vmem:[#allocation3 + $0x180] sm:$0xff] %v3995
    %4140 = vst [vmem:[#allocation3 + $0x188] sm:$0xff] %v3996
    %4141 = vst [vmem:[#allocation3 + $0x190] sm:$0xff] %v3997
    %4142 = vst [vmem:[#allocation3 + $0x198] sm:$0xff] %v3998
    %4143 = vst [vmem:[#allocation3 + $0x1a0] sm:$0xff] %v3999
    %4144 = vst [vmem:[#allocation3 + $0x1a8] sm:$0xff] %v4000
    %4145 = vst [vmem:[#allocation3 + $0x1b0] sm:$0xff] %v4001
    %4146 = vst [vmem:[#allocation3 + $0x1b8] sm:$0xff] %v4002
    %4147 = vst [vmem:[#allocation3 + $0x1c0] sm:$0xff] %v4003
    %4148 = vst [vmem:[#allocation3 + $0x1c8] sm:$0xff] %v4004
    %4149 = vst [vmem:[#allocation3 + $0x1d0] sm:$0xff] %v4005
    %4150 = vst [vmem:[#allocation3 + $0x1d8] sm:$0xff] %v4006
    %4151 = vst [vmem:[#allocation3 + $0x1e0] sm:$0xff] %v4007
    %4152 = vst [vmem:[#allocation3 + $0x1e8] sm:$0xff] %v4008
    %4153 = vst [vmem:[#allocation3 + $0x1f0] sm:$0xff] %v4009
    %4154 = vst [vmem:[#allocation3 + $0x1f8] sm:$0xff] %v4010
    %4155 = vst [vmem:[#allocation3 + $0x200] sm:$0xff] %v4011
    %4156 = vst [vmem:[#allocation3 + $0x208] sm:$0xff] %v4012
    %4157 = vst [vmem:[#allocation3 + $0x210] sm:$0xff] %v4013
    %4158 = vst [vmem:[#allocation3 + $0x218] sm:$0xff] %v4014
    %4159 = vst [vmem:[#allocation3 + $0x220] sm:$0xff] %v4015
    %4160 = vst [vmem:[#allocation3 + $0x228] sm:$0xff] %v4016
    %4161 = vst [vmem:[#allocation3 + $0x230] sm:$0xff] %v4017
    %4162 = vst [vmem:[#allocation3 + $0x238] sm:$0xff] %v4018
    %4163 = vst [vmem:[#allocation3 + $0x240] sm:$0xff] %v4019
    %4164 = vst [vmem:[#allocation3 + $0x248] sm:$0xff] %v4020
    %4165 = vst [vmem:[#allocation3 + $0x250] sm:$0xff] %v4021
    %4166 = vst [vmem:[#allocation3 + $0x258] sm:$0xff] %v4022
    %4167 = vst [vmem:[#allocation3 + $0x260] sm:$0xff] %v4023
    %4168 = vst [vmem:[#allocation3 + $0x268] sm:$0xff] %v4024
    %4169 = vst [vmem:[#allocation3 + $0x270] sm:$0xff] %v4025
    %4170 = vst [vmem:[#allocation3 + $0x278] sm:$0xff] %v4026
    %4171 = vst [vmem:[#allocation3 + $0x280] sm:$0xff] %v4027
    %4172 = vst [vmem:[#allocation3 + $0x288] sm:$0xff] %v4028
    %4173 = vst [vmem:[#allocation3 + $0x290] sm:$0xff] %v4029
    %4174 = vst [vmem:[#allocation3 + $0x298] sm:$0xff] %v4030
    %4175 = vst [vmem:[#allocation3 + $0x2a0] sm:$0xff] %v4031
    %4176 = vst [vmem:[#allocation3 + $0x2a8] sm:$0xff] %v4032
    %4177 = vst [vmem:[#allocation3 + $0x2b0] sm:$0xff] %v4033
    %4178 = vst [vmem:[#allocation3 + $0x2b8] sm:$0xff] %v4034
    %4179 = vst [vmem:[#allocation3 + $0x2c0] sm:$0xff] %v4035
    %4180 = vst [vmem:[#allocation3 + $0x2c8] sm:$0xff] %v4036
    %4181 = vst [vmem:[#allocation3 + $0x2d0] sm:$0xff] %v4037
    %4182 = vst [vmem:[#allocation3 + $0x2d8] sm:$0xff] %v4038
    %4183 = vst [vmem:[#allocation3 + $0x2e0] sm:$0xff] %v4039
    %4184 = vst [vmem:[#allocation3 + $0x2e8] sm:$0xff] %v4040
    %4185 = vst [vmem:[#allocation3 + $0x2f0] sm:$0xff] %v4041
    %4186 = vst [vmem:[#allocation3 + $0x2f8] sm:$0xff] %v4042
    %4187 = vst [vmem:[#allocation3 + $0x300] sm:$0xff] %v4043
    %4188 = vst [vmem:[#allocation3 + $0x308] sm:$0xff] %v4044
    %4189 = vst [vmem:[#allocation3 + $0x310] sm:$0xff] %v4045
    %4190 = vst [vmem:[#allocation3 + $0x318] sm:$0xff] %v4046
    %4191 = vst [vmem:[#allocation3 + $0x320] sm:$0xff] %v4047
    %4192 = vst [vmem:[#allocation3 + $0x328] sm:$0xff] %v4048
    %4193 = vst [vmem:[#allocation3 + $0x330] sm:$0xff] %v4049
    %4194 = vst [vmem:[#allocation3 + $0x338] sm:$0xff] %v4050
    %4195 = vst [vmem:[#allocation3 + $0x340] sm:$0xff] %v4051
    %4196 = vst [vmem:[#allocation3 + $0x348] sm:$0xff] %v4052
    %4197 = vst [vmem:[#allocation3 + $0x350] sm:$0xff] %v4053
    %4198 = vst [vmem:[#allocation3 + $0x358] sm:$0xff] %v4054
    %4199 = vst [vmem:[#allocation3 + $0x360] sm:$0xff] %v4055
    %4200 = vst [vmem:[#allocation3 + $0x368] sm:$0xff] %v4056
    %4201 = vst [vmem:[#allocation3 + $0x370] sm:$0xff] %v4057
    %4202 = vst [vmem:[#allocation3 + $0x378] sm:$0xff] %v4058
    %4203 = vst [vmem:[#allocation3 + $0x380] sm:$0xff] %v4059
    %4204 = vst [vmem:[#allocation3 + $0x388] sm:$0xff] %v4060
    %4205 = vst [vmem:[#allocation3 + $0x390] sm:$0xff] %v4061
    %4206 = vst [vmem:[#allocation3 + $0x398] sm:$0xff] %v4062
    %4207 = vst [vmem:[#allocation3 + $0x3a0] sm:$0xff] %v4063
    %4208 = vst [vmem:[#allocation3 + $0x3a8] sm:$0xff] %v4064
    %4209 = vst [vmem:[#allocation3 + $0x3b0] sm:$0xff] %v4065
    %4210 = vst [vmem:[#allocation3 + $0x3b8] sm:$0xff] %v4066
    %4211 = vst [vmem:[#allocation3 + $0x3c0] sm:$0xff] %v4067
    %4212 = vst [vmem:[#allocation3 + $0x3c8] sm:$0xff] %v4068
    %4213 = vst [vmem:[#allocation3 + $0x3d0] sm:$0xff] %v4069
    %4214 = vst [vmem:[#allocation3 + $0x3d8] sm:$0xff] %v4070
    %4215 = vst [vmem:[#allocation3 + $0x3e0] sm:$0xff] %v4071
    %4216 = vst [vmem:[#allocation3 + $0x3e8] sm:$0xff] %v4072
    %4217 = vst [vmem:[#allocation3 + $0x3f0] sm:$0xff] %v4073
    %4218 = vst [vmem:[#allocation3 + $0x3f8] sm:$0xff] %v4074
    %4219 = vst [vmem:[#allocation3 + $0x400] sm:$0xff] %v4075
    %4220 = vst [vmem:[#allocation3 + $0x408] sm:$0xff] %v4076
    %4221 = vst [vmem:[#allocation3 + $0x410] sm:$0xff] %v4077
    %4222 = vst [vmem:[#allocation3 + $0x418] sm:$0xff] %v4078
    %4223 = vst [vmem:[#allocation3 + $0x420] sm:$0xff] %v4079
    %4224 = vst [vmem:[#allocation3 + $0x428] sm:$0xff] %v4080
    %4225 = vst [vmem:[#allocation3 + $0x430] sm:$0xff] %v4081
    %4226 = vst [vmem:[#allocation3 + $0x438] sm:$0xff] %v4082
    %4227 = vst [vmem:[#allocation3 + $0x440] sm:$0xff] %v4083
    %4228 = vst [vmem:[#allocation3 + $0x448] sm:$0xff] %v4084
    %4229 = vst [vmem:[#allocation3 + $0x450] sm:$0xff] %v4085
    %4230 = vst [vmem:[#allocation3 + $0x458] sm:$0xff] %v4086
    %4231 = vst [vmem:[#allocation3 + $0x460] sm:$0xff] %v4087
    %4232 = vst [vmem:[#allocation3 + $0x468] sm:$0xff] %v4088
    %4233 = vst [vmem:[#allocation3 + $0x470] sm:$0xff] %v4089
    %4234 = vst [vmem:[#allocation3 + $0x478] sm:$0xff] %v4090
    %v4235 = vld [vmem:[#allocation3] ss:$2 sm:$0xff]
    %s4236 = scalar_lea.vmem [#allocation3], 16
    %v4237 = vld [vmem:[%s4236] ss:$2 sm:$0x7]
    %4238 = vst [vmem:[#allocation4] sm:$0xff] %v4235
    %4239 = vst [vmem:[#allocation4 + $0x8] sm:$0x7] %v4237
    %s4240 = scalar_lea.vmem [#allocation3], 48
    %v4241 = vld [vmem:[%s4240] ss:$2 sm:$0xff]
    %s4242 = scalar_lea.vmem [#allocation3], 64
    %v4243 = vld [vmem:[%s4242] ss:$2 sm:$0x7]
    %4244 = vst [vmem:[#allocation4 + $0xb] sm:$0xff] %v4241
    %4245 = vst [vmem:[#allocation4 + $0x13] sm:$0x7] %v4243
    %s4246 = scalar_lea.vmem [#allocation3], 96
    %v4247 = vld [vmem:[%s4246] ss:$2 sm:$0xff]
    %s4248 = scalar_lea.vmem [#allocation3], 112
    %v4249 = vld [vmem:[%s4248] ss:$2 sm:$0x7]
    %4250 = vst [vmem:[#allocation4 + $0x16] sm:$0xff] %v4247
    %4251 = vst [vmem:[#allocation4 + $0x1e] sm:$0x7] %v4249
    %s4252 = scalar_lea.vmem [#allocation3], 144
    %v4253 = vld [vmem:[%s4252] ss:$2 sm:$0xff]
    %s4254 = scalar_lea.vmem [#allocation3], 160
    %v4255 = vld [vmem:[%s4254] ss:$2 sm:$0x7]
    %4256 = vst [vmem:[#allocation4 + $0x21] sm:$0xff] %v4253
    %4257 = vst [vmem:[#allocation4 + $0x29] sm:$0x7] %v4255
    %s4258 = scalar_lea.vmem [#allocation3], 192
    %v4259 = vld [vmem:[%s4258] ss:$2 sm:$0xff]
    %s4260 = scalar_lea.vmem [#allocation3], 208
    %v4261 = vld [vmem:[%s4260] ss:$2 sm:$0x7]
    %4262 = vst [vmem:[#allocation4 + $0x2c] sm:$0xff] %v4259
    %4263 = vst [vmem:[#allocation4 + $0x34] sm:$0x7] %v4261
    %s4264 = scalar_lea.vmem [#allocation3], 240
    %v4265 = vld [vmem:[%s4264] ss:$2 sm:$0xff]
    %s4266 = scalar_lea.vmem [#allocation3], 256
    %v4267 = vld [vmem:[%s4266] ss:$2 sm:$0x7]
    %4268 = vst [vmem:[#allocation4 + $0x37] sm:$0xff] %v4265
    %4269 = vst [vmem:[#allocation4 + $0x3f] sm:$0x7] %v4267
    %s4270 = scalar_lea.vmem [#allocation3], 288
    %v4271 = vld [vmem:[%s4270] ss:$2 sm:$0xff]
    %s4272 = scalar_lea.vmem [#allocation3], 304
    %v4273 = vld [vmem:[%s4272] ss:$2 sm:$0x7]
    %4274 = vst [vmem:[#allocation4 + $0x42] sm:$0xff] %v4271
    %4275 = vst [vmem:[#allocation4 + $0x4a] sm:$0x7] %v4273
    %s4276 = scalar_lea.vmem [#allocation3], 336
    %v4277 = vld [vmem:[%s4276] ss:$2 sm:$0xff]
    %s4278 = scalar_lea.vmem [#allocation3], 352
    %v4279 = vld [vmem:[%s4278] ss:$2 sm:$0x7]
    %4280 = vst [vmem:[#allocation4 + $0x4d] sm:$0xff] %v4277
    %4281 = vst [vmem:[#allocation4 + $0x55] sm:$0x7] %v4279
    %s4282 = scalar_lea.vmem [#allocation3], 384
    %v4283 = vld [vmem:[%s4282] ss:$2 sm:$0xff]
    %s4284 = scalar_lea.vmem [#allocation3], 400
    %v4285 = vld [vmem:[%s4284] ss:$2 sm:$0x7]
    %4286 = vst [vmem:[#allocation4 + $0x58] sm:$0xff] %v4283
    %4287 = vst [vmem:[#allocation4 + $0x60] sm:$0x7] %v4285
    %s4288 = scalar_lea.vmem [#allocation3], 432
    %v4289 = vld [vmem:[%s4288] ss:$2 sm:$0xff]
    %s4290 = scalar_lea.vmem [#allocation3], 448
    %v4291 = vld [vmem:[%s4290] ss:$2 sm:$0x7]
    %4292 = vst [vmem:[#allocation4 + $0x63] sm:$0xff] %v4289
    %4293 = vst [vmem:[#allocation4 + $0x6b] sm:$0x7] %v4291
    %s4294 = scalar_lea.vmem [#allocation3], 480
    %v4295 = vld [vmem:[%s4294] ss:$2 sm:$0xff]
    %s4296 = scalar_lea.vmem [#allocation3], 496
    %v4297 = vld [vmem:[%s4296] ss:$2 sm:$0x7]
    %4298 = vst [vmem:[#allocation4 + $0x6e] sm:$0xff] %v4295
    %4299 = vst [vmem:[#allocation4 + $0x76] sm:$0x7] %v4297
    %s4300 = scalar_lea.vmem [#allocation3], 576
    %v4301 = vld [vmem:[%s4300] ss:$2 sm:$0xff]
    %s4302 = scalar_lea.vmem [#allocation3], 592
    %v4303 = vld [vmem:[%s4302] ss:$2 sm:$0x7]
    %4304 = vst [vmem:[#allocation4 + $0x79] sm:$0xff] %v4301
    %4305 = vst [vmem:[#allocation4 + $0x81] sm:$0x7] %v4303
    %s4306 = scalar_lea.vmem [#allocation3], 624
    %v4307 = vld [vmem:[%s4306] ss:$2 sm:$0xff]
    %s4308 = scalar_lea.vmem [#allocation3], 640
    %v4309 = vld [vmem:[%s4308] ss:$2 sm:$0x7]
    %4310 = vst [vmem:[#allocation4 + $0x84] sm:$0xff] %v4307
    %4311 = vst [vmem:[#allocation4 + $0x8c] sm:$0x7] %v4309
    %s4312 = scalar_lea.vmem [#allocation3], 672
    %v4313 = vld [vmem:[%s4312] ss:$2 sm:$0xff]
    %s4314 = scalar_lea.vmem [#allocation3], 688
    %v4315 = vld [vmem:[%s4314] ss:$2 sm:$0x7]
    %4316 = vst [vmem:[#allocation4 + $0x8f] sm:$0xff] %v4313
    %4317 = vst [vmem:[#allocation4 + $0x97] sm:$0x7] %v4315
    %s4318 = scalar_lea.vmem [#allocation3], 720
    %v4319 = vld [vmem:[%s4318] ss:$2 sm:$0xff]
    %s4320 = scalar_lea.vmem [#allocation3], 736
    %v4321 = vld [vmem:[%s4320] ss:$2 sm:$0x7]
    %4322 = vst [vmem:[#allocation4 + $0x9a] sm:$0xff] %v4319
    %4323 = vst [vmem:[#allocation4 + $0xa2] sm:$0x7] %v4321
    %s4324 = scalar_lea.vmem [#allocation3], 768
    %v4325 = vld [vmem:[%s4324] ss:$2 sm:$0xff]
    %s4326 = scalar_lea.vmem [#allocation3], 784
    %v4327 = vld [vmem:[%s4326] ss:$2 sm:$0x7]
    %4328 = vst [vmem:[#allocation4 + $0xa5] sm:$0xff] %v4325
    %4329 = vst [vmem:[#allocation4 + $0xad] sm:$0x7] %v4327
    %s4330 = scalar_lea.vmem [#allocation3], 816
    %v4331 = vld [vmem:[%s4330] ss:$2 sm:$0xff]
    %s4332 = scalar_lea.vmem [#allocation3], 832
    %v4333 = vld [vmem:[%s4332] ss:$2 sm:$0x7]
    %4334 = vst [vmem:[#allocation4 + $0xb0] sm:$0xff] %v4331
    %4335 = vst [vmem:[#allocation4 + $0xb8] sm:$0x7] %v4333
    %s4336 = scalar_lea.vmem [#allocation3], 864
    %v4337 = vld [vmem:[%s4336] ss:$2 sm:$0xff]
    %s4338 = scalar_lea.vmem [#allocation3], 880
    %v4339 = vld [vmem:[%s4338] ss:$2 sm:$0x7]
    %4340 = vst [vmem:[#allocation4 + $0xbb] sm:$0xff] %v4337
    %4341 = vst [vmem:[#allocation4 + $0xc3] sm:$0x7] %v4339
    %s4342 = scalar_lea.vmem [#allocation3], 912
    %v4343 = vld [vmem:[%s4342] ss:$2 sm:$0xff]
    %s4344 = scalar_lea.vmem [#allocation3], 928
    %v4345 = vld [vmem:[%s4344] ss:$2 sm:$0x7]
    %4346 = vst [vmem:[#allocation4 + $0xc6] sm:$0xff] %v4343
    %4347 = vst [vmem:[#allocation4 + $0xce] sm:$0x7] %v4345
    %s4348 = scalar_lea.vmem [#allocation3], 960
    %v4349 = vld [vmem:[%s4348] ss:$2 sm:$0xff]
    %s4350 = scalar_lea.vmem [#allocation3], 976
    %v4351 = vld [vmem:[%s4350] ss:$2 sm:$0x7]
    %4352 = vst [vmem:[#allocation4 + $0xd1] sm:$0xff] %v4349
    %4353 = vst [vmem:[#allocation4 + $0xd9] sm:$0x7] %v4351
    %s4354 = scalar_lea.vmem [#allocation3], 1008
    %v4355 = vld [vmem:[%s4354] ss:$2 sm:$0xff]
    %s4356 = scalar_lea.vmem [#allocation3], 1024
    %v4357 = vld [vmem:[%s4356] ss:$2 sm:$0x7]
    %4358 = vst [vmem:[#allocation4 + $0xdc] sm:$0xff] %v4355
    %4359 = vst [vmem:[#allocation4 + $0xe4] sm:$0x7] %v4357
    %s4360 = scalar_lea.vmem [#allocation3], 1056
    %v4361 = vld [vmem:[%s4360] ss:$2 sm:$0xff]
    %s4362 = scalar_lea.vmem [#allocation3], 1072
    %v4363 = vld [vmem:[%s4362] ss:$2 sm:$0x7]
    %4364 = vst [vmem:[#allocation4 + $0xe7] sm:$0xff] %v4361
    %4365 = vst [vmem:[#allocation4 + $0xef] sm:$0x7] %v4363
    %4366 = vst [vmem:[#allocation4 + $0xf2] sm:$0xff] 0.0
    %4367 = vst [vmem:[#allocation4 + $0xfa] sm:$0xff] 0.0
    %4368 = vst [vmem:[#allocation4 + $0x102] sm:$0xff] 0.0
    %4369 = vst [vmem:[#allocation4 + $0x10a] sm:$0x3f] 0.0
    %v4370 = vld [vmem:[#allocation4] sm:$0xff]
    %v4371 = vld [vmem:[#allocation4 + $0x8] sm:$0xff]
    %v4372 = vld [vmem:[#allocation4 + $0x10] sm:$0xff]
    %v4373 = vld [vmem:[#allocation4 + $0x18] sm:$0xff]
    %v4374 = vld [vmem:[#allocation4 + $0x20] sm:$0xff]
    %v4375 = vld [vmem:[#allocation4 + $0x28] sm:$0xff]
    %v4376 = vld [vmem:[#allocation4 + $0x30] sm:$0xff]
    %v4377 = vld [vmem:[#allocation4 + $0x38] sm:$0xff]
    %v4378 = vld [vmem:[#allocation4 + $0x40] sm:$0xff]
    %v4379 = vld [vmem:[#allocation4 + $0x48] sm:$0xff]
    %v4380 = vld [vmem:[#allocation4 + $0x50] sm:$0xff]
    %v4381 = vld [vmem:[#allocation4 + $0x58] sm:$0xff]
    %v4382 = vld [vmem:[#allocation4 + $0x60] sm:$0xff]
    %v4383 = vld [vmem:[#allocation4 + $0x68] sm:$0xff]
    %v4384 = vld [vmem:[#allocation4 + $0x70] sm:$0xff]
    %v4385 = vld [vmem:[#allocation4 + $0x78] sm:$0xff]
    %v4386 = vld [vmem:[#allocation4 + $0x80] sm:$0xff]
    %v4387 = vld [vmem:[#allocation4 + $0x88] sm:$0xff]
    %v4388 = vld [vmem:[#allocation4 + $0x90] sm:$0xff]
    %v4389 = vld [vmem:[#allocation4 + $0x98] sm:$0xff]
    %v4390 = vld [vmem:[#allocation4 + $0xa0] sm:$0xff]
    %v4391 = vld [vmem:[#allocation4 + $0xa8] sm:$0xff]
    %v4392 = vld [vmem:[#allocation4 + $0xb0] sm:$0xff]
    %v4393 = vld [vmem:[#allocation4 + $0xb8] sm:$0xff]
    %v4394 = vld [vmem:[#allocation4 + $0xc0] sm:$0xff]
    %v4395 = vld [vmem:[#allocation4 + $0xc8] sm:$0xff]
    %v4396 = vld [vmem:[#allocation4 + $0xd0] sm:$0xff]
    %v4397 = vld [vmem:[#allocation4 + $0xd8] sm:$0xff]
    %v4398 = vld [vmem:[#allocation4 + $0xe0] sm:$0xff]
    %v4399 = vld [vmem:[#allocation4 + $0xe8] sm:$0xff]
    %v4400 = vld [vmem:[#allocation4 + $0xf0] sm:$0x3]
    %v4401 = vpack.c.bf16 %v4371, %v4370
    %v4402 = vpack.c.bf16 %v4373, %v4372
    %v4403 = vpack.c.bf16 %v4375, %v4374
    %v4404 = vpack.c.bf16 %v4377, %v4376
    %v4405 = vpack.c.bf16 %v4379, %v4378
    %v4406 = vpack.c.bf16 %v4381, %v4380
    %v4407 = vpack.c.bf16 %v4383, %v4382
    %v4408 = vpack.c.bf16 %v4385, %v4384
    %v4409 = vpack.c.bf16 %v4387, %v4386
    %v4410 = vpack.c.bf16 %v4389, %v4388
    %v4411 = vpack.c.bf16 %v4391, %v4390
    %v4412 = vpack.c.bf16 %v4393, %v4392
    %v4413 = vpack.c.bf16 %v4395, %v4394
    %v4414 = vpack.c.bf16 %v4397, %v4396
    %v4415 = vpack.c.bf16 %v4399, %v4398
    %v4416 = vpack.c.bf16 %v4400, %v4400
    %v4417 = vld [vmem:[%s4] sm:$0xf]
    %v4418 = vld [vmem:[%s4 + $0x4] sm:$0xf]
    %v4419 = vld [vmem:[%s4 + $0x8] sm:$0xf]
    %v4420 = vld [vmem:[%s4 + $0xc] sm:$0xf]
    %v4421 = vld [vmem:[%s4 + $0x10] sm:$0xf]
    %v4422 = vld [vmem:[%s4 + $0x14] sm:$0xf]
    %v4423 = vld [vmem:[%s4 + $0x18] sm:$0xf]
    %v4424 = vld [vmem:[%s4 + $0x1c] sm:$0xf]
    %v4425 = vld [vmem:[%s4 + $0x20] sm:$0xf]
    %v4426 = vld [vmem:[%s4 + $0x24] sm:$0xf]
    %v4427 = vld [vmem:[%s4 + $0x28] sm:$0xf]
    %v4428 = vld [vmem:[%s4 + $0x2c] sm:$0xf]
    %v4429 = vld [vmem:[%s4 + $0x30] sm:$0xf]
    %v4430 = vld [vmem:[%s4 + $0x34] sm:$0xf]
    %v4431 = vld [vmem:[%s4 + $0x38] sm:$0xf]
    %v4432 = vld [vmem:[%s4 + $0x3c] sm:$0xf]
    %v4433 = vld [vmem:[#allocation4 + $0x1] sm:$0xff]
    %v4434 = vld [vmem:[#allocation4 + $0x9] sm:$0xff]
    %v4435 = vld [vmem:[#allocation4 + $0x11] sm:$0xff]
    %v4436 = vld [vmem:[#allocation4 + $0x19] sm:$0xff]
    %v4437 = vld [vmem:[#allocation4 + $0x21] sm:$0xff]
    %v4438 = vld [vmem:[#allocation4 + $0x29] sm:$0xff]
    %v4439 = vld [vmem:[#allocation4 + $0x31] sm:$0xff]
    %v4440 = vld [vmem:[#allocation4 + $0x39] sm:$0xff]
    %v4441 = vld [vmem:[#allocation4 + $0x41] sm:$0xff]
    %v4442 = vld [vmem:[#allocation4 + $0x49] sm:$0xff]
    %v4443 = vld [vmem:[#allocation4 + $0x51] sm:$0xff]
    %v4444 = vld [vmem:[#allocation4 + $0x59] sm:$0xff]
    %v4445 = vld [vmem:[#allocation4 + $0x61] sm:$0xff]
    %v4446 = vld [vmem:[#allocation4 + $0x69] sm:$0xff]
    %v4447 = vld [vmem:[#allocation4 + $0x71] sm:$0xff]
    %v4448 = vld [vmem:[#allocation4 + $0x79] sm:$0xff]
    %v4449 = vld [vmem:[#allocation4 + $0x81] sm:$0xff]
    %v4450 = vld [vmem:[#allocation4 + $0x89] sm:$0xff]
    %v4451 = vld [vmem:[#allocation4 + $0x91] sm:$0xff]
    %v4452 = vld [vmem:[#allocation4 + $0x99] sm:$0xff]
    %v4453 = vld [vmem:[#allocation4 + $0xa1] sm:$0xff]
    %v4454 = vld [vmem:[#allocation4 + $0xa9] sm:$0xff]
    %v4455 = vld [vmem:[#allocation4 + $0xb1] sm:$0xff]
    %v4456 = vld [vmem:[#allocation4 + $0xb9] sm:$0xff]
    %v4457 = vld [vmem:[#allocation4 + $0xc1] sm:$0xff]
    %v4458 = vld [vmem:[#allocation4 + $0xc9] sm:$0xff]
    %v4459 = vld [vmem:[#allocation4 + $0xd1] sm:$0xff]
    %v4460 = vld [vmem:[#allocation4 + $0xd9] sm:$0xff]
    %v4461 = vld [vmem:[#allocation4 + $0xe1] sm:$0xff]
    %v4462 = vld [vmem:[#allocation4 + $0xe9] sm:$0xff]
    %v4463 = vld [vmem:[#allocation4 + $0xf1] sm:$0x3]
    %v4464 = vpack.c.bf16 %v4434, %v4433
    %v4465 = vpack.c.bf16 %v4436, %v4435
    %v4466 = vpack.c.bf16 %v4438, %v4437
    %v4467 = vpack.c.bf16 %v4440, %v4439
    %v4468 = vpack.c.bf16 %v4442, %v4441
    %v4469 = vpack.c.bf16 %v4444, %v4443
    %v4470 = vpack.c.bf16 %v4446, %v4445
    %v4471 = vpack.c.bf16 %v4448, %v4447
    %v4472 = vpack.c.bf16 %v4450, %v4449
    %v4473 = vpack.c.bf16 %v4452, %v4451
    %v4474 = vpack.c.bf16 %v4454, %v4453
    %v4475 = vpack.c.bf16 %v4456, %v4455
    %v4476 = vpack.c.bf16 %v4458, %v4457
    %v4477 = vpack.c.bf16 %v4460, %v4459
    %v4478 = vpack.c.bf16 %v4462, %v4461
    %v4479 = vpack.c.bf16 %v4463, %v4463
    %v4480 = vld [vmem:[%s4 + $0x40] sm:$0xf]
    %v4481 = vld [vmem:[%s4 + $0x44] sm:$0xf]
    %v4482 = vld [vmem:[%s4 + $0x48] sm:$0xf]
    %v4483 = vld [vmem:[%s4 + $0x4c] sm:$0xf]
    %v4484 = vld [vmem:[%s4 + $0x50] sm:$0xf]
    %v4485 = vld [vmem:[%s4 + $0x54] sm:$0xf]
    %v4486 = vld [vmem:[%s4 + $0x58] sm:$0xf]
    %v4487 = vld [vmem:[%s4 + $0x5c] sm:$0xf]
    %v4488 = vld [vmem:[%s4 + $0x60] sm:$0xf]
    %v4489 = vld [vmem:[%s4 + $0x64] sm:$0xf]
    %v4490 = vld [vmem:[%s4 + $0x68] sm:$0xf]
    %v4491 = vld [vmem:[%s4 + $0x6c] sm:$0xf]
    %v4492 = vld [vmem:[%s4 + $0x70] sm:$0xf]
    %v4493 = vld [vmem:[%s4 + $0x74] sm:$0xf]
    %v4494 = vld [vmem:[%s4 + $0x78] sm:$0xf]
    %v4495 = vld [vmem:[%s4 + $0x7c] sm:$0xf]
    %v4512 = vunpack.c.l.b16 %v4480
    %v4513 = vunpack.c.l.b16 %v4481
    %v4514 = vunpack.c.l.b16 %v4482
    %v4515 = vunpack.c.l.b16 %v4483
    %v4516 = vunpack.c.l.b16 %v4484
    %v4517 = vunpack.c.l.b16 %v4485
    %v4518 = vunpack.c.l.b16 %v4486
    %v4519 = vunpack.c.l.b16 %v4487
    %v4520 = vunpack.c.l.b16 %v4488
    %v4521 = vunpack.c.l.b16 %v4489
    %v4522 = vunpack.c.l.b16 %v4490
    %v4523 = vunpack.c.l.b16 %v4491
    %v4524 = vunpack.c.l.b16 %v4492
    %v4525 = vunpack.c.l.b16 %v4493
    %v4526 = vunpack.c.l.b16 %v4494
    %v4527 = vunpack.c.l.b16 %v4495
    %v4528 = vpack.c.b16 %v4513, %v4512
    %v4529 = vpack.c.b16 %v4515, %v4514
    %v4530 = vpack.c.b16 %v4517, %v4516
    %v4531 = vpack.c.b16 %v4519, %v4518
    %v4532 = vpack.c.b16 %v4521, %v4520
    %v4533 = vpack.c.b16 %v4523, %v4522
    %v4534 = vpack.c.b16 %v4525, %v4524
    %v4535 = vpack.c.b16 %v4527, %v4526
    %4544 = vmatpush.bf16.msra.mxu0 %v4535
    %4545 = vmatpush.bf16.msra.mxu0 %v4534
    %4546 = vmatpush.bf16.msra.mxu0 %v4533
    %4547 = vmatpush.bf16.msra.mxu0 %v4532
    %4548 = vmatpush.bf16.msra.mxu0 %v4531
    %4549 = vmatpush.bf16.msra.mxu0 %v4530
    %4550 = vmatpush.bf16.msra.mxu0 %v4529
    %4551 = vmatpush.bf16.msra.mxu0 %v4528
    %4552 = vmatmul.bf16.gmra.mxu0 %v4464
    %v4553 = vpop.f32.mrf.mxu0
    %v4554 = vadd.f32 0.0, %v4553
    %v4555 = vpop.f32.mrf.mxu0
    %v4556 = vadd.f32 0.0, %v4555
    %4557 = vmatmul.bf16.gmra.mxu0 %v4465
    %v4558 = vpop.f32.mrf.mxu0
    %v4559 = vadd.f32 0.0, %v4558
    %v4560 = vpop.f32.mrf.mxu0
    %v4561 = vadd.f32 0.0, %v4560
    %4562 = vmatmul.bf16.gmra.mxu0 %v4466
    %v4563 = vpop.f32.mrf.mxu0
    %v4564 = vadd.f32 0.0, %v4563
    %v4565 = vpop.f32.mrf.mxu0
    %v4566 = vadd.f32 0.0, %v4565
    %4567 = vmatmul.bf16.gmra.mxu0 %v4467
    %v4568 = vpop.f32.mrf.mxu0
    %v4569 = vadd.f32 0.0, %v4568
    %v4570 = vpop.f32.mrf.mxu0
    %v4571 = vadd.f32 0.0, %v4570
    %4572 = vmatmul.bf16.gmra.mxu0 %v4468
    %v4573 = vpop.f32.mrf.mxu0
    %v4574 = vadd.f32 0.0, %v4573
    %v4575 = vpop.f32.mrf.mxu0
    %v4576 = vadd.f32 0.0, %v4575
    %4577 = vmatmul.bf16.gmra.mxu0 %v4469
    %v4578 = vpop.f32.mrf.mxu0
    %v4579 = vadd.f32 0.0, %v4578
    %v4580 = vpop.f32.mrf.mxu0
    %v4581 = vadd.f32 0.0, %v4580
    %4582 = vmatmul.bf16.gmra.mxu0 %v4470
    %v4583 = vpop.f32.mrf.mxu0
    %v4584 = vadd.f32 0.0, %v4583
    %v4585 = vpop.f32.mrf.mxu0
    %v4586 = vadd.f32 0.0, %v4585
    %4587 = vmatmul.bf16.gmra.mxu0 %v4471
    %v4588 = vpop.f32.mrf.mxu0
    %v4589 = vadd.f32 0.0, %v4588
    %v4590 = vpop.f32.mrf.mxu0
    %v4591 = vadd.f32 0.0, %v4590
    %4592 = vmatmul.bf16.gmra.mxu0 %v4472
    %v4593 = vpop.f32.mrf.mxu0
    %v4594 = vadd.f32 0.0, %v4593
    %v4595 = vpop.f32.mrf.mxu0
    %v4596 = vadd.f32 0.0, %v4595
    %4597 = vmatmul.bf16.gmra.mxu0 %v4473
    %v4598 = vpop.f32.mrf.mxu0
    %v4599 = vadd.f32 0.0, %v4598
    %v4600 = vpop.f32.mrf.mxu0
    %v4601 = vadd.f32 0.0, %v4600
    %4602 = vmatmul.bf16.gmra.mxu0 %v4474
    %v4603 = vpop.f32.mrf.mxu0
    %v4604 = vadd.f32 0.0, %v4603
    %v4605 = vpop.f32.mrf.mxu0
    %v4606 = vadd.f32 0.0, %v4605
    %4607 = vmatmul.bf16.gmra.mxu0 %v4475
    %v4608 = vpop.f32.mrf.mxu0
    %v4609 = vadd.f32 0.0, %v4608
    %v4610 = vpop.f32.mrf.mxu0
    %v4611 = vadd.f32 0.0, %v4610
    %4612 = vmatmul.bf16.gmra.mxu0 %v4476
    %v4613 = vpop.f32.mrf.mxu0
    %v4614 = vadd.f32 0.0, %v4613
    %v4615 = vpop.f32.mrf.mxu0
    %v4616 = vadd.f32 0.0, %v4615
    %4617 = vmatmul.bf16.gmra.mxu0 %v4477
    %v4618 = vpop.f32.mrf.mxu0
    %v4619 = vadd.f32 0.0, %v4618
    %v4620 = vpop.f32.mrf.mxu0
    %v4621 = vadd.f32 0.0, %v4620
    %4622 = vmatmul.bf16.gmra.mxu0 %v4478
    %v4623 = vpop.f32.mrf.mxu0
    %v4624 = vadd.f32 0.0, %v4623
    %v4625 = vpop.f32.mrf.mxu0
    %v4626 = vadd.f32 0.0, %v4625
    %4627 = vmatmul.bf16.gmra.mxu0 %v4479
    %v4628 = vpop.f32.mrf.mxu0
    %v4629 = vadd.f32 0.0, %v4628
    %v4630 = vpop.f32.mrf.mxu0
    %4631 = vdwg.mxu0
    %v4648 = vunpack.c.l.b16 %v4417
    %v4649 = vunpack.c.l.b16 %v4418
    %v4650 = vunpack.c.l.b16 %v4419
    %v4651 = vunpack.c.l.b16 %v4420
    %v4652 = vunpack.c.l.b16 %v4421
    %v4653 = vunpack.c.l.b16 %v4422
    %v4654 = vunpack.c.l.b16 %v4423
    %v4655 = vunpack.c.l.b16 %v4424
    %v4656 = vunpack.c.l.b16 %v4425
    %v4657 = vunpack.c.l.b16 %v4426
    %v4658 = vunpack.c.l.b16 %v4427
    %v4659 = vunpack.c.l.b16 %v4428
    %v4660 = vunpack.c.l.b16 %v4429
    %v4661 = vunpack.c.l.b16 %v4430
    %v4662 = vunpack.c.l.b16 %v4431
    %v4663 = vunpack.c.l.b16 %v4432
    %v4664 = vpack.c.b16 %v4649, %v4648
    %v4665 = vpack.c.b16 %v4651, %v4650
    %v4666 = vpack.c.b16 %v4653, %v4652
    %v4667 = vpack.c.b16 %v4655, %v4654
    %v4668 = vpack.c.b16 %v4657, %v4656
    %v4669 = vpack.c.b16 %v4659, %v4658
    %v4670 = vpack.c.b16 %v4661, %v4660
    %v4671 = vpack.c.b16 %v4663, %v4662
    %4680 = vmatpush.bf16.msra.mxu0 %v4671
    %4681 = vmatpush.bf16.msra.mxu0 %v4670
    %4682 = vmatpush.bf16.msra.mxu0 %v4669
    %4683 = vmatpush.bf16.msra.mxu0 %v4668
    %4684 = vmatpush.bf16.msra.mxu0 %v4667
    %4685 = vmatpush.bf16.msra.mxu0 %v4666
    %4686 = vmatpush.bf16.msra.mxu0 %v4665
    %4687 = vmatpush.bf16.msra.mxu0 %v4664
    %4688 = vmatmul.bf16.gmra.mxu0 %v4401
    %v4689 = vpop.f32.mrf.mxu0
    %v4690 = vadd.f32 %v4554, %v4689
    %v4691 = vpop.f32.mrf.mxu0
    %v4692 = vadd.f32 %v4556, %v4691
    %4693 = vmatmul.bf16.gmra.mxu0 %v4402
    %v4694 = vpop.f32.mrf.mxu0
    %v4695 = vadd.f32 %v4559, %v4694
    %v4696 = vpop.f32.mrf.mxu0
    %v4697 = vadd.f32 %v4561, %v4696
    %4698 = vmatmul.bf16.gmra.mxu0 %v4403
    %v4699 = vpop.f32.mrf.mxu0
    %v4700 = vadd.f32 %v4564, %v4699
    %v4701 = vpop.f32.mrf.mxu0
    %v4702 = vadd.f32 %v4566, %v4701
    %4703 = vmatmul.bf16.gmra.mxu0 %v4404
    %v4704 = vpop.f32.mrf.mxu0
    %v4705 = vadd.f32 %v4569, %v4704
    %v4706 = vpop.f32.mrf.mxu0
    %v4707 = vadd.f32 %v4571, %v4706
    %4708 = vmatmul.bf16.gmra.mxu0 %v4405
    %v4709 = vpop.f32.mrf.mxu0
    %v4710 = vadd.f32 %v4574, %v4709
    %v4711 = vpop.f32.mrf.mxu0
    %v4712 = vadd.f32 %v4576, %v4711
    %4713 = vmatmul.bf16.gmra.mxu0 %v4406
    %v4714 = vpop.f32.mrf.mxu0
    %v4715 = vadd.f32 %v4579, %v4714
    %v4716 = vpop.f32.mrf.mxu0
    %v4717 = vadd.f32 %v4581, %v4716
    %4718 = vmatmul.bf16.gmra.mxu0 %v4407
    %v4719 = vpop.f32.mrf.mxu0
    %v4720 = vadd.f32 %v4584, %v4719
    %v4721 = vpop.f32.mrf.mxu0
    %v4722 = vadd.f32 %v4586, %v4721
    %4723 = vmatmul.bf16.gmra.mxu0 %v4408
    %v4724 = vpop.f32.mrf.mxu0
    %v4725 = vadd.f32 %v4589, %v4724
    %v4726 = vpop.f32.mrf.mxu0
    %v4727 = vadd.f32 %v4591, %v4726
    %4728 = vmatmul.bf16.gmra.mxu0 %v4409
    %v4729 = vpop.f32.mrf.mxu0
    %v4730 = vadd.f32 %v4594, %v4729
    %v4731 = vpop.f32.mrf.mxu0
    %v4732 = vadd.f32 %v4596, %v4731
    %4733 = vmatmul.bf16.gmra.mxu0 %v4410
    %v4734 = vpop.f32.mrf.mxu0
    %v4735 = vadd.f32 %v4599, %v4734
    %v4736 = vpop.f32.mrf.mxu0
    %v4737 = vadd.f32 %v4601, %v4736
    %4738 = vmatmul.bf16.gmra.mxu0 %v4411
    %v4739 = vpop.f32.mrf.mxu0
    %v4740 = vadd.f32 %v4604, %v4739
    %v4741 = vpop.f32.mrf.mxu0
    %v4742 = vadd.f32 %v4606, %v4741
    %4743 = vmatmul.bf16.gmra.mxu0 %v4412
    %v4744 = vpop.f32.mrf.mxu0
    %v4745 = vadd.f32 %v4609, %v4744
    %v4746 = vpop.f32.mrf.mxu0
    %v4747 = vadd.f32 %v4611, %v4746
    %4748 = vmatmul.bf16.gmra.mxu0 %v4413
    %v4749 = vpop.f32.mrf.mxu0
    %v4750 = vadd.f32 %v4614, %v4749
    %v4751 = vpop.f32.mrf.mxu0
    %v4752 = vadd.f32 %v4616, %v4751
    %4753 = vmatmul.bf16.gmra.mxu0 %v4414
    %v4754 = vpop.f32.mrf.mxu0
    %v4755 = vadd.f32 %v4619, %v4754
    %v4756 = vpop.f32.mrf.mxu0
    %v4757 = vadd.f32 %v4621, %v4756
    %4758 = vmatmul.bf16.gmra.mxu0 %v4415
    %v4759 = vpop.f32.mrf.mxu0
    %v4760 = vadd.f32 %v4624, %v4759
    %v4761 = vpop.f32.mrf.mxu0
    %v4762 = vadd.f32 %v4626, %v4761
    %4763 = vmatmul.bf16.gmra.mxu0 %v4416
    %v4764 = vpop.f32.mrf.mxu0
    %v4765 = vadd.f32 %v4629, %v4764
    %v4766 = vpop.f32.mrf.mxu0
    %4767 = vdwg.mxu0
    %v4768 = vld [vmem:[#allocation4 + $0x2] sm:$0xff]
    %v4769 = vld [vmem:[#allocation4 + $0xa] sm:$0xff]
    %v4770 = vld [vmem:[#allocation4 + $0x12] sm:$0xff]
    %v4771 = vld [vmem:[#allocation4 + $0x1a] sm:$0xff]
    %v4772 = vld [vmem:[#allocation4 + $0x22] sm:$0xff]
    %v4773 = vld [vmem:[#allocation4 + $0x2a] sm:$0xff]
    %v4774 = vld [vmem:[#allocation4 + $0x32] sm:$0xff]
    %v4775 = vld [vmem:[#allocation4 + $0x3a] sm:$0xff]
    %v4776 = vld [vmem:[#allocation4 + $0x42] sm:$0xff]
    %v4777 = vld [vmem:[#allocation4 + $0x4a] sm:$0xff]
    %v4778 = vld [vmem:[#allocation4 + $0x52] sm:$0xff]
    %v4779 = vld [vmem:[#allocation4 + $0x5a] sm:$0xff]
    %v4780 = vld [vmem:[#allocation4 + $0x62] sm:$0xff]
    %v4781 = vld [vmem:[#allocation4 + $0x6a] sm:$0xff]
    %v4782 = vld [vmem:[#allocation4 + $0x72] sm:$0xff]
    %v4783 = vld [vmem:[#allocation4 + $0x7a] sm:$0xff]
    %v4784 = vld [vmem:[#allocation4 + $0x82] sm:$0xff]
    %v4785 = vld [vmem:[#allocation4 + $0x8a] sm:$0xff]
    %v4786 = vld [vmem:[#allocation4 + $0x92] sm:$0xff]
    %v4787 = vld [vmem:[#allocation4 + $0x9a] sm:$0xff]
    %v4788 = vld [vmem:[#allocation4 + $0xa2] sm:$0xff]
    %v4789 = vld [vmem:[#allocation4 + $0xaa] sm:$0xff]
    %v4790 = vld [vmem:[#allocation4 + $0xb2] sm:$0xff]
    %v4791 = vld [vmem:[#allocation4 + $0xba] sm:$0xff]
    %v4792 = vld [vmem:[#allocation4 + $0xc2] sm:$0xff]
    %v4793 = vld [vmem:[#allocation4 + $0xca] sm:$0xff]
    %v4794 = vld [vmem:[#allocation4 + $0xd2] sm:$0xff]
    %v4795 = vld [vmem:[#allocation4 + $0xda] sm:$0xff]
    %v4796 = vld [vmem:[#allocation4 + $0xe2] sm:$0xff]
    %v4797 = vld [vmem:[#allocation4 + $0xea] sm:$0xff]
    %v4798 = vld [vmem:[#allocation4 + $0xf2] sm:$0x3]
    %v4799 = vpack.c.bf16 %v4769, %v4768
    %v4800 = vpack.c.bf16 %v4771, %v4770
    %v4801 = vpack.c.bf16 %v4773, %v4772
    %v4802 = vpack.c.bf16 %v4775, %v4774
    %v4803 = vpack.c.bf16 %v4777, %v4776
    %v4804 = vpack.c.bf16 %v4779, %v4778
    %v4805 = vpack.c.bf16 %v4781, %v4780
    %v4806 = vpack.c.bf16 %v4783, %v4782
    %v4807 = vpack.c.bf16 %v4785, %v4784
    %v4808 = vpack.c.bf16 %v4787, %v4786
    %v4809 = vpack.c.bf16 %v4789, %v4788
    %v4810 = vpack.c.bf16 %v4791, %v4790
    %v4811 = vpack.c.bf16 %v4793, %v4792
    %v4812 = vpack.c.bf16 %v4795, %v4794
    %v4813 = vpack.c.bf16 %v4797, %v4796
    %v4814 = vpack.c.bf16 %v4798, %v4798
    %v4815 = vld [vmem:[%s4 + $0x80] sm:$0xf]
    %v4816 = vld [vmem:[%s4 + $0x84] sm:$0xf]
    %v4817 = vld [vmem:[%s4 + $0x88] sm:$0xf]
    %v4818 = vld [vmem:[%s4 + $0x8c] sm:$0xf]
    %v4819 = vld [vmem:[%s4 + $0x90] sm:$0xf]
    %v4820 = vld [vmem:[%s4 + $0x94] sm:$0xf]
    %v4821 = vld [vmem:[%s4 + $0x98] sm:$0xf]
    %v4822 = vld [vmem:[%s4 + $0x9c] sm:$0xf]
    %v4823 = vld [vmem:[%s4 + $0xa0] sm:$0xf]
    %v4824 = vld [vmem:[%s4 + $0xa4] sm:$0xf]
    %v4825 = vld [vmem:[%s4 + $0xa8] sm:$0xf]
    %v4826 = vld [vmem:[%s4 + $0xac] sm:$0xf]
    %v4827 = vld [vmem:[%s4 + $0xb0] sm:$0xf]
    %v4828 = vld [vmem:[%s4 + $0xb4] sm:$0xf]
    %v4829 = vld [vmem:[%s4 + $0xb8] sm:$0xf]
    %v4830 = vld [vmem:[%s4 + $0xbc] sm:$0xf]
    %v4847 = vunpack.c.l.b16 %v4815
    %v4848 = vunpack.c.l.b16 %v4816
    %v4849 = vunpack.c.l.b16 %v4817
    %v4850 = vunpack.c.l.b16 %v4818
    %v4851 = vunpack.c.l.b16 %v4819
    %v4852 = vunpack.c.l.b16 %v4820
    %v4853 = vunpack.c.l.b16 %v4821
    %v4854 = vunpack.c.l.b16 %v4822
    %v4855 = vunpack.c.l.b16 %v4823
    %v4856 = vunpack.c.l.b16 %v4824
    %v4857 = vunpack.c.l.b16 %v4825
    %v4858 = vunpack.c.l.b16 %v4826
    %v4859 = vunpack.c.l.b16 %v4827
    %v4860 = vunpack.c.l.b16 %v4828
    %v4861 = vunpack.c.l.b16 %v4829
    %v4862 = vunpack.c.l.b16 %v4830
    %v4863 = vpack.c.b16 %v4848, %v4847
    %v4864 = vpack.c.b16 %v4850, %v4849
    %v4865 = vpack.c.b16 %v4852, %v4851
    %v4866 = vpack.c.b16 %v4854, %v4853
    %v4867 = vpack.c.b16 %v4856, %v4855
    %v4868 = vpack.c.b16 %v4858, %v4857
    %v4869 = vpack.c.b16 %v4860, %v4859
    %v4870 = vpack.c.b16 %v4862, %v4861
    %4879 = vmatpush.bf16.msra.mxu0 %v4870
    %4880 = vmatpush.bf16.msra.mxu0 %v4869
    %4881 = vmatpush.bf16.msra.mxu0 %v4868
    %4882 = vmatpush.bf16.msra.mxu0 %v4867
    %4883 = vmatpush.bf16.msra.mxu0 %v4866
    %4884 = vmatpush.bf16.msra.mxu0 %v4865
    %4885 = vmatpush.bf16.msra.mxu0 %v4864
    %4886 = vmatpush.bf16.msra.mxu0 %v4863
    %4887 = vmatmul.bf16.gmra.mxu0 %v4799
    %v4888 = vpop.f32.mrf.mxu0
    %v4889 = vadd.f32 0.0, %v4888
    %v4890 = vpop.f32.mrf.mxu0
    %v4891 = vadd.f32 0.0, %v4890
    %4892 = vmatmul.bf16.gmra.mxu0 %v4800
    %v4893 = vpop.f32.mrf.mxu0
    %v4894 = vadd.f32 0.0, %v4893
    %v4895 = vpop.f32.mrf.mxu0
    %v4896 = vadd.f32 0.0, %v4895
    %4897 = vmatmul.bf16.gmra.mxu0 %v4801
    %v4898 = vpop.f32.mrf.mxu0
    %v4899 = vadd.f32 0.0, %v4898
    %v4900 = vpop.f32.mrf.mxu0
    %v4901 = vadd.f32 0.0, %v4900
    %4902 = vmatmul.bf16.gmra.mxu0 %v4802
    %v4903 = vpop.f32.mrf.mxu0
    %v4904 = vadd.f32 0.0, %v4903
    %v4905 = vpop.f32.mrf.mxu0
    %v4906 = vadd.f32 0.0, %v4905
    %4907 = vmatmul.bf16.gmra.mxu0 %v4803
    %v4908 = vpop.f32.mrf.mxu0
    %v4909 = vadd.f32 0.0, %v4908
    %v4910 = vpop.f32.mrf.mxu0
    %v4911 = vadd.f32 0.0, %v4910
    %4912 = vmatmul.bf16.gmra.mxu0 %v4804
    %v4913 = vpop.f32.mrf.mxu0
    %v4914 = vadd.f32 0.0, %v4913
    %v4915 = vpop.f32.mrf.mxu0
    %v4916 = vadd.f32 0.0, %v4915
    %4917 = vmatmul.bf16.gmra.mxu0 %v4805
    %v4918 = vpop.f32.mrf.mxu0
    %v4919 = vadd.f32 0.0, %v4918
    %v4920 = vpop.f32.mrf.mxu0
    %v4921 = vadd.f32 0.0, %v4920
    %4922 = vmatmul.bf16.gmra.mxu0 %v4806
    %v4923 = vpop.f32.mrf.mxu0
    %v4924 = vadd.f32 0.0, %v4923
    %v4925 = vpop.f32.mrf.mxu0
    %v4926 = vadd.f32 0.0, %v4925
    %4927 = vmatmul.bf16.gmra.mxu0 %v4807
    %v4928 = vpop.f32.mrf.mxu0
    %v4929 = vadd.f32 0.0, %v4928
    %v4930 = vpop.f32.mrf.mxu0
    %v4931 = vadd.f32 0.0, %v4930
    %4932 = vmatmul.bf16.gmra.mxu0 %v4808
    %v4933 = vpop.f32.mrf.mxu0
    %v4934 = vadd.f32 0.0, %v4933
    %v4935 = vpop.f32.mrf.mxu0
    %v4936 = vadd.f32 0.0, %v4935
    %4937 = vmatmul.bf16.gmra.mxu0 %v4809
    %v4938 = vpop.f32.mrf.mxu0
    %v4939 = vadd.f32 0.0, %v4938
    %v4940 = vpop.f32.mrf.mxu0
    %v4941 = vadd.f32 0.0, %v4940
    %4942 = vmatmul.bf16.gmra.mxu0 %v4810
    %v4943 = vpop.f32.mrf.mxu0
    %v4944 = vadd.f32 0.0, %v4943
    %v4945 = vpop.f32.mrf.mxu0
    %v4946 = vadd.f32 0.0, %v4945
    %4947 = vmatmul.bf16.gmra.mxu0 %v4811
    %v4948 = vpop.f32.mrf.mxu0
    %v4949 = vadd.f32 0.0, %v4948
    %v4950 = vpop.f32.mrf.mxu0
    %v4951 = vadd.f32 0.0, %v4950
    %4952 = vmatmul.bf16.gmra.mxu0 %v4812
    %v4953 = vpop.f32.mrf.mxu0
    %v4954 = vadd.f32 0.0, %v4953
    %v4955 = vpop.f32.mrf.mxu0
    %v4956 = vadd.f32 0.0, %v4955
    %4957 = vmatmul.bf16.gmra.mxu0 %v4813
    %v4958 = vpop.f32.mrf.mxu0
    %v4959 = vadd.f32 0.0, %v4958
    %v4960 = vpop.f32.mrf.mxu0
    %v4961 = vadd.f32 0.0, %v4960
    %4962 = vmatmul.bf16.gmra.mxu0 %v4814
    %v4963 = vpop.f32.mrf.mxu0
    %v4964 = vadd.f32 0.0, %v4963
    %v4965 = vpop.f32.mrf.mxu0
    %4966 = vdwg.mxu0
    %v4967 = vadd.f32 %v4690, %v4889
    %v4968 = vadd.f32 %v4692, %v4891
    %v4969 = vadd.f32 %v4695, %v4894
    %v4970 = vadd.f32 %v4697, %v4896
    %v4971 = vadd.f32 %v4700, %v4899
    %v4972 = vadd.f32 %v4702, %v4901
    %v4973 = vadd.f32 %v4705, %v4904
    %v4974 = vadd.f32 %v4707, %v4906
    %v4975 = vadd.f32 %v4710, %v4909
    %v4976 = vadd.f32 %v4712, %v4911
    %v4977 = vadd.f32 %v4715, %v4914
    %v4978 = vadd.f32 %v4717, %v4916
    %v4979 = vadd.f32 %v4720, %v4919
    %v4980 = vadd.f32 %v4722, %v4921
    %v4981 = vadd.f32 %v4725, %v4924
    %v4982 = vadd.f32 %v4727, %v4926
    %v4983 = vadd.f32 %v4730, %v4929
    %v4984 = vadd.f32 %v4732, %v4931
    %v4985 = vadd.f32 %v4735, %v4934
    %v4986 = vadd.f32 %v4737, %v4936
    %v4987 = vadd.f32 %v4740, %v4939
    %v4988 = vadd.f32 %v4742, %v4941
    %v4989 = vadd.f32 %v4745, %v4944
    %v4990 = vadd.f32 %v4747, %v4946
    %v4991 = vadd.f32 %v4750, %v4949
    %v4992 = vadd.f32 %v4752, %v4951
    %v4993 = vadd.f32 %v4755, %v4954
    %v4994 = vadd.f32 %v4757, %v4956
    %v4995 = vadd.f32 %v4760, %v4959
    %v4996 = vadd.f32 %v4762, %v4961
    %v4997 = vadd.f32 %v4765, %v4964
    %v4998 = vld [vmem:[#allocation4 + $0xb] sm:$0xff]
    %v4999 = vld [vmem:[#allocation4 + $0x13] sm:$0xff]
    %v5000 = vld [vmem:[#allocation4 + $0x1b] sm:$0xff]
    %v5001 = vld [vmem:[#allocation4 + $0x23] sm:$0xff]
    %v5002 = vld [vmem:[#allocation4 + $0x2b] sm:$0xff]
    %v5003 = vld [vmem:[#allocation4 + $0x33] sm:$0xff]
    %v5004 = vld [vmem:[#allocation4 + $0x3b] sm:$0xff]
    %v5005 = vld [vmem:[#allocation4 + $0x43] sm:$0xff]
    %v5006 = vld [vmem:[#allocation4 + $0x4b] sm:$0xff]
    %v5007 = vld [vmem:[#allocation4 + $0x53] sm:$0xff]
    %v5008 = vld [vmem:[#allocation4 + $0x5b] sm:$0xff]
    %v5009 = vld [vmem:[#allocation4 + $0x63] sm:$0xff]
    %v5010 = vld [vmem:[#allocation4 + $0x6b] sm:$0xff]
    %v5011 = vld [vmem:[#allocation4 + $0x73] sm:$0xff]
    %v5012 = vld [vmem:[#allocation4 + $0x7b] sm:$0xff]
    %v5013 = vld [vmem:[#allocation4 + $0x83] sm:$0xff]
    %v5014 = vld [vmem:[#allocation4 + $0x8b] sm:$0xff]
    %v5015 = vld [vmem:[#allocation4 + $0x93] sm:$0xff]
    %v5016 = vld [vmem:[#allocation4 + $0x9b] sm:$0xff]
    %v5017 = vld [vmem:[#allocation4 + $0xa3] sm:$0xff]
    %v5018 = vld [vmem:[#allocation4 + $0xab] sm:$0xff]
    %v5019 = vld [vmem:[#allocation4 + $0xb3] sm:$0xff]
    %v5020 = vld [vmem:[#allocation4 + $0xbb] sm:$0xff]
    %v5021 = vld [vmem:[#allocation4 + $0xc3] sm:$0xff]
    %v5022 = vld [vmem:[#allocation4 + $0xcb] sm:$0xff]
    %v5023 = vld [vmem:[#allocation4 + $0xd3] sm:$0xff]
    %v5024 = vld [vmem:[#allocation4 + $0xdb] sm:$0xff]
    %v5025 = vld [vmem:[#allocation4 + $0xe3] sm:$0xff]
    %v5026 = vld [vmem:[#allocation4 + $0xeb] sm:$0xff]
    %v5027 = vld [vmem:[#allocation4 + $0xf3] sm:$0xff]
    %v5028 = vld [vmem:[#allocation4 + $0xfb] sm:$0x3]
    %v5029 = vpack.c.bf16 %v4999, %v4998
    %v5030 = vpack.c.bf16 %v5001, %v5000
    %v5031 = vpack.c.bf16 %v5003, %v5002
    %v5032 = vpack.c.bf16 %v5005, %v5004
    %v5033 = vpack.c.bf16 %v5007, %v5006
    %v5034 = vpack.c.bf16 %v5009, %v5008
    %v5035 = vpack.c.bf16 %v5011, %v5010
    %v5036 = vpack.c.bf16 %v5013, %v5012
    %v5037 = vpack.c.bf16 %v5015, %v5014
    %v5038 = vpack.c.bf16 %v5017, %v5016
    %v5039 = vpack.c.bf16 %v5019, %v5018
    %v5040 = vpack.c.bf16 %v5021, %v5020
    %v5041 = vpack.c.bf16 %v5023, %v5022
    %v5042 = vpack.c.bf16 %v5025, %v5024
    %v5043 = vpack.c.bf16 %v5027, %v5026
    %v5044 = vpack.c.bf16 %v5028, %v5028
    %v5045 = vld [vmem:[%s4 + $0xc0] sm:$0xf]
    %v5046 = vld [vmem:[%s4 + $0xc4] sm:$0xf]
    %v5047 = vld [vmem:[%s4 + $0xc8] sm:$0xf]
    %v5048 = vld [vmem:[%s4 + $0xcc] sm:$0xf]
    %v5049 = vld [vmem:[%s4 + $0xd0] sm:$0xf]
    %v5050 = vld [vmem:[%s4 + $0xd4] sm:$0xf]
    %v5051 = vld [vmem:[%s4 + $0xd8] sm:$0xf]
    %v5052 = vld [vmem:[%s4 + $0xdc] sm:$0xf]
    %v5053 = vld [vmem:[%s4 + $0xe0] sm:$0xf]
    %v5054 = vld [vmem:[%s4 + $0xe4] sm:$0xf]
    %v5055 = vld [vmem:[%s4 + $0xe8] sm:$0xf]
    %v5056 = vld [vmem:[%s4 + $0xec] sm:$0xf]
    %v5057 = vld [vmem:[%s4 + $0xf0] sm:$0xf]
    %v5058 = vld [vmem:[%s4 + $0xf4] sm:$0xf]
    %v5059 = vld [vmem:[%s4 + $0xf8] sm:$0xf]
    %v5060 = vld [vmem:[%s4 + $0xfc] sm:$0xf]
    %v5077 = vunpack.c.l.b16 %v5045
    %v5078 = vunpack.c.l.b16 %v5046
    %v5079 = vunpack.c.l.b16 %v5047
    %v5080 = vunpack.c.l.b16 %v5048
    %v5081 = vunpack.c.l.b16 %v5049
    %v5082 = vunpack.c.l.b16 %v5050
    %v5083 = vunpack.c.l.b16 %v5051
    %v5084 = vunpack.c.l.b16 %v5052
    %v5085 = vunpack.c.l.b16 %v5053
    %v5086 = vunpack.c.l.b16 %v5054
    %v5087 = vunpack.c.l.b16 %v5055
    %v5088 = vunpack.c.l.b16 %v5056
    %v5089 = vunpack.c.l.b16 %v5057
    %v5090 = vunpack.c.l.b16 %v5058
    %v5091 = vunpack.c.l.b16 %v5059
    %v5092 = vunpack.c.l.b16 %v5060
    %v5093 = vpack.c.b16 %v5078, %v5077
    %v5094 = vpack.c.b16 %v5080, %v5079
    %v5095 = vpack.c.b16 %v5082, %v5081
    %v5096 = vpack.c.b16 %v5084, %v5083
    %v5097 = vpack.c.b16 %v5086, %v5085
    %v5098 = vpack.c.b16 %v5088, %v5087
    %v5099 = vpack.c.b16 %v5090, %v5089
    %v5100 = vpack.c.b16 %v5092, %v5091
    %5109 = vmatpush.bf16.msra.mxu0 %v5100
    %5110 = vmatpush.bf16.msra.mxu0 %v5099
    %5111 = vmatpush.bf16.msra.mxu0 %v5098
    %5112 = vmatpush.bf16.msra.mxu0 %v5097
    %5113 = vmatpush.bf16.msra.mxu0 %v5096
    %5114 = vmatpush.bf16.msra.mxu0 %v5095
    %5115 = vmatpush.bf16.msra.mxu0 %v5094
    %5116 = vmatpush.bf16.msra.mxu0 %v5093
    %5117 = vmatmul.bf16.gmra.mxu0 %v5029
    %v5118 = vpop.f32.mrf.mxu0
    %v5119 = vadd.f32 0.0, %v5118
    %v5120 = vpop.f32.mrf.mxu0
    %v5121 = vadd.f32 0.0, %v5120
    %5122 = vmatmul.bf16.gmra.mxu0 %v5030
    %v5123 = vpop.f32.mrf.mxu0
    %v5124 = vadd.f32 0.0, %v5123
    %v5125 = vpop.f32.mrf.mxu0
    %v5126 = vadd.f32 0.0, %v5125
    %5127 = vmatmul.bf16.gmra.mxu0 %v5031
    %v5128 = vpop.f32.mrf.mxu0
    %v5129 = vadd.f32 0.0, %v5128
    %v5130 = vpop.f32.mrf.mxu0
    %v5131 = vadd.f32 0.0, %v5130
    %5132 = vmatmul.bf16.gmra.mxu0 %v5032
    %v5133 = vpop.f32.mrf.mxu0
    %v5134 = vadd.f32 0.0, %v5133
    %v5135 = vpop.f32.mrf.mxu0
    %v5136 = vadd.f32 0.0, %v5135
    %5137 = vmatmul.bf16.gmra.mxu0 %v5033
    %v5138 = vpop.f32.mrf.mxu0
    %v5139 = vadd.f32 0.0, %v5138
    %v5140 = vpop.f32.mrf.mxu0
    %v5141 = vadd.f32 0.0, %v5140
    %5142 = vmatmul.bf16.gmra.mxu0 %v5034
    %v5143 = vpop.f32.mrf.mxu0
    %v5144 = vadd.f32 0.0, %v5143
    %v5145 = vpop.f32.mrf.mxu0
    %v5146 = vadd.f32 0.0, %v5145
    %5147 = vmatmul.bf16.gmra.mxu0 %v5035
    %v5148 = vpop.f32.mrf.mxu0
    %v5149 = vadd.f32 0.0, %v5148
    %v5150 = vpop.f32.mrf.mxu0
    %v5151 = vadd.f32 0.0, %v5150
    %5152 = vmatmul.bf16.gmra.mxu0 %v5036
    %v5153 = vpop.f32.mrf.mxu0
    %v5154 = vadd.f32 0.0, %v5153
    %v5155 = vpop.f32.mrf.mxu0
    %v5156 = vadd.f32 0.0, %v5155
    %5157 = vmatmul.bf16.gmra.mxu0 %v5037
    %v5158 = vpop.f32.mrf.mxu0
    %v5159 = vadd.f32 0.0, %v5158
    %v5160 = vpop.f32.mrf.mxu0
    %v5161 = vadd.f32 0.0, %v5160
    %5162 = vmatmul.bf16.gmra.mxu0 %v5038
    %v5163 = vpop.f32.mrf.mxu0
    %v5164 = vadd.f32 0.0, %v5163
    %v5165 = vpop.f32.mrf.mxu0
    %v5166 = vadd.f32 0.0, %v5165
    %5167 = vmatmul.bf16.gmra.mxu0 %v5039
    %v5168 = vpop.f32.mrf.mxu0
    %v5169 = vadd.f32 0.0, %v5168
    %v5170 = vpop.f32.mrf.mxu0
    %v5171 = vadd.f32 0.0, %v5170
    %5172 = vmatmul.bf16.gmra.mxu0 %v5040
    %v5173 = vpop.f32.mrf.mxu0
    %v5174 = vadd.f32 0.0, %v5173
    %v5175 = vpop.f32.mrf.mxu0
    %v5176 = vadd.f32 0.0, %v5175
    %5177 = vmatmul.bf16.gmra.mxu0 %v5041
    %v5178 = vpop.f32.mrf.mxu0
    %v5179 = vadd.f32 0.0, %v5178
    %v5180 = vpop.f32.mrf.mxu0
    %v5181 = vadd.f32 0.0, %v5180
    %5182 = vmatmul.bf16.gmra.mxu0 %v5042
    %v5183 = vpop.f32.mrf.mxu0
    %v5184 = vadd.f32 0.0, %v5183
    %v5185 = vpop.f32.mrf.mxu0
    %v5186 = vadd.f32 0.0, %v5185
    %5187 = vmatmul.bf16.gmra.mxu0 %v5043
    %v5188 = vpop.f32.mrf.mxu0
    %v5189 = vadd.f32 0.0, %v5188
    %v5190 = vpop.f32.mrf.mxu0
    %v5191 = vadd.f32 0.0, %v5190
    %5192 = vmatmul.bf16.gmra.mxu0 %v5044
    %v5193 = vpop.f32.mrf.mxu0
    %v5194 = vadd.f32 0.0, %v5193
    %v5195 = vpop.f32.mrf.mxu0
    %5196 = vdwg.mxu0
    %v5197 = vadd.f32 %v4967, %v5119
    %v5198 = vadd.f32 %v4968, %v5121
    %v5199 = vadd.f32 %v4969, %v5124
    %v5200 = vadd.f32 %v4970, %v5126
    %v5201 = vadd.f32 %v4971, %v5129
    %v5202 = vadd.f32 %v4972, %v5131
    %v5203 = vadd.f32 %v4973, %v5134
    %v5204 = vadd.f32 %v4974, %v5136
    %v5205 = vadd.f32 %v4975, %v5139
    %v5206 = vadd.f32 %v4976, %v5141
    %v5207 = vadd.f32 %v4977, %v5144
    %v5208 = vadd.f32 %v4978, %v5146
    %v5209 = vadd.f32 %v4979, %v5149
    %v5210 = vadd.f32 %v4980, %v5151
    %v5211 = vadd.f32 %v4981, %v5154
    %v5212 = vadd.f32 %v4982, %v5156
    %v5213 = vadd.f32 %v4983, %v5159
    %v5214 = vadd.f32 %v4984, %v5161
    %v5215 = vadd.f32 %v4985, %v5164
    %v5216 = vadd.f32 %v4986, %v5166
    %v5217 = vadd.f32 %v4987, %v5169
    %v5218 = vadd.f32 %v4988, %v5171
    %v5219 = vadd.f32 %v4989, %v5174
    %v5220 = vadd.f32 %v4990, %v5176
    %v5221 = vadd.f32 %v4991, %v5179
    %v5222 = vadd.f32 %v4992, %v5181
    %v5223 = vadd.f32 %v4993, %v5184
    %v5224 = vadd.f32 %v4994, %v5186
    %v5225 = vadd.f32 %v4995, %v5189
    %v5226 = vadd.f32 %v4996, %v5191
    %v5227 = vadd.f32 %v4997, %v5194
    %v5228 = vld [vmem:[#allocation4 + $0xc] sm:$0xff]
    %v5229 = vld [vmem:[#allocation4 + $0x14] sm:$0xff]
    %v5230 = vld [vmem:[#allocation4 + $0x1c] sm:$0xff]
    %v5231 = vld [vmem:[#allocation4 + $0x24] sm:$0xff]
    %v5232 = vld [vmem:[#allocation4 + $0x2c] sm:$0xff]
    %v5233 = vld [vmem:[#allocation4 + $0x34] sm:$0xff]
    %v5234 = vld [vmem:[#allocation4 + $0x3c] sm:$0xff]
    %v5235 = vld [vmem:[#allocation4 + $0x44] sm:$0xff]
    %v5236 = vld [vmem:[#allocation4 + $0x4c] sm:$0xff]
    %v5237 = vld [vmem:[#allocation4 + $0x54] sm:$0xff]
    %v5238 = vld [vmem:[#allocation4 + $0x5c] sm:$0xff]
    %v5239 = vld [vmem:[#allocation4 + $0x64] sm:$0xff]
    %v5240 = vld [vmem:[#allocation4 + $0x6c] sm:$0xff]
    %v5241 = vld [vmem:[#allocation4 + $0x74] sm:$0xff]
    %v5242 = vld [vmem:[#allocation4 + $0x7c] sm:$0xff]
    %v5243 = vld [vmem:[#allocation4 + $0x84] sm:$0xff]
    %v5244 = vld [vmem:[#allocation4 + $0x8c] sm:$0xff]
    %v5245 = vld [vmem:[#allocation4 + $0x94] sm:$0xff]
    %v5246 = vld [vmem:[#allocation4 + $0x9c] sm:$0xff]
    %v5247 = vld [vmem:[#allocation4 + $0xa4] sm:$0xff]
    %v5248 = vld [vmem:[#allocation4 + $0xac] sm:$0xff]
    %v5249 = vld [vmem:[#allocation4 + $0xb4] sm:$0xff]
    %v5250 = vld [vmem:[#allocation4 + $0xbc] sm:$0xff]
    %v5251 = vld [vmem:[#allocation4 + $0xc4] sm:$0xff]
    %v5252 = vld [vmem:[#allocation4 + $0xcc] sm:$0xff]
    %v5253 = vld [vmem:[#allocation4 + $0xd4] sm:$0xff]
    %v5254 = vld [vmem:[#allocation4 + $0xdc] sm:$0xff]
    %v5255 = vld [vmem:[#allocation4 + $0xe4] sm:$0xff]
    %v5256 = vld [vmem:[#allocation4 + $0xec] sm:$0xff]
    %v5257 = vld [vmem:[#allocation4 + $0xf4] sm:$0xff]
    %v5258 = vld [vmem:[#allocation4 + $0xfc] sm:$0x3]
    %v5259 = vpack.c.bf16 %v5229, %v5228
    %v5260 = vpack.c.bf16 %v5231, %v5230
    %v5261 = vpack.c.bf16 %v5233, %v5232
    %v5262 = vpack.c.bf16 %v5235, %v5234
    %v5263 = vpack.c.bf16 %v5237, %v5236
    %v5264 = vpack.c.bf16 %v5239, %v5238
    %v5265 = vpack.c.bf16 %v5241, %v5240
    %v5266 = vpack.c.bf16 %v5243, %v5242
    %v5267 = vpack.c.bf16 %v5245, %v5244
    %v5268 = vpack.c.bf16 %v5247, %v5246
    %v5269 = vpack.c.bf16 %v5249, %v5248
    %v5270 = vpack.c.bf16 %v5251, %v5250
    %v5271 = vpack.c.bf16 %v5253, %v5252
    %v5272 = vpack.c.bf16 %v5255, %v5254
    %v5273 = vpack.c.bf16 %v5257, %v5256
    %v5274 = vpack.c.bf16 %v5258, %v5258
    %v5275 = vld [vmem:[%s4 + $0x100] sm:$0xf]
    %v5276 = vld [vmem:[%s4 + $0x104] sm:$0xf]
    %v5277 = vld [vmem:[%s4 + $0x108] sm:$0xf]
    %v5278 = vld [vmem:[%s4 + $0x10c] sm:$0xf]
    %v5279 = vld [vmem:[%s4 + $0x110] sm:$0xf]
    %v5280 = vld [vmem:[%s4 + $0x114] sm:$0xf]
    %v5281 = vld [vmem:[%s4 + $0x118] sm:$0xf]
    %v5282 = vld [vmem:[%s4 + $0x11c] sm:$0xf]
    %v5283 = vld [vmem:[%s4 + $0x120] sm:$0xf]
    %v5284 = vld [vmem:[%s4 + $0x124] sm:$0xf]
    %v5285 = vld [vmem:[%s4 + $0x128] sm:$0xf]
    %v5286 = vld [vmem:[%s4 + $0x12c] sm:$0xf]
    %v5287 = vld [vmem:[%s4 + $0x130] sm:$0xf]
    %v5288 = vld [vmem:[%s4 + $0x134] sm:$0xf]
    %v5289 = vld [vmem:[%s4 + $0x138] sm:$0xf]
    %v5290 = vld [vmem:[%s4 + $0x13c] sm:$0xf]
    %v5307 = vunpack.c.l.b16 %v5275
    %v5308 = vunpack.c.l.b16 %v5276
    %v5309 = vunpack.c.l.b16 %v5277
    %v5310 = vunpack.c.l.b16 %v5278
    %v5311 = vunpack.c.l.b16 %v5279
    %v5312 = vunpack.c.l.b16 %v5280
    %v5313 = vunpack.c.l.b16 %v5281
    %v5314 = vunpack.c.l.b16 %v5282
    %v5315 = vunpack.c.l.b16 %v5283
    %v5316 = vunpack.c.l.b16 %v5284
    %v5317 = vunpack.c.l.b16 %v5285
    %v5318 = vunpack.c.l.b16 %v5286
    %v5319 = vunpack.c.l.b16 %v5287
    %v5320 = vunpack.c.l.b16 %v5288
    %v5321 = vunpack.c.l.b16 %v5289
    %v5322 = vunpack.c.l.b16 %v5290
    %v5323 = vpack.c.b16 %v5308, %v5307
    %v5324 = vpack.c.b16 %v5310, %v5309
    %v5325 = vpack.c.b16 %v5312, %v5311
    %v5326 = vpack.c.b16 %v5314, %v5313
    %v5327 = vpack.c.b16 %v5316, %v5315
    %v5328 = vpack.c.b16 %v5318, %v5317
    %v5329 = vpack.c.b16 %v5320, %v5319
    %v5330 = vpack.c.b16 %v5322, %v5321
    %5339 = vmatpush.bf16.msra.mxu0 %v5330
    %5340 = vmatpush.bf16.msra.mxu0 %v5329
    %5341 = vmatpush.bf16.msra.mxu0 %v5328
    %5342 = vmatpush.bf16.msra.mxu0 %v5327
    %5343 = vmatpush.bf16.msra.mxu0 %v5326
    %5344 = vmatpush.bf16.msra.mxu0 %v5325
    %5345 = vmatpush.bf16.msra.mxu0 %v5324
    %5346 = vmatpush.bf16.msra.mxu0 %v5323
    %5347 = vmatmul.bf16.gmra.mxu0 %v5259
    %v5348 = vpop.f32.mrf.mxu0
    %v5349 = vadd.f32 0.0, %v5348
    %v5350 = vpop.f32.mrf.mxu0
    %v5351 = vadd.f32 0.0, %v5350
    %5352 = vmatmul.bf16.gmra.mxu0 %v5260
    %v5353 = vpop.f32.mrf.mxu0
    %v5354 = vadd.f32 0.0, %v5353
    %v5355 = vpop.f32.mrf.mxu0
    %v5356 = vadd.f32 0.0, %v5355
    %5357 = vmatmul.bf16.gmra.mxu0 %v5261
    %v5358 = vpop.f32.mrf.mxu0
    %v5359 = vadd.f32 0.0, %v5358
    %v5360 = vpop.f32.mrf.mxu0
    %v5361 = vadd.f32 0.0, %v5360
    %5362 = vmatmul.bf16.gmra.mxu0 %v5262
    %v5363 = vpop.f32.mrf.mxu0
    %v5364 = vadd.f32 0.0, %v5363
    %v5365 = vpop.f32.mrf.mxu0
    %v5366 = vadd.f32 0.0, %v5365
    %5367 = vmatmul.bf16.gmra.mxu0 %v5263
    %v5368 = vpop.f32.mrf.mxu0
    %v5369 = vadd.f32 0.0, %v5368
    %v5370 = vpop.f32.mrf.mxu0
    %v5371 = vadd.f32 0.0, %v5370
    %5372 = vmatmul.bf16.gmra.mxu0 %v5264
    %v5373 = vpop.f32.mrf.mxu0
    %v5374 = vadd.f32 0.0, %v5373
    %v5375 = vpop.f32.mrf.mxu0
    %v5376 = vadd.f32 0.0, %v5375
    %5377 = vmatmul.bf16.gmra.mxu0 %v5265
    %v5378 = vpop.f32.mrf.mxu0
    %v5379 = vadd.f32 0.0, %v5378
    %v5380 = vpop.f32.mrf.mxu0
    %v5381 = vadd.f32 0.0, %v5380
    %5382 = vmatmul.bf16.gmra.mxu0 %v5266
    %v5383 = vpop.f32.mrf.mxu0
    %v5384 = vadd.f32 0.0, %v5383
    %v5385 = vpop.f32.mrf.mxu0
    %v5386 = vadd.f32 0.0, %v5385
    %5387 = vmatmul.bf16.gmra.mxu0 %v5267
    %v5388 = vpop.f32.mrf.mxu0
    %v5389 = vadd.f32 0.0, %v5388
    %v5390 = vpop.f32.mrf.mxu0
    %v5391 = vadd.f32 0.0, %v5390
    %5392 = vmatmul.bf16.gmra.mxu0 %v5268
    %v5393 = vpop.f32.mrf.mxu0
    %v5394 = vadd.f32 0.0, %v5393
    %v5395 = vpop.f32.mrf.mxu0
    %v5396 = vadd.f32 0.0, %v5395
    %5397 = vmatmul.bf16.gmra.mxu0 %v5269
    %v5398 = vpop.f32.mrf.mxu0
    %v5399 = vadd.f32 0.0, %v5398
    %v5400 = vpop.f32.mrf.mxu0
    %v5401 = vadd.f32 0.0, %v5400
    %5402 = vmatmul.bf16.gmra.mxu0 %v5270
    %v5403 = vpop.f32.mrf.mxu0
    %v5404 = vadd.f32 0.0, %v5403
    %v5405 = vpop.f32.mrf.mxu0
    %v5406 = vadd.f32 0.0, %v5405
    %5407 = vmatmul.bf16.gmra.mxu0 %v5271
    %v5408 = vpop.f32.mrf.mxu0
    %v5409 = vadd.f32 0.0, %v5408
    %v5410 = vpop.f32.mrf.mxu0
    %v5411 = vadd.f32 0.0, %v5410
    %5412 = vmatmul.bf16.gmra.mxu0 %v5272
    %v5413 = vpop.f32.mrf.mxu0
    %v5414 = vadd.f32 0.0, %v5413
    %v5415 = vpop.f32.mrf.mxu0
    %v5416 = vadd.f32 0.0, %v5415
    %5417 = vmatmul.bf16.gmra.mxu0 %v5273
    %v5418 = vpop.f32.mrf.mxu0
    %v5419 = vadd.f32 0.0, %v5418
    %v5420 = vpop.f32.mrf.mxu0
    %v5421 = vadd.f32 0.0, %v5420
    %5422 = vmatmul.bf16.gmra.mxu0 %v5274
    %v5423 = vpop.f32.mrf.mxu0
    %v5424 = vadd.f32 0.0, %v5423
    %v5425 = vpop.f32.mrf.mxu0
    %5426 = vdwg.mxu0
    %v5427 = vadd.f32 %v5197, %v5349
    %v5428 = vadd.f32 %v5198, %v5351
    %v5429 = vadd.f32 %v5199, %v5354
    %v5430 = vadd.f32 %v5200, %v5356
    %v5431 = vadd.f32 %v5201, %v5359
    %v5432 = vadd.f32 %v5202, %v5361
    %v5433 = vadd.f32 %v5203, %v5364
    %v5434 = vadd.f32 %v5204, %v5366
    %v5435 = vadd.f32 %v5205, %v5369
    %v5436 = vadd.f32 %v5206, %v5371
    %v5437 = vadd.f32 %v5207, %v5374
    %v5438 = vadd.f32 %v5208, %v5376
    %v5439 = vadd.f32 %v5209, %v5379
    %v5440 = vadd.f32 %v5210, %v5381
    %v5441 = vadd.f32 %v5211, %v5384
    %v5442 = vadd.f32 %v5212, %v5386
    %v5443 = vadd.f32 %v5213, %v5389
    %v5444 = vadd.f32 %v5214, %v5391
    %v5445 = vadd.f32 %v5215, %v5394
    %v5446 = vadd.f32 %v5216, %v5396
    %v5447 = vadd.f32 %v5217, %v5399
    %v5448 = vadd.f32 %v5218, %v5401
    %v5449 = vadd.f32 %v5219, %v5404
    %v5450 = vadd.f32 %v5220, %v5406
    %v5451 = vadd.f32 %v5221, %v5409
    %v5452 = vadd.f32 %v5222, %v5411
    %v5453 = vadd.f32 %v5223, %v5414
    %v5454 = vadd.f32 %v5224, %v5416
    %v5455 = vadd.f32 %v5225, %v5419
    %v5456 = vadd.f32 %v5226, %v5421
    %v5457 = vadd.f32 %v5227, %v5424
    %v5458 = vld [vmem:[#allocation4 + $0xd] sm:$0xff]
    %v5459 = vld [vmem:[#allocation4 + $0x15] sm:$0xff]
    %v5460 = vld [vmem:[#allocation4 + $0x1d] sm:$0xff]
    %v5461 = vld [vmem:[#allocation4 + $0x25] sm:$0xff]
    %v5462 = vld [vmem:[#allocation4 + $0x2d] sm:$0xff]
    %v5463 = vld [vmem:[#allocation4 + $0x35] sm:$0xff]
    %v5464 = vld [vmem:[#allocation4 + $0x3d] sm:$0xff]
    %v5465 = vld [vmem:[#allocation4 + $0x45] sm:$0xff]
    %v5466 = vld [vmem:[#allocation4 + $0x4d] sm:$0xff]
    %v5467 = vld [vmem:[#allocation4 + $0x55] sm:$0xff]
    %v5468 = vld [vmem:[#allocation4 + $0x5d] sm:$0xff]
    %v5469 = vld [vmem:[#allocation4 + $0x65] sm:$0xff]
    %v5470 = vld [vmem:[#allocation4 + $0x6d] sm:$0xff]
    %v5471 = vld [vmem:[#allocation4 + $0x75] sm:$0xff]
    %v5472 = vld [vmem:[#allocation4 + $0x7d] sm:$0xff]
    %v5473 = vld [vmem:[#allocation4 + $0x85] sm:$0xff]
    %v5474 = vld [vmem:[#allocation4 + $0x8d] sm:$0xff]
    %v5475 = vld [vmem:[#allocation4 + $0x95] sm:$0xff]
    %v5476 = vld [vmem:[#allocation4 + $0x9d] sm:$0xff]
    %v5477 = vld [vmem:[#allocation4 + $0xa5] sm:$0xff]
    %v5478 = vld [vmem:[#allocation4 + $0xad] sm:$0xff]
    %v5479 = vld [vmem:[#allocation4 + $0xb5] sm:$0xff]
    %v5480 = vld [vmem:[#allocation4 + $0xbd] sm:$0xff]
    %v5481 = vld [vmem:[#allocation4 + $0xc5] sm:$0xff]
    %v5482 = vld [vmem:[#allocation4 + $0xcd] sm:$0xff]
    %v5483 = vld [vmem:[#allocation4 + $0xd5] sm:$0xff]
    %v5484 = vld [vmem:[#allocation4 + $0xdd] sm:$0xff]
    %v5485 = vld [vmem:[#allocation4 + $0xe5] sm:$0xff]
    %v5486 = vld [vmem:[#allocation4 + $0xed] sm:$0xff]
    %v5487 = vld [vmem:[#allocation4 + $0xf5] sm:$0xff]
    %v5488 = vld [vmem:[#allocation4 + $0xfd] sm:$0x3]
    %v5489 = vpack.c.bf16 %v5459, %v5458
    %v5490 = vpack.c.bf16 %v5461, %v5460
    %v5491 = vpack.c.bf16 %v5463, %v5462
    %v5492 = vpack.c.bf16 %v5465, %v5464
    %v5493 = vpack.c.bf16 %v5467, %v5466
    %v5494 = vpack.c.bf16 %v5469, %v5468
    %v5495 = vpack.c.bf16 %v5471, %v5470
    %v5496 = vpack.c.bf16 %v5473, %v5472
    %v5497 = vpack.c.bf16 %v5475, %v5474
    %v5498 = vpack.c.bf16 %v5477, %v5476
    %v5499 = vpack.c.bf16 %v5479, %v5478
    %v5500 = vpack.c.bf16 %v5481, %v5480
    %v5501 = vpack.c.bf16 %v5483, %v5482
    %v5502 = vpack.c.bf16 %v5485, %v5484
    %v5503 = vpack.c.bf16 %v5487, %v5486
    %v5504 = vpack.c.bf16 %v5488, %v5488
    %v5505 = vld [vmem:[%s4 + $0x140] sm:$0xf]
    %v5506 = vld [vmem:[%s4 + $0x144] sm:$0xf]
    %v5507 = vld [vmem:[%s4 + $0x148] sm:$0xf]
    %v5508 = vld [vmem:[%s4 + $0x14c] sm:$0xf]
    %v5509 = vld [vmem:[%s4 + $0x150] sm:$0xf]
    %v5510 = vld [vmem:[%s4 + $0x154] sm:$0xf]
    %v5511 = vld [vmem:[%s4 + $0x158] sm:$0xf]
    %v5512 = vld [vmem:[%s4 + $0x15c] sm:$0xf]
    %v5513 = vld [vmem:[%s4 + $0x160] sm:$0xf]
    %v5514 = vld [vmem:[%s4 + $0x164] sm:$0xf]
    %v5515 = vld [vmem:[%s4 + $0x168] sm:$0xf]
    %v5516 = vld [vmem:[%s4 + $0x16c] sm:$0xf]
    %v5517 = vld [vmem:[%s4 + $0x170] sm:$0xf]
    %v5518 = vld [vmem:[%s4 + $0x174] sm:$0xf]
    %v5519 = vld [vmem:[%s4 + $0x178] sm:$0xf]
    %v5520 = vld [vmem:[%s4 + $0x17c] sm:$0xf]
    %v5537 = vunpack.c.l.b16 %v5505
    %v5538 = vunpack.c.l.b16 %v5506
    %v5539 = vunpack.c.l.b16 %v5507
    %v5540 = vunpack.c.l.b16 %v5508
    %v5541 = vunpack.c.l.b16 %v5509
    %v5542 = vunpack.c.l.b16 %v5510
    %v5543 = vunpack.c.l.b16 %v5511
    %v5544 = vunpack.c.l.b16 %v5512
    %v5545 = vunpack.c.l.b16 %v5513
    %v5546 = vunpack.c.l.b16 %v5514
    %v5547 = vunpack.c.l.b16 %v5515
    %v5548 = vunpack.c.l.b16 %v5516
    %v5549 = vunpack.c.l.b16 %v5517
    %v5550 = vunpack.c.l.b16 %v5518
    %v5551 = vunpack.c.l.b16 %v5519
    %v5552 = vunpack.c.l.b16 %v5520
    %v5553 = vpack.c.b16 %v5538, %v5537
    %v5554 = vpack.c.b16 %v5540, %v5539
    %v5555 = vpack.c.b16 %v5542, %v5541
    %v5556 = vpack.c.b16 %v5544, %v5543
    %v5557 = vpack.c.b16 %v5546, %v5545
    %v5558 = vpack.c.b16 %v5548, %v5547
    %v5559 = vpack.c.b16 %v5550, %v5549
    %v5560 = vpack.c.b16 %v5552, %v5551
    %5569 = vmatpush.bf16.msra.mxu0 %v5560
    %5570 = vmatpush.bf16.msra.mxu0 %v5559
    %5571 = vmatpush.bf16.msra.mxu0 %v5558
    %5572 = vmatpush.bf16.msra.mxu0 %v5557
    %5573 = vmatpush.bf16.msra.mxu0 %v5556
    %5574 = vmatpush.bf16.msra.mxu0 %v5555
    %5575 = vmatpush.bf16.msra.mxu0 %v5554
    %5576 = vmatpush.bf16.msra.mxu0 %v5553
    %5577 = vmatmul.bf16.gmra.mxu0 %v5489
    %v5578 = vpop.f32.mrf.mxu0
    %v5579 = vadd.f32 0.0, %v5578
    %v5580 = vpop.f32.mrf.mxu0
    %v5581 = vadd.f32 0.0, %v5580
    %5582 = vmatmul.bf16.gmra.mxu0 %v5490
    %v5583 = vpop.f32.mrf.mxu0
    %v5584 = vadd.f32 0.0, %v5583
    %v5585 = vpop.f32.mrf.mxu0
    %v5586 = vadd.f32 0.0, %v5585
    %5587 = vmatmul.bf16.gmra.mxu0 %v5491
    %v5588 = vpop.f32.mrf.mxu0
    %v5589 = vadd.f32 0.0, %v5588
    %v5590 = vpop.f32.mrf.mxu0
    %v5591 = vadd.f32 0.0, %v5590
    %5592 = vmatmul.bf16.gmra.mxu0 %v5492
    %v5593 = vpop.f32.mrf.mxu0
    %v5594 = vadd.f32 0.0, %v5593
    %v5595 = vpop.f32.mrf.mxu0
    %v5596 = vadd.f32 0.0, %v5595
    %5597 = vmatmul.bf16.gmra.mxu0 %v5493
    %v5598 = vpop.f32.mrf.mxu0
    %v5599 = vadd.f32 0.0, %v5598
    %v5600 = vpop.f32.mrf.mxu0
    %v5601 = vadd.f32 0.0, %v5600
    %5602 = vmatmul.bf16.gmra.mxu0 %v5494
    %v5603 = vpop.f32.mrf.mxu0
    %v5604 = vadd.f32 0.0, %v5603
    %v5605 = vpop.f32.mrf.mxu0
    %v5606 = vadd.f32 0.0, %v5605
    %5607 = vmatmul.bf16.gmra.mxu0 %v5495
    %v5608 = vpop.f32.mrf.mxu0
    %v5609 = vadd.f32 0.0, %v5608
    %v5610 = vpop.f32.mrf.mxu0
    %v5611 = vadd.f32 0.0, %v5610
    %5612 = vmatmul.bf16.gmra.mxu0 %v5496
    %v5613 = vpop.f32.mrf.mxu0
    %v5614 = vadd.f32 0.0, %v5613
    %v5615 = vpop.f32.mrf.mxu0
    %v5616 = vadd.f32 0.0, %v5615
    %5617 = vmatmul.bf16.gmra.mxu0 %v5497
    %v5618 = vpop.f32.mrf.mxu0
    %v5619 = vadd.f32 0.0, %v5618
    %v5620 = vpop.f32.mrf.mxu0
    %v5621 = vadd.f32 0.0, %v5620
    %5622 = vmatmul.bf16.gmra.mxu0 %v5498
    %v5623 = vpop.f32.mrf.mxu0
    %v5624 = vadd.f32 0.0, %v5623
    %v5625 = vpop.f32.mrf.mxu0
    %v5626 = vadd.f32 0.0, %v5625
    %5627 = vmatmul.bf16.gmra.mxu0 %v5499
    %v5628 = vpop.f32.mrf.mxu0
    %v5629 = vadd.f32 0.0, %v5628
    %v5630 = vpop.f32.mrf.mxu0
    %v5631 = vadd.f32 0.0, %v5630
    %5632 = vmatmul.bf16.gmra.mxu0 %v5500
    %v5633 = vpop.f32.mrf.mxu0
    %v5634 = vadd.f32 0.0, %v5633
    %v5635 = vpop.f32.mrf.mxu0
    %v5636 = vadd.f32 0.0, %v5635
    %5637 = vmatmul.bf16.gmra.mxu0 %v5501
    %v5638 = vpop.f32.mrf.mxu0
    %v5639 = vadd.f32 0.0, %v5638
    %v5640 = vpop.f32.mrf.mxu0
    %v5641 = vadd.f32 0.0, %v5640
    %5642 = vmatmul.bf16.gmra.mxu0 %v5502
    %v5643 = vpop.f32.mrf.mxu0
    %v5644 = vadd.f32 0.0, %v5643
    %v5645 = vpop.f32.mrf.mxu0
    %v5646 = vadd.f32 0.0, %v5645
    %5647 = vmatmul.bf16.gmra.mxu0 %v5503
    %v5648 = vpop.f32.mrf.mxu0
    %v5649 = vadd.f32 0.0, %v5648
    %v5650 = vpop.f32.mrf.mxu0
    %v5651 = vadd.f32 0.0, %v5650
    %5652 = vmatmul.bf16.gmra.mxu0 %v5504
    %v5653 = vpop.f32.mrf.mxu0
    %v5654 = vadd.f32 0.0, %v5653
    %v5655 = vpop.f32.mrf.mxu0
    %5656 = vdwg.mxu0
    %v5657 = vadd.f32 %v5427, %v5579
    %v5658 = vadd.f32 %v5428, %v5581
    %v5659 = vadd.f32 %v5429, %v5584
    %v5660 = vadd.f32 %v5430, %v5586
    %v5661 = vadd.f32 %v5431, %v5589
    %v5662 = vadd.f32 %v5432, %v5591
    %v5663 = vadd.f32 %v5433, %v5594
    %v5664 = vadd.f32 %v5434, %v5596
    %v5665 = vadd.f32 %v5435, %v5599
    %v5666 = vadd.f32 %v5436, %v5601
    %v5667 = vadd.f32 %v5437, %v5604
    %v5668 = vadd.f32 %v5438, %v5606
    %v5669 = vadd.f32 %v5439, %v5609
    %v5670 = vadd.f32 %v5440, %v5611
    %v5671 = vadd.f32 %v5441, %v5614
    %v5672 = vadd.f32 %v5442, %v5616
    %v5673 = vadd.f32 %v5443, %v5619
    %v5674 = vadd.f32 %v5444, %v5621
    %v5675 = vadd.f32 %v5445, %v5624
    %v5676 = vadd.f32 %v5446, %v5626
    %v5677 = vadd.f32 %v5447, %v5629
    %v5678 = vadd.f32 %v5448, %v5631
    %v5679 = vadd.f32 %v5449, %v5634
    %v5680 = vadd.f32 %v5450, %v5636
    %v5681 = vadd.f32 %v5451, %v5639
    %v5682 = vadd.f32 %v5452, %v5641
    %v5683 = vadd.f32 %v5453, %v5644
    %v5684 = vadd.f32 %v5454, %v5646
    %v5685 = vadd.f32 %v5455, %v5649
    %v5686 = vadd.f32 %v5456, %v5651
    %v5687 = vadd.f32 %v5457, %v5654
    %v5688 = vld [vmem:[#allocation4 + $0x16] sm:$0xff]
    %v5689 = vld [vmem:[#allocation4 + $0x1e] sm:$0xff]
    %v5690 = vld [vmem:[#allocation4 + $0x26] sm:$0xff]
    %v5691 = vld [vmem:[#allocation4 + $0x2e] sm:$0xff]
    %v5692 = vld [vmem:[#allocation4 + $0x36] sm:$0xff]
    %v5693 = vld [vmem:[#allocation4 + $0x3e] sm:$0xff]
    %v5694 = vld [vmem:[#allocation4 + $0x46] sm:$0xff]
    %v5695 = vld [vmem:[#allocation4 + $0x4e] sm:$0xff]
    %v5696 = vld [vmem:[#allocation4 + $0x56] sm:$0xff]
    %v5697 = vld [vmem:[#allocation4 + $0x5e] sm:$0xff]
    %v5698 = vld [vmem:[#allocation4 + $0x66] sm:$0xff]
    %v5699 = vld [vmem:[#allocation4 + $0x6e] sm:$0xff]
    %v5700 = vld [vmem:[#allocation4 + $0x76] sm:$0xff]
    %v5701 = vld [vmem:[#allocation4 + $0x7e] sm:$0xff]
    %v5702 = vld [vmem:[#allocation4 + $0x86] sm:$0xff]
    %v5703 = vld [vmem:[#allocation4 + $0x8e] sm:$0xff]
    %v5704 = vld [vmem:[#allocation4 + $0x96] sm:$0xff]
    %v5705 = vld [vmem:[#allocation4 + $0x9e] sm:$0xff]
    %v5706 = vld [vmem:[#allocation4 + $0xa6] sm:$0xff]
    %v5707 = vld [vmem:[#allocation4 + $0xae] sm:$0xff]
    %v5708 = vld [vmem:[#allocation4 + $0xb6] sm:$0xff]
    %v5709 = vld [vmem:[#allocation4 + $0xbe] sm:$0xff]
    %v5710 = vld [vmem:[#allocation4 + $0xc6] sm:$0xff]
    %v5711 = vld [vmem:[#allocation4 + $0xce] sm:$0xff]
    %v5712 = vld [vmem:[#allocation4 + $0xd6] sm:$0xff]
    %v5713 = vld [vmem:[#allocation4 + $0xde] sm:$0xff]
    %v5714 = vld [vmem:[#allocation4 + $0xe6] sm:$0xff]
    %v5715 = vld [vmem:[#allocation4 + $0xee] sm:$0xff]
    %v5716 = vld [vmem:[#allocation4 + $0xf6] sm:$0xff]
    %v5717 = vld [vmem:[#allocation4 + $0xfe] sm:$0xff]
    %v5718 = vld [vmem:[#allocation4 + $0x106] sm:$0x3]
    %v5719 = vpack.c.bf16 %v5689, %v5688
    %v5720 = vpack.c.bf16 %v5691, %v5690
    %v5721 = vpack.c.bf16 %v5693, %v5692
    %v5722 = vpack.c.bf16 %v5695, %v5694
    %v5723 = vpack.c.bf16 %v5697, %v5696
    %v5724 = vpack.c.bf16 %v5699, %v5698
    %v5725 = vpack.c.bf16 %v5701, %v5700
    %v5726 = vpack.c.bf16 %v5703, %v5702
    %v5727 = vpack.c.bf16 %v5705, %v5704
    %v5728 = vpack.c.bf16 %v5707, %v5706
    %v5729 = vpack.c.bf16 %v5709, %v5708
    %v5730 = vpack.c.bf16 %v5711, %v5710
    %v5731 = vpack.c.bf16 %v5713, %v5712
    %v5732 = vpack.c.bf16 %v5715, %v5714
    %v5733 = vpack.c.bf16 %v5717, %v5716
    %v5734 = vpack.c.bf16 %v5718, %v5718
    %v5735 = vld [vmem:[%s4 + $0x180] sm:$0xf]
    %v5736 = vld [vmem:[%s4 + $0x184] sm:$0xf]
    %v5737 = vld [vmem:[%s4 + $0x188] sm:$0xf]
    %v5738 = vld [vmem:[%s4 + $0x18c] sm:$0xf]
    %v5739 = vld [vmem:[%s4 + $0x190] sm:$0xf]
    %v5740 = vld [vmem:[%s4 + $0x194] sm:$0xf]
    %v5741 = vld [vmem:[%s4 + $0x198] sm:$0xf]
    %v5742 = vld [vmem:[%s4 + $0x19c] sm:$0xf]
    %v5743 = vld [vmem:[%s4 + $0x1a0] sm:$0xf]
    %v5744 = vld [vmem:[%s4 + $0x1a4] sm:$0xf]
    %v5745 = vld [vmem:[%s4 + $0x1a8] sm:$0xf]
    %v5746 = vld [vmem:[%s4 + $0x1ac] sm:$0xf]
    %v5747 = vld [vmem:[%s4 + $0x1b0] sm:$0xf]
    %v5748 = vld [vmem:[%s4 + $0x1b4] sm:$0xf]
    %v5749 = vld [vmem:[%s4 + $0x1b8] sm:$0xf]
    %v5750 = vld [vmem:[%s4 + $0x1bc] sm:$0xf]
    %v5767 = vunpack.c.l.b16 %v5735
    %v5768 = vunpack.c.l.b16 %v5736
    %v5769 = vunpack.c.l.b16 %v5737
    %v5770 = vunpack.c.l.b16 %v5738
    %v5771 = vunpack.c.l.b16 %v5739
    %v5772 = vunpack.c.l.b16 %v5740
    %v5773 = vunpack.c.l.b16 %v5741
    %v5774 = vunpack.c.l.b16 %v5742
    %v5775 = vunpack.c.l.b16 %v5743
    %v5776 = vunpack.c.l.b16 %v5744
    %v5777 = vunpack.c.l.b16 %v5745
    %v5778 = vunpack.c.l.b16 %v5746
    %v5779 = vunpack.c.l.b16 %v5747
    %v5780 = vunpack.c.l.b16 %v5748
    %v5781 = vunpack.c.l.b16 %v5749
    %v5782 = vunpack.c.l.b16 %v5750
    %v5783 = vpack.c.b16 %v5768, %v5767
    %v5784 = vpack.c.b16 %v5770, %v5769
    %v5785 = vpack.c.b16 %v5772, %v5771
    %v5786 = vpack.c.b16 %v5774, %v5773
    %v5787 = vpack.c.b16 %v5776, %v5775
    %v5788 = vpack.c.b16 %v5778, %v5777
    %v5789 = vpack.c.b16 %v5780, %v5779
    %v5790 = vpack.c.b16 %v5782, %v5781
    %5799 = vmatpush.bf16.msra.mxu0 %v5790
    %5800 = vmatpush.bf16.msra.mxu0 %v5789
    %5801 = vmatpush.bf16.msra.mxu0 %v5788
    %5802 = vmatpush.bf16.msra.mxu0 %v5787
    %5803 = vmatpush.bf16.msra.mxu0 %v5786
    %5804 = vmatpush.bf16.msra.mxu0 %v5785
    %5805 = vmatpush.bf16.msra.mxu0 %v5784
    %5806 = vmatpush.bf16.msra.mxu0 %v5783
    %5807 = vmatmul.bf16.gmra.mxu0 %v5719
    %v5808 = vpop.f32.mrf.mxu0
    %v5809 = vadd.f32 0.0, %v5808
    %v5810 = vpop.f32.mrf.mxu0
    %v5811 = vadd.f32 0.0, %v5810
    %5812 = vmatmul.bf16.gmra.mxu0 %v5720
    %v5813 = vpop.f32.mrf.mxu0
    %v5814 = vadd.f32 0.0, %v5813
    %v5815 = vpop.f32.mrf.mxu0
    %v5816 = vadd.f32 0.0, %v5815
    %5817 = vmatmul.bf16.gmra.mxu0 %v5721
    %v5818 = vpop.f32.mrf.mxu0
    %v5819 = vadd.f32 0.0, %v5818
    %v5820 = vpop.f32.mrf.mxu0
    %v5821 = vadd.f32 0.0, %v5820
    %5822 = vmatmul.bf16.gmra.mxu0 %v5722
    %v5823 = vpop.f32.mrf.mxu0
    %v5824 = vadd.f32 0.0, %v5823
    %v5825 = vpop.f32.mrf.mxu0
    %v5826 = vadd.f32 0.0, %v5825
    %5827 = vmatmul.bf16.gmra.mxu0 %v5723
    %v5828 = vpop.f32.mrf.mxu0
    %v5829 = vadd.f32 0.0, %v5828
    %v5830 = vpop.f32.mrf.mxu0
    %v5831 = vadd.f32 0.0, %v5830
    %5832 = vmatmul.bf16.gmra.mxu0 %v5724
    %v5833 = vpop.f32.mrf.mxu0
    %v5834 = vadd.f32 0.0, %v5833
    %v5835 = vpop.f32.mrf.mxu0
    %v5836 = vadd.f32 0.0, %v5835
    %5837 = vmatmul.bf16.gmra.mxu0 %v5725
    %v5838 = vpop.f32.mrf.mxu0
    %v5839 = vadd.f32 0.0, %v5838
    %v5840 = vpop.f32.mrf.mxu0
    %v5841 = vadd.f32 0.0, %v5840
    %5842 = vmatmul.bf16.gmra.mxu0 %v5726
    %v5843 = vpop.f32.mrf.mxu0
    %v5844 = vadd.f32 0.0, %v5843
    %v5845 = vpop.f32.mrf.mxu0
    %v5846 = vadd.f32 0.0, %v5845
    %5847 = vmatmul.bf16.gmra.mxu0 %v5727
    %v5848 = vpop.f32.mrf.mxu0
    %v5849 = vadd.f32 0.0, %v5848
    %v5850 = vpop.f32.mrf.mxu0
    %v5851 = vadd.f32 0.0, %v5850
    %5852 = vmatmul.bf16.gmra.mxu0 %v5728
    %v5853 = vpop.f32.mrf.mxu0
    %v5854 = vadd.f32 0.0, %v5853
    %v5855 = vpop.f32.mrf.mxu0
    %v5856 = vadd.f32 0.0, %v5855
    %5857 = vmatmul.bf16.gmra.mxu0 %v5729
    %v5858 = vpop.f32.mrf.mxu0
    %v5859 = vadd.f32 0.0, %v5858
    %v5860 = vpop.f32.mrf.mxu0
    %v5861 = vadd.f32 0.0, %v5860
    %5862 = vmatmul.bf16.gmra.mxu0 %v5730
    %v5863 = vpop.f32.mrf.mxu0
    %v5864 = vadd.f32 0.0, %v5863
    %v5865 = vpop.f32.mrf.mxu0
    %v5866 = vadd.f32 0.0, %v5865
    %5867 = vmatmul.bf16.gmra.mxu0 %v5731
    %v5868 = vpop.f32.mrf.mxu0
    %v5869 = vadd.f32 0.0, %v5868
    %v5870 = vpop.f32.mrf.mxu0
    %v5871 = vadd.f32 0.0, %v5870
    %5872 = vmatmul.bf16.gmra.mxu0 %v5732
    %v5873 = vpop.f32.mrf.mxu0
    %v5874 = vadd.f32 0.0, %v5873
    %v5875 = vpop.f32.mrf.mxu0
    %v5876 = vadd.f32 0.0, %v5875
    %5877 = vmatmul.bf16.gmra.mxu0 %v5733
    %v5878 = vpop.f32.mrf.mxu0
    %v5879 = vadd.f32 0.0, %v5878
    %v5880 = vpop.f32.mrf.mxu0
    %v5881 = vadd.f32 0.0, %v5880
    %5882 = vmatmul.bf16.gmra.mxu0 %v5734
    %v5883 = vpop.f32.mrf.mxu0
    %v5884 = vadd.f32 0.0, %v5883
    %v5885 = vpop.f32.mrf.mxu0
    %5886 = vdwg.mxu0
    %v5887 = vadd.f32 %v5657, %v5809
    %v5888 = vadd.f32 %v5658, %v5811
    %v5889 = vadd.f32 %v5659, %v5814
    %v5890 = vadd.f32 %v5660, %v5816
    %v5891 = vadd.f32 %v5661, %v5819
    %v5892 = vadd.f32 %v5662, %v5821
    %v5893 = vadd.f32 %v5663, %v5824
    %v5894 = vadd.f32 %v5664, %v5826
    %v5895 = vadd.f32 %v5665, %v5829
    %v5896 = vadd.f32 %v5666, %v5831
    %v5897 = vadd.f32 %v5667, %v5834
    %v5898 = vadd.f32 %v5668, %v5836
    %v5899 = vadd.f32 %v5669, %v5839
    %v5900 = vadd.f32 %v5670, %v5841
    %v5901 = vadd.f32 %v5671, %v5844
    %v5902 = vadd.f32 %v5672, %v5846
    %v5903 = vadd.f32 %v5673, %v5849
    %v5904 = vadd.f32 %v5674, %v5851
    %v5905 = vadd.f32 %v5675, %v5854
    %v5906 = vadd.f32 %v5676, %v5856
    %v5907 = vadd.f32 %v5677, %v5859
    %v5908 = vadd.f32 %v5678, %v5861
    %v5909 = vadd.f32 %v5679, %v5864
    %v5910 = vadd.f32 %v5680, %v5866
    %v5911 = vadd.f32 %v5681, %v5869
    %v5912 = vadd.f32 %v5682, %v5871
    %v5913 = vadd.f32 %v5683, %v5874
    %v5914 = vadd.f32 %v5684, %v5876
    %v5915 = vadd.f32 %v5685, %v5879
    %v5916 = vadd.f32 %v5686, %v5881
    %v5917 = vadd.f32 %v5687, %v5884
    %v5918 = vld [vmem:[#allocation4 + $0x17] sm:$0xff]
    %v5919 = vld [vmem:[#allocation4 + $0x1f] sm:$0xff]
    %v5920 = vld [vmem:[#allocation4 + $0x27] sm:$0xff]
    %v5921 = vld [vmem:[#allocation4 + $0x2f] sm:$0xff]
    %v5922 = vld [vmem:[#allocation4 + $0x37] sm:$0xff]
    %v5923 = vld [vmem:[#allocation4 + $0x3f] sm:$0xff]
    %v5924 = vld [vmem:[#allocation4 + $0x47] sm:$0xff]
    %v5925 = vld [vmem:[#allocation4 + $0x4f] sm:$0xff]
    %v5926 = vld [vmem:[#allocation4 + $0x57] sm:$0xff]
    %v5927 = vld [vmem:[#allocation4 + $0x5f] sm:$0xff]
    %v5928 = vld [vmem:[#allocation4 + $0x67] sm:$0xff]
    %v5929 = vld [vmem:[#allocation4 + $0x6f] sm:$0xff]
    %v5930 = vld [vmem:[#allocation4 + $0x77] sm:$0xff]
    %v5931 = vld [vmem:[#allocation4 + $0x7f] sm:$0xff]
    %v5932 = vld [vmem:[#allocation4 + $0x87] sm:$0xff]
    %v5933 = vld [vmem:[#allocation4 + $0x8f] sm:$0xff]
    %v5934 = vld [vmem:[#allocation4 + $0x97] sm:$0xff]
    %v5935 = vld [vmem:[#allocation4 + $0x9f] sm:$0xff]
    %v5936 = vld [vmem:[#allocation4 + $0xa7] sm:$0xff]
    %v5937 = vld [vmem:[#allocation4 + $0xaf] sm:$0xff]
    %v5938 = vld [vmem:[#allocation4 + $0xb7] sm:$0xff]
    %v5939 = vld [vmem:[#allocation4 + $0xbf] sm:$0xff]
    %v5940 = vld [vmem:[#allocation4 + $0xc7] sm:$0xff]
    %v5941 = vld [vmem:[#allocation4 + $0xcf] sm:$0xff]
    %v5942 = vld [vmem:[#allocation4 + $0xd7] sm:$0xff]
    %v5943 = vld [vmem:[#allocation4 + $0xdf] sm:$0xff]
    %v5944 = vld [vmem:[#allocation4 + $0xe7] sm:$0xff]
    %v5945 = vld [vmem:[#allocation4 + $0xef] sm:$0xff]
    %v5946 = vld [vmem:[#allocation4 + $0xf7] sm:$0xff]
    %v5947 = vld [vmem:[#allocation4 + $0xff] sm:$0xff]
    %v5948 = vld [vmem:[#allocation4 + $0x107] sm:$0x3]
    %v5949 = vpack.c.bf16 %v5919, %v5918
    %v5950 = vpack.c.bf16 %v5921, %v5920
    %v5951 = vpack.c.bf16 %v5923, %v5922
    %v5952 = vpack.c.bf16 %v5925, %v5924
    %v5953 = vpack.c.bf16 %v5927, %v5926
    %v5954 = vpack.c.bf16 %v5929, %v5928
    %v5955 = vpack.c.bf16 %v5931, %v5930
    %v5956 = vpack.c.bf16 %v5933, %v5932
    %v5957 = vpack.c.bf16 %v5935, %v5934
    %v5958 = vpack.c.bf16 %v5937, %v5936
    %v5959 = vpack.c.bf16 %v5939, %v5938
    %v5960 = vpack.c.bf16 %v5941, %v5940
    %v5961 = vpack.c.bf16 %v5943, %v5942
    %v5962 = vpack.c.bf16 %v5945, %v5944
    %v5963 = vpack.c.bf16 %v5947, %v5946
    %v5964 = vpack.c.bf16 %v5948, %v5948
    %v5965 = vld [vmem:[%s4 + $0x1c0] sm:$0xf]
    %v5966 = vld [vmem:[%s4 + $0x1c4] sm:$0xf]
    %v5967 = vld [vmem:[%s4 + $0x1c8] sm:$0xf]
    %v5968 = vld [vmem:[%s4 + $0x1cc] sm:$0xf]
    %v5969 = vld [vmem:[%s4 + $0x1d0] sm:$0xf]
    %v5970 = vld [vmem:[%s4 + $0x1d4] sm:$0xf]
    %v5971 = vld [vmem:[%s4 + $0x1d8] sm:$0xf]
    %v5972 = vld [vmem:[%s4 + $0x1dc] sm:$0xf]
    %v5973 = vld [vmem:[%s4 + $0x1e0] sm:$0xf]
    %v5974 = vld [vmem:[%s4 + $0x1e4] sm:$0xf]
    %v5975 = vld [vmem:[%s4 + $0x1e8] sm:$0xf]
    %v5976 = vld [vmem:[%s4 + $0x1ec] sm:$0xf]
    %v5977 = vld [vmem:[%s4 + $0x1f0] sm:$0xf]
    %v5978 = vld [vmem:[%s4 + $0x1f4] sm:$0xf]
    %v5979 = vld [vmem:[%s4 + $0x1f8] sm:$0xf]
    %v5980 = vld [vmem:[%s4 + $0x1fc] sm:$0xf]
    %v5997 = vunpack.c.l.b16 %v5965
    %v5998 = vunpack.c.l.b16 %v5966
    %v5999 = vunpack.c.l.b16 %v5967
    %v6000 = vunpack.c.l.b16 %v5968
    %v6001 = vunpack.c.l.b16 %v5969
    %v6002 = vunpack.c.l.b16 %v5970
    %v6003 = vunpack.c.l.b16 %v5971
    %v6004 = vunpack.c.l.b16 %v5972
    %v6005 = vunpack.c.l.b16 %v5973
    %v6006 = vunpack.c.l.b16 %v5974
    %v6007 = vunpack.c.l.b16 %v5975
    %v6008 = vunpack.c.l.b16 %v5976
    %v6009 = vunpack.c.l.b16 %v5977
    %v6010 = vunpack.c.l.b16 %v5978
    %v6011 = vunpack.c.l.b16 %v5979
    %v6012 = vunpack.c.l.b16 %v5980
    %v6013 = vpack.c.b16 %v5998, %v5997
    %v6014 = vpack.c.b16 %v6000, %v5999
    %v6015 = vpack.c.b16 %v6002, %v6001
    %v6016 = vpack.c.b16 %v6004, %v6003
    %v6017 = vpack.c.b16 %v6006, %v6005
    %v6018 = vpack.c.b16 %v6008, %v6007
    %v6019 = vpack.c.b16 %v6010, %v6009
    %v6020 = vpack.c.b16 %v6012, %v6011
    %6029 = vmatpush.bf16.msra.mxu0 %v6020
    %6030 = vmatpush.bf16.msra.mxu0 %v6019
    %6031 = vmatpush.bf16.msra.mxu0 %v6018
    %6032 = vmatpush.bf16.msra.mxu0 %v6017
    %6033 = vmatpush.bf16.msra.mxu0 %v6016
    %6034 = vmatpush.bf16.msra.mxu0 %v6015
    %6035 = vmatpush.bf16.msra.mxu0 %v6014
    %6036 = vmatpush.bf16.msra.mxu0 %v6013
    %6037 = vmatmul.bf16.gmra.mxu0 %v5949
    %v6038 = vpop.f32.mrf.mxu0
    %v6039 = vadd.f32 0.0, %v6038
    %v6040 = vpop.f32.mrf.mxu0
    %v6041 = vadd.f32 0.0, %v6040
    %6042 = vmatmul.bf16.gmra.mxu0 %v5950
    %v6043 = vpop.f32.mrf.mxu0
    %v6044 = vadd.f32 0.0, %v6043
    %v6045 = vpop.f32.mrf.mxu0
    %v6046 = vadd.f32 0.0, %v6045
    %6047 = vmatmul.bf16.gmra.mxu0 %v5951
    %v6048 = vpop.f32.mrf.mxu0
    %v6049 = vadd.f32 0.0, %v6048
    %v6050 = vpop.f32.mrf.mxu0
    %v6051 = vadd.f32 0.0, %v6050
    %6052 = vmatmul.bf16.gmra.mxu0 %v5952
    %v6053 = vpop.f32.mrf.mxu0
    %v6054 = vadd.f32 0.0, %v6053
    %v6055 = vpop.f32.mrf.mxu0
    %v6056 = vadd.f32 0.0, %v6055
    %6057 = vmatmul.bf16.gmra.mxu0 %v5953
    %v6058 = vpop.f32.mrf.mxu0
    %v6059 = vadd.f32 0.0, %v6058
    %v6060 = vpop.f32.mrf.mxu0
    %v6061 = vadd.f32 0.0, %v6060
    %6062 = vmatmul.bf16.gmra.mxu0 %v5954
    %v6063 = vpop.f32.mrf.mxu0
    %v6064 = vadd.f32 0.0, %v6063
    %v6065 = vpop.f32.mrf.mxu0
    %v6066 = vadd.f32 0.0, %v6065
    %6067 = vmatmul.bf16.gmra.mxu0 %v5955
    %v6068 = vpop.f32.mrf.mxu0
    %v6069 = vadd.f32 0.0, %v6068
    %v6070 = vpop.f32.mrf.mxu0
    %v6071 = vadd.f32 0.0, %v6070
    %6072 = vmatmul.bf16.gmra.mxu0 %v5956
    %v6073 = vpop.f32.mrf.mxu0
    %v6074 = vadd.f32 0.0, %v6073
    %v6075 = vpop.f32.mrf.mxu0
    %v6076 = vadd.f32 0.0, %v6075
    %6077 = vmatmul.bf16.gmra.mxu0 %v5957
    %v6078 = vpop.f32.mrf.mxu0
    %v6079 = vadd.f32 0.0, %v6078
    %v6080 = vpop.f32.mrf.mxu0
    %v6081 = vadd.f32 0.0, %v6080
    %6082 = vmatmul.bf16.gmra.mxu0 %v5958
    %v6083 = vpop.f32.mrf.mxu0
    %v6084 = vadd.f32 0.0, %v6083
    %v6085 = vpop.f32.mrf.mxu0
    %v6086 = vadd.f32 0.0, %v6085
    %6087 = vmatmul.bf16.gmra.mxu0 %v5959
    %v6088 = vpop.f32.mrf.mxu0
    %v6089 = vadd.f32 0.0, %v6088
    %v6090 = vpop.f32.mrf.mxu0
    %v6091 = vadd.f32 0.0, %v6090
    %6092 = vmatmul.bf16.gmra.mxu0 %v5960
    %v6093 = vpop.f32.mrf.mxu0
    %v6094 = vadd.f32 0.0, %v6093
    %v6095 = vpop.f32.mrf.mxu0
    %v6096 = vadd.f32 0.0, %v6095
    %6097 = vmatmul.bf16.gmra.mxu0 %v5961
    %v6098 = vpop.f32.mrf.mxu0
    %v6099 = vadd.f32 0.0, %v6098
    %v6100 = vpop.f32.mrf.mxu0
    %v6101 = vadd.f32 0.0, %v6100
    %6102 = vmatmul.bf16.gmra.mxu0 %v5962
    %v6103 = vpop.f32.mrf.mxu0
    %v6104 = vadd.f32 0.0, %v6103
    %v6105 = vpop.f32.mrf.mxu0
    %v6106 = vadd.f32 0.0, %v6105
    %6107 = vmatmul.bf16.gmra.mxu0 %v5963
    %v6108 = vpop.f32.mrf.mxu0
    %v6109 = vadd.f32 0.0, %v6108
    %v6110 = vpop.f32.mrf.mxu0
    %v6111 = vadd.f32 0.0, %v6110
    %6112 = vmatmul.bf16.gmra.mxu0 %v5964
    %v6113 = vpop.f32.mrf.mxu0
    %v6114 = vadd.f32 0.0, %v6113
    %v6115 = vpop.f32.mrf.mxu0
    %6116 = vdwg.mxu0
    %v6117 = vadd.f32 %v5887, %v6039
    %v6118 = vadd.f32 %v5888, %v6041
    %v6119 = vadd.f32 %v5889, %v6044
    %v6120 = vadd.f32 %v5890, %v6046
    %v6121 = vadd.f32 %v5891, %v6049
    %v6122 = vadd.f32 %v5892, %v6051
    %v6123 = vadd.f32 %v5893, %v6054
    %v6124 = vadd.f32 %v5894, %v6056
    %v6125 = vadd.f32 %v5895, %v6059
    %v6126 = vadd.f32 %v5896, %v6061
    %v6127 = vadd.f32 %v5897, %v6064
    %v6128 = vadd.f32 %v5898, %v6066
    %v6129 = vadd.f32 %v5899, %v6069
    %v6130 = vadd.f32 %v5900, %v6071
    %v6131 = vadd.f32 %v5901, %v6074
    %v6132 = vadd.f32 %v5902, %v6076
    %v6133 = vadd.f32 %v5903, %v6079
    %v6134 = vadd.f32 %v5904, %v6081
    %v6135 = vadd.f32 %v5905, %v6084
    %v6136 = vadd.f32 %v5906, %v6086
    %v6137 = vadd.f32 %v5907, %v6089
    %v6138 = vadd.f32 %v5908, %v6091
    %v6139 = vadd.f32 %v5909, %v6094
    %v6140 = vadd.f32 %v5910, %v6096
    %v6141 = vadd.f32 %v5911, %v6099
    %v6142 = vadd.f32 %v5912, %v6101
    %v6143 = vadd.f32 %v5913, %v6104
    %v6144 = vadd.f32 %v5914, %v6106
    %v6145 = vadd.f32 %v5915, %v6109
    %v6146 = vadd.f32 %v5916, %v6111
    %v6147 = vadd.f32 %v5917, %v6114
    %v6148 = vld [vmem:[#allocation4 + $0x18] sm:$0xff]
    %v6149 = vld [vmem:[#allocation4 + $0x20] sm:$0xff]
    %v6150 = vld [vmem:[#allocation4 + $0x28] sm:$0xff]
    %v6151 = vld [vmem:[#allocation4 + $0x30] sm:$0xff]
    %v6152 = vld [vmem:[#allocation4 + $0x38] sm:$0xff]
    %v6153 = vld [vmem:[#allocation4 + $0x40] sm:$0xff]
    %v6154 = vld [vmem:[#allocation4 + $0x48] sm:$0xff]
    %v6155 = vld [vmem:[#allocation4 + $0x50] sm:$0xff]
    %v6156 = vld [vmem:[#allocation4 + $0x58] sm:$0xff]
    %v6157 = vld [vmem:[#allocation4 + $0x60] sm:$0xff]
    %v6158 = vld [vmem:[#allocation4 + $0x68] sm:$0xff]
    %v6159 = vld [vmem:[#allocation4 + $0x70] sm:$0xff]
    %v6160 = vld [vmem:[#allocation4 + $0x78] sm:$0xff]
    %v6161 = vld [vmem:[#allocation4 + $0x80] sm:$0xff]
    %v6162 = vld [vmem:[#allocation4 + $0x88] sm:$0xff]
    %v6163 = vld [vmem:[#allocation4 + $0x90] sm:$0xff]
    %v6164 = vld [vmem:[#allocation4 + $0x98] sm:$0xff]
    %v6165 = vld [vmem:[#allocation4 + $0xa0] sm:$0xff]
    %v6166 = vld [vmem:[#allocation4 + $0xa8] sm:$0xff]
    %v6167 = vld [vmem:[#allocation4 + $0xb0] sm:$0xff]
    %v6168 = vld [vmem:[#allocation4 + $0xb8] sm:$0xff]
    %v6169 = vld [vmem:[#allocation4 + $0xc0] sm:$0xff]
    %v6170 = vld [vmem:[#allocation4 + $0xc8] sm:$0xff]
    %v6171 = vld [vmem:[#allocation4 + $0xd0] sm:$0xff]
    %v6172 = vld [vmem:[#allocation4 + $0xd8] sm:$0xff]
    %v6173 = vld [vmem:[#allocation4 + $0xe0] sm:$0xff]
    %v6174 = vld [vmem:[#allocation4 + $0xe8] sm:$0xff]
    %v6175 = vld [vmem:[#allocation4 + $0xf0] sm:$0xff]
    %v6176 = vld [vmem:[#allocation4 + $0xf8] sm:$0xff]
    %v6177 = vld [vmem:[#allocation4 + $0x100] sm:$0xff]
    %v6178 = vld [vmem:[#allocation4 + $0x108] sm:$0x3]
    %v6179 = vpack.c.bf16 %v6149, %v6148
    %v6180 = vpack.c.bf16 %v6151, %v6150
    %v6181 = vpack.c.bf16 %v6153, %v6152
    %v6182 = vpack.c.bf16 %v6155, %v6154
    %v6183 = vpack.c.bf16 %v6157, %v6156
    %v6184 = vpack.c.bf16 %v6159, %v6158
    %v6185 = vpack.c.bf16 %v6161, %v6160
    %v6186 = vpack.c.bf16 %v6163, %v6162
    %v6187 = vpack.c.bf16 %v6165, %v6164
    %v6188 = vpack.c.bf16 %v6167, %v6166
    %v6189 = vpack.c.bf16 %v6169, %v6168
    %v6190 = vpack.c.bf16 %v6171, %v6170
    %v6191 = vpack.c.bf16 %v6173, %v6172
    %v6192 = vpack.c.bf16 %v6175, %v6174
    %v6193 = vpack.c.bf16 %v6177, %v6176
    %v6194 = vpack.c.bf16 %v6178, %v6178
    %v6195 = vld [vmem:[%s4 + $0x200] sm:$0xf]
    %v6196 = vld [vmem:[%s4 + $0x204] sm:$0xf]
    %v6197 = vld [vmem:[%s4 + $0x208] sm:$0xf]
    %v6198 = vld [vmem:[%s4 + $0x20c] sm:$0xf]
    %v6199 = vld [vmem:[%s4 + $0x210] sm:$0xf]
    %v6200 = vld [vmem:[%s4 + $0x214] sm:$0xf]
    %v6201 = vld [vmem:[%s4 + $0x218] sm:$0xf]
    %v6202 = vld [vmem:[%s4 + $0x21c] sm:$0xf]
    %v6203 = vld [vmem:[%s4 + $0x220] sm:$0xf]
    %v6204 = vld [vmem:[%s4 + $0x224] sm:$0xf]
    %v6205 = vld [vmem:[%s4 + $0x228] sm:$0xf]
    %v6206 = vld [vmem:[%s4 + $0x22c] sm:$0xf]
    %v6207 = vld [vmem:[%s4 + $0x230] sm:$0xf]
    %v6208 = vld [vmem:[%s4 + $0x234] sm:$0xf]
    %v6209 = vld [vmem:[%s4 + $0x238] sm:$0xf]
    %v6210 = vld [vmem:[%s4 + $0x23c] sm:$0xf]
    %v6227 = vunpack.c.l.b16 %v6195
    %v6228 = vunpack.c.l.b16 %v6196
    %v6229 = vunpack.c.l.b16 %v6197
    %v6230 = vunpack.c.l.b16 %v6198
    %v6231 = vunpack.c.l.b16 %v6199
    %v6232 = vunpack.c.l.b16 %v6200
    %v6233 = vunpack.c.l.b16 %v6201
    %v6234 = vunpack.c.l.b16 %v6202
    %v6235 = vunpack.c.l.b16 %v6203
    %v6236 = vunpack.c.l.b16 %v6204
    %v6237 = vunpack.c.l.b16 %v6205
    %v6238 = vunpack.c.l.b16 %v6206
    %v6239 = vunpack.c.l.b16 %v6207
    %v6240 = vunpack.c.l.b16 %v6208
    %v6241 = vunpack.c.l.b16 %v6209
    %v6242 = vunpack.c.l.b16 %v6210
    %v6243 = vpack.c.b16 %v6228, %v6227
    %v6244 = vpack.c.b16 %v6230, %v6229
    %v6245 = vpack.c.b16 %v6232, %v6231
    %v6246 = vpack.c.b16 %v6234, %v6233
    %v6247 = vpack.c.b16 %v6236, %v6235
    %v6248 = vpack.c.b16 %v6238, %v6237
    %v6249 = vpack.c.b16 %v6240, %v6239
    %v6250 = vpack.c.b16 %v6242, %v6241
    %6259 = vmatpush.bf16.msra.mxu0 %v6250
    %6260 = vmatpush.bf16.msra.mxu0 %v6249
    %6261 = vmatpush.bf16.msra.mxu0 %v6248
    %6262 = vmatpush.bf16.msra.mxu0 %v6247
    %6263 = vmatpush.bf16.msra.mxu0 %v6246
    %6264 = vmatpush.bf16.msra.mxu0 %v6245
    %6265 = vmatpush.bf16.msra.mxu0 %v6244
    %6266 = vmatpush.bf16.msra.mxu0 %v6243
    %6267 = vmatmul.bf16.gmra.mxu0 %v6179
    %v6268 = vpop.f32.mrf.mxu0
    %v6269 = vadd.f32 0.0, %v6268
    %v6270 = vpop.f32.mrf.mxu0
    %v6271 = vadd.f32 0.0, %v6270
    %6272 = vmatmul.bf16.gmra.mxu0 %v6180
    %v6273 = vpop.f32.mrf.mxu0
    %v6274 = vadd.f32 0.0, %v6273
    %v6275 = vpop.f32.mrf.mxu0
    %v6276 = vadd.f32 0.0, %v6275
    %6277 = vmatmul.bf16.gmra.mxu0 %v6181
    %v6278 = vpop.f32.mrf.mxu0
    %v6279 = vadd.f32 0.0, %v6278
    %v6280 = vpop.f32.mrf.mxu0
    %v6281 = vadd.f32 0.0, %v6280
    %6282 = vmatmul.bf16.gmra.mxu0 %v6182
    %v6283 = vpop.f32.mrf.mxu0
    %v6284 = vadd.f32 0.0, %v6283
    %v6285 = vpop.f32.mrf.mxu0
    %v6286 = vadd.f32 0.0, %v6285
    %6287 = vmatmul.bf16.gmra.mxu0 %v6183
    %v6288 = vpop.f32.mrf.mxu0
    %v6289 = vadd.f32 0.0, %v6288
    %v6290 = vpop.f32.mrf.mxu0
    %v6291 = vadd.f32 0.0, %v6290
    %6292 = vmatmul.bf16.gmra.mxu0 %v6184
    %v6293 = vpop.f32.mrf.mxu0
    %v6294 = vadd.f32 0.0, %v6293
    %v6295 = vpop.f32.mrf.mxu0
    %v6296 = vadd.f32 0.0, %v6295
    %6297 = vmatmul.bf16.gmra.mxu0 %v6185
    %v6298 = vpop.f32.mrf.mxu0
    %v6299 = vadd.f32 0.0, %v6298
    %v6300 = vpop.f32.mrf.mxu0
    %v6301 = vadd.f32 0.0, %v6300
    %6302 = vmatmul.bf16.gmra.mxu0 %v6186
    %v6303 = vpop.f32.mrf.mxu0
    %v6304 = vadd.f32 0.0, %v6303
    %v6305 = vpop.f32.mrf.mxu0
    %v6306 = vadd.f32 0.0, %v6305
    %6307 = vmatmul.bf16.gmra.mxu0 %v6187
    %v6308 = vpop.f32.mrf.mxu0
    %v6309 = vadd.f32 0.0, %v6308
    %v6310 = vpop.f32.mrf.mxu0
    %v6311 = vadd.f32 0.0, %v6310
    %6312 = vmatmul.bf16.gmra.mxu0 %v6188
    %v6313 = vpop.f32.mrf.mxu0
    %v6314 = vadd.f32 0.0, %v6313
    %v6315 = vpop.f32.mrf.mxu0
    %v6316 = vadd.f32 0.0, %v6315
    %6317 = vmatmul.bf16.gmra.mxu0 %v6189
    %v6318 = vpop.f32.mrf.mxu0
    %v6319 = vadd.f32 0.0, %v6318
    %v6320 = vpop.f32.mrf.mxu0
    %v6321 = vadd.f32 0.0, %v6320
    %6322 = vmatmul.bf16.gmra.mxu0 %v6190
    %v6323 = vpop.f32.mrf.mxu0
    %v6324 = vadd.f32 0.0, %v6323
    %v6325 = vpop.f32.mrf.mxu0
    %v6326 = vadd.f32 0.0, %v6325
    %6327 = vmatmul.bf16.gmra.mxu0 %v6191
    %v6328 = vpop.f32.mrf.mxu0
    %v6329 = vadd.f32 0.0, %v6328
    %v6330 = vpop.f32.mrf.mxu0
    %v6331 = vadd.f32 0.0, %v6330
    %6332 = vmatmul.bf16.gmra.mxu0 %v6192
    %v6333 = vpop.f32.mrf.mxu0
    %v6334 = vadd.f32 0.0, %v6333
    %v6335 = vpop.f32.mrf.mxu0
    %v6336 = vadd.f32 0.0, %v6335
    %6337 = vmatmul.bf16.gmra.mxu0 %v6193
    %v6338 = vpop.f32.mrf.mxu0
    %v6339 = vadd.f32 0.0, %v6338
    %v6340 = vpop.f32.mrf.mxu0
    %v6341 = vadd.f32 0.0, %v6340
    %6342 = vmatmul.bf16.gmra.mxu0 %v6194
    %v6343 = vpop.f32.mrf.mxu0
    %v6344 = vadd.f32 0.0, %v6343
    %v6345 = vpop.f32.mrf.mxu0
    %6346 = vdwg.mxu0
    %v6347 = vadd.f32 %v6117, %v6269
    %v6348 = vadd.f32 %v6118, %v6271
    %v6349 = vadd.f32 %v6119, %v6274
    %v6350 = vadd.f32 %v6120, %v6276
    %v6351 = vadd.f32 %v6121, %v6279
    %v6352 = vadd.f32 %v6122, %v6281
    %v6353 = vadd.f32 %v6123, %v6284
    %v6354 = vadd.f32 %v6124, %v6286
    %v6355 = vadd.f32 %v6125, %v6289
    %v6356 = vadd.f32 %v6126, %v6291
    %v6357 = vadd.f32 %v6127, %v6294
    %v6358 = vadd.f32 %v6128, %v6296
    %v6359 = vadd.f32 %v6129, %v6299
    %v6360 = vadd.f32 %v6130, %v6301
    %v6361 = vadd.f32 %v6131, %v6304
    %v6362 = vadd.f32 %v6132, %v6306
    %v6363 = vadd.f32 %v6133, %v6309
    %v6364 = vadd.f32 %v6134, %v6311
    %v6365 = vadd.f32 %v6135, %v6314
    %v6366 = vadd.f32 %v6136, %v6316
    %v6367 = vadd.f32 %v6137, %v6319
    %v6368 = vadd.f32 %v6138, %v6321
    %v6369 = vadd.f32 %v6139, %v6324
    %v6370 = vadd.f32 %v6140, %v6326
    %v6371 = vadd.f32 %v6141, %v6329
    %v6372 = vadd.f32 %v6142, %v6331
    %v6373 = vadd.f32 %v6143, %v6334
    %v6374 = vadd.f32 %v6144, %v6336
    %v6375 = vadd.f32 %v6145, %v6339
    %v6376 = vadd.f32 %v6146, %v6341
    %v6377 = vadd.f32 %v6147, %v6344
    %v6378 = vld [vmem:[%s1] sm:$0xff]
    %v6379 = vld [vmem:[%s1 + $0x8] sm:$0xff]
    %v6380 = vld [vmem:[%s1 + $0x10] sm:$0xff]
    %v6381 = vld [vmem:[%s1 + $0x18] sm:$0xff]
    %v6382 = vld [vmem:[%s1 + $0x20] sm:$0xff]
    %v6383 = vld [vmem:[%s1 + $0x28] sm:$0xff]
    %v6384 = vld [vmem:[%s1 + $0x30] sm:$0xff]
    %v6385 = vld [vmem:[%s1 + $0x38] sm:$0xff]
    %v6386 = vld [vmem:[%s1 + $0x40] sm:$0xff]
    %v6387 = vld [vmem:[%s1 + $0x48] sm:$0xff]
    %v6388 = vld [vmem:[%s1 + $0x50] sm:$0xff]
    %v6389 = vld [vmem:[%s1 + $0x58] sm:$0xff]
    %v6390 = vld [vmem:[%s1 + $0x60] sm:$0xff]
    %v6391 = vld [vmem:[%s1 + $0x68] sm:$0xff]
    %v6392 = vld [vmem:[%s1 + $0x70] sm:$0xff]
    %v6393 = vld [vmem:[%s1 + $0x78] sm:$0xff]
    %v6394 = vld [vmem:[%s1 + $0x80] sm:$0xff]
    %v6395 = vld [vmem:[%s1 + $0x88] sm:$0xff]
    %v6396 = vld [vmem:[%s1 + $0x90] sm:$0xff]
    %v6397 = vld [vmem:[%s1 + $0x98] sm:$0xff]
    %v6398 = vld [vmem:[%s1 + $0xa0] sm:$0xff]
    %v6399 = vld [vmem:[%s1 + $0xa8] sm:$0xff]
    %v6400 = vld [vmem:[%s1 + $0xb0] sm:$0xff]
    %v6401 = vld [vmem:[%s1 + $0xb8] sm:$0xff]
    %v6402 = vld [vmem:[%s1 + $0xc0] sm:$0xff]
    %v6403 = vld [vmem:[%s1 + $0xc8] sm:$0xff]
    %v6404 = vld [vmem:[%s1 + $0xd0] sm:$0xff]
    %v6405 = vld [vmem:[%s1 + $0xd8] sm:$0xff]
    %v6406 = vld [vmem:[%s1 + $0xe0] sm:$0xff]
    %v6407 = vld [vmem:[%s1 + $0xe8] sm:$0xff]
    %v6408 = vld [vmem:[%s1 + $0xf0] sm:$0x3]
    %v6409 = vld [vmem:[%s6 + $0x2] sm:$0x1]
    %v6410 = vld [vmem:[%s6 + $0x3] sm:$0x1]
    %6412 = vset.pattern.permute.xlu0 0
    %6413 = vperm.xlu0 %6412, %v6378
    %v6414 = vpop.permute.xlu0 %6413
    %6417 = vset.pattern.permute.xlu0 0
    %6418 = vperm.xlu0 %6417, %v6379
    %v6419 = vpop.permute.xlu0 %6418
    %6422 = vset.pattern.permute.xlu0 0
    %6423 = vperm.xlu0 %6422, %v6380
    %v6424 = vpop.permute.xlu0 %6423
    %6427 = vset.pattern.permute.xlu0 0
    %6428 = vperm.xlu0 %6427, %v6381
    %v6429 = vpop.permute.xlu0 %6428
    %6432 = vset.pattern.permute.xlu0 0
    %6433 = vperm.xlu0 %6432, %v6382
    %v6434 = vpop.permute.xlu0 %6433
    %6437 = vset.pattern.permute.xlu0 0
    %6438 = vperm.xlu0 %6437, %v6383
    %v6439 = vpop.permute.xlu0 %6438
    %6442 = vset.pattern.permute.xlu0 0
    %6443 = vperm.xlu0 %6442, %v6384
    %v6444 = vpop.permute.xlu0 %6443
    %6447 = vset.pattern.permute.xlu0 0
    %6448 = vperm.xlu0 %6447, %v6385
    %v6449 = vpop.permute.xlu0 %6448
    %6452 = vset.pattern.permute.xlu0 0
    %6453 = vperm.xlu0 %6452, %v6386
    %v6454 = vpop.permute.xlu0 %6453
    %6457 = vset.pattern.permute.xlu0 0
    %6458 = vperm.xlu0 %6457, %v6387
    %v6459 = vpop.permute.xlu0 %6458
    %6462 = vset.pattern.permute.xlu0 0
    %6463 = vperm.xlu0 %6462, %v6388
    %v6464 = vpop.permute.xlu0 %6463
    %6467 = vset.pattern.permute.xlu0 0
    %6468 = vperm.xlu0 %6467, %v6389
    %v6469 = vpop.permute.xlu0 %6468
    %6472 = vset.pattern.permute.xlu0 0
    %6473 = vperm.xlu0 %6472, %v6390
    %v6474 = vpop.permute.xlu0 %6473
    %6477 = vset.pattern.permute.xlu0 0
    %6478 = vperm.xlu0 %6477, %v6391
    %v6479 = vpop.permute.xlu0 %6478
    %6482 = vset.pattern.permute.xlu0 0
    %6483 = vperm.xlu0 %6482, %v6392
    %v6484 = vpop.permute.xlu0 %6483
    %6487 = vset.pattern.permute.xlu0 0
    %6488 = vperm.xlu0 %6487, %v6393
    %v6489 = vpop.permute.xlu0 %6488
    %6492 = vset.pattern.permute.xlu0 0
    %6493 = vperm.xlu0 %6492, %v6394
    %v6494 = vpop.permute.xlu0 %6493
    %6497 = vset.pattern.permute.xlu0 0
    %6498 = vperm.xlu0 %6497, %v6395
    %v6499 = vpop.permute.xlu0 %6498
    %6502 = vset.pattern.permute.xlu0 0
    %6503 = vperm.xlu0 %6502, %v6396
    %v6504 = vpop.permute.xlu0 %6503
    %6507 = vset.pattern.permute.xlu0 0
    %6508 = vperm.xlu0 %6507, %v6397
    %v6509 = vpop.permute.xlu0 %6508
    %6512 = vset.pattern.permute.xlu0 0
    %6513 = vperm.xlu0 %6512, %v6398
    %v6514 = vpop.permute.xlu0 %6513
    %6517 = vset.pattern.permute.xlu0 0
    %6518 = vperm.xlu0 %6517, %v6399
    %v6519 = vpop.permute.xlu0 %6518
    %6522 = vset.pattern.permute.xlu0 0
    %6523 = vperm.xlu0 %6522, %v6400
    %v6524 = vpop.permute.xlu0 %6523
    %6527 = vset.pattern.permute.xlu0 0
    %6528 = vperm.xlu0 %6527, %v6401
    %v6529 = vpop.permute.xlu0 %6528
    %6532 = vset.pattern.permute.xlu0 0
    %6533 = vperm.xlu0 %6532, %v6402
    %v6534 = vpop.permute.xlu0 %6533
    %6537 = vset.pattern.permute.xlu0 0
    %6538 = vperm.xlu0 %6537, %v6403
    %v6539 = vpop.permute.xlu0 %6538
    %6542 = vset.pattern.permute.xlu0 0
    %6543 = vperm.xlu0 %6542, %v6404
    %v6544 = vpop.permute.xlu0 %6543
    %6547 = vset.pattern.permute.xlu0 0
    %6548 = vperm.xlu0 %6547, %v6405
    %v6549 = vpop.permute.xlu0 %6548
    %6552 = vset.pattern.permute.xlu0 0
    %6553 = vperm.xlu0 %6552, %v6406
    %v6554 = vpop.permute.xlu0 %6553
    %6557 = vset.pattern.permute.xlu0 0
    %6558 = vperm.xlu0 %6557, %v6407
    %v6559 = vpop.permute.xlu0 %6558
    %6562 = vset.pattern.permute.xlu0 0
    %6563 = vperm.xlu0 %6562, %v6408
    %v6564 = vpop.permute.xlu0 %6563
    %v6566 = vmul.f32 %v6347, %v6414
    %v6567 = vmul.f32 %v6348, %v6419
    %v6568 = vmul.f32 %v6349, %v6424
    %v6569 = vmul.f32 %v6350, %v6429
    %v6570 = vmul.f32 %v6351, %v6434
    %v6571 = vmul.f32 %v6352, %v6439
    %v6572 = vmul.f32 %v6353, %v6444
    %v6573 = vmul.f32 %v6354, %v6449
    %v6574 = vmul.f32 %v6355, %v6454
    %v6575 = vmul.f32 %v6356, %v6459
    %v6576 = vmul.f32 %v6357, %v6464
    %v6577 = vmul.f32 %v6358, %v6469
    %v6578 = vmul.f32 %v6359, %v6474
    %v6579 = vmul.f32 %v6360, %v6479
    %v6580 = vmul.f32 %v6361, %v6484
    %v6581 = vmul.f32 %v6362, %v6489
    %v6582 = vmul.f32 %v6363, %v6494
    %v6583 = vmul.f32 %v6364, %v6499
    %v6584 = vmul.f32 %v6365, %v6504
    %v6585 = vmul.f32 %v6366, %v6509
    %v6586 = vmul.f32 %v6367, %v6514
    %v6587 = vmul.f32 %v6368, %v6519
    %v6588 = vmul.f32 %v6369, %v6524
    %v6589 = vmul.f32 %v6370, %v6529
    %v6590 = vmul.f32 %v6371, %v6534
    %v6591 = vmul.f32 %v6372, %v6539
    %v6592 = vmul.f32 %v6373, %v6544
    %v6593 = vmul.f32 %v6374, %v6549
    %v6594 = vmul.f32 %v6375, %v6554
    %v6595 = vmul.f32 %v6376, %v6559
    %v6596 = vmul.f32 %v6377, %v6564
    %v6597 = vadd.f32 %v6566, %v6567
    %v6598 = vadd.f32 %v6597, %v6568
    %v6599 = vadd.f32 %v6598, %v6569
    %v6600 = vadd.f32 %v6599, %v6570
    %v6601 = vadd.f32 %v6600, %v6571
    %v6602 = vadd.f32 %v6601, %v6572
    %v6603 = vadd.f32 %v6602, %v6573
    %v6604 = vadd.f32 %v6603, %v6574
    %v6605 = vadd.f32 %v6604, %v6575
    %v6606 = vadd.f32 %v6605, %v6576
    %v6607 = vadd.f32 %v6606, %v6577
    %v6608 = vadd.f32 %v6607, %v6578
    %v6609 = vadd.f32 %v6608, %v6579
    %v6610 = vadd.f32 %v6609, %v6580
    %v6611 = vadd.f32 %v6610, %v6581
    %v6612 = vadd.f32 %v6611, %v6582
    %v6613 = vadd.f32 %v6612, %v6583
    %v6614 = vadd.f32 %v6613, %v6584
    %v6615 = vadd.f32 %v6614, %v6585
    %v6616 = vadd.f32 %v6615, %v6586
    %v6617 = vadd.f32 %v6616, %v6587
    %v6618 = vadd.f32 %v6617, %v6588
    %v6619 = vadd.f32 %v6618, %v6589
    %v6620 = vadd.f32 %v6619, %v6590
    %v6621 = vadd.f32 %v6620, %v6591
    %v6622 = vadd.f32 %v6621, %v6592
    %v6623 = vadd.f32 %v6622, %v6593
    %v6624 = vadd.f32 %v6623, %v6594
    %v6625 = vadd.f32 %v6624, %v6595
    %vm6626 = vcmask 1041408
    %v6627 = vsel %vm6626, %v6596, 0.0
    %v6628 = vadd.f32 %v6625, %v6627
    %v6629 = vrot.slane %v6628, 4
    %v6630 = vadd.f32 %v6628, %v6629
    %v6631 = vrot.slane %v6630, 2
    %v6632 = vadd.f32 %v6630, %v6631
    %v6633 = vrot.slane %v6632, 1
    %v6634 = vadd.f32 %v6632, %v6633
    %v6635 = vmul.f32 %v6634, 0.0061728396
    %v6636 = vmul.f32 %v6566, %v6566
    %v6637 = vmul.f32 %v6567, %v6567
    %v6638 = vmul.f32 %v6568, %v6568
    %v6639 = vmul.f32 %v6569, %v6569
    %v6640 = vmul.f32 %v6570, %v6570
    %v6641 = vmul.f32 %v6571, %v6571
    %v6642 = vmul.f32 %v6572, %v6572
    %v6643 = vmul.f32 %v6573, %v6573
    %v6644 = vmul.f32 %v6574, %v6574
    %v6645 = vmul.f32 %v6575, %v6575
    %v6646 = vmul.f32 %v6576, %v6576
    %v6647 = vmul.f32 %v6577, %v6577
    %v6648 = vmul.f32 %v6578, %v6578
    %v6649 = vmul.f32 %v6579, %v6579
    %v6650 = vmul.f32 %v6580, %v6580
    %v6651 = vmul.f32 %v6581, %v6581
    %v6652 = vmul.f32 %v6582, %v6582
    %v6653 = vmul.f32 %v6583, %v6583
    %v6654 = vmul.f32 %v6584, %v6584
    %v6655 = vmul.f32 %v6585, %v6585
    %v6656 = vmul.f32 %v6586, %v6586
    %v6657 = vmul.f32 %v6587, %v6587
    %v6658 = vmul.f32 %v6588, %v6588
    %v6659 = vmul.f32 %v6589, %v6589
    %v6660 = vmul.f32 %v6590, %v6590
    %v6661 = vmul.f32 %v6591, %v6591
    %v6662 = vmul.f32 %v6592, %v6592
    %v6663 = vmul.f32 %v6593, %v6593
    %v6664 = vmul.f32 %v6594, %v6594
    %v6665 = vmul.f32 %v6595, %v6595
    %v6666 = vmul.f32 %v6596, %v6596
    %v6667 = vadd.f32 %v6636, %v6637
    %v6668 = vadd.f32 %v6667, %v6638
    %v6669 = vadd.f32 %v6668, %v6639
    %v6670 = vadd.f32 %v6669, %v6640
    %v6671 = vadd.f32 %v6670, %v6641
    %v6672 = vadd.f32 %v6671, %v6642
    %v6673 = vadd.f32 %v6672, %v6643
    %v6674 = vadd.f32 %v6673, %v6644
    %v6675 = vadd.f32 %v6674, %v6645
    %v6676 = vadd.f32 %v6675, %v6646
    %v6677 = vadd.f32 %v6676, %v6647
    %v6678 = vadd.f32 %v6677, %v6648
    %v6679 = vadd.f32 %v6678, %v6649
    %v6680 = vadd.f32 %v6679, %v6650
    %v6681 = vadd.f32 %v6680, %v6651
    %v6682 = vadd.f32 %v6681, %v6652
    %v6683 = vadd.f32 %v6682, %v6653
    %v6684 = vadd.f32 %v6683, %v6654
    %v6685 = vadd.f32 %v6684, %v6655
    %v6686 = vadd.f32 %v6685, %v6656
    %v6687 = vadd.f32 %v6686, %v6657
    %v6688 = vadd.f32 %v6687, %v6658
    %v6689 = vadd.f32 %v6688, %v6659
    %v6690 = vadd.f32 %v6689, %v6660
    %v6691 = vadd.f32 %v6690, %v6661
    %v6692 = vadd.f32 %v6691, %v6662
    %v6693 = vadd.f32 %v6692, %v6663
    %v6694 = vadd.f32 %v6693, %v6664
    %v6695 = vadd.f32 %v6694, %v6665
    %v6696 = vsel %vm6626, %v6666, 0.0
    %v6697 = vadd.f32 %v6695, %v6696
    %v6698 = vrot.slane %v6697, 4
    %v6699 = vadd.f32 %v6697, %v6698
    %v6700 = vrot.slane %v6699, 2
    %v6701 = vadd.f32 %v6699, %v6700
    %v6702 = vrot.slane %v6701, 1
    %v6703 = vadd.f32 %v6701, %v6702
    %v6704 = vmul.f32 %v6703, 0.0061728396
    %v6705 = vmul.f32 %v6635, %v6635
    %v6706 = vsub.f32 %v6704, %v6705
    %v6707 = vmax.f32 %v6706, 0.0
    %v6708 = vsub.f32 %v6347, %v6635
    %v6709 = vsub.f32 %v6348, %v6635
    %v6710 = vsub.f32 %v6349, %v6635
    %v6711 = vsub.f32 %v6350, %v6635
    %v6712 = vsub.f32 %v6351, %v6635
    %v6713 = vsub.f32 %v6352, %v6635
    %v6714 = vsub.f32 %v6353, %v6635
    %v6715 = vsub.f32 %v6354, %v6635
    %v6716 = vsub.f32 %v6355, %v6635
    %v6717 = vsub.f32 %v6356, %v6635
    %v6718 = vsub.f32 %v6357, %v6635
    %v6719 = vsub.f32 %v6358, %v6635
    %v6720 = vsub.f32 %v6359, %v6635
    %v6721 = vsub.f32 %v6360, %v6635
    %v6722 = vsub.f32 %v6361, %v6635
    %v6723 = vsub.f32 %v6362, %v6635
    %v6724 = vsub.f32 %v6363, %v6635
    %v6725 = vsub.f32 %v6364, %v6635
    %v6726 = vsub.f32 %v6365, %v6635
    %v6727 = vsub.f32 %v6366, %v6635
    %v6728 = vsub.f32 %v6367, %v6635
    %v6729 = vsub.f32 %v6368, %v6635
    %v6730 = vsub.f32 %v6369, %v6635
    %v6731 = vsub.f32 %v6370, %v6635
    %v6732 = vsub.f32 %v6371, %v6635
    %v6733 = vsub.f32 %v6372, %v6635
    %v6734 = vsub.f32 %v6373, %v6635
    %v6735 = vsub.f32 %v6374, %v6635
    %v6736 = vsub.f32 %v6375, %v6635
    %v6737 = vsub.f32 %v6376, %v6635
    %v6738 = vsub.f32 %v6377, %v6635
    %v6739 = vadd.f32 %v6707, 1e-05
    %v6740 = vrsqrt.pop %v6739
    %v6741 = vmul.f32 %v6740, %v6739
    %v6742 = vmul.f32 %v6741, %v6740
    %v6743 = vmul.f32 0.5, %v6742
    %v6744 = vsub.f32 1.5, %v6743
    %v6745 = vmul.f32 %v6740, %v6744
    %vm6746 = vweird.f32 %v6739
    %vm6747 = vweird.f32 %v6740
    %vm6748 = vmor %vm6746, %vm6747
    %v6749 = vsel %vm6748, %v6740, %v6745
    %v6750 = vmul.f32 %v6708, %v6749
    %v6751 = vmul.f32 %v6709, %v6749
    %v6752 = vmul.f32 %v6710, %v6749
    %v6753 = vmul.f32 %v6711, %v6749
    %v6754 = vmul.f32 %v6712, %v6749
    %v6755 = vmul.f32 %v6713, %v6749
    %v6756 = vmul.f32 %v6714, %v6749
    %v6757 = vmul.f32 %v6715, %v6749
    %v6758 = vmul.f32 %v6716, %v6749
    %v6759 = vmul.f32 %v6717, %v6749
    %v6760 = vmul.f32 %v6718, %v6749
    %v6761 = vmul.f32 %v6719, %v6749
    %v6762 = vmul.f32 %v6720, %v6749
    %v6763 = vmul.f32 %v6721, %v6749
    %v6764 = vmul.f32 %v6722, %v6749
    %v6765 = vmul.f32 %v6723, %v6749
    %v6766 = vmul.f32 %v6724, %v6749
    %v6767 = vmul.f32 %v6725, %v6749
    %v6768 = vmul.f32 %v6726, %v6749
    %v6769 = vmul.f32 %v6727, %v6749
    %v6770 = vmul.f32 %v6728, %v6749
    %v6771 = vmul.f32 %v6729, %v6749
    %v6772 = vmul.f32 %v6730, %v6749
    %v6773 = vmul.f32 %v6731, %v6749
    %v6774 = vmul.f32 %v6732, %v6749
    %v6775 = vmul.f32 %v6733, %v6749
    %v6776 = vmul.f32 %v6734, %v6749
    %v6777 = vmul.f32 %v6735, %v6749
    %v6778 = vmul.f32 %v6736, %v6749
    %v6779 = vmul.f32 %v6737, %v6749
    %v6780 = vmul.f32 %v6738, %v6749
    %v6781 = vperm.slane %v6409, 0
    %v6782 = vmul.f32 %v6750, %v6781
    %v6783 = vmul.f32 %v6751, %v6781
    %v6784 = vmul.f32 %v6752, %v6781
    %v6785 = vmul.f32 %v6753, %v6781
    %v6786 = vmul.f32 %v6754, %v6781
    %v6787 = vmul.f32 %v6755, %v6781
    %v6788 = vmul.f32 %v6756, %v6781
    %v6789 = vmul.f32 %v6757, %v6781
    %v6790 = vmul.f32 %v6758, %v6781
    %v6791 = vmul.f32 %v6759, %v6781
    %v6792 = vmul.f32 %v6760, %v6781
    %v6793 = vmul.f32 %v6761, %v6781
    %v6794 = vmul.f32 %v6762, %v6781
    %v6795 = vmul.f32 %v6763, %v6781
    %v6796 = vmul.f32 %v6764, %v6781
    %v6797 = vmul.f32 %v6765, %v6781
    %v6798 = vmul.f32 %v6766, %v6781
    %v6799 = vmul.f32 %v6767, %v6781
    %v6800 = vmul.f32 %v6768, %v6781
    %v6801 = vmul.f32 %v6769, %v6781
    %v6802 = vmul.f32 %v6770, %v6781
    %v6803 = vmul.f32 %v6771, %v6781
    %v6804 = vmul.f32 %v6772, %v6781
    %v6805 = vmul.f32 %v6773, %v6781
    %v6806 = vmul.f32 %v6774, %v6781
    %v6807 = vmul.f32 %v6775, %v6781
    %v6808 = vmul.f32 %v6776, %v6781
    %v6809 = vmul.f32 %v6777, %v6781
    %v6810 = vmul.f32 %v6778, %v6781
    %v6811 = vmul.f32 %v6779, %v6781
    %v6812 = vmul.f32 %v6780, %v6781
    %v6813 = vperm.slane %v6410, 0
    %v6814 = vadd.f32 %v6782, %v6813
    %v6815 = vadd.f32 %v6783, %v6813
    %v6816 = vadd.f32 %v6784, %v6813
    %v6817 = vadd.f32 %v6785, %v6813
    %v6818 = vadd.f32 %v6786, %v6813
    %v6819 = vadd.f32 %v6787, %v6813
    %v6820 = vadd.f32 %v6788, %v6813
    %v6821 = vadd.f32 %v6789, %v6813
    %v6822 = vadd.f32 %v6790, %v6813
    %v6823 = vadd.f32 %v6791, %v6813
    %v6824 = vadd.f32 %v6792, %v6813
    %v6825 = vadd.f32 %v6793, %v6813
    %v6826 = vadd.f32 %v6794, %v6813
    %v6827 = vadd.f32 %v6795, %v6813
    %v6828 = vadd.f32 %v6796, %v6813
    %v6829 = vadd.f32 %v6797, %v6813
    %v6830 = vadd.f32 %v6798, %v6813
    %v6831 = vadd.f32 %v6799, %v6813
    %v6832 = vadd.f32 %v6800, %v6813
    %v6833 = vadd.f32 %v6801, %v6813
    %v6834 = vadd.f32 %v6802, %v6813
    %v6835 = vadd.f32 %v6803, %v6813
    %v6836 = vadd.f32 %v6804, %v6813
    %v6837 = vadd.f32 %v6805, %v6813
    %v6838 = vadd.f32 %v6806, %v6813
    %v6839 = vadd.f32 %v6807, %v6813
    %v6840 = vadd.f32 %v6808, %v6813
    %v6841 = vadd.f32 %v6809, %v6813
    %v6842 = vadd.f32 %v6810, %v6813
    %v6843 = vadd.f32 %v6811, %v6813
    %v6844 = vadd.f32 %v6812, %v6813
    %v6845 = vmax.f32 %v6814, 0.0
    %v6846 = vmax.f32 %v6815, 0.0
    %v6847 = vmax.f32 %v6816, 0.0
    %v6848 = vmax.f32 %v6817, 0.0
    %v6849 = vmax.f32 %v6818, 0.0
    %v6850 = vmax.f32 %v6819, 0.0
    %v6851 = vmax.f32 %v6820, 0.0
    %v6852 = vmax.f32 %v6821, 0.0
    %v6853 = vmax.f32 %v6822, 0.0
    %v6854 = vmax.f32 %v6823, 0.0
    %v6855 = vmax.f32 %v6824, 0.0
    %v6856 = vmax.f32 %v6825, 0.0
    %v6857 = vmax.f32 %v6826, 0.0
    %v6858 = vmax.f32 %v6827, 0.0
    %v6859 = vmax.f32 %v6828, 0.0
    %v6860 = vmax.f32 %v6829, 0.0
    %v6861 = vmax.f32 %v6830, 0.0
    %v6862 = vmax.f32 %v6831, 0.0
    %v6863 = vmax.f32 %v6832, 0.0
    %v6864 = vmax.f32 %v6833, 0.0
    %v6865 = vmax.f32 %v6834, 0.0
    %v6866 = vmax.f32 %v6835, 0.0
    %v6867 = vmax.f32 %v6836, 0.0
    %v6868 = vmax.f32 %v6837, 0.0
    %v6869 = vmax.f32 %v6838, 0.0
    %v6870 = vmax.f32 %v6839, 0.0
    %v6871 = vmax.f32 %v6840, 0.0
    %v6872 = vmax.f32 %v6841, 0.0
    %v6873 = vmax.f32 %v6842, 0.0
    %v6874 = vmax.f32 %v6843, 0.0
    %v6875 = vmax.f32 %v6844, 0.0
    %6876 = vst [vmem:[#allocation5] sm:$0xff] %v6845
    %6877 = vst [vmem:[#allocation5 + $0x8] sm:$0xff] %v6846
    %6878 = vst [vmem:[#allocation5 + $0x10] sm:$0xff] %v6847
    %6879 = vst [vmem:[#allocation5 + $0x18] sm:$0xff] %v6848
    %6880 = vst [vmem:[#allocation5 + $0x20] sm:$0xff] %v6849
    %6881 = vst [vmem:[#allocation5 + $0x28] sm:$0xff] %v6850
    %6882 = vst [vmem:[#allocation5 + $0x30] sm:$0xff] %v6851
    %6883 = vst [vmem:[#allocation5 + $0x38] sm:$0xff] %v6852
    %6884 = vst [vmem:[#allocation5 + $0x40] sm:$0xff] %v6853
    %6885 = vst [vmem:[#allocation5 + $0x48] sm:$0xff] %v6854
    %6886 = vst [vmem:[#allocation5 + $0x50] sm:$0xff] %v6855
    %6887 = vst [vmem:[#allocation5 + $0x58] sm:$0xff] %v6856
    %6888 = vst [vmem:[#allocation5 + $0x60] sm:$0xff] %v6857
    %6889 = vst [vmem:[#allocation5 + $0x68] sm:$0xff] %v6858
    %6890 = vst [vmem:[#allocation5 + $0x70] sm:$0xff] %v6859
    %6891 = vst [vmem:[#allocation5 + $0x78] sm:$0xff] %v6860
    %6892 = vst [vmem:[#allocation5 + $0x80] sm:$0xff] %v6861
    %6893 = vst [vmem:[#allocation5 + $0x88] sm:$0xff] %v6862
    %6894 = vst [vmem:[#allocation5 + $0x90] sm:$0xff] %v6863
    %6895 = vst [vmem:[#allocation5 + $0x98] sm:$0xff] %v6864
    %6896 = vst [vmem:[#allocation5 + $0xa0] sm:$0xff] %v6865
    %6897 = vst [vmem:[#allocation5 + $0xa8] sm:$0xff] %v6866
    %6898 = vst [vmem:[#allocation5 + $0xb0] sm:$0xff] %v6867
    %6899 = vst [vmem:[#allocation5 + $0xb8] sm:$0xff] %v6868
    %6900 = vst [vmem:[#allocation5 + $0xc0] sm:$0xff] %v6869
    %6901 = vst [vmem:[#allocation5 + $0xc8] sm:$0xff] %v6870
    %6902 = vst [vmem:[#allocation5 + $0xd0] sm:$0xff] %v6871
    %6903 = vst [vmem:[#allocation5 + $0xd8] sm:$0xff] %v6872
    %6904 = vst [vmem:[#allocation5 + $0xe0] sm:$0xff] %v6873
    %6905 = vst [vmem:[#allocation5 + $0xe8] sm:$0xff] %v6874
    %6906 = vst [vmem:[#allocation5 + $0xf0] sm:$0x3] %v6875
    %6907 = vst [vmem:[#allocation5 + $0xf2] sm:$0xff] 0.0
    %6908 = vst [vmem:[#allocation5 + $0xfa] sm:$0xff] 0.0
    %6909 = vst [vmem:[#allocation5 + $0x102] sm:$0xff] 0.0
    %6910 = vst [vmem:[#allocation5 + $0x10a] sm:$0x3f] 0.0
    %v6911 = vld [vmem:[#allocation5] sm:$0xff]
    %v6912 = vld [vmem:[#allocation5 + $0x8] sm:$0xff]
    %v6913 = vld [vmem:[#allocation5 + $0x10] sm:$0xff]
    %v6914 = vld [vmem:[#allocation5 + $0x18] sm:$0xff]
    %v6915 = vld [vmem:[#allocation5 + $0x20] sm:$0xff]
    %v6916 = vld [vmem:[#allocation5 + $0x28] sm:$0xff]
    %v6917 = vld [vmem:[#allocation5 + $0x30] sm:$0xff]
    %v6918 = vld [vmem:[#allocation5 + $0x38] sm:$0xff]
    %v6919 = vld [vmem:[#allocation5 + $0x40] sm:$0xff]
    %v6920 = vld [vmem:[#allocation5 + $0x48] sm:$0xff]
    %v6921 = vld [vmem:[#allocation5 + $0x50] sm:$0xff]
    %v6922 = vld [vmem:[#allocation5 + $0x58] sm:$0xff]
    %v6923 = vld [vmem:[#allocation5 + $0x60] sm:$0xff]
    %v6924 = vld [vmem:[#allocation5 + $0x68] sm:$0xff]
    %v6925 = vld [vmem:[#allocation5 + $0x70] sm:$0xff]
    %v6926 = vld [vmem:[#allocation5 + $0x78] sm:$0xff]
    %v6927 = vld [vmem:[#allocation5 + $0x80] sm:$0xff]
    %v6928 = vld [vmem:[#allocation5 + $0x88] sm:$0xff]
    %v6929 = vld [vmem:[#allocation5 + $0x90] sm:$0xff]
    %v6930 = vld [vmem:[#allocation5 + $0x98] sm:$0xff]
    %v6931 = vld [vmem:[#allocation5 + $0xa0] sm:$0xff]
    %v6932 = vld [vmem:[#allocation5 + $0xa8] sm:$0xff]
    %v6933 = vld [vmem:[#allocation5 + $0xb0] sm:$0xff]
    %v6934 = vld [vmem:[#allocation5 + $0xb8] sm:$0xff]
    %v6935 = vld [vmem:[#allocation5 + $0xc0] sm:$0xff]
    %v6936 = vld [vmem:[#allocation5 + $0xc8] sm:$0xff]
    %v6937 = vld [vmem:[#allocation5 + $0xd0] sm:$0xff]
    %v6938 = vld [vmem:[#allocation5 + $0xd8] sm:$0xff]
    %v6939 = vld [vmem:[#allocation5 + $0xe0] sm:$0xff]
    %v6940 = vld [vmem:[#allocation5 + $0xe8] sm:$0xff]
    %v6941 = vld [vmem:[#allocation5 + $0xf0] sm:$0x3]
    %v6942 = vld [vmem:[#allocation5 + $0x1] sm:$0xff]
    %v6943 = vld [vmem:[#allocation5 + $0x9] sm:$0xff]
    %v6944 = vld [vmem:[#allocation5 + $0x11] sm:$0xff]
    %v6945 = vld [vmem:[#allocation5 + $0x19] sm:$0xff]
    %v6946 = vld [vmem:[#allocation5 + $0x21] sm:$0xff]
    %v6947 = vld [vmem:[#allocation5 + $0x29] sm:$0xff]
    %v6948 = vld [vmem:[#allocation5 + $0x31] sm:$0xff]
    %v6949 = vld [vmem:[#allocation5 + $0x39] sm:$0xff]
    %v6950 = vld [vmem:[#allocation5 + $0x41] sm:$0xff]
    %v6951 = vld [vmem:[#allocation5 + $0x49] sm:$0xff]
    %v6952 = vld [vmem:[#allocation5 + $0x51] sm:$0xff]
    %v6953 = vld [vmem:[#allocation5 + $0x59] sm:$0xff]
    %v6954 = vld [vmem:[#allocation5 + $0x61] sm:$0xff]
    %v6955 = vld [vmem:[#allocation5 + $0x69] sm:$0xff]
    %v6956 = vld [vmem:[#allocation5 + $0x71] sm:$0xff]
    %v6957 = vld [vmem:[#allocation5 + $0x79] sm:$0xff]
    %v6958 = vld [vmem:[#allocation5 + $0x81] sm:$0xff]
    %v6959 = vld [vmem:[#allocation5 + $0x89] sm:$0xff]
    %v6960 = vld [vmem:[#allocation5 + $0x91] sm:$0xff]
    %v6961 = vld [vmem:[#allocation5 + $0x99] sm:$0xff]
    %v6962 = vld [vmem:[#allocation5 + $0xa1] sm:$0xff]
    %v6963 = vld [vmem:[#allocation5 + $0xa9] sm:$0xff]
    %v6964 = vld [vmem:[#allocation5 + $0xb1] sm:$0xff]
    %v6965 = vld [vmem:[#allocation5 + $0xb9] sm:$0xff]
    %v6966 = vld [vmem:[#allocation5 + $0xc1] sm:$0xff]
    %v6967 = vld [vmem:[#allocation5 + $0xc9] sm:$0xff]
    %v6968 = vld [vmem:[#allocation5 + $0xd1] sm:$0xff]
    %v6969 = vld [vmem:[#allocation5 + $0xd9] sm:$0xff]
    %v6970 = vld [vmem:[#allocation5 + $0xe1] sm:$0xff]
    %v6971 = vld [vmem:[#allocation5 + $0xe9] sm:$0xff]
    %v6972 = vld [vmem:[#allocation5 + $0xf1] sm:$0x3]
    %v6973 = vmax.f32 %v6911, %v6942
    %v6974 = vmax.f32 %v6912, %v6943
    %v6975 = vmax.f32 %v6913, %v6944
    %v6976 = vmax.f32 %v6914, %v6945
    %v6977 = vmax.f32 %v6915, %v6946
    %v6978 = vmax.f32 %v6916, %v6947
    %v6979 = vmax.f32 %v6917, %v6948
    %v6980 = vmax.f32 %v6918, %v6949
    %v6981 = vmax.f32 %v6919, %v6950
    %v6982 = vmax.f32 %v6920, %v6951
    %v6983 = vmax.f32 %v6921, %v6952
    %v6984 = vmax.f32 %v6922, %v6953
    %v6985 = vmax.f32 %v6923, %v6954
    %v6986 = vmax.f32 %v6924, %v6955
    %v6987 = vmax.f32 %v6925, %v6956
    %v6988 = vmax.f32 %v6926, %v6957
    %v6989 = vmax.f32 %v6927, %v6958
    %v6990 = vmax.f32 %v6928, %v6959
    %v6991 = vmax.f32 %v6929, %v6960
    %v6992 = vmax.f32 %v6930, %v6961
    %v6993 = vmax.f32 %v6931, %v6962
    %v6994 = vmax.f32 %v6932, %v6963
    %v6995 = vmax.f32 %v6933, %v6964
    %v6996 = vmax.f32 %v6934, %v6965
    %v6997 = vmax.f32 %v6935, %v6966
    %v6998 = vmax.f32 %v6936, %v6967
    %v6999 = vmax.f32 %v6937, %v6968
    %v7000 = vmax.f32 %v6938, %v6969
    %v7001 = vmax.f32 %v6939, %v6970
    %v7002 = vmax.f32 %v6940, %v6971
    %v7003 = vmax.f32 %v6941, %v6972
    %v7004 = vld [vmem:[#allocation5 + $0x2] sm:$0xff]
    %v7005 = vld [vmem:[#allocation5 + $0xa] sm:$0xff]
    %v7006 = vld [vmem:[#allocation5 + $0x12] sm:$0xff]
    %v7007 = vld [vmem:[#allocation5 + $0x1a] sm:$0xff]
    %v7008 = vld [vmem:[#allocation5 + $0x22] sm:$0xff]
    %v7009 = vld [vmem:[#allocation5 + $0x2a] sm:$0xff]
    %v7010 = vld [vmem:[#allocation5 + $0x32] sm:$0xff]
    %v7011 = vld [vmem:[#allocation5 + $0x3a] sm:$0xff]
    %v7012 = vld [vmem:[#allocation5 + $0x42] sm:$0xff]
    %v7013 = vld [vmem:[#allocation5 + $0x4a] sm:$0xff]
    %v7014 = vld [vmem:[#allocation5 + $0x52] sm:$0xff]
    %v7015 = vld [vmem:[#allocation5 + $0x5a] sm:$0xff]
    %v7016 = vld [vmem:[#allocation5 + $0x62] sm:$0xff]
    %v7017 = vld [vmem:[#allocation5 + $0x6a] sm:$0xff]
    %v7018 = vld [vmem:[#allocation5 + $0x72] sm:$0xff]
    %v7019 = vld [vmem:[#allocation5 + $0x7a] sm:$0xff]
    %v7020 = vld [vmem:[#allocation5 + $0x82] sm:$0xff]
    %v7021 = vld [vmem:[#allocation5 + $0x8a] sm:$0xff]
    %v7022 = vld [vmem:[#allocation5 + $0x92] sm:$0xff]
    %v7023 = vld [vmem:[#allocation5 + $0x9a] sm:$0xff]
    %v7024 = vld [vmem:[#allocation5 + $0xa2] sm:$0xff]
    %v7025 = vld [vmem:[#allocation5 + $0xaa] sm:$0xff]
    %v7026 = vld [vmem:[#allocation5 + $0xb2] sm:$0xff]
    %v7027 = vld [vmem:[#allocation5 + $0xba] sm:$0xff]
    %v7028 = vld [vmem:[#allocation5 + $0xc2] sm:$0xff]
    %v7029 = vld [vmem:[#allocation5 + $0xca] sm:$0xff]
    %v7030 = vld [vmem:[#allocation5 + $0xd2] sm:$0xff]
    %v7031 = vld [vmem:[#allocation5 + $0xda] sm:$0xff]
    %v7032 = vld [vmem:[#allocation5 + $0xe2] sm:$0xff]
    %v7033 = vld [vmem:[#allocation5 + $0xea] sm:$0xff]
    %v7034 = vld [vmem:[#allocation5 + $0xf2] sm:$0x3]
    %v7035 = vmax.f32 %v6973, %v7004
    %v7036 = vmax.f32 %v6974, %v7005
    %v7037 = vmax.f32 %v6975, %v7006
    %v7038 = vmax.f32 %v6976, %v7007
    %v7039 = vmax.f32 %v6977, %v7008
    %v7040 = vmax.f32 %v6978, %v7009
    %v7041 = vmax.f32 %v6979, %v7010
    %v7042 = vmax.f32 %v6980, %v7011
    %v7043 = vmax.f32 %v6981, %v7012
    %v7044 = vmax.f32 %v6982, %v7013
    %v7045 = vmax.f32 %v6983, %v7014
    %v7046 = vmax.f32 %v6984, %v7015
    %v7047 = vmax.f32 %v6985, %v7016
    %v7048 = vmax.f32 %v6986, %v7017
    %v7049 = vmax.f32 %v6987, %v7018
    %v7050 = vmax.f32 %v6988, %v7019
    %v7051 = vmax.f32 %v6989, %v7020
    %v7052 = vmax.f32 %v6990, %v7021
    %v7053 = vmax.f32 %v6991, %v7022
    %v7054 = vmax.f32 %v6992, %v7023
    %v7055 = vmax.f32 %v6993, %v7024
    %v7056 = vmax.f32 %v6994, %v7025
    %v7057 = vmax.f32 %v6995, %v7026
    %v7058 = vmax.f32 %v6996, %v7027
    %v7059 = vmax.f32 %v6997, %v7028
    %v7060 = vmax.f32 %v6998, %v7029
    %v7061 = vmax.f32 %v6999, %v7030
    %v7062 = vmax.f32 %v7000, %v7031
    %v7063 = vmax.f32 %v7001, %v7032
    %v7064 = vmax.f32 %v7002, %v7033
    %v7065 = vmax.f32 %v7003, %v7034
    %v7066 = vld [vmem:[#allocation5 + $0xb] sm:$0xff]
    %v7067 = vld [vmem:[#allocation5 + $0x13] sm:$0xff]
    %v7068 = vld [vmem:[#allocation5 + $0x1b] sm:$0xff]
    %v7069 = vld [vmem:[#allocation5 + $0x23] sm:$0xff]
    %v7070 = vld [vmem:[#allocation5 + $0x2b] sm:$0xff]
    %v7071 = vld [vmem:[#allocation5 + $0x33] sm:$0xff]
    %v7072 = vld [vmem:[#allocation5 + $0x3b] sm:$0xff]
    %v7073 = vld [vmem:[#allocation5 + $0x43] sm:$0xff]
    %v7074 = vld [vmem:[#allocation5 + $0x4b] sm:$0xff]
    %v7075 = vld [vmem:[#allocation5 + $0x53] sm:$0xff]
    %v7076 = vld [vmem:[#allocation5 + $0x5b] sm:$0xff]
    %v7077 = vld [vmem:[#allocation5 + $0x63] sm:$0xff]
    %v7078 = vld [vmem:[#allocation5 + $0x6b] sm:$0xff]
    %v7079 = vld [vmem:[#allocation5 + $0x73] sm:$0xff]
    %v7080 = vld [vmem:[#allocation5 + $0x7b] sm:$0xff]
    %v7081 = vld [vmem:[#allocation5 + $0x83] sm:$0xff]
    %v7082 = vld [vmem:[#allocation5 + $0x8b] sm:$0xff]
    %v7083 = vld [vmem:[#allocation5 + $0x93] sm:$0xff]
    %v7084 = vld [vmem:[#allocation5 + $0x9b] sm:$0xff]
    %v7085 = vld [vmem:[#allocation5 + $0xa3] sm:$0xff]
    %v7086 = vld [vmem:[#allocation5 + $0xab] sm:$0xff]
    %v7087 = vld [vmem:[#allocation5 + $0xb3] sm:$0xff]
    %v7088 = vld [vmem:[#allocation5 + $0xbb] sm:$0xff]
    %v7089 = vld [vmem:[#allocation5 + $0xc3] sm:$0xff]
    %v7090 = vld [vmem:[#allocation5 + $0xcb] sm:$0xff]
    %v7091 = vld [vmem:[#allocation5 + $0xd3] sm:$0xff]
    %v7092 = vld [vmem:[#allocation5 + $0xdb] sm:$0xff]
    %v7093 = vld [vmem:[#allocation5 + $0xe3] sm:$0xff]
    %v7094 = vld [vmem:[#allocation5 + $0xeb] sm:$0xff]
    %v7095 = vld [vmem:[#allocation5 + $0xf3] sm:$0xff]
    %v7096 = vld [vmem:[#allocation5 + $0xfb] sm:$0x3]
    %v7097 = vmax.f32 %v7035, %v7066
    %v7098 = vmax.f32 %v7036, %v7067
    %v7099 = vmax.f32 %v7037, %v7068
    %v7100 = vmax.f32 %v7038, %v7069
    %v7101 = vmax.f32 %v7039, %v7070
    %v7102 = vmax.f32 %v7040, %v7071
    %v7103 = vmax.f32 %v7041, %v7072
    %v7104 = vmax.f32 %v7042, %v7073
    %v7105 = vmax.f32 %v7043, %v7074
    %v7106 = vmax.f32 %v7044, %v7075
    %v7107 = vmax.f32 %v7045, %v7076
    %v7108 = vmax.f32 %v7046, %v7077
    %v7109 = vmax.f32 %v7047, %v7078
    %v7110 = vmax.f32 %v7048, %v7079
    %v7111 = vmax.f32 %v7049, %v7080
    %v7112 = vmax.f32 %v7050, %v7081
    %v7113 = vmax.f32 %v7051, %v7082
    %v7114 = vmax.f32 %v7052, %v7083
    %v7115 = vmax.f32 %v7053, %v7084
    %v7116 = vmax.f32 %v7054, %v7085
    %v7117 = vmax.f32 %v7055, %v7086
    %v7118 = vmax.f32 %v7056, %v7087
    %v7119 = vmax.f32 %v7057, %v7088
    %v7120 = vmax.f32 %v7058, %v7089
    %v7121 = vmax.f32 %v7059, %v7090
    %v7122 = vmax.f32 %v7060, %v7091
    %v7123 = vmax.f32 %v7061, %v7092
    %v7124 = vmax.f32 %v7062, %v7093
    %v7125 = vmax.f32 %v7063, %v7094
    %v7126 = vmax.f32 %v7064, %v7095
    %v7127 = vmax.f32 %v7065, %v7096
    %v7128 = vld [vmem:[#allocation5 + $0xc] sm:$0xff]
    %v7129 = vld [vmem:[#allocation5 + $0x14] sm:$0xff]
    %v7130 = vld [vmem:[#allocation5 + $0x1c] sm:$0xff]
    %v7131 = vld [vmem:[#allocation5 + $0x24] sm:$0xff]
    %v7132 = vld [vmem:[#allocation5 + $0x2c] sm:$0xff]
    %v7133 = vld [vmem:[#allocation5 + $0x34] sm:$0xff]
    %v7134 = vld [vmem:[#allocation5 + $0x3c] sm:$0xff]
    %v7135 = vld [vmem:[#allocation5 + $0x44] sm:$0xff]
    %v7136 = vld [vmem:[#allocation5 + $0x4c] sm:$0xff]
    %v7137 = vld [vmem:[#allocation5 + $0x54] sm:$0xff]
    %v7138 = vld [vmem:[#allocation5 + $0x5c] sm:$0xff]
    %v7139 = vld [vmem:[#allocation5 + $0x64] sm:$0xff]
    %v7140 = vld [vmem:[#allocation5 + $0x6c] sm:$0xff]
    %v7141 = vld [vmem:[#allocation5 + $0x74] sm:$0xff]
    %v7142 = vld [vmem:[#allocation5 + $0x7c] sm:$0xff]
    %v7143 = vld [vmem:[#allocation5 + $0x84] sm:$0xff]
    %v7144 = vld [vmem:[#allocation5 + $0x8c] sm:$0xff]
    %v7145 = vld [vmem:[#allocation5 + $0x94] sm:$0xff]
    %v7146 = vld [vmem:[#allocation5 + $0x9c] sm:$0xff]
    %v7147 = vld [vmem:[#allocation5 + $0xa4] sm:$0xff]
    %v7148 = vld [vmem:[#allocation5 + $0xac] sm:$0xff]
    %v7149 = vld [vmem:[#allocation5 + $0xb4] sm:$0xff]
    %v7150 = vld [vmem:[#allocation5 + $0xbc] sm:$0xff]
    %v7151 = vld [vmem:[#allocation5 + $0xc4] sm:$0xff]
    %v7152 = vld [vmem:[#allocation5 + $0xcc] sm:$0xff]
    %v7153 = vld [vmem:[#allocation5 + $0xd4] sm:$0xff]
    %v7154 = vld [vmem:[#allocation5 + $0xdc] sm:$0xff]
    %v7155 = vld [vmem:[#allocation5 + $0xe4] sm:$0xff]
    %v7156 = vld [vmem:[#allocation5 + $0xec] sm:$0xff]
    %v7157 = vld [vmem:[#allocation5 + $0xf4] sm:$0xff]
    %v7158 = vld [vmem:[#allocation5 + $0xfc] sm:$0x3]
    %v7159 = vmax.f32 %v7097, %v7128
    %v7160 = vmax.f32 %v7098, %v7129
    %v7161 = vmax.f32 %v7099, %v7130
    %v7162 = vmax.f32 %v7100, %v7131
    %v7163 = vmax.f32 %v7101, %v7132
    %v7164 = vmax.f32 %v7102, %v7133
    %v7165 = vmax.f32 %v7103, %v7134
    %v7166 = vmax.f32 %v7104, %v7135
    %v7167 = vmax.f32 %v7105, %v7136
    %v7168 = vmax.f32 %v7106, %v7137
    %v7169 = vmax.f32 %v7107, %v7138
    %v7170 = vmax.f32 %v7108, %v7139
    %v7171 = vmax.f32 %v7109, %v7140
    %v7172 = vmax.f32 %v7110, %v7141
    %v7173 = vmax.f32 %v7111, %v7142
    %v7174 = vmax.f32 %v7112, %v7143
    %v7175 = vmax.f32 %v7113, %v7144
    %v7176 = vmax.f32 %v7114, %v7145
    %v7177 = vmax.f32 %v7115, %v7146
    %v7178 = vmax.f32 %v7116, %v7147
    %v7179 = vmax.f32 %v7117, %v7148
    %v7180 = vmax.f32 %v7118, %v7149
    %v7181 = vmax.f32 %v7119, %v7150
    %v7182 = vmax.f32 %v7120, %v7151
    %v7183 = vmax.f32 %v7121, %v7152
    %v7184 = vmax.f32 %v7122, %v7153
    %v7185 = vmax.f32 %v7123, %v7154
    %v7186 = vmax.f32 %v7124, %v7155
    %v7187 = vmax.f32 %v7125, %v7156
    %v7188 = vmax.f32 %v7126, %v7157
    %v7189 = vmax.f32 %v7127, %v7158
    %v7190 = vld [vmem:[#allocation5 + $0xd] sm:$0xff]
    %v7191 = vld [vmem:[#allocation5 + $0x15] sm:$0xff]
    %v7192 = vld [vmem:[#allocation5 + $0x1d] sm:$0xff]
    %v7193 = vld [vmem:[#allocation5 + $0x25] sm:$0xff]
    %v7194 = vld [vmem:[#allocation5 + $0x2d] sm:$0xff]
    %v7195 = vld [vmem:[#allocation5 + $0x35] sm:$0xff]
    %v7196 = vld [vmem:[#allocation5 + $0x3d] sm:$0xff]
    %v7197 = vld [vmem:[#allocation5 + $0x45] sm:$0xff]
    %v7198 = vld [vmem:[#allocation5 + $0x4d] sm:$0xff]
    %v7199 = vld [vmem:[#allocation5 + $0x55] sm:$0xff]
    %v7200 = vld [vmem:[#allocation5 + $0x5d] sm:$0xff]
    %v7201 = vld [vmem:[#allocation5 + $0x65] sm:$0xff]
    %v7202 = vld [vmem:[#allocation5 + $0x6d] sm:$0xff]
    %v7203 = vld [vmem:[#allocation5 + $0x75] sm:$0xff]
    %v7204 = vld [vmem:[#allocation5 + $0x7d] sm:$0xff]
    %v7205 = vld [vmem:[#allocation5 + $0x85] sm:$0xff]
    %v7206 = vld [vmem:[#allocation5 + $0x8d] sm:$0xff]
    %v7207 = vld [vmem:[#allocation5 + $0x95] sm:$0xff]
    %v7208 = vld [vmem:[#allocation5 + $0x9d] sm:$0xff]
    %v7209 = vld [vmem:[#allocation5 + $0xa5] sm:$0xff]
    %v7210 = vld [vmem:[#allocation5 + $0xad] sm:$0xff]
    %v7211 = vld [vmem:[#allocation5 + $0xb5] sm:$0xff]
    %v7212 = vld [vmem:[#allocation5 + $0xbd] sm:$0xff]
    %v7213 = vld [vmem:[#allocation5 + $0xc5] sm:$0xff]
    %v7214 = vld [vmem:[#allocation5 + $0xcd] sm:$0xff]
    %v7215 = vld [vmem:[#allocation5 + $0xd5] sm:$0xff]
    %v7216 = vld [vmem:[#allocation5 + $0xdd] sm:$0xff]
    %v7217 = vld [vmem:[#allocation5 + $0xe5] sm:$0xff]
    %v7218 = vld [vmem:[#allocation5 + $0xed] sm:$0xff]
    %v7219 = vld [vmem:[#allocation5 + $0xf5] sm:$0xff]
    %v7220 = vld [vmem:[#allocation5 + $0xfd] sm:$0x3]
    %v7221 = vmax.f32 %v7159, %v7190
    %v7222 = vmax.f32 %v7160, %v7191
    %v7223 = vmax.f32 %v7161, %v7192
    %v7224 = vmax.f32 %v7162, %v7193
    %v7225 = vmax.f32 %v7163, %v7194
    %v7226 = vmax.f32 %v7164, %v7195
    %v7227 = vmax.f32 %v7165, %v7196
    %v7228 = vmax.f32 %v7166, %v7197
    %v7229 = vmax.f32 %v7167, %v7198
    %v7230 = vmax.f32 %v7168, %v7199
    %v7231 = vmax.f32 %v7169, %v7200
    %v7232 = vmax.f32 %v7170, %v7201
    %v7233 = vmax.f32 %v7171, %v7202
    %v7234 = vmax.f32 %v7172, %v7203
    %v7235 = vmax.f32 %v7173, %v7204
    %v7236 = vmax.f32 %v7174, %v7205
    %v7237 = vmax.f32 %v7175, %v7206
    %v7238 = vmax.f32 %v7176, %v7207
    %v7239 = vmax.f32 %v7177, %v7208
    %v7240 = vmax.f32 %v7178, %v7209
    %v7241 = vmax.f32 %v7179, %v7210
    %v7242 = vmax.f32 %v7180, %v7211
    %v7243 = vmax.f32 %v7181, %v7212
    %v7244 = vmax.f32 %v7182, %v7213
    %v7245 = vmax.f32 %v7183, %v7214
    %v7246 = vmax.f32 %v7184, %v7215
    %v7247 = vmax.f32 %v7185, %v7216
    %v7248 = vmax.f32 %v7186, %v7217
    %v7249 = vmax.f32 %v7187, %v7218
    %v7250 = vmax.f32 %v7188, %v7219
    %v7251 = vmax.f32 %v7189, %v7220
    %v7252 = vld [vmem:[#allocation5 + $0x16] sm:$0xff]
    %v7253 = vld [vmem:[#allocation5 + $0x1e] sm:$0xff]
    %v7254 = vld [vmem:[#allocation5 + $0x26] sm:$0xff]
    %v7255 = vld [vmem:[#allocation5 + $0x2e] sm:$0xff]
    %v7256 = vld [vmem:[#allocation5 + $0x36] sm:$0xff]
    %v7257 = vld [vmem:[#allocation5 + $0x3e] sm:$0xff]
    %v7258 = vld [vmem:[#allocation5 + $0x46] sm:$0xff]
    %v7259 = vld [vmem:[#allocation5 + $0x4e] sm:$0xff]
    %v7260 = vld [vmem:[#allocation5 + $0x56] sm:$0xff]
    %v7261 = vld [vmem:[#allocation5 + $0x5e] sm:$0xff]
    %v7262 = vld [vmem:[#allocation5 + $0x66] sm:$0xff]
    %v7263 = vld [vmem:[#allocation5 + $0x6e] sm:$0xff]
    %v7264 = vld [vmem:[#allocation5 + $0x76] sm:$0xff]
    %v7265 = vld [vmem:[#allocation5 + $0x7e] sm:$0xff]
    %v7266 = vld [vmem:[#allocation5 + $0x86] sm:$0xff]
    %v7267 = vld [vmem:[#allocation5 + $0x8e] sm:$0xff]
    %v7268 = vld [vmem:[#allocation5 + $0x96] sm:$0xff]
    %v7269 = vld [vmem:[#allocation5 + $0x9e] sm:$0xff]
    %v7270 = vld [vmem:[#allocation5 + $0xa6] sm:$0xff]
    %v7271 = vld [vmem:[#allocation5 + $0xae] sm:$0xff]
    %v7272 = vld [vmem:[#allocation5 + $0xb6] sm:$0xff]
    %v7273 = vld [vmem:[#allocation5 + $0xbe] sm:$0xff]
    %v7274 = vld [vmem:[#allocation5 + $0xc6] sm:$0xff]
    %v7275 = vld [vmem:[#allocation5 + $0xce] sm:$0xff]
    %v7276 = vld [vmem:[#allocation5 + $0xd6] sm:$0xff]
    %v7277 = vld [vmem:[#allocation5 + $0xde] sm:$0xff]
    %v7278 = vld [vmem:[#allocation5 + $0xe6] sm:$0xff]
    %v7279 = vld [vmem:[#allocation5 + $0xee] sm:$0xff]
    %v7280 = vld [vmem:[#allocation5 + $0xf6] sm:$0xff]
    %v7281 = vld [vmem:[#allocation5 + $0xfe] sm:$0xff]
    %v7282 = vld [vmem:[#allocation5 + $0x106] sm:$0x3]
    %v7283 = vmax.f32 %v7221, %v7252
    %v7284 = vmax.f32 %v7222, %v7253
    %v7285 = vmax.f32 %v7223, %v7254
    %v7286 = vmax.f32 %v7224, %v7255
    %v7287 = vmax.f32 %v7225, %v7256
    %v7288 = vmax.f32 %v7226, %v7257
    %v7289 = vmax.f32 %v7227, %v7258
    %v7290 = vmax.f32 %v7228, %v7259
    %v7291 = vmax.f32 %v7229, %v7260
    %v7292 = vmax.f32 %v7230, %v7261
    %v7293 = vmax.f32 %v7231, %v7262
    %v7294 = vmax.f32 %v7232, %v7263
    %v7295 = vmax.f32 %v7233, %v7264
    %v7296 = vmax.f32 %v7234, %v7265
    %v7297 = vmax.f32 %v7235, %v7266
    %v7298 = vmax.f32 %v7236, %v7267
    %v7299 = vmax.f32 %v7237, %v7268
    %v7300 = vmax.f32 %v7238, %v7269
    %v7301 = vmax.f32 %v7239, %v7270
    %v7302 = vmax.f32 %v7240, %v7271
    %v7303 = vmax.f32 %v7241, %v7272
    %v7304 = vmax.f32 %v7242, %v7273
    %v7305 = vmax.f32 %v7243, %v7274
    %v7306 = vmax.f32 %v7244, %v7275
    %v7307 = vmax.f32 %v7245, %v7276
    %v7308 = vmax.f32 %v7246, %v7277
    %v7309 = vmax.f32 %v7247, %v7278
    %v7310 = vmax.f32 %v7248, %v7279
    %v7311 = vmax.f32 %v7249, %v7280
    %v7312 = vmax.f32 %v7250, %v7281
    %v7313 = vmax.f32 %v7251, %v7282
    %v7314 = vld [vmem:[#allocation5 + $0x17] sm:$0xff]
    %v7315 = vld [vmem:[#allocation5 + $0x1f] sm:$0xff]
    %v7316 = vld [vmem:[#allocation5 + $0x27] sm:$0xff]
    %v7317 = vld [vmem:[#allocation5 + $0x2f] sm:$0xff]
    %v7318 = vld [vmem:[#allocation5 + $0x37] sm:$0xff]
    %v7319 = vld [vmem:[#allocation5 + $0x3f] sm:$0xff]
    %v7320 = vld [vmem:[#allocation5 + $0x47] sm:$0xff]
    %v7321 = vld [vmem:[#allocation5 + $0x4f] sm:$0xff]
    %v7322 = vld [vmem:[#allocation5 + $0x57] sm:$0xff]
    %v7323 = vld [vmem:[#allocation5 + $0x5f] sm:$0xff]
    %v7324 = vld [vmem:[#allocation5 + $0x67] sm:$0xff]
    %v7325 = vld [vmem:[#allocation5 + $0x6f] sm:$0xff]
    %v7326 = vld [vmem:[#allocation5 + $0x77] sm:$0xff]
    %v7327 = vld [vmem:[#allocation5 + $0x7f] sm:$0xff]
    %v7328 = vld [vmem:[#allocation5 + $0x87] sm:$0xff]
    %v7329 = vld [vmem:[#allocation5 + $0x8f] sm:$0xff]
    %v7330 = vld [vmem:[#allocation5 + $0x97] sm:$0xff]
    %v7331 = vld [vmem:[#allocation5 + $0x9f] sm:$0xff]
    %v7332 = vld [vmem:[#allocation5 + $0xa7] sm:$0xff]
    %v7333 = vld [vmem:[#allocation5 + $0xaf] sm:$0xff]
    %v7334 = vld [vmem:[#allocation5 + $0xb7] sm:$0xff]
    %v7335 = vld [vmem:[#allocation5 + $0xbf] sm:$0xff]
    %v7336 = vld [vmem:[#allocation5 + $0xc7] sm:$0xff]
    %v7337 = vld [vmem:[#allocation5 + $0xcf] sm:$0xff]
    %v7338 = vld [vmem:[#allocation5 + $0xd7] sm:$0xff]
    %v7339 = vld [vmem:[#allocation5 + $0xdf] sm:$0xff]
    %v7340 = vld [vmem:[#allocation5 + $0xe7] sm:$0xff]
    %v7341 = vld [vmem:[#allocation5 + $0xef] sm:$0xff]
    %v7342 = vld [vmem:[#allocation5 + $0xf7] sm:$0xff]
    %v7343 = vld [vmem:[#allocation5 + $0xff] sm:$0xff]
    %v7344 = vld [vmem:[#allocation5 + $0x107] sm:$0x3]
    %v7345 = vmax.f32 %v7283, %v7314
    %v7346 = vmax.f32 %v7284, %v7315
    %v7347 = vmax.f32 %v7285, %v7316
    %v7348 = vmax.f32 %v7286, %v7317
    %v7349 = vmax.f32 %v7287, %v7318
    %v7350 = vmax.f32 %v7288, %v7319
    %v7351 = vmax.f32 %v7289, %v7320
    %v7352 = vmax.f32 %v7290, %v7321
    %v7353 = vmax.f32 %v7291, %v7322
    %v7354 = vmax.f32 %v7292, %v7323
    %v7355 = vmax.f32 %v7293, %v7324
    %v7356 = vmax.f32 %v7294, %v7325
    %v7357 = vmax.f32 %v7295, %v7326
    %v7358 = vmax.f32 %v7296, %v7327
    %v7359 = vmax.f32 %v7297, %v7328
    %v7360 = vmax.f32 %v7298, %v7329
    %v7361 = vmax.f32 %v7299, %v7330
    %v7362 = vmax.f32 %v7300, %v7331
    %v7363 = vmax.f32 %v7301, %v7332
    %v7364 = vmax.f32 %v7302, %v7333
    %v7365 = vmax.f32 %v7303, %v7334
    %v7366 = vmax.f32 %v7304, %v7335
    %v7367 = vmax.f32 %v7305, %v7336
    %v7368 = vmax.f32 %v7306, %v7337
    %v7369 = vmax.f32 %v7307, %v7338
    %v7370 = vmax.f32 %v7308, %v7339
    %v7371 = vmax.f32 %v7309, %v7340
    %v7372 = vmax.f32 %v7310, %v7341
    %v7373 = vmax.f32 %v7311, %v7342
    %v7374 = vmax.f32 %v7312, %v7343
    %v7375 = vmax.f32 %v7313, %v7344
    %v7376 = vld [vmem:[#allocation5 + $0xf0] sm:$0xff]
    %v7377 = vld [vmem:[#allocation5 + $0xf8] sm:$0xff]
    %v7378 = vld [vmem:[#allocation5 + $0x100] sm:$0xff]
    %v7379 = vld [vmem:[#allocation5 + $0x108] sm:$0x3]
    %v7380 = vmax.f32 %v7345, %v6914
    %v7381 = vmax.f32 %v7346, %v6915
    %v7382 = vmax.f32 %v7347, %v6916
    %v7383 = vmax.f32 %v7348, %v6917
    %v7384 = vmax.f32 %v7349, %v6918
    %v7385 = vmax.f32 %v7350, %v6919
    %v7386 = vmax.f32 %v7351, %v6920
    %v7387 = vmax.f32 %v7352, %v6921
    %v7388 = vmax.f32 %v7353, %v6922
    %v7389 = vmax.f32 %v7354, %v6923
    %v7390 = vmax.f32 %v7355, %v6924
    %v7391 = vmax.f32 %v7356, %v6925
    %v7392 = vmax.f32 %v7357, %v6926
    %v7393 = vmax.f32 %v7358, %v6927
    %v7394 = vmax.f32 %v7359, %v6928
    %v7395 = vmax.f32 %v7360, %v6929
    %v7396 = vmax.f32 %v7361, %v6930
    %v7397 = vmax.f32 %v7362, %v6931
    %v7398 = vmax.f32 %v7363, %v6932
    %v7399 = vmax.f32 %v7364, %v6933
    %v7400 = vmax.f32 %v7365, %v6934
    %v7401 = vmax.f32 %v7366, %v6935
    %v7402 = vmax.f32 %v7367, %v6936
    %v7403 = vmax.f32 %v7368, %v6937
    %v7404 = vmax.f32 %v7369, %v6938
    %v7405 = vmax.f32 %v7370, %v6939
    %v7406 = vmax.f32 %v7371, %v6940
    %v7407 = vmax.f32 %v7372, %v7376
    %v7408 = vmax.f32 %v7373, %v7377
    %v7409 = vmax.f32 %v7374, %v7378
    %v7410 = vmax.f32 %v7375, %v7379
    %7411 = vst [vmem:[#allocation6] sm:$0xff] %v7380
    %7412 = vst [vmem:[#allocation6 + $0x8] sm:$0xff] %v7381
    %7413 = vst [vmem:[#allocation6 + $0x10] sm:$0xff] %v7382
    %7414 = vst [vmem:[#allocation6 + $0x18] sm:$0xff] %v7383
    %7415 = vst [vmem:[#allocation6 + $0x20] sm:$0xff] %v7384
    %7416 = vst [vmem:[#allocation6 + $0x28] sm:$0xff] %v7385
    %7417 = vst [vmem:[#allocation6 + $0x30] sm:$0xff] %v7386
    %7418 = vst [vmem:[#allocation6 + $0x38] sm:$0xff] %v7387
    %7419 = vst [vmem:[#allocation6 + $0x40] sm:$0xff] %v7388
    %7420 = vst [vmem:[#allocation6 + $0x48] sm:$0xff] %v7389
    %7421 = vst [vmem:[#allocation6 + $0x50] sm:$0xff] %v7390
    %7422 = vst [vmem:[#allocation6 + $0x58] sm:$0xff] %v7391
    %7423 = vst [vmem:[#allocation6 + $0x60] sm:$0xff] %v7392
    %7424 = vst [vmem:[#allocation6 + $0x68] sm:$0xff] %v7393
    %7425 = vst [vmem:[#allocation6 + $0x70] sm:$0xff] %v7394
    %7426 = vst [vmem:[#allocation6 + $0x78] sm:$0xff] %v7395
    %7427 = vst [vmem:[#allocation6 + $0x80] sm:$0xff] %v7396
    %7428 = vst [vmem:[#allocation6 + $0x88] sm:$0xff] %v7397
    %7429 = vst [vmem:[#allocation6 + $0x90] sm:$0xff] %v7398
    %7430 = vst [vmem:[#allocation6 + $0x98] sm:$0xff] %v7399
    %7431 = vst [vmem:[#allocation6 + $0xa0] sm:$0xff] %v7400
    %7432 = vst [vmem:[#allocation6 + $0xa8] sm:$0xff] %v7401
    %7433 = vst [vmem:[#allocation6 + $0xb0] sm:$0xff] %v7402
    %7434 = vst [vmem:[#allocation6 + $0xb8] sm:$0xff] %v7403
    %7435 = vst [vmem:[#allocation6 + $0xc0] sm:$0xff] %v7404
    %7436 = vst [vmem:[#allocation6 + $0xc8] sm:$0xff] %v7405
    %7437 = vst [vmem:[#allocation6 + $0xd0] sm:$0xff] %v7406
    %7438 = vst [vmem:[#allocation6 + $0xd8] sm:$0xff] %v7407
    %7439 = vst [vmem:[#allocation6 + $0xe0] sm:$0xff] %v7408
    %7440 = vst [vmem:[#allocation6 + $0xe8] sm:$0xff] %v7409
    %7441 = vst [vmem:[#allocation6 + $0xf0] sm:$0x3] %v7410
    %v7442 = vld [vmem:[#allocation6] ss:$2 sm:$0xf]
    %7443 = vst [vmem:[#allocation7] sm:$0xf] %v7442
    %s7444 = scalar_lea.vmem [#allocation6], 22
    %v7445 = vld [vmem:[%s7444] ss:$2 sm:$0xf]
    %7446 = vst [vmem:[#allocation7 + $0x4] sm:$0xf] %v7445
    %s7447 = scalar_lea.vmem [#allocation6], 44
    %v7448 = vld [vmem:[%s7447] ss:$2 sm:$0xf]
    %7449 = vst [vmem:[#allocation7 + $0x8] sm:$0xf] %v7448
    %s7450 = scalar_lea.vmem [#allocation6], 66
    %v7451 = vld [vmem:[%s7450] ss:$2 sm:$0xf]
    %7452 = vst [vmem:[#allocation7 + $0xc] sm:$0xf] %v7451
    %s7453 = scalar_lea.vmem [#allocation6], 121
    %v7454 = vld [vmem:[%s7453] ss:$2 sm:$0xf]
    %7455 = vst [vmem:[#allocation7 + $0x10] sm:$0xf] %v7454
    %s7456 = scalar_lea.vmem [#allocation6], 143
    %v7457 = vld [vmem:[%s7456] ss:$2 sm:$0xf]
    %7458 = vst [vmem:[#allocation7 + $0x14] sm:$0xf] %v7457
    %s7459 = scalar_lea.vmem [#allocation6], 165
    %v7460 = vld [vmem:[%s7459] ss:$2 sm:$0xf]
    %7461 = vst [vmem:[#allocation7 + $0x18] sm:$0xf] %v7460
    %s7462 = scalar_lea.vmem [#allocation6], 187
    %v7463 = vld [vmem:[%s7462] ss:$2 sm:$0xf]
    %7464 = vst [vmem:[#allocation7 + $0x1c] sm:$0xf] %v7463
    %7465 = vst [vmem:[#allocation7 + $0x20] sm:$0xff] 0.0
    %v7466 = vld [vmem:[#allocation7] sm:$0xff]
    %v7467 = vld [vmem:[#allocation7 + $0x8] sm:$0xff]
    %v7468 = vld [vmem:[#allocation7 + $0x10] sm:$0xff]
    %v7469 = vld [vmem:[#allocation7 + $0x18] sm:$0xff]
    %v7470 = vpack.c.bf16 %v7467, %v7466
    %v7471 = vpack.c.bf16 %v7469, %v7468
    %v7472 = vld [vmem:[%s5] sm:$0xf]
    %v7473 = vld [vmem:[%s5 + $0x4] sm:$0xf]
    %v7474 = vld [vmem:[%s5 + $0x8] sm:$0xf]
    %v7475 = vld [vmem:[%s5 + $0xc] sm:$0xf]
    %v7476 = vld [vmem:[%s5 + $0x10] sm:$0xf]
    %v7477 = vld [vmem:[%s5 + $0x14] sm:$0xf]
    %v7478 = vld [vmem:[%s5 + $0x18] sm:$0xf]
    %v7479 = vld [vmem:[%s5 + $0x1c] sm:$0xf]
    %v7480 = vld [vmem:[%s5 + $0x20] sm:$0xf]
    %v7481 = vld [vmem:[%s5 + $0x24] sm:$0xf]
    %v7482 = vld [vmem:[%s5 + $0x28] sm:$0xf]
    %v7483 = vld [vmem:[%s5 + $0x2c] sm:$0xf]
    %v7484 = vld [vmem:[%s5 + $0x30] sm:$0xf]
    %v7485 = vld [vmem:[%s5 + $0x34] sm:$0xf]
    %v7486 = vld [vmem:[%s5 + $0x38] sm:$0xf]
    %v7487 = vld [vmem:[%s5 + $0x3c] sm:$0xf]
    %v7488 = vld [vmem:[#allocation7 + $0x1] sm:$0xff]
    %v7489 = vld [vmem:[#allocation7 + $0x9] sm:$0xff]
    %v7490 = vld [vmem:[#allocation7 + $0x11] sm:$0xff]
    %v7491 = vld [vmem:[#allocation7 + $0x19] sm:$0xff]
    %v7492 = vpack.c.bf16 %v7489, %v7488
    %v7493 = vpack.c.bf16 %v7491, %v7490
    %v7494 = vld [vmem:[%s5 + $0x40] sm:$0xf]
    %v7495 = vld [vmem:[%s5 + $0x44] sm:$0xf]
    %v7496 = vld [vmem:[%s5 + $0x48] sm:$0xf]
    %v7497 = vld [vmem:[%s5 + $0x4c] sm:$0xf]
    %v7498 = vld [vmem:[%s5 + $0x50] sm:$0xf]
    %v7499 = vld [vmem:[%s5 + $0x54] sm:$0xf]
    %v7500 = vld [vmem:[%s5 + $0x58] sm:$0xf]
    %v7501 = vld [vmem:[%s5 + $0x5c] sm:$0xf]
    %v7502 = vld [vmem:[%s5 + $0x60] sm:$0xf]
    %v7503 = vld [vmem:[%s5 + $0x64] sm:$0xf]
    %v7504 = vld [vmem:[%s5 + $0x68] sm:$0xf]
    %v7505 = vld [vmem:[%s5 + $0x6c] sm:$0xf]
    %v7506 = vld [vmem:[%s5 + $0x70] sm:$0xf]
    %v7507 = vld [vmem:[%s5 + $0x74] sm:$0xf]
    %v7508 = vld [vmem:[%s5 + $0x78] sm:$0xf]
    %v7509 = vld [vmem:[%s5 + $0x7c] sm:$0xf]
    %v7526 = vunpack.c.l.b16 %v7494
    %v7527 = vunpack.c.l.b16 %v7495
    %v7528 = vunpack.c.l.b16 %v7496
    %v7529 = vunpack.c.l.b16 %v7497
    %v7530 = vunpack.c.l.b16 %v7498
    %v7531 = vunpack.c.l.b16 %v7499
    %v7532 = vunpack.c.l.b16 %v7500
    %v7533 = vunpack.c.l.b16 %v7501
    %v7534 = vunpack.c.l.b16 %v7502
    %v7535 = vunpack.c.l.b16 %v7503
    %v7536 = vunpack.c.l.b16 %v7504
    %v7537 = vunpack.c.l.b16 %v7505
    %v7538 = vunpack.c.l.b16 %v7506
    %v7539 = vunpack.c.l.b16 %v7507
    %v7540 = vunpack.c.l.b16 %v7508
    %v7541 = vunpack.c.l.b16 %v7509
    %v7542 = vpack.c.b16 %v7527, %v7526
    %v7543 = vpack.c.b16 %v7529, %v7528
    %v7544 = vpack.c.b16 %v7531, %v7530
    %v7545 = vpack.c.b16 %v7533, %v7532
    %v7546 = vpack.c.b16 %v7535, %v7534
    %v7547 = vpack.c.b16 %v7537, %v7536
    %v7548 = vpack.c.b16 %v7539, %v7538
    %v7549 = vpack.c.b16 %v7541, %v7540
    %7558 = vmatpush.bf16.msra.mxu0 %v7549
    %7559 = vmatpush.bf16.msra.mxu0 %v7548
    %7560 = vmatpush.bf16.msra.mxu0 %v7547
    %7561 = vmatpush.bf16.msra.mxu0 %v7546
    %7562 = vmatpush.bf16.msra.mxu0 %v7545
    %7563 = vmatpush.bf16.msra.mxu0 %v7544
    %7564 = vmatpush.bf16.msra.mxu0 %v7543
    %7565 = vmatpush.bf16.msra.mxu0 %v7542
    %7566 = vmatmul.bf16.gmra.mxu0 %v7492
    %v7567 = vpop.f32.mrf.mxu0
    %v7568 = vadd.f32 0.0, %v7567
    %v7569 = vpop.f32.mrf.mxu0
    %v7570 = vadd.f32 0.0, %v7569
    %7571 = vmatmul.bf16.gmra.mxu0 %v7493
    %v7572 = vpop.f32.mrf.mxu0
    %v7573 = vadd.f32 0.0, %v7572
    %v7574 = vpop.f32.mrf.mxu0
    %v7575 = vadd.f32 0.0, %v7574
    %7576 = vdwg.mxu0
    %v7593 = vunpack.c.l.b16 %v7472
    %v7594 = vunpack.c.l.b16 %v7473
    %v7595 = vunpack.c.l.b16 %v7474
    %v7596 = vunpack.c.l.b16 %v7475
    %v7597 = vunpack.c.l.b16 %v7476
    %v7598 = vunpack.c.l.b16 %v7477
    %v7599 = vunpack.c.l.b16 %v7478
    %v7600 = vunpack.c.l.b16 %v7479
    %v7601 = vunpack.c.l.b16 %v7480
    %v7602 = vunpack.c.l.b16 %v7481
    %v7603 = vunpack.c.l.b16 %v7482
    %v7604 = vunpack.c.l.b16 %v7483
    %v7605 = vunpack.c.l.b16 %v7484
    %v7606 = vunpack.c.l.b16 %v7485
    %v7607 = vunpack.c.l.b16 %v7486
    %v7608 = vunpack.c.l.b16 %v7487
    %v7609 = vpack.c.b16 %v7594, %v7593
    %v7610 = vpack.c.b16 %v7596, %v7595
    %v7611 = vpack.c.b16 %v7598, %v7597
    %v7612 = vpack.c.b16 %v7600, %v7599
    %v7613 = vpack.c.b16 %v7602, %v7601
    %v7614 = vpack.c.b16 %v7604, %v7603
    %v7615 = vpack.c.b16 %v7606, %v7605
    %v7616 = vpack.c.b16 %v7608, %v7607
    %7625 = vmatpush.bf16.msra.mxu0 %v7616
    %7626 = vmatpush.bf16.msra.mxu0 %v7615
    %7627 = vmatpush.bf16.msra.mxu0 %v7614
    %7628 = vmatpush.bf16.msra.mxu0 %v7613
    %7629 = vmatpush.bf16.msra.mxu0 %v7612
    %7630 = vmatpush.bf16.msra.mxu0 %v7611
    %7631 = vmatpush.bf16.msra.mxu0 %v7610
    %7632 = vmatpush.bf16.msra.mxu0 %v7609
    %7633 = vmatmul.bf16.gmra.mxu0 %v7470
    %v7634 = vpop.f32.mrf.mxu0
    %v7635 = vadd.f32 %v7568, %v7634
    %v7636 = vpop.f32.mrf.mxu0
    %v7637 = vadd.f32 %v7570, %v7636
    %7638 = vmatmul.bf16.gmra.mxu0 %v7471
    %v7639 = vpop.f32.mrf.mxu0
    %v7640 = vadd.f32 %v7573, %v7639
    %v7641 = vpop.f32.mrf.mxu0
    %v7642 = vadd.f32 %v7575, %v7641
    %7643 = vdwg.mxu0
    %v7644 = vld [vmem:[#allocation7 + $0x4] sm:$0xff]
    %v7645 = vld [vmem:[#allocation7 + $0xc] sm:$0xff]
    %v7646 = vld [vmem:[#allocation7 + $0x14] sm:$0xff]
    %v7647 = vld [vmem:[#allocation7 + $0x1c] sm:$0xff]
    %v7648 = vpack.c.bf16 %v7645, %v7644
    %v7649 = vpack.c.bf16 %v7647, %v7646
    %v7650 = vld [vmem:[%s5 + $0x80] sm:$0xf]
    %v7651 = vld [vmem:[%s5 + $0x84] sm:$0xf]
    %v7652 = vld [vmem:[%s5 + $0x88] sm:$0xf]
    %v7653 = vld [vmem:[%s5 + $0x8c] sm:$0xf]
    %v7654 = vld [vmem:[%s5 + $0x90] sm:$0xf]
    %v7655 = vld [vmem:[%s5 + $0x94] sm:$0xf]
    %v7656 = vld [vmem:[%s5 + $0x98] sm:$0xf]
    %v7657 = vld [vmem:[%s5 + $0x9c] sm:$0xf]
    %v7658 = vld [vmem:[%s5 + $0xa0] sm:$0xf]
    %v7659 = vld [vmem:[%s5 + $0xa4] sm:$0xf]
    %v7660 = vld [vmem:[%s5 + $0xa8] sm:$0xf]
    %v7661 = vld [vmem:[%s5 + $0xac] sm:$0xf]
    %v7662 = vld [vmem:[%s5 + $0xb0] sm:$0xf]
    %v7663 = vld [vmem:[%s5 + $0xb4] sm:$0xf]
    %v7664 = vld [vmem:[%s5 + $0xb8] sm:$0xf]
    %v7665 = vld [vmem:[%s5 + $0xbc] sm:$0xf]
    %v7682 = vunpack.c.l.b16 %v7650
    %v7683 = vunpack.c.l.b16 %v7651
    %v7684 = vunpack.c.l.b16 %v7652
    %v7685 = vunpack.c.l.b16 %v7653
    %v7686 = vunpack.c.l.b16 %v7654
    %v7687 = vunpack.c.l.b16 %v7655
    %v7688 = vunpack.c.l.b16 %v7656
    %v7689 = vunpack.c.l.b16 %v7657
    %v7690 = vunpack.c.l.b16 %v7658
    %v7691 = vunpack.c.l.b16 %v7659
    %v7692 = vunpack.c.l.b16 %v7660
    %v7693 = vunpack.c.l.b16 %v7661
    %v7694 = vunpack.c.l.b16 %v7662
    %v7695 = vunpack.c.l.b16 %v7663
    %v7696 = vunpack.c.l.b16 %v7664
    %v7697 = vunpack.c.l.b16 %v7665
    %v7698 = vpack.c.b16 %v7683, %v7682
    %v7699 = vpack.c.b16 %v7685, %v7684
    %v7700 = vpack.c.b16 %v7687, %v7686
    %v7701 = vpack.c.b16 %v7689, %v7688
    %v7702 = vpack.c.b16 %v7691, %v7690
    %v7703 = vpack.c.b16 %v7693, %v7692
    %v7704 = vpack.c.b16 %v7695, %v7694
    %v7705 = vpack.c.b16 %v7697, %v7696
    %7714 = vmatpush.bf16.msra.mxu0 %v7705
    %7715 = vmatpush.bf16.msra.mxu0 %v7704
    %7716 = vmatpush.bf16.msra.mxu0 %v7703
    %7717 = vmatpush.bf16.msra.mxu0 %v7702
    %7718 = vmatpush.bf16.msra.mxu0 %v7701
    %7719 = vmatpush.bf16.msra.mxu0 %v7700
    %7720 = vmatpush.bf16.msra.mxu0 %v7699
    %7721 = vmatpush.bf16.msra.mxu0 %v7698
    %7722 = vmatmul.bf16.gmra.mxu0 %v7648
    %v7723 = vpop.f32.mrf.mxu0
    %v7724 = vadd.f32 0.0, %v7723
    %v7725 = vpop.f32.mrf.mxu0
    %v7726 = vadd.f32 0.0, %v7725
    %7727 = vmatmul.bf16.gmra.mxu0 %v7649
    %v7728 = vpop.f32.mrf.mxu0
    %v7729 = vadd.f32 0.0, %v7728
    %v7730 = vpop.f32.mrf.mxu0
    %v7731 = vadd.f32 0.0, %v7730
    %7732 = vdwg.mxu0
    %v7733 = vadd.f32 %v7635, %v7724
    %v7734 = vadd.f32 %v7637, %v7726
    %v7735 = vadd.f32 %v7640, %v7729
    %v7736 = vadd.f32 %v7642, %v7731
    %v7737 = vld [vmem:[#allocation7 + $0x5] sm:$0xff]
    %v7738 = vld [vmem:[#allocation7 + $0xd] sm:$0xff]
    %v7739 = vld [vmem:[#allocation7 + $0x15] sm:$0xff]
    %v7740 = vld [vmem:[#allocation7 + $0x1d] sm:$0xff]
    %v7741 = vpack.c.bf16 %v7738, %v7737
    %v7742 = vpack.c.bf16 %v7740, %v7739
    %v7743 = vld [vmem:[%s5 + $0xc0] sm:$0xf]
    %v7744 = vld [vmem:[%s5 + $0xc4] sm:$0xf]
    %v7745 = vld [vmem:[%s5 + $0xc8] sm:$0xf]
    %v7746 = vld [vmem:[%s5 + $0xcc] sm:$0xf]
    %v7747 = vld [vmem:[%s5 + $0xd0] sm:$0xf]
    %v7748 = vld [vmem:[%s5 + $0xd4] sm:$0xf]
    %v7749 = vld [vmem:[%s5 + $0xd8] sm:$0xf]
    %v7750 = vld [vmem:[%s5 + $0xdc] sm:$0xf]
    %v7751 = vld [vmem:[%s5 + $0xe0] sm:$0xf]
    %v7752 = vld [vmem:[%s5 + $0xe4] sm:$0xf]
    %v7753 = vld [vmem:[%s5 + $0xe8] sm:$0xf]
    %v7754 = vld [vmem:[%s5 + $0xec] sm:$0xf]
    %v7755 = vld [vmem:[%s5 + $0xf0] sm:$0xf]
    %v7756 = vld [vmem:[%s5 + $0xf4] sm:$0xf]
    %v7757 = vld [vmem:[%s5 + $0xf8] sm:$0xf]
    %v7758 = vld [vmem:[%s5 + $0xfc] sm:$0xf]
    %v7775 = vunpack.c.l.b16 %v7743
    %v7776 = vunpack.c.l.b16 %v7744
    %v7777 = vunpack.c.l.b16 %v7745
    %v7778 = vunpack.c.l.b16 %v7746
    %v7779 = vunpack.c.l.b16 %v7747
    %v7780 = vunpack.c.l.b16 %v7748
    %v7781 = vunpack.c.l.b16 %v7749
    %v7782 = vunpack.c.l.b16 %v7750
    %v7783 = vunpack.c.l.b16 %v7751
    %v7784 = vunpack.c.l.b16 %v7752
    %v7785 = vunpack.c.l.b16 %v7753
    %v7786 = vunpack.c.l.b16 %v7754
    %v7787 = vunpack.c.l.b16 %v7755
    %v7788 = vunpack.c.l.b16 %v7756
    %v7789 = vunpack.c.l.b16 %v7757
    %v7790 = vunpack.c.l.b16 %v7758
    %v7791 = vpack.c.b16 %v7776, %v7775
    %v7792 = vpack.c.b16 %v7778, %v7777
    %v7793 = vpack.c.b16 %v7780, %v7779
    %v7794 = vpack.c.b16 %v7782, %v7781
    %v7795 = vpack.c.b16 %v7784, %v7783
    %v7796 = vpack.c.b16 %v7786, %v7785
    %v7797 = vpack.c.b16 %v7788, %v7787
    %v7798 = vpack.c.b16 %v7790, %v7789
    %7807 = vmatpush.bf16.msra.mxu0 %v7798
    %7808 = vmatpush.bf16.msra.mxu0 %v7797
    %7809 = vmatpush.bf16.msra.mxu0 %v7796
    %7810 = vmatpush.bf16.msra.mxu0 %v7795
    %7811 = vmatpush.bf16.msra.mxu0 %v7794
    %7812 = vmatpush.bf16.msra.mxu0 %v7793
    %7813 = vmatpush.bf16.msra.mxu0 %v7792
    %7814 = vmatpush.bf16.msra.mxu0 %v7791
    %7815 = vmatmul.bf16.gmra.mxu0 %v7741
    %v7816 = vpop.f32.mrf.mxu0
    %v7817 = vadd.f32 0.0, %v7816
    %v7818 = vpop.f32.mrf.mxu0
    %v7819 = vadd.f32 0.0, %v7818
    %7820 = vmatmul.bf16.gmra.mxu0 %v7742
    %v7821 = vpop.f32.mrf.mxu0
    %v7822 = vadd.f32 0.0, %v7821
    %v7823 = vpop.f32.mrf.mxu0
    %v7824 = vadd.f32 0.0, %v7823
    %7825 = vdwg.mxu0
    %v7826 = vadd.f32 %v7733, %v7817
    %v7827 = vadd.f32 %v7734, %v7819
    %v7828 = vadd.f32 %v7735, %v7822
    %v7829 = vadd.f32 %v7736, %v7824
    %v7830 = vld [vmem:[%s2] sm:$0xff]
    %v7831 = vld [vmem:[%s2 + $0x8] sm:$0xff]
    %v7832 = vld [vmem:[%s2 + $0x10] sm:$0xff]
    %v7833 = vld [vmem:[%s2 + $0x18] sm:$0xff]
    %v7834 = vld [vmem:[%s6 + $0x4] sm:$0x1]
    %v7835 = vld [vmem:[%s6 + $0x5] sm:$0x1]
    %7837 = vset.pattern.permute.xlu0 0
    %7838 = vperm.xlu0 %7837, %v7830
    %v7839 = vpop.permute.xlu0 %7838
    %7842 = vset.pattern.permute.xlu0 0
    %7843 = vperm.xlu0 %7842, %v7831
    %v7844 = vpop.permute.xlu0 %7843
    %7847 = vset.pattern.permute.xlu0 0
    %7848 = vperm.xlu0 %7847, %v7832
    %v7849 = vpop.permute.xlu0 %7848
    %7852 = vset.pattern.permute.xlu0 0
    %7853 = vperm.xlu0 %7852, %v7833
    %v7854 = vpop.permute.xlu0 %7853
    %v7856 = vmul.f32 %v7826, %v7839
    %v7857 = vmul.f32 %v7827, %v7844
    %v7858 = vmul.f32 %v7828, %v7849
    %v7859 = vmul.f32 %v7829, %v7854
    %v7860 = vadd.f32 %v7856, %v7857
    %v7861 = vadd.f32 %v7860, %v7858
    %v7862 = vadd.f32 %v7861, %v7859
    %v7863 = vrot.slane %v7862, 4
    %v7864 = vadd.f32 %v7862, %v7863
    %v7865 = vrot.slane %v7864, 2
    %v7866 = vadd.f32 %v7864, %v7865
    %v7867 = vrot.slane %v7866, 1
    %v7868 = vadd.f32 %v7866, %v7867
    %v7869 = vmul.f32 %v7868, 0.055555556
    %v7870 = vmul.f32 %v7856, %v7856
    %v7871 = vmul.f32 %v7857, %v7857
    %v7872 = vmul.f32 %v7858, %v7858
    %v7873 = vmul.f32 %v7859, %v7859
    %v7874 = vadd.f32 %v7870, %v7871
    %v7875 = vadd.f32 %v7874, %v7872
    %v7876 = vadd.f32 %v7875, %v7873
    %v7877 = vrot.slane %v7876, 4
    %v7878 = vadd.f32 %v7876, %v7877
    %v7879 = vrot.slane %v7878, 2
    %v7880 = vadd.f32 %v7878, %v7879
    %v7881 = vrot.slane %v7880, 1
    %v7882 = vadd.f32 %v7880, %v7881
    %v7883 = vmul.f32 %v7882, 0.055555556
    %v7884 = vmul.f32 %v7869, %v7869
    %v7885 = vsub.f32 %v7883, %v7884
    %v7886 = vmax.f32 %v7885, 0.0
    %v7887 = vsub.f32 %v7826, %v7869
    %v7888 = vsub.f32 %v7827, %v7869
    %v7889 = vsub.f32 %v7828, %v7869
    %v7890 = vsub.f32 %v7829, %v7869
    %v7891 = vadd.f32 %v7886, 1e-05
    %v7892 = vrsqrt.pop %v7891
    %v7893 = vmul.f32 %v7892, %v7891
    %v7894 = vmul.f32 %v7893, %v7892
    %v7895 = vmul.f32 0.5, %v7894
    %v7896 = vsub.f32 1.5, %v7895
    %v7897 = vmul.f32 %v7892, %v7896
    %vm7898 = vweird.f32 %v7891
    %vm7899 = vweird.f32 %v7892
    %vm7900 = vmor %vm7898, %vm7899
    %v7901 = vsel %vm7900, %v7892, %v7897
    %v7902 = vmul.f32 %v7887, %v7901
    %v7903 = vmul.f32 %v7888, %v7901
    %v7904 = vmul.f32 %v7889, %v7901
    %v7905 = vmul.f32 %v7890, %v7901
    %v7906 = vperm.slane %v7834, 0
    %v7907 = vmul.f32 %v7902, %v7906
    %v7908 = vmul.f32 %v7903, %v7906
    %v7909 = vmul.f32 %v7904, %v7906
    %v7910 = vmul.f32 %v7905, %v7906
    %v7911 = vperm.slane %v7835, 0
    %v7912 = vadd.f32 %v7907, %v7911
    %v7913 = vadd.f32 %v7908, %v7911
    %v7914 = vadd.f32 %v7909, %v7911
    %v7915 = vadd.f32 %v7910, %v7911
    %v7916 = vmax.f32 %v7912, 0.0
    %v7917 = vmax.f32 %v7913, 0.0
    %v7918 = vmax.f32 %v7914, 0.0
    %v7919 = vmax.f32 %v7915, 0.0
    %7920 = vst [vmem:[#allocation8] sm:$0xff] %v7916
    %7921 = vst [vmem:[#allocation8 + $0x8] sm:$0xff] %v7917
    %7922 = vst [vmem:[#allocation8 + $0x10] sm:$0xff] %v7918
    %7923 = vst [vmem:[#allocation8 + $0x18] sm:$0xff] %v7919
    %v7924 = vld [vmem:[#allocation8] ss:$16 sm:$0x3]
    %v7925 = vpack.c.bf16 %v7924, %v7924
    %v7926 = vld [vmem:[%s7] sm:$0xff]
    %v7927 = vld [vmem:[%s7 + $0x8] sm:$0xff]
    %v7928 = vld [vmem:[%s7 + $0x10] sm:$0xff]
    %v7929 = vld [vmem:[%s7 + $0x18] sm:$0xff]
    %v7930 = vld [vmem:[%s7 + $0x20] sm:$0xff]
    %v7931 = vld [vmem:[%s7 + $0x28] sm:$0xff]
    %v7932 = vld [vmem:[%s7 + $0x30] sm:$0xff]
    %v7933 = vld [vmem:[%s7 + $0x38] sm:$0xff]
    %v7934 = vld [vmem:[%s7 + $0x40] sm:$0xff]
    %v7935 = vld [vmem:[%s7 + $0x48] sm:$0xff]
    %v7936 = vld [vmem:[%s7 + $0x50] sm:$0xff]
    %v7937 = vld [vmem:[%s7 + $0x58] sm:$0xff]
    %v7938 = vld [vmem:[%s7 + $0x60] sm:$0xff]
    %v7939 = vld [vmem:[%s7 + $0x68] sm:$0xff]
    %v7940 = vld [vmem:[%s7 + $0x70] sm:$0xff]
    %v7941 = vld [vmem:[%s7 + $0x78] sm:$0xff]
    %s7942 = scalar_lea.vmem [#allocation8], 1
    %v7943 = vld [vmem:[%s7942] ss:$16 sm:$0x3]
    %v7944 = vpack.c.bf16 %v7943, %v7943
    %v7945 = vld [vmem:[%s7 + $0x80] sm:$0xff]
    %v7946 = vld [vmem:[%s7 + $0x88] sm:$0xff]
    %v7947 = vld [vmem:[%s7 + $0x90] sm:$0xff]
    %v7948 = vld [vmem:[%s7 + $0x98] sm:$0xff]
    %v7949 = vld [vmem:[%s7 + $0xa0] sm:$0xff]
    %v7950 = vld [vmem:[%s7 + $0xa8] sm:$0xff]
    %v7951 = vld [vmem:[%s7 + $0xb0] sm:$0xff]
    %v7952 = vld [vmem:[%s7 + $0xb8] sm:$0xff]
    %v7953 = vld [vmem:[%s7 + $0xc0] sm:$0xff]
    %v7954 = vld [vmem:[%s7 + $0xc8] sm:$0xff]
    %v7955 = vld [vmem:[%s7 + $0xd0] sm:$0xff]
    %v7956 = vld [vmem:[%s7 + $0xd8] sm:$0xff]
    %v7957 = vld [vmem:[%s7 + $0xe0] sm:$0xff]
    %v7958 = vld [vmem:[%s7 + $0xe8] sm:$0xff]
    %v7959 = vld [vmem:[%s7 + $0xf0] sm:$0xff]
    %v7960 = vld [vmem:[%s7 + $0xf8] sm:$0xff]
    %v7977 = vunpack.c.l.b16 %v7945
    %v7978 = vunpack.c.h.b16 %v7945
    %v7979 = vunpack.c.l.b16 %v7946
    %v7980 = vunpack.c.h.b16 %v7946
    %v7981 = vunpack.c.l.b16 %v7947
    %v7982 = vunpack.c.h.b16 %v7947
    %v7983 = vunpack.c.l.b16 %v7948
    %v7984 = vunpack.c.h.b16 %v7948
    %v7985 = vunpack.c.l.b16 %v7949
    %v7986 = vunpack.c.h.b16 %v7949
    %v7987 = vunpack.c.l.b16 %v7950
    %v7988 = vunpack.c.h.b16 %v7950
    %v7989 = vunpack.c.l.b16 %v7951
    %v7990 = vunpack.c.h.b16 %v7951
    %v7991 = vunpack.c.l.b16 %v7952
    %v7992 = vunpack.c.h.b16 %v7952
    %v7993 = vunpack.c.l.b16 %v7953
    %v7994 = vunpack.c.h.b16 %v7953
    %v7995 = vunpack.c.l.b16 %v7954
    %v7996 = vunpack.c.h.b16 %v7954
    %v7997 = vunpack.c.l.b16 %v7955
    %v7998 = vunpack.c.h.b16 %v7955
    %v7999 = vunpack.c.l.b16 %v7956
    %v8000 = vunpack.c.h.b16 %v7956
    %v8001 = vunpack.c.l.b16 %v7957
    %v8002 = vunpack.c.h.b16 %v7957
    %v8003 = vunpack.c.l.b16 %v7958
    %v8004 = vunpack.c.h.b16 %v7958
    %v8005 = vunpack.c.l.b16 %v7959
    %v8006 = vunpack.c.h.b16 %v7959
    %v8007 = vunpack.c.l.b16 %v7960
    %v8008 = vunpack.c.h.b16 %v7960
    %v8009 = vpack.c.b16 %v7979, %v7977
    %v8010 = vpack.c.b16 %v7980, %v7978
    %v8011 = vpack.c.b16 %v7983, %v7981
    %v8012 = vpack.c.b16 %v7984, %v7982
    %v8013 = vpack.c.b16 %v7987, %v7985
    %v8014 = vpack.c.b16 %v7988, %v7986
    %v8015 = vpack.c.b16 %v7991, %v7989
    %v8016 = vpack.c.b16 %v7992, %v7990
    %v8017 = vpack.c.b16 %v7995, %v7993
    %v8018 = vpack.c.b16 %v7996, %v7994
    %v8019 = vpack.c.b16 %v7999, %v7997
    %v8020 = vpack.c.b16 %v8000, %v7998
    %v8021 = vpack.c.b16 %v8003, %v8001
    %v8022 = vpack.c.b16 %v8004, %v8002
    %v8023 = vpack.c.b16 %v8007, %v8005
    %v8024 = vpack.c.b16 %v8008, %v8006
    %8041 = vmatpush.bf16.msra.mxu0 %v8023
    %8042 = vmatpush.bf16.msra.mxu0 %v8021
    %8043 = vmatpush.bf16.msra.mxu0 %v8019
    %8044 = vmatpush.bf16.msra.mxu0 %v8017
    %8045 = vmatpush.bf16.msra.mxu0 %v8015
    %8046 = vmatpush.bf16.msra.mxu0 %v8013
    %8047 = vmatpush.bf16.msra.mxu0 %v8011
    %8048 = vmatpush.bf16.msra.mxu0 %v8009
    %8049 = vmatmul.bf16.gmra.mxu0 %v7944
    %v8050 = vpop.f32.mrf.mxu0
    %v8051 = vadd.f32 0.0, %v8050
    %v8052 = vpop.f32.mrf.mxu0
    %8053 = vdwg.mxu0
    %8054 = vmatpush.bf16.msra.mxu0 %v8024
    %8055 = vmatpush.bf16.msra.mxu0 %v8022
    %8056 = vmatpush.bf16.msra.mxu0 %v8020
    %8057 = vmatpush.bf16.msra.mxu0 %v8018
    %8058 = vmatpush.bf16.msra.mxu0 %v8016
    %8059 = vmatpush.bf16.msra.mxu0 %v8014
    %8060 = vmatpush.bf16.msra.mxu0 %v8012
    %8061 = vmatpush.bf16.msra.mxu0 %v8010
    %8062 = vmatmul.bf16.gmra.mxu0 %v7944
    %v8063 = vpop.f32.mrf.mxu0
    %v8064 = vadd.f32 0.0, %v8063
    %v8065 = vpop.f32.mrf.mxu0
    %8066 = vdwg.mxu0
    %v8083 = vunpack.c.l.b16 %v7926
    %v8084 = vunpack.c.h.b16 %v7926
    %v8085 = vunpack.c.l.b16 %v7927
    %v8086 = vunpack.c.h.b16 %v7927
    %v8087 = vunpack.c.l.b16 %v7928
    %v8088 = vunpack.c.h.b16 %v7928
    %v8089 = vunpack.c.l.b16 %v7929
    %v8090 = vunpack.c.h.b16 %v7929
    %v8091 = vunpack.c.l.b16 %v7930
    %v8092 = vunpack.c.h.b16 %v7930
    %v8093 = vunpack.c.l.b16 %v7931
    %v8094 = vunpack.c.h.b16 %v7931
    %v8095 = vunpack.c.l.b16 %v7932
    %v8096 = vunpack.c.h.b16 %v7932
    %v8097 = vunpack.c.l.b16 %v7933
    %v8098 = vunpack.c.h.b16 %v7933
    %v8099 = vunpack.c.l.b16 %v7934
    %v8100 = vunpack.c.h.b16 %v7934
    %v8101 = vunpack.c.l.b16 %v7935
    %v8102 = vunpack.c.h.b16 %v7935
    %v8103 = vunpack.c.l.b16 %v7936
    %v8104 = vunpack.c.h.b16 %v7936
    %v8105 = vunpack.c.l.b16 %v7937
    %v8106 = vunpack.c.h.b16 %v7937
    %v8107 = vunpack.c.l.b16 %v7938
    %v8108 = vunpack.c.h.b16 %v7938
    %v8109 = vunpack.c.l.b16 %v7939
    %v8110 = vunpack.c.h.b16 %v7939
    %v8111 = vunpack.c.l.b16 %v7940
    %v8112 = vunpack.c.h.b16 %v7940
    %v8113 = vunpack.c.l.b16 %v7941
    %v8114 = vunpack.c.h.b16 %v7941
    %v8115 = vpack.c.b16 %v8085, %v8083
    %v8116 = vpack.c.b16 %v8086, %v8084
    %v8117 = vpack.c.b16 %v8089, %v8087
    %v8118 = vpack.c.b16 %v8090, %v8088
    %v8119 = vpack.c.b16 %v8093, %v8091
    %v8120 = vpack.c.b16 %v8094, %v8092
    %v8121 = vpack.c.b16 %v8097, %v8095
    %v8122 = vpack.c.b16 %v8098, %v8096
    %v8123 = vpack.c.b16 %v8101, %v8099
    %v8124 = vpack.c.b16 %v8102, %v8100
    %v8125 = vpack.c.b16 %v8105, %v8103
    %v8126 = vpack.c.b16 %v8106, %v8104
    %v8127 = vpack.c.b16 %v8109, %v8107
    %v8128 = vpack.c.b16 %v8110, %v8108
    %v8129 = vpack.c.b16 %v8113, %v8111
    %v8130 = vpack.c.b16 %v8114, %v8112
    %8147 = vmatpush.bf16.msra.mxu0 %v8129
    %8148 = vmatpush.bf16.msra.mxu0 %v8127
    %8149 = vmatpush.bf16.msra.mxu0 %v8125
    %8150 = vmatpush.bf16.msra.mxu0 %v8123
    %8151 = vmatpush.bf16.msra.mxu0 %v8121
    %8152 = vmatpush.bf16.msra.mxu0 %v8119
    %8153 = vmatpush.bf16.msra.mxu0 %v8117
    %8154 = vmatpush.bf16.msra.mxu0 %v8115
    %8155 = vmatmul.bf16.gmra.mxu0 %v7925
    %v8156 = vpop.f32.mrf.mxu0
    %v8157 = vadd.f32 %v8051, %v8156
    %v8158 = vpop.f32.mrf.mxu0
    %8159 = vdwg.mxu0
    %8160 = vmatpush.bf16.msra.mxu0 %v8130
    %8161 = vmatpush.bf16.msra.mxu0 %v8128
    %8162 = vmatpush.bf16.msra.mxu0 %v8126
    %8163 = vmatpush.bf16.msra.mxu0 %v8124
    %8164 = vmatpush.bf16.msra.mxu0 %v8122
    %8165 = vmatpush.bf16.msra.mxu0 %v8120
    %8166 = vmatpush.bf16.msra.mxu0 %v8118
    %8167 = vmatpush.bf16.msra.mxu0 %v8116
    %8168 = vmatmul.bf16.gmra.mxu0 %v7925
    %v8169 = vpop.f32.mrf.mxu0
    %v8170 = vadd.f32 %v8064, %v8169
    %v8171 = vpop.f32.mrf.mxu0
    %8172 = vdwg.mxu0
    %s8173 = scalar_lea.vmem [#allocation8], 2
    %v8174 = vld [vmem:[%s8173] ss:$16 sm:$0x3]
    %v8175 = vpack.c.bf16 %v8174, %v8174
    %v8176 = vld [vmem:[%s7 + $0x100] sm:$0xff]
    %v8177 = vld [vmem:[%s7 + $0x108] sm:$0xff]
    %v8178 = vld [vmem:[%s7 + $0x110] sm:$0xff]
    %v8179 = vld [vmem:[%s7 + $0x118] sm:$0xff]
    %v8180 = vld [vmem:[%s7 + $0x120] sm:$0xff]
    %v8181 = vld [vmem:[%s7 + $0x128] sm:$0xff]
    %v8182 = vld [vmem:[%s7 + $0x130] sm:$0xff]
    %v8183 = vld [vmem:[%s7 + $0x138] sm:$0xff]
    %v8184 = vld [vmem:[%s7 + $0x140] sm:$0xff]
    %v8185 = vld [vmem:[%s7 + $0x148] sm:$0xff]
    %v8186 = vld [vmem:[%s7 + $0x150] sm:$0xff]
    %v8187 = vld [vmem:[%s7 + $0x158] sm:$0xff]
    %v8188 = vld [vmem:[%s7 + $0x160] sm:$0xff]
    %v8189 = vld [vmem:[%s7 + $0x168] sm:$0xff]
    %v8190 = vld [vmem:[%s7 + $0x170] sm:$0xff]
    %v8191 = vld [vmem:[%s7 + $0x178] sm:$0xff]
    %v8208 = vunpack.c.l.b16 %v8176
    %v8209 = vunpack.c.h.b16 %v8176
    %v8210 = vunpack.c.l.b16 %v8177
    %v8211 = vunpack.c.h.b16 %v8177
    %v8212 = vunpack.c.l.b16 %v8178
    %v8213 = vunpack.c.h.b16 %v8178
    %v8214 = vunpack.c.l.b16 %v8179
    %v8215 = vunpack.c.h.b16 %v8179
    %v8216 = vunpack.c.l.b16 %v8180
    %v8217 = vunpack.c.h.b16 %v8180
    %v8218 = vunpack.c.l.b16 %v8181
    %v8219 = vunpack.c.h.b16 %v8181
    %v8220 = vunpack.c.l.b16 %v8182
    %v8221 = vunpack.c.h.b16 %v8182
    %v8222 = vunpack.c.l.b16 %v8183
    %v8223 = vunpack.c.h.b16 %v8183
    %v8224 = vunpack.c.l.b16 %v8184
    %v8225 = vunpack.c.h.b16 %v8184
    %v8226 = vunpack.c.l.b16 %v8185
    %v8227 = vunpack.c.h.b16 %v8185
    %v8228 = vunpack.c.l.b16 %v8186
    %v8229 = vunpack.c.h.b16 %v8186
    %v8230 = vunpack.c.l.b16 %v8187
    %v8231 = vunpack.c.h.b16 %v8187
    %v8232 = vunpack.c.l.b16 %v8188
    %v8233 = vunpack.c.h.b16 %v8188
    %v8234 = vunpack.c.l.b16 %v8189
    %v8235 = vunpack.c.h.b16 %v8189
    %v8236 = vunpack.c.l.b16 %v8190
    %v8237 = vunpack.c.h.b16 %v8190
    %v8238 = vunpack.c.l.b16 %v8191
    %v8239 = vunpack.c.h.b16 %v8191
    %v8240 = vpack.c.b16 %v8210, %v8208
    %v8241 = vpack.c.b16 %v8211, %v8209
    %v8242 = vpack.c.b16 %v8214, %v8212
    %v8243 = vpack.c.b16 %v8215, %v8213
    %v8244 = vpack.c.b16 %v8218, %v8216
    %v8245 = vpack.c.b16 %v8219, %v8217
    %v8246 = vpack.c.b16 %v8222, %v8220
    %v8247 = vpack.c.b16 %v8223, %v8221
    %v8248 = vpack.c.b16 %v8226, %v8224
    %v8249 = vpack.c.b16 %v8227, %v8225
    %v8250 = vpack.c.b16 %v8230, %v8228
    %v8251 = vpack.c.b16 %v8231, %v8229
    %v8252 = vpack.c.b16 %v8234, %v8232
    %v8253 = vpack.c.b16 %v8235, %v8233
    %v8254 = vpack.c.b16 %v8238, %v8236
    %v8255 = vpack.c.b16 %v8239, %v8237
    %8272 = vmatpush.bf16.msra.mxu0 %v8254
    %8273 = vmatpush.bf16.msra.mxu0 %v8252
    %8274 = vmatpush.bf16.msra.mxu0 %v8250
    %8275 = vmatpush.bf16.msra.mxu0 %v8248
    %8276 = vmatpush.bf16.msra.mxu0 %v8246
    %8277 = vmatpush.bf16.msra.mxu0 %v8244
    %8278 = vmatpush.bf16.msra.mxu0 %v8242
    %8279 = vmatpush.bf16.msra.mxu0 %v8240
    %8280 = vmatmul.bf16.gmra.mxu0 %v8175
    %v8281 = vpop.f32.mrf.mxu0
    %v8282 = vadd.f32 0.0, %v8281
    %v8283 = vpop.f32.mrf.mxu0
    %8284 = vdwg.mxu0
    %8285 = vmatpush.bf16.msra.mxu0 %v8255
    %8286 = vmatpush.bf16.msra.mxu0 %v8253
    %8287 = vmatpush.bf16.msra.mxu0 %v8251
    %8288 = vmatpush.bf16.msra.mxu0 %v8249
    %8289 = vmatpush.bf16.msra.mxu0 %v8247
    %8290 = vmatpush.bf16.msra.mxu0 %v8245
    %8291 = vmatpush.bf16.msra.mxu0 %v8243
    %8292 = vmatpush.bf16.msra.mxu0 %v8241
    %8293 = vmatmul.bf16.gmra.mxu0 %v8175
    %v8294 = vpop.f32.mrf.mxu0
    %v8295 = vadd.f32 0.0, %v8294
    %v8296 = vpop.f32.mrf.mxu0
    %8297 = vdwg.mxu0
    %v8298 = vadd.f32 %v8157, %v8282
    %v8299 = vadd.f32 %v8170, %v8295
    %s8300 = scalar_lea.vmem [#allocation8], 4
    %v8301 = vld [vmem:[%s8300] ss:$16 sm:$0x3]
    %v8302 = vpack.c.bf16 %v8301, %v8301
    %v8303 = vld [vmem:[%s7 + $0x180] sm:$0xff]
    %v8304 = vld [vmem:[%s7 + $0x188] sm:$0xff]
    %v8305 = vld [vmem:[%s7 + $0x190] sm:$0xff]
    %v8306 = vld [vmem:[%s7 + $0x198] sm:$0xff]
    %v8307 = vld [vmem:[%s7 + $0x1a0] sm:$0xff]
    %v8308 = vld [vmem:[%s7 + $0x1a8] sm:$0xff]
    %v8309 = vld [vmem:[%s7 + $0x1b0] sm:$0xff]
    %v8310 = vld [vmem:[%s7 + $0x1b8] sm:$0xff]
    %v8311 = vld [vmem:[%s7 + $0x1c0] sm:$0xff]
    %v8312 = vld [vmem:[%s7 + $0x1c8] sm:$0xff]
    %v8313 = vld [vmem:[%s7 + $0x1d0] sm:$0xff]
    %v8314 = vld [vmem:[%s7 + $0x1d8] sm:$0xff]
    %v8315 = vld [vmem:[%s7 + $0x1e0] sm:$0xff]
    %v8316 = vld [vmem:[%s7 + $0x1e8] sm:$0xff]
    %v8317 = vld [vmem:[%s7 + $0x1f0] sm:$0xff]
    %v8318 = vld [vmem:[%s7 + $0x1f8] sm:$0xff]
    %v8335 = vunpack.c.l.b16 %v8303
    %v8336 = vunpack.c.h.b16 %v8303
    %v8337 = vunpack.c.l.b16 %v8304
    %v8338 = vunpack.c.h.b16 %v8304
    %v8339 = vunpack.c.l.b16 %v8305
    %v8340 = vunpack.c.h.b16 %v8305
    %v8341 = vunpack.c.l.b16 %v8306
    %v8342 = vunpack.c.h.b16 %v8306
    %v8343 = vunpack.c.l.b16 %v8307
    %v8344 = vunpack.c.h.b16 %v8307
    %v8345 = vunpack.c.l.b16 %v8308
    %v8346 = vunpack.c.h.b16 %v8308
    %v8347 = vunpack.c.l.b16 %v8309
    %v8348 = vunpack.c.h.b16 %v8309
    %v8349 = vunpack.c.l.b16 %v8310
    %v8350 = vunpack.c.h.b16 %v8310
    %v8351 = vunpack.c.l.b16 %v8311
    %v8352 = vunpack.c.h.b16 %v8311
    %v8353 = vunpack.c.l.b16 %v8312
    %v8354 = vunpack.c.h.b16 %v8312
    %v8355 = vunpack.c.l.b16 %v8313
    %v8356 = vunpack.c.h.b16 %v8313
    %v8357 = vunpack.c.l.b16 %v8314
    %v8358 = vunpack.c.h.b16 %v8314
    %v8359 = vunpack.c.l.b16 %v8315
    %v8360 = vunpack.c.h.b16 %v8315
    %v8361 = vunpack.c.l.b16 %v8316
    %v8362 = vunpack.c.h.b16 %v8316
    %v8363 = vunpack.c.l.b16 %v8317
    %v8364 = vunpack.c.h.b16 %v8317
    %v8365 = vunpack.c.l.b16 %v8318
    %v8366 = vunpack.c.h.b16 %v8318
    %v8367 = vpack.c.b16 %v8337, %v8335
    %v8368 = vpack.c.b16 %v8338, %v8336
    %v8369 = vpack.c.b16 %v8341, %v8339
    %v8370 = vpack.c.b16 %v8342, %v8340
    %v8371 = vpack.c.b16 %v8345, %v8343
    %v8372 = vpack.c.b16 %v8346, %v8344
    %v8373 = vpack.c.b16 %v8349, %v8347
    %v8374 = vpack.c.b16 %v8350, %v8348
    %v8375 = vpack.c.b16 %v8353, %v8351
    %v8376 = vpack.c.b16 %v8354, %v8352
    %v8377 = vpack.c.b16 %v8357, %v8355
    %v8378 = vpack.c.b16 %v8358, %v8356
    %v8379 = vpack.c.b16 %v8361, %v8359
    %v8380 = vpack.c.b16 %v8362, %v8360
    %v8381 = vpack.c.b16 %v8365, %v8363
    %v8382 = vpack.c.b16 %v8366, %v8364
    %8399 = vmatpush.bf16.msra.mxu0 %v8381
    %8400 = vmatpush.bf16.msra.mxu0 %v8379
    %8401 = vmatpush.bf16.msra.mxu0 %v8377
    %8402 = vmatpush.bf16.msra.mxu0 %v8375
    %8403 = vmatpush.bf16.msra.mxu0 %v8373
    %8404 = vmatpush.bf16.msra.mxu0 %v8371
    %8405 = vmatpush.bf16.msra.mxu0 %v8369
    %8406 = vmatpush.bf16.msra.mxu0 %v8367
    %8407 = vmatmul.bf16.gmra.mxu0 %v8302
    %v8408 = vpop.f32.mrf.mxu0
    %v8409 = vadd.f32 0.0, %v8408
    %v8410 = vpop.f32.mrf.mxu0
    %8411 = vdwg.mxu0
    %8412 = vmatpush.bf16.msra.mxu0 %v8382
    %8413 = vmatpush.bf16.msra.mxu0 %v8380
    %8414 = vmatpush.bf16.msra.mxu0 %v8378
    %8415 = vmatpush.bf16.msra.mxu0 %v8376
    %8416 = vmatpush.bf16.msra.mxu0 %v8374
    %8417 = vmatpush.bf16.msra.mxu0 %v8372
    %8418 = vmatpush.bf16.msra.mxu0 %v8370
    %8419 = vmatpush.bf16.msra.mxu0 %v8368
    %8420 = vmatmul.bf16.gmra.mxu0 %v8302
    %v8421 = vpop.f32.mrf.mxu0
    %v8422 = vadd.f32 0.0, %v8421
    %v8423 = vpop.f32.mrf.mxu0
    %8424 = vdwg.mxu0
    %v8425 = vadd.f32 %v8298, %v8409
    %v8426 = vadd.f32 %v8299, %v8422
    %s8427 = scalar_lea.vmem [#allocation8], 5
    %v8428 = vld [vmem:[%s8427] ss:$16 sm:$0x3]
    %v8429 = vpack.c.bf16 %v8428, %v8428
    %v8430 = vld [vmem:[%s7 + $0x200] sm:$0xff]
    %v8431 = vld [vmem:[%s7 + $0x208] sm:$0xff]
    %v8432 = vld [vmem:[%s7 + $0x210] sm:$0xff]
    %v8433 = vld [vmem:[%s7 + $0x218] sm:$0xff]
    %v8434 = vld [vmem:[%s7 + $0x220] sm:$0xff]
    %v8435 = vld [vmem:[%s7 + $0x228] sm:$0xff]
    %v8436 = vld [vmem:[%s7 + $0x230] sm:$0xff]
    %v8437 = vld [vmem:[%s7 + $0x238] sm:$0xff]
    %v8438 = vld [vmem:[%s7 + $0x240] sm:$0xff]
    %v8439 = vld [vmem:[%s7 + $0x248] sm:$0xff]
    %v8440 = vld [vmem:[%s7 + $0x250] sm:$0xff]
    %v8441 = vld [vmem:[%s7 + $0x258] sm:$0xff]
    %v8442 = vld [vmem:[%s7 + $0x260] sm:$0xff]
    %v8443 = vld [vmem:[%s7 + $0x268] sm:$0xff]
    %v8444 = vld [vmem:[%s7 + $0x270] sm:$0xff]
    %v8445 = vld [vmem:[%s7 + $0x278] sm:$0xff]
    %v8462 = vunpack.c.l.b16 %v8430
    %v8463 = vunpack.c.h.b16 %v8430
    %v8464 = vunpack.c.l.b16 %v8431
    %v8465 = vunpack.c.h.b16 %v8431
    %v8466 = vunpack.c.l.b16 %v8432
    %v8467 = vunpack.c.h.b16 %v8432
    %v8468 = vunpack.c.l.b16 %v8433
    %v8469 = vunpack.c.h.b16 %v8433
    %v8470 = vunpack.c.l.b16 %v8434
    %v8471 = vunpack.c.h.b16 %v8434
    %v8472 = vunpack.c.l.b16 %v8435
    %v8473 = vunpack.c.h.b16 %v8435
    %v8474 = vunpack.c.l.b16 %v8436
    %v8475 = vunpack.c.h.b16 %v8436
    %v8476 = vunpack.c.l.b16 %v8437
    %v8477 = vunpack.c.h.b16 %v8437
    %v8478 = vunpack.c.l.b16 %v8438
    %v8479 = vunpack.c.h.b16 %v8438
    %v8480 = vunpack.c.l.b16 %v8439
    %v8481 = vunpack.c.h.b16 %v8439
    %v8482 = vunpack.c.l.b16 %v8440
    %v8483 = vunpack.c.h.b16 %v8440
    %v8484 = vunpack.c.l.b16 %v8441
    %v8485 = vunpack.c.h.b16 %v8441
    %v8486 = vunpack.c.l.b16 %v8442
    %v8487 = vunpack.c.h.b16 %v8442
    %v8488 = vunpack.c.l.b16 %v8443
    %v8489 = vunpack.c.h.b16 %v8443
    %v8490 = vunpack.c.l.b16 %v8444
    %v8491 = vunpack.c.h.b16 %v8444
    %v8492 = vunpack.c.l.b16 %v8445
    %v8493 = vunpack.c.h.b16 %v8445
    %v8494 = vpack.c.b16 %v8464, %v8462
    %v8495 = vpack.c.b16 %v8465, %v8463
    %v8496 = vpack.c.b16 %v8468, %v8466
    %v8497 = vpack.c.b16 %v8469, %v8467
    %v8498 = vpack.c.b16 %v8472, %v8470
    %v8499 = vpack.c.b16 %v8473, %v8471
    %v8500 = vpack.c.b16 %v8476, %v8474
    %v8501 = vpack.c.b16 %v8477, %v8475
    %v8502 = vpack.c.b16 %v8480, %v8478
    %v8503 = vpack.c.b16 %v8481, %v8479
    %v8504 = vpack.c.b16 %v8484, %v8482
    %v8505 = vpack.c.b16 %v8485, %v8483
    %v8506 = vpack.c.b16 %v8488, %v8486
    %v8507 = vpack.c.b16 %v8489, %v8487
    %v8508 = vpack.c.b16 %v8492, %v8490
    %v8509 = vpack.c.b16 %v8493, %v8491
    %8526 = vmatpush.bf16.msra.mxu0 %v8508
    %8527 = vmatpush.bf16.msra.mxu0 %v8506
    %8528 = vmatpush.bf16.msra.mxu0 %v8504
    %8529 = vmatpush.bf16.msra.mxu0 %v8502
    %8530 = vmatpush.bf16.msra.mxu0 %v8500
    %8531 = vmatpush.bf16.msra.mxu0 %v8498
    %8532 = vmatpush.bf16.msra.mxu0 %v8496
    %8533 = vmatpush.bf16.msra.mxu0 %v8494
    %8534 = vmatmul.bf16.gmra.mxu0 %v8429
    %v8535 = vpop.f32.mrf.mxu0
    %v8536 = vadd.f32 0.0, %v8535
    %v8537 = vpop.f32.mrf.mxu0
    %8538 = vdwg.mxu0
    %8539 = vmatpush.bf16.msra.mxu0 %v8509
    %8540 = vmatpush.bf16.msra.mxu0 %v8507
    %8541 = vmatpush.bf16.msra.mxu0 %v8505
    %8542 = vmatpush.bf16.msra.mxu0 %v8503
    %8543 = vmatpush.bf16.msra.mxu0 %v8501
    %8544 = vmatpush.bf16.msra.mxu0 %v8499
    %8545 = vmatpush.bf16.msra.mxu0 %v8497
    %8546 = vmatpush.bf16.msra.mxu0 %v8495
    %8547 = vmatmul.bf16.gmra.mxu0 %v8429
    %v8548 = vpop.f32.mrf.mxu0
    %v8549 = vadd.f32 0.0, %v8548
    %v8550 = vpop.f32.mrf.mxu0
    %8551 = vdwg.mxu0
    %v8552 = vadd.f32 %v8425, %v8536
    %v8553 = vadd.f32 %v8426, %v8549
    %s8554 = scalar_lea.vmem [#allocation8], 6
    %v8555 = vld [vmem:[%s8554] ss:$16 sm:$0x3]
    %v8556 = vpack.c.bf16 %v8555, %v8555
    %v8557 = vld [vmem:[%s7 + $0x280] sm:$0xff]
    %v8558 = vld [vmem:[%s7 + $0x288] sm:$0xff]
    %v8559 = vld [vmem:[%s7 + $0x290] sm:$0xff]
    %v8560 = vld [vmem:[%s7 + $0x298] sm:$0xff]
    %v8561 = vld [vmem:[%s7 + $0x2a0] sm:$0xff]
    %v8562 = vld [vmem:[%s7 + $0x2a8] sm:$0xff]
    %v8563 = vld [vmem:[%s7 + $0x2b0] sm:$0xff]
    %v8564 = vld [vmem:[%s7 + $0x2b8] sm:$0xff]
    %v8565 = vld [vmem:[%s7 + $0x2c0] sm:$0xff]
    %v8566 = vld [vmem:[%s7 + $0x2c8] sm:$0xff]
    %v8567 = vld [vmem:[%s7 + $0x2d0] sm:$0xff]
    %v8568 = vld [vmem:[%s7 + $0x2d8] sm:$0xff]
    %v8569 = vld [vmem:[%s7 + $0x2e0] sm:$0xff]
    %v8570 = vld [vmem:[%s7 + $0x2e8] sm:$0xff]
    %v8571 = vld [vmem:[%s7 + $0x2f0] sm:$0xff]
    %v8572 = vld [vmem:[%s7 + $0x2f8] sm:$0xff]
    %v8589 = vunpack.c.l.b16 %v8557
    %v8590 = vunpack.c.h.b16 %v8557
    %v8591 = vunpack.c.l.b16 %v8558
    %v8592 = vunpack.c.h.b16 %v8558
    %v8593 = vunpack.c.l.b16 %v8559
    %v8594 = vunpack.c.h.b16 %v8559
    %v8595 = vunpack.c.l.b16 %v8560
    %v8596 = vunpack.c.h.b16 %v8560
    %v8597 = vunpack.c.l.b16 %v8561
    %v8598 = vunpack.c.h.b16 %v8561
    %v8599 = vunpack.c.l.b16 %v8562
    %v8600 = vunpack.c.h.b16 %v8562
    %v8601 = vunpack.c.l.b16 %v8563
    %v8602 = vunpack.c.h.b16 %v8563
    %v8603 = vunpack.c.l.b16 %v8564
    %v8604 = vunpack.c.h.b16 %v8564
    %v8605 = vunpack.c.l.b16 %v8565
    %v8606 = vunpack.c.h.b16 %v8565
    %v8607 = vunpack.c.l.b16 %v8566
    %v8608 = vunpack.c.h.b16 %v8566
    %v8609 = vunpack.c.l.b16 %v8567
    %v8610 = vunpack.c.h.b16 %v8567
    %v8611 = vunpack.c.l.b16 %v8568
    %v8612 = vunpack.c.h.b16 %v8568
    %v8613 = vunpack.c.l.b16 %v8569
    %v8614 = vunpack.c.h.b16 %v8569
    %v8615 = vunpack.c.l.b16 %v8570
    %v8616 = vunpack.c.h.b16 %v8570
    %v8617 = vunpack.c.l.b16 %v8571
    %v8618 = vunpack.c.h.b16 %v8571
    %v8619 = vunpack.c.l.b16 %v8572
    %v8620 = vunpack.c.h.b16 %v8572
    %v8621 = vpack.c.b16 %v8591, %v8589
    %v8622 = vpack.c.b16 %v8592, %v8590
    %v8623 = vpack.c.b16 %v8595, %v8593
    %v8624 = vpack.c.b16 %v8596, %v8594
    %v8625 = vpack.c.b16 %v8599, %v8597
    %v8626 = vpack.c.b16 %v8600, %v8598
    %v8627 = vpack.c.b16 %v8603, %v8601
    %v8628 = vpack.c.b16 %v8604, %v8602
    %v8629 = vpack.c.b16 %v8607, %v8605
    %v8630 = vpack.c.b16 %v8608, %v8606
    %v8631 = vpack.c.b16 %v8611, %v8609
    %v8632 = vpack.c.b16 %v8612, %v8610
    %v8633 = vpack.c.b16 %v8615, %v8613
    %v8634 = vpack.c.b16 %v8616, %v8614
    %v8635 = vpack.c.b16 %v8619, %v8617
    %v8636 = vpack.c.b16 %v8620, %v8618
    %8653 = vmatpush.bf16.msra.mxu0 %v8635
    %8654 = vmatpush.bf16.msra.mxu0 %v8633
    %8655 = vmatpush.bf16.msra.mxu0 %v8631
    %8656 = vmatpush.bf16.msra.mxu0 %v8629
    %8657 = vmatpush.bf16.msra.mxu0 %v8627
    %8658 = vmatpush.bf16.msra.mxu0 %v8625
    %8659 = vmatpush.bf16.msra.mxu0 %v8623
    %8660 = vmatpush.bf16.msra.mxu0 %v8621
    %8661 = vmatmul.bf16.gmra.mxu0 %v8556
    %v8662 = vpop.f32.mrf.mxu0
    %v8663 = vadd.f32 0.0, %v8662
    %v8664 = vpop.f32.mrf.mxu0
    %8665 = vdwg.mxu0
    %8666 = vmatpush.bf16.msra.mxu0 %v8636
    %8667 = vmatpush.bf16.msra.mxu0 %v8634
    %8668 = vmatpush.bf16.msra.mxu0 %v8632
    %8669 = vmatpush.bf16.msra.mxu0 %v8630
    %8670 = vmatpush.bf16.msra.mxu0 %v8628
    %8671 = vmatpush.bf16.msra.mxu0 %v8626
    %8672 = vmatpush.bf16.msra.mxu0 %v8624
    %8673 = vmatpush.bf16.msra.mxu0 %v8622
    %8674 = vmatmul.bf16.gmra.mxu0 %v8556
    %v8675 = vpop.f32.mrf.mxu0
    %v8676 = vadd.f32 0.0, %v8675
    %v8677 = vpop.f32.mrf.mxu0
    %8678 = vdwg.mxu0
    %v8679 = vadd.f32 %v8552, %v8663
    %v8680 = vadd.f32 %v8553, %v8676
    %s8681 = scalar_lea.vmem [#allocation8], 8
    %v8682 = vld [vmem:[%s8681] ss:$16 sm:$0x3]
    %v8683 = vpack.c.bf16 %v8682, %v8682
    %v8684 = vld [vmem:[%s7 + $0x300] sm:$0xff]
    %v8685 = vld [vmem:[%s7 + $0x308] sm:$0xff]
    %v8686 = vld [vmem:[%s7 + $0x310] sm:$0xff]
    %v8687 = vld [vmem:[%s7 + $0x318] sm:$0xff]
    %v8688 = vld [vmem:[%s7 + $0x320] sm:$0xff]
    %v8689 = vld [vmem:[%s7 + $0x328] sm:$0xff]
    %v8690 = vld [vmem:[%s7 + $0x330] sm:$0xff]
    %v8691 = vld [vmem:[%s7 + $0x338] sm:$0xff]
    %v8692 = vld [vmem:[%s7 + $0x340] sm:$0xff]
    %v8693 = vld [vmem:[%s7 + $0x348] sm:$0xff]
    %v8694 = vld [vmem:[%s7 + $0x350] sm:$0xff]
    %v8695 = vld [vmem:[%s7 + $0x358] sm:$0xff]
    %v8696 = vld [vmem:[%s7 + $0x360] sm:$0xff]
    %v8697 = vld [vmem:[%s7 + $0x368] sm:$0xff]
    %v8698 = vld [vmem:[%s7 + $0x370] sm:$0xff]
    %v8699 = vld [vmem:[%s7 + $0x378] sm:$0xff]
    %v8716 = vunpack.c.l.b16 %v8684
    %v8717 = vunpack.c.h.b16 %v8684
    %v8718 = vunpack.c.l.b16 %v8685
    %v8719 = vunpack.c.h.b16 %v8685
    %v8720 = vunpack.c.l.b16 %v8686
    %v8721 = vunpack.c.h.b16 %v8686
    %v8722 = vunpack.c.l.b16 %v8687
    %v8723 = vunpack.c.h.b16 %v8687
    %v8724 = vunpack.c.l.b16 %v8688
    %v8725 = vunpack.c.h.b16 %v8688
    %v8726 = vunpack.c.l.b16 %v8689
    %v8727 = vunpack.c.h.b16 %v8689
    %v8728 = vunpack.c.l.b16 %v8690
    %v8729 = vunpack.c.h.b16 %v8690
    %v8730 = vunpack.c.l.b16 %v8691
    %v8731 = vunpack.c.h.b16 %v8691
    %v8732 = vunpack.c.l.b16 %v8692
    %v8733 = vunpack.c.h.b16 %v8692
    %v8734 = vunpack.c.l.b16 %v8693
    %v8735 = vunpack.c.h.b16 %v8693
    %v8736 = vunpack.c.l.b16 %v8694
    %v8737 = vunpack.c.h.b16 %v8694
    %v8738 = vunpack.c.l.b16 %v8695
    %v8739 = vunpack.c.h.b16 %v8695
    %v8740 = vunpack.c.l.b16 %v8696
    %v8741 = vunpack.c.h.b16 %v8696
    %v8742 = vunpack.c.l.b16 %v8697
    %v8743 = vunpack.c.h.b16 %v8697
    %v8744 = vunpack.c.l.b16 %v8698
    %v8745 = vunpack.c.h.b16 %v8698
    %v8746 = vunpack.c.l.b16 %v8699
    %v8747 = vunpack.c.h.b16 %v8699
    %v8748 = vpack.c.b16 %v8718, %v8716
    %v8749 = vpack.c.b16 %v8719, %v8717
    %v8750 = vpack.c.b16 %v8722, %v8720
    %v8751 = vpack.c.b16 %v8723, %v8721
    %v8752 = vpack.c.b16 %v8726, %v8724
    %v8753 = vpack.c.b16 %v8727, %v8725
    %v8754 = vpack.c.b16 %v8730, %v8728
    %v8755 = vpack.c.b16 %v8731, %v8729
    %v8756 = vpack.c.b16 %v8734, %v8732
    %v8757 = vpack.c.b16 %v8735, %v8733
    %v8758 = vpack.c.b16 %v8738, %v8736
    %v8759 = vpack.c.b16 %v8739, %v8737
    %v8760 = vpack.c.b16 %v8742, %v8740
    %v8761 = vpack.c.b16 %v8743, %v8741
    %v8762 = vpack.c.b16 %v8746, %v8744
    %v8763 = vpack.c.b16 %v8747, %v8745
    %8780 = vmatpush.bf16.msra.mxu0 %v8762
    %8781 = vmatpush.bf16.msra.mxu0 %v8760
    %8782 = vmatpush.bf16.msra.mxu0 %v8758
    %8783 = vmatpush.bf16.msra.mxu0 %v8756
    %8784 = vmatpush.bf16.msra.mxu0 %v8754
    %8785 = vmatpush.bf16.msra.mxu0 %v8752
    %8786 = vmatpush.bf16.msra.mxu0 %v8750
    %8787 = vmatpush.bf16.msra.mxu0 %v8748
    %8788 = vmatmul.bf16.gmra.mxu0 %v8683
    %v8789 = vpop.f32.mrf.mxu0
    %v8790 = vadd.f32 0.0, %v8789
    %v8791 = vpop.f32.mrf.mxu0
    %8792 = vdwg.mxu0
    %8793 = vmatpush.bf16.msra.mxu0 %v8763
    %8794 = vmatpush.bf16.msra.mxu0 %v8761
    %8795 = vmatpush.bf16.msra.mxu0 %v8759
    %8796 = vmatpush.bf16.msra.mxu0 %v8757
    %8797 = vmatpush.bf16.msra.mxu0 %v8755
    %8798 = vmatpush.bf16.msra.mxu0 %v8753
    %8799 = vmatpush.bf16.msra.mxu0 %v8751
    %8800 = vmatpush.bf16.msra.mxu0 %v8749
    %8801 = vmatmul.bf16.gmra.mxu0 %v8683
    %v8802 = vpop.f32.mrf.mxu0
    %v8803 = vadd.f32 0.0, %v8802
    %v8804 = vpop.f32.mrf.mxu0
    %8805 = vdwg.mxu0
    %v8806 = vadd.f32 %v8679, %v8790
    %v8807 = vadd.f32 %v8680, %v8803
    %s8808 = scalar_lea.vmem [#allocation8], 9
    %v8809 = vld [vmem:[%s8808] ss:$16 sm:$0x3]
    %v8810 = vpack.c.bf16 %v8809, %v8809
    %v8811 = vld [vmem:[%s7 + $0x380] sm:$0xff]
    %v8812 = vld [vmem:[%s7 + $0x388] sm:$0xff]
    %v8813 = vld [vmem:[%s7 + $0x390] sm:$0xff]
    %v8814 = vld [vmem:[%s7 + $0x398] sm:$0xff]
    %v8815 = vld [vmem:[%s7 + $0x3a0] sm:$0xff]
    %v8816 = vld [vmem:[%s7 + $0x3a8] sm:$0xff]
    %v8817 = vld [vmem:[%s7 + $0x3b0] sm:$0xff]
    %v8818 = vld [vmem:[%s7 + $0x3b8] sm:$0xff]
    %v8819 = vld [vmem:[%s7 + $0x3c0] sm:$0xff]
    %v8820 = vld [vmem:[%s7 + $0x3c8] sm:$0xff]
    %v8821 = vld [vmem:[%s7 + $0x3d0] sm:$0xff]
    %v8822 = vld [vmem:[%s7 + $0x3d8] sm:$0xff]
    %v8823 = vld [vmem:[%s7 + $0x3e0] sm:$0xff]
    %v8824 = vld [vmem:[%s7 + $0x3e8] sm:$0xff]
    %v8825 = vld [vmem:[%s7 + $0x3f0] sm:$0xff]
    %v8826 = vld [vmem:[%s7 + $0x3f8] sm:$0xff]
    %v8843 = vunpack.c.l.b16 %v8811
    %v8844 = vunpack.c.h.b16 %v8811
    %v8845 = vunpack.c.l.b16 %v8812
    %v8846 = vunpack.c.h.b16 %v8812
    %v8847 = vunpack.c.l.b16 %v8813
    %v8848 = vunpack.c.h.b16 %v8813
    %v8849 = vunpack.c.l.b16 %v8814
    %v8850 = vunpack.c.h.b16 %v8814
    %v8851 = vunpack.c.l.b16 %v8815
    %v8852 = vunpack.c.h.b16 %v8815
    %v8853 = vunpack.c.l.b16 %v8816
    %v8854 = vunpack.c.h.b16 %v8816
    %v8855 = vunpack.c.l.b16 %v8817
    %v8856 = vunpack.c.h.b16 %v8817
    %v8857 = vunpack.c.l.b16 %v8818
    %v8858 = vunpack.c.h.b16 %v8818
    %v8859 = vunpack.c.l.b16 %v8819
    %v8860 = vunpack.c.h.b16 %v8819
    %v8861 = vunpack.c.l.b16 %v8820
    %v8862 = vunpack.c.h.b16 %v8820
    %v8863 = vunpack.c.l.b16 %v8821
    %v8864 = vunpack.c.h.b16 %v8821
    %v8865 = vunpack.c.l.b16 %v8822
    %v8866 = vunpack.c.h.b16 %v8822
    %v8867 = vunpack.c.l.b16 %v8823
    %v8868 = vunpack.c.h.b16 %v8823
    %v8869 = vunpack.c.l.b16 %v8824
    %v8870 = vunpack.c.h.b16 %v8824
    %v8871 = vunpack.c.l.b16 %v8825
    %v8872 = vunpack.c.h.b16 %v8825
    %v8873 = vunpack.c.l.b16 %v8826
    %v8874 = vunpack.c.h.b16 %v8826
    %v8875 = vpack.c.b16 %v8845, %v8843
    %v8876 = vpack.c.b16 %v8846, %v8844
    %v8877 = vpack.c.b16 %v8849, %v8847
    %v8878 = vpack.c.b16 %v8850, %v8848
    %v8879 = vpack.c.b16 %v8853, %v8851
    %v8880 = vpack.c.b16 %v8854, %v8852
    %v8881 = vpack.c.b16 %v8857, %v8855
    %v8882 = vpack.c.b16 %v8858, %v8856
    %v8883 = vpack.c.b16 %v8861, %v8859
    %v8884 = vpack.c.b16 %v8862, %v8860
    %v8885 = vpack.c.b16 %v8865, %v8863
    %v8886 = vpack.c.b16 %v8866, %v8864
    %v8887 = vpack.c.b16 %v8869, %v8867
    %v8888 = vpack.c.b16 %v8870, %v8868
    %v8889 = vpack.c.b16 %v8873, %v8871
    %v8890 = vpack.c.b16 %v8874, %v8872
    %8907 = vmatpush.bf16.msra.mxu0 %v8889
    %8908 = vmatpush.bf16.msra.mxu0 %v8887
    %8909 = vmatpush.bf16.msra.mxu0 %v8885
    %8910 = vmatpush.bf16.msra.mxu0 %v8883
    %8911 = vmatpush.bf16.msra.mxu0 %v8881
    %8912 = vmatpush.bf16.msra.mxu0 %v8879
    %8913 = vmatpush.bf16.msra.mxu0 %v8877
    %8914 = vmatpush.bf16.msra.mxu0 %v8875
    %8915 = vmatmul.bf16.gmra.mxu0 %v8810
    %v8916 = vpop.f32.mrf.mxu0
    %v8917 = vadd.f32 0.0, %v8916
    %v8918 = vpop.f32.mrf.mxu0
    %8919 = vdwg.mxu0
    %8920 = vmatpush.bf16.msra.mxu0 %v8890
    %8921 = vmatpush.bf16.msra.mxu0 %v8888
    %8922 = vmatpush.bf16.msra.mxu0 %v8886
    %8923 = vmatpush.bf16.msra.mxu0 %v8884
    %8924 = vmatpush.bf16.msra.mxu0 %v8882
    %8925 = vmatpush.bf16.msra.mxu0 %v8880
    %8926 = vmatpush.bf16.msra.mxu0 %v8878
    %8927 = vmatpush.bf16.msra.mxu0 %v8876
    %8928 = vmatmul.bf16.gmra.mxu0 %v8810
    %v8929 = vpop.f32.mrf.mxu0
    %v8930 = vadd.f32 0.0, %v8929
    %v8931 = vpop.f32.mrf.mxu0
    %8932 = vdwg.mxu0
    %v8933 = vadd.f32 %v8806, %v8917
    %v8934 = vadd.f32 %v8807, %v8930
    %s8935 = scalar_lea.vmem [#allocation8], 10
    %v8936 = vld [vmem:[%s8935] ss:$16 sm:$0x3]
    %v8937 = vpack.c.bf16 %v8936, %v8936
    %v8938 = vld [vmem:[%s7 + $0x400] sm:$0xff]
    %v8939 = vld [vmem:[%s7 + $0x408] sm:$0xff]
    %v8940 = vld [vmem:[%s7 + $0x410] sm:$0xff]
    %v8941 = vld [vmem:[%s7 + $0x418] sm:$0xff]
    %v8942 = vld [vmem:[%s7 + $0x420] sm:$0xff]
    %v8943 = vld [vmem:[%s7 + $0x428] sm:$0xff]
    %v8944 = vld [vmem:[%s7 + $0x430] sm:$0xff]
    %v8945 = vld [vmem:[%s7 + $0x438] sm:$0xff]
    %v8946 = vld [vmem:[%s7 + $0x440] sm:$0xff]
    %v8947 = vld [vmem:[%s7 + $0x448] sm:$0xff]
    %v8948 = vld [vmem:[%s7 + $0x450] sm:$0xff]
    %v8949 = vld [vmem:[%s7 + $0x458] sm:$0xff]
    %v8950 = vld [vmem:[%s7 + $0x460] sm:$0xff]
    %v8951 = vld [vmem:[%s7 + $0x468] sm:$0xff]
    %v8952 = vld [vmem:[%s7 + $0x470] sm:$0xff]
    %v8953 = vld [vmem:[%s7 + $0x478] sm:$0xff]
    %v8970 = vunpack.c.l.b16 %v8938
    %v8971 = vunpack.c.h.b16 %v8938
    %v8972 = vunpack.c.l.b16 %v8939
    %v8973 = vunpack.c.h.b16 %v8939
    %v8974 = vunpack.c.l.b16 %v8940
    %v8975 = vunpack.c.h.b16 %v8940
    %v8976 = vunpack.c.l.b16 %v8941
    %v8977 = vunpack.c.h.b16 %v8941
    %v8978 = vunpack.c.l.b16 %v8942
    %v8979 = vunpack.c.h.b16 %v8942
    %v8980 = vunpack.c.l.b16 %v8943
    %v8981 = vunpack.c.h.b16 %v8943
    %v8982 = vunpack.c.l.b16 %v8944
    %v8983 = vunpack.c.h.b16 %v8944
    %v8984 = vunpack.c.l.b16 %v8945
    %v8985 = vunpack.c.h.b16 %v8945
    %v8986 = vunpack.c.l.b16 %v8946
    %v8987 = vunpack.c.h.b16 %v8946
    %v8988 = vunpack.c.l.b16 %v8947
    %v8989 = vunpack.c.h.b16 %v8947
    %v8990 = vunpack.c.l.b16 %v8948
    %v8991 = vunpack.c.h.b16 %v8948
    %v8992 = vunpack.c.l.b16 %v8949
    %v8993 = vunpack.c.h.b16 %v8949
    %v8994 = vunpack.c.l.b16 %v8950
    %v8995 = vunpack.c.h.b16 %v8950
    %v8996 = vunpack.c.l.b16 %v8951
    %v8997 = vunpack.c.h.b16 %v8951
    %v8998 = vunpack.c.l.b16 %v8952
    %v8999 = vunpack.c.h.b16 %v8952
    %v9000 = vunpack.c.l.b16 %v8953
    %v9001 = vunpack.c.h.b16 %v8953
    %v9002 = vpack.c.b16 %v8972, %v8970
    %v9003 = vpack.c.b16 %v8973, %v8971
    %v9004 = vpack.c.b16 %v8976, %v8974
    %v9005 = vpack.c.b16 %v8977, %v8975
    %v9006 = vpack.c.b16 %v8980, %v8978
    %v9007 = vpack.c.b16 %v8981, %v8979
    %v9008 = vpack.c.b16 %v8984, %v8982
    %v9009 = vpack.c.b16 %v8985, %v8983
    %v9010 = vpack.c.b16 %v8988, %v8986
    %v9011 = vpack.c.b16 %v8989, %v8987
    %v9012 = vpack.c.b16 %v8992, %v8990
    %v9013 = vpack.c.b16 %v8993, %v8991
    %v9014 = vpack.c.b16 %v8996, %v8994
    %v9015 = vpack.c.b16 %v8997, %v8995
    %v9016 = vpack.c.b16 %v9000, %v8998
    %v9017 = vpack.c.b16 %v9001, %v8999
    %9034 = vmatpush.bf16.msra.mxu0 %v9016
    %9035 = vmatpush.bf16.msra.mxu0 %v9014
    %9036 = vmatpush.bf16.msra.mxu0 %v9012
    %9037 = vmatpush.bf16.msra.mxu0 %v9010
    %9038 = vmatpush.bf16.msra.mxu0 %v9008
    %9039 = vmatpush.bf16.msra.mxu0 %v9006
    %9040 = vmatpush.bf16.msra.mxu0 %v9004
    %9041 = vmatpush.bf16.msra.mxu0 %v9002
    %9042 = vmatmul.bf16.gmra.mxu0 %v8937
    %v9043 = vpop.f32.mrf.mxu0
    %v9044 = vadd.f32 0.0, %v9043
    %v9045 = vpop.f32.mrf.mxu0
    %9046 = vdwg.mxu0
    %9047 = vmatpush.bf16.msra.mxu0 %v9017
    %9048 = vmatpush.bf16.msra.mxu0 %v9015
    %9049 = vmatpush.bf16.msra.mxu0 %v9013
    %9050 = vmatpush.bf16.msra.mxu0 %v9011
    %9051 = vmatpush.bf16.msra.mxu0 %v9009
    %9052 = vmatpush.bf16.msra.mxu0 %v9007
    %9053 = vmatpush.bf16.msra.mxu0 %v9005
    %9054 = vmatpush.bf16.msra.mxu0 %v9003
    %9055 = vmatmul.bf16.gmra.mxu0 %v8937
    %v9056 = vpop.f32.mrf.mxu0
    %v9057 = vadd.f32 0.0, %v9056
    %v9058 = vpop.f32.mrf.mxu0
    %9059 = vdwg.mxu0
    %v9060 = vadd.f32 %v8933, %v9044
    %v9061 = vadd.f32 %v8934, %v9057
    %v9062 = vld [vmem:[%s8] sm:$0x3]
    %v9064 = vperm.slane %v9062, 0
    %v9065 = vperm.slane %v9062, 1
    %v9068 = vadd.f32 %v9060, %v9064
    %v9069 = vadd.f32 %v9061, %v9065
    %v9070 = vmax.f32 %v9068, 0.0
    %v9071 = vmax.f32 %v9069, 0.0
    %v9072 = vpack.c.bf16 %v9070, %v9070
    %v9073 = vpack.c.bf16 %v9071, %v9071
    %v9074 = vld [vmem:[%s9] sm:$0xf]
    %v9075 = vld [vmem:[%s9 + $0x4] sm:$0xf]
    %v9076 = vld [vmem:[%s9 + $0x8] sm:$0xf]
    %v9077 = vld [vmem:[%s9 + $0xc] sm:$0xf]
    %v9078 = vld [vmem:[%s9 + $0x10] sm:$0xf]
    %v9079 = vld [vmem:[%s9 + $0x14] sm:$0xf]
    %v9080 = vld [vmem:[%s9 + $0x18] sm:$0xf]
    %v9081 = vld [vmem:[%s9 + $0x1c] sm:$0xf]
    %v9082 = vld [vmem:[%s9 + $0x20] sm:$0xf]
    %v9083 = vld [vmem:[%s9 + $0x24] sm:$0xf]
    %v9084 = vld [vmem:[%s9 + $0x28] sm:$0xf]
    %v9085 = vld [vmem:[%s9 + $0x2c] sm:$0xf]
    %v9086 = vld [vmem:[%s9 + $0x30] sm:$0xf]
    %v9087 = vld [vmem:[%s9 + $0x34] sm:$0xf]
    %v9088 = vld [vmem:[%s9 + $0x38] sm:$0xf]
    %v9089 = vld [vmem:[%s9 + $0x3c] sm:$0xf]
    %v9090 = vld [vmem:[#allocation9] sm:$0x1]
    %v9092 = vperm.slane %v9090, 0
    %v9110 = vunpack.c.l.b16 %v9074
    %v9111 = vunpack.c.l.b16 %v9075
    %v9112 = vunpack.c.l.b16 %v9076
    %v9113 = vunpack.c.l.b16 %v9077
    %v9114 = vunpack.c.l.b16 %v9078
    %v9115 = vunpack.c.l.b16 %v9079
    %v9116 = vunpack.c.l.b16 %v9080
    %v9117 = vunpack.c.l.b16 %v9081
    %v9118 = vunpack.c.l.b16 %v9082
    %v9119 = vunpack.c.l.b16 %v9083
    %v9120 = vunpack.c.l.b16 %v9084
    %v9121 = vunpack.c.l.b16 %v9085
    %v9122 = vunpack.c.l.b16 %v9086
    %v9123 = vunpack.c.l.b16 %v9087
    %v9124 = vunpack.c.l.b16 %v9088
    %v9125 = vunpack.c.l.b16 %v9089
    %v9126 = vpack.c.b16 %v9111, %v9110
    %v9127 = vpack.c.b16 %v9113, %v9112
    %v9128 = vpack.c.b16 %v9115, %v9114
    %v9129 = vpack.c.b16 %v9117, %v9116
    %v9130 = vpack.c.b16 %v9119, %v9118
    %v9131 = vpack.c.b16 %v9121, %v9120
    %v9132 = vpack.c.b16 %v9123, %v9122
    %v9133 = vpack.c.b16 %v9125, %v9124
    %9142 = vmatpush.bf16.msra.mxu0 %v9133
    %9143 = vmatpush.bf16.msra.mxu0 %v9132
    %9144 = vmatpush.bf16.msra.mxu0 %v9131
    %9145 = vmatpush.bf16.msra.mxu0 %v9130
    %9146 = vmatpush.bf16.msra.mxu0 %v9129
    %9147 = vmatpush.bf16.msra.mxu0 %v9128
    %9148 = vmatpush.bf16.msra.mxu0 %v9127
    %9149 = vmatpush.bf16.msra.mxu0 %v9126
    %9150 = vmatmul.bf16.gmra.mxu0 %v9072
    %v9151 = vpop.f32.mrf.mxu0
    %v9152 = vadd.f32 %v9092, %v9151
    %v9153 = vpop.f32.mrf.mxu0
    %9154 = vdwg.mxu0
    %v9155 = vsub.f32 0.0, %v9152
    %v9156 = vmul.f32 %v9155, 1.442695
    %v9157 = vpow.pop %v9156
    %v9158 = vadd.f32 %v9157, 1.0
    %v9159 = vrcp.pop %v9158
    %v9160 = vmul.f32 %v9158, %v9159
    %v9161 = vsub.f32 1.0, %v9160
    %v9162 = vmul.f32 %v9159, %v9161
    %v9163 = vadd.f32 %v9159, %v9162
    %vm9164 = vweird.f32 %v9158
    %vm9165 = vweird.f32 %v9159
    %vm9166 = vmor %vm9164, %vm9165
    %v9167 = vsel %vm9166, %v9159, %v9163
    %v9168 = vand.u32 2147483647, %v9158
    %vm9169 = vcmp.eq.f32.partialorder %v9168, 8.507059e+37
    %v9170 = vand.u32 %v9158, 2147483648
    %v9171 = vor.u32 1.1754944e-38, %v9170
    %v9172 = vsel %vm9169, %v9171, %v9167
    %v9173 = vmul.f32 1.0, %v9172
    %vm9174 = vcmask 1024
    %9175 = vst.msk [vmem:[%s13] sm:$0x3] %vm9174, %v9173
    %v9176 = vld [vmem:[%s11] sm:$0xf]
    %v9177 = vld [vmem:[%s11 + $0x4] sm:$0xf]
    %v9178 = vld [vmem:[%s11 + $0x8] sm:$0xf]
    %v9179 = vld [vmem:[%s11 + $0xc] sm:$0xf]
    %v9180 = vld [vmem:[%s11 + $0x10] sm:$0xf]
    %v9181 = vld [vmem:[%s11 + $0x14] sm:$0xf]
    %v9182 = vld [vmem:[%s11 + $0x18] sm:$0xf]
    %v9183 = vld [vmem:[%s11 + $0x1c] sm:$0xf]
    %v9184 = vld [vmem:[%s11 + $0x20] sm:$0xf]
    %v9185 = vld [vmem:[%s11 + $0x24] sm:$0xf]
    %v9186 = vld [vmem:[%s11 + $0x28] sm:$0xf]
    %v9187 = vld [vmem:[%s11 + $0x2c] sm:$0xf]
    %v9188 = vld [vmem:[%s11 + $0x30] sm:$0xf]
    %v9189 = vld [vmem:[%s11 + $0x34] sm:$0xf]
    %v9190 = vld [vmem:[%s11 + $0x38] sm:$0xf]
    %v9191 = vld [vmem:[%s11 + $0x3c] sm:$0xf]
    %v9192 = vld [vmem:[%s12] sm:$0x1]
    %v9194 = vperm.slane %v9192, 0
    %v9212 = vunpack.c.l.b16 %v9176
    %v9213 = vunpack.c.l.b16 %v9177
    %v9214 = vunpack.c.l.b16 %v9178
    %v9215 = vunpack.c.l.b16 %v9179
    %v9216 = vunpack.c.l.b16 %v9180
    %v9217 = vunpack.c.l.b16 %v9181
    %v9218 = vunpack.c.l.b16 %v9182
    %v9219 = vunpack.c.l.b16 %v9183
    %v9220 = vunpack.c.l.b16 %v9184
    %v9221 = vunpack.c.l.b16 %v9185
    %v9222 = vunpack.c.l.b16 %v9186
    %v9223 = vunpack.c.l.b16 %v9187
    %v9224 = vunpack.c.l.b16 %v9188
    %v9225 = vunpack.c.l.b16 %v9189
    %v9226 = vunpack.c.l.b16 %v9190
    %v9227 = vunpack.c.l.b16 %v9191
    %v9228 = vpack.c.b16 %v9213, %v9212
    %v9229 = vpack.c.b16 %v9215, %v9214
    %v9230 = vpack.c.b16 %v9217, %v9216
    %v9231 = vpack.c.b16 %v9219, %v9218
    %v9232 = vpack.c.b16 %v9221, %v9220
    %v9233 = vpack.c.b16 %v9223, %v9222
    %v9234 = vpack.c.b16 %v9225, %v9224
    %v9235 = vpack.c.b16 %v9227, %v9226
    %9244 = vmatpush.bf16.msra.mxu0 %v9235
    %9245 = vmatpush.bf16.msra.mxu0 %v9234
    %9246 = vmatpush.bf16.msra.mxu0 %v9233
    %9247 = vmatpush.bf16.msra.mxu0 %v9232
    %9248 = vmatpush.bf16.msra.mxu0 %v9231
    %9249 = vmatpush.bf16.msra.mxu0 %v9230
    %9250 = vmatpush.bf16.msra.mxu0 %v9229
    %9251 = vmatpush.bf16.msra.mxu0 %v9228
    %9252 = vmatmul.bf16.gmra.mxu0 %v9073
    %v9253 = vpop.f32.mrf.mxu0
    %v9254 = vadd.f32 %v9194, %v9253
    %v9255 = vpop.f32.mrf.mxu0
    %9256 = vdwg.mxu0
    %vm9257 = vcmask 25600
    %9258 = vst.msk [vmem:[#allocation10] sm:$0x3] %vm9257, %v9254
    // Predicated region
    $region54: #{rnet_forward.1} parent=1 // pred_check
      _
    $region55: #{rnet_forward.1} parent=1 // pred_check_branch
      %9260 = sbr.rel (0) target = $region57
    $region56: #{rnet_forward.1} parent=1 // pred_region
      _
    $region57: #{rnet_forward.1} parent=1 // pred_fallthru
      _
    // Predicated region
    $region58: #{rnet_forward.1} parent=1 // pred_check
      _
    $region59: #{rnet_forward.1} parent=1 // pred_check_branch
      %9262 = sbr.rel (0) target = $region61
    $region60: #{rnet_forward.1} parent=1 // pred_region
      %9264 = vsyncadd [#allocation11], 0
      %s9266 = sshll.u32 [#allocation10], 4
      %s9267 = int_to_ptr.vmem [resolvable:$true] %s9266
      %s9268 = sshll.u32 %s14, 4
      %s9269 = int_to_ptr.hbm [resolvable:$true] %s9268
      %9271 = dma.vmem_to_hbm [thread:$0]  %s9267, 32, %s9269, [#allocation11]
    $region61: #{rnet_forward.1} parent=1 // pred_fallthru
      _
    // Predicated region
    $region62: #{rnet_forward.1} parent=1 // pred_check
      _
    $region63: #{rnet_forward.1} parent=1 // pred_check_branch
      %9273 = sbr.rel (0) target = $region65
    $region64: #{rnet_forward.1} parent=1 // pred_region
      _
    $region65: #{rnet_forward.1} parent=1 // pred_fallthru
      _
    // Predicated region
    $region66: #{rnet_forward.1} parent=1 // pred_check
      _
    $region67: #{rnet_forward.1} parent=1 // pred_check_branch
      %9275 = sbr.rel (0) target = $region69
    $region68: #{rnet_forward.1} parent=1 // pred_region
      %9277 = dma.done [#allocation11], 32
    $region69: #{rnet_forward.1} parent=1 // pred_fallthru
      _
    %9278 = vsyncpa [#allocation11], 1

</llo_original>
